<compile_context>
chip_gen: v6e
topology: v6e:2x2x1
jax: 0.10.0
libtpu: 0.0.40
codegen_flags: <defaults>
</compile_context>

<pallas_src>
import functools
import math

import numpy as np
import jax
import jax.numpy as jnp
from jax.experimental import pallas as pl
from jax.experimental.pallas import tpu as pltpu

# ----------------------------- configuration -------------------------------
N_CLS = 3          # number of class prompts
S_TEXT = 8         # text context length
D_TEXT = 32        # text transformer width   (clip_model.ln_final.weight.shape[0])
D_VIS = 32         # visual transformer width (clip_model.visual.ln_post.weight.shape[0])
EMBED = 32         # joint embedding dim (text_projection / visual proj output)
N_HEADS = 4
N_LAYERS = 2       # scaled-down tower depth (real CLIP >=12; adapters on layers 1..N_LAYERS)
MID_DIM = 32       # adapter bottleneck
ADAPTER_SCALE = 0.001
B_IMG = 2
IMG = 16
PATCH = 8
N_PATCH = (IMG // PATCH) ** 2
S_VIS = N_PATCH + 1
DTYPE = jnp.float32
NEG_INF = -1e30    # f32-safe large negative for masking
LANES = 128        # packed-buffer lane width (lane-dense)


# ------------------------- in-kernel building blocks ------------------------

def _ld(ref, slot):
    """Load one packed slot (static row offset / extent, lane slice from col 0)."""
    r0, nr, nc = slot
    return ref[0, r0:r0 + nr, :nc]


def _layernorm(x, g, b):
    m = jnp.mean(x, axis=-1, keepdims=True)
    c = x - m
    v = jnp.mean(c * c, axis=-1, keepdims=True)
    return c * jax.lax.rsqrt(v + 1e-5) * g + b


def _l2norm(x):
    return x * jax.lax.rsqrt(jnp.sum(x * x, axis=-1, keepdims=True) + 1e-12)


def _tower_blocks(x, ref, slots, *, n_heads, n_layers, scale):
    """Unrolled transformer tower reading all weights from the packed VMEM slab.

    Attention is head-fused: K/V are stacked (head-masked) along sublanes so the
    score matrix is (N, H*N) and softmax reductions run over a lane-dense axis.
    """
    hmask = _ld(ref, slots["hmask"])   # (H*N, D)  head-lane indicator
    bias = _ld(ref, slots["bias"])     # (N, H*N)  block-diagonal (+causal) additive mask

    for i in range(n_layers):
        g = lambda name: _ld(ref, slots[name + str(i)])

        # ---------------- multi-head attention (head-fused) -----------------
        xl = _layernorm(x, g("ln1_g"), g("ln1_b"))
        q = jnp.dot(xl, g("wq"), preferred_element_type=jnp.float32) + g("bq")   # scale folded
        k = jnp.dot(xl, g("wk"), preferred_element_type=jnp.float32) + g("bk")
        v = jnp.dot(xl, g("wv"), preferred_element_type=jnp.float32) + g("bv")
        kk = jnp.concatenate([k] * n_heads, axis=0) * hmask                       # (H*N, D)
        vv = jnp.concatenate([v] * n_heads, axis=0) * hmask                       # (H*N, D)
        s = jax.lax.dot_general(q, kk, dimension_numbers=(((1,), (1,)), ((), ())),
                                preferred_element_type=jnp.float32) + bias        # (N, H*N)
        s = s - jnp.max(s, axis=-1, keepdims=True)       # global row max: shift-invariant
        p = jnp.exp(s)
        denom = jnp.dot(p, hmask, preferred_element_type=jnp.float32)             # (N, D): per-head sums
        o = jnp.dot(p, vv, preferred_element_type=jnp.float32) / denom            # per-head normalized
        x = x + jnp.dot(o, g("wout"), preferred_element_type=jnp.float32) + g("bout")

        # ------------------------------ MLP ---------------------------------
        xl = _layernorm(x, g("ln2_g"), g("ln2_b"))
        h = jnp.dot(xl, g("wfc1"), preferred_element_type=jnp.float32) + g("bfc1")
        h = h * jax.nn.sigmoid(1.702 * h)                 # CLIP QuickGELU
        y = jax.lax.dot_general(h, g("wfc2T"), dimension_numbers=(((1,), (1,)), ((), ())),
                                preferred_element_type=jnp.float32) + g("bfc2")
        x = x + y

        # --------------------------- MMA adapter ----------------------------
        # TODO(synk): adapter applied post-block; the exact mid-block injection point
        # lives in the modified CLIP ResidualAttentionBlock (not in the provided module).
        a = jnp.maximum(jnp.dot(x, g("awd"), preferred_element_type=jnp.float32) + g("abd"), 0.0)
        a = jnp.maximum(jnp.dot(a, g("asw"), preferred_element_type=jnp.float32) + g("asb"), 0.0)
        a = jnp.dot(a, g("awu"), preferred_element_type=jnp.float32) + g("abu")
        x = x + scale * a
    return x


def _text_branch(ref, slots, *, n_heads, n_layers, scale):
    x = _ld(ref, slots["x0"])                                              # (N_CLS*S, D), pos added
    x = _tower_blocks(x, ref, slots, n_heads=n_heads, n_layers=n_layers, scale=scale)
    x = _layernorm(x, _ld(ref, slots["lnf_g"]), _ld(ref, slots["lnf_b"]))
    f = jnp.dot(_ld(ref, slots["eot_sel"]), x, preferred_element_type=jnp.float32)   # EOT gather (8, D)
    f = jnp.dot(f, _ld(ref, slots["proj"]), preferred_element_type=jnp.float32)      # (8, 128) lane-padded
    return _l2norm(f)


def _visual_branch(ref, patches_ref, slots, *, n_heads, n_layers, scale):
    # conv1 (patchify matmul) + cls/pos assembly fully in-kernel (selection matmul).
    xp = jnp.dot(patches_ref[...], _ld(ref, slots["conv_w"]),
                 preferred_element_type=jnp.float32)                        # (B*P, D)
    x = jnp.dot(_ld(ref, slots["sel_patch"]), xp,
                preferred_element_type=jnp.float32) + _ld(ref, slots["base"])   # (B*S_VIS, D)
    x = _layernorm(x, _ld(ref, slots["lnpre_g"]), _ld(ref, slots["lnpre_b"]))
    x = _tower_blocks(x, ref, slots, n_heads=n_heads, n_layers=n_layers, scale=scale)
    f = jnp.dot(_ld(ref, slots["cls_sel"]), x, preferred_element_type=jnp.float32)   # cls gather (8, D)
    f = _layernorm(f, _ld(ref, slots["lnpost_g"]), _ld(ref, slots["lnpost_b"]))
    f = jnp.dot(f, _ld(ref, slots["proj"]), preferred_element_type=jnp.float32)      # (8, 128) lane-padded
    return _l2norm(f)


def _maple_fused_kernel(packed_ref, patches_ref, out_ref, *,
                        text_slots, vis_slots, n_heads, n_layers, scale):
    pid = pl.program_id(0)

    @pl.when(pid == 0)
    def _():
        out_ref[0] = _text_branch(packed_ref, text_slots, n_heads=n_heads,
                                  n_layers=n_layers, scale=scale).astype(out_ref.dtype)

    @pl.when(pid == 1)
    def _():
        out_ref[0] = _visual_branch(packed_ref, patches_ref, vis_slots, n_heads=n_heads,
                                    n_layers=n_layers, scale=scale).astype(out_ref.dtype)


# ----------------------------- forward wrapper ------------------------------

def maple_forward(image, packed, text_slots, vis_slots):
    B, C, H, W = image.shape
    p = PATCH
    patches = image.reshape(B, C, H // p, p, W // p, p)
    patches = patches.transpose(0, 2, 4, 1, 3, 5).reshape(B * (H // p) * (W // p), C * p * p)

    rows = packed.shape[1]
    kernel = functools.partial(_maple_fused_kernel, text_slots=text_slots, vis_slots=vis_slots,
                               n_heads=N_HEADS, n_layers=N_LAYERS, scale=ADAPTER_SCALE)
    out = pl.pallas_call(
        kernel,
        out_shape=jax.ShapeDtypeStruct((2, 8, LANES), DTYPE),
        grid=(2,),
        in_specs=[pl.BlockSpec((1, rows, LANES), lambda i: (i, 0, 0)),    # per-tower weight slab
                  pl.BlockSpec(patches.shape, lambda i: (0, 0))],         # image patches
        out_specs=pl.BlockSpec((1, 8, LANES), lambda i: (i, 0, 0)),       # lane-dense output
        compiler_params=pltpu.CompilerParams(dimension_semantics=("parallel",)),
    )(packed, patches)

    text_features = out[0, :N_CLS, :EMBED]
    image_features = out[1, :B, :EMBED]
    # class_name / domain_name -> cls_id / dom_id are computed but unused in the
    # PyTorch forward's returned tensors, so they are omitted here.
    return image_features, text_features


# ----------------------------- host-side packing -----------------------------

class _Packer:
    """Packs many small f32 pieces into one lane-dense (rows, 128) slab.

    Each slot starts at an 8-aligned row offset (no unaligned sublane slices in-kernel)
    and is addressed by static (row_offset, n_rows, n_cols)."""

    def __init__(self, cols=LANES):
        self.cols = cols
        self.parts = []
        self.slots = {}
        self.r = 0

    def add(self, name, arr):
        arr = np.asarray(arr, np.float32)
        if arr.ndim == 1:
            arr = arr[None, :]
        nr, nc = arr.shape
        assert nc <= self.cols, f"{name}: {nc} cols > {self.cols}"
        pad_r = (-nr) % 8
        buf = np.zeros((nr + pad_r, self.cols), np.float32)
        buf[:nr, :nc] = arr
        self.slots[name] = (self.r, nr, nc)
        self.parts.append(buf)
        self.r += nr + pad_r

    def finalize(self, total_rows):
        buf = np.concatenate(self.parts, axis=0)
        assert buf.shape[0] <= total_rows
        out = np.zeros((total_rows, self.cols), np.float32)
        out[:buf.shape[0]] = buf
        return out


def _head_lane_mask(n_seq_total, d, n_heads):
    """(H*N, D) indicator: row r (head r//N) keeps only its head's lanes."""
    dh = d // n_heads
    r = np.arange(n_heads * n_seq_total)[:, None] // n_seq_total
    c = np.arange(d)[None, :] // dh
    return (r == c).astype(np.float32)


def _bias_all(n_groups, seq, n_heads, causal):
    """(N, H*N) additive mask, block-diagonal per group (+causal), tiled across heads."""
    n = n_groups * seq
    i = np.arange(n)[:, None]
    j = np.arange(n_heads * n)[None, :] % n
    ok = (i // seq) == (j // seq)
    if causal:
        ok = ok & ((j % seq) <= (i % seq))
    return np.where(ok, 0.0, NEG_INF).astype(np.float32)


def _pack_layers(pk, blocks, modal_adapter, shared_adapter, d, n_heads):
    inv = 1.0 / math.sqrt(d // n_heads)
    for i in range(N_LAYERS):
        bp = {k: np.asarray(v, np.float32) for k, v in blocks[i].items()}
        wqkv, bqkv = bp["w_qkv"], bp["b_qkv"]
        pk.add(f"ln1_g{i}", bp["ln1_g"]);            pk.add(f"ln1_b{i}", bp["ln1_b"])
        pk.add(f"wq{i}", wqkv[:, :d] * inv);         pk.add(f"bq{i}", bqkv[:d] * inv)   # 1/sqrt(dh) folded
        pk.add(f"wk{i}", wqkv[:, d:2 * d]);          pk.add(f"bk{i}", bqkv[d:2 * d])
        pk.add(f"wv{i}", wqkv[:, 2 * d:]);           pk.add(f"bv{i}", bqkv[2 * d:])
        pk.add(f"wout{i}", bp["w_out"]);             pk.add(f"bout{i}", bp["b_out"])
        pk.add(f"ln2_g{i}", bp["ln2_g"]);            pk.add(f"ln2_b{i}", bp["ln2_b"])
        pk.add(f"wfc1{i}", bp["w_fc1"]);             pk.add(f"bfc1{i}", bp["b_fc1"])
        pk.add(f"wfc2T{i}", bp["w_fc2"].T);          pk.add(f"bfc2{i}", bp["b_fc2"])    # transposed
        ma, sa = modal_adapter[i + 1], shared_adapter[i + 1]
        pk.add(f"awd{i}", np.asarray(ma["wd"]));     pk.add(f"abd{i}", np.asarray(ma["bd"]))
        pk.add(f"asw{i}", np.asarray(sa["w"]));      pk.add(f"asb{i}", np.asarray(sa["b"]))
        pk.add(f"awu{i}", np.asarray(ma["wu"]));     pk.add(f"abu{i}", np.asarray(ma["bu"]))


def pack_params(params):
    adapters = params["adapters"]

    # ------------------------------- text tower ------------------------------
    pk_t = _Packer()
    tp = params["text"]
    tok_emb = np.asarray(params["token_embedding"], np.float32)
    pos_t = np.asarray(tp["pos_emb"], np.float32)
    # AdapterLearner.forward: text_adapter[0] is None (l_start=1) -> prompts = raw embedding.
    pk_t.add("x0", (tok_emb + pos_t[None]).reshape(N_CLS * S_TEXT, D_TEXT))
    pk_t.add("bias", _bias_all(N_CLS, S_TEXT, N_HEADS, causal=True))
    pk_t.add("hmask", _head_lane_mask(N_CLS * S_TEXT, D_TEXT, N_HEADS))
    eot = np.asarray(jnp.argmax(params["tokenized_prompts"], axis=-1))
    eot_sel = np.zeros((8, N_CLS * S_TEXT), np.float32)          # row-padded to 8
    for c in range(N_CLS):
        eot_sel[c, c * S_TEXT + int(eot[c])] = 1.0
    pk_t.add("eot_sel", eot_sel)
    pk_t.add("lnf_g", np.asarray(tp["lnf_g"]));  pk_t.add("lnf_b", np.asarray(tp["lnf_b"]))
    proj_t = np.zeros((D_TEXT, LANES), np.float32)               # lane-padded to 128 for dense output
    proj_t[:, :EMBED] = np.asarray(tp["text_proj"])
    pk_t.add("proj", proj_t)
    _pack_layers(pk_t, tp["blocks"], adapters["text"], adapters["shared"], D_TEXT, N_HEADS)

    # ------------------------------ visual tower -----------------------------
    pk_v = _Packer()
    vp = params["visual"]
    pk_v.add("conv_w", np.asarray(vp["conv_w"]))                 # (C*p*p, D) patchify weight
    sel_patch = np.zeros((B_IMG * S_VIS, B_IMG * N_PATCH), np.float32)
    cls_sel = np.zeros((8, B_IMG * S_VIS), np.float32)           # row-padded to 8
    for b in range(B_IMG):
        cls_sel[b, b * S_VIS] = 1.0
        for q in range(N_PATCH):
            sel_patch[b * S_VIS + 1 + q, b * N_PATCH + q] = 1.0
    pk_v.add("sel_patch", sel_patch)
    cls_emb = np.asarray(vp["cls_emb"], np.float32)
    pos_v = np.asarray(vp["pos_emb"], np.float32)
    base_one = np.concatenate([(cls_emb + pos_v[0])[None, :], pos_v[1:]], axis=0)
    pk_v.add("base", np.tile(base_one, (B_IMG, 1)))              # cls emb + pos emb per image
    pk_v.add("cls_sel", cls_sel)
    pk_v.add("bias", _bias_all(B_IMG, S_VIS, N_HEADS, causal=False))
    pk_v.add("hmask", _head_lane_mask(B_IMG * S_VIS, D_VIS, N_HEADS))
    pk_v.add("lnpre_g", np.asarray(vp["ln_pre_g"]));   pk_v.add("lnpre_b", np.asarray(vp["ln_pre_b"]))
    pk_v.add("lnpost_g", np.asarray(vp["ln_post_g"])); pk_v.add("lnpost_b", np.asarray(vp["ln_post_b"]))
    proj_v = np.zeros((D_VIS, LANES), np.float32)
    proj_v[:, :EMBED] = np.asarray(vp["proj"])
    pk_v.add("proj", proj_v)
    _pack_layers(pk_v, vp["blocks"], adapters["visual"], adapters["shared"], D_VIS, N_HEADS)

    rows = ((max(pk_t.r, pk_v.r) + 7) // 8) * 8
    packed = np.stack([pk_t.finalize(rows), pk_v.finalize(rows)], axis=0)    # (2, rows, 128)
    return jnp.asarray(packed), pk_t.slots, pk_v.slots


# ----------------------------- parameter building --------------------------

def _normal(key, shape, std):
    return (std * jax.random.normal(key, shape)).astype(DTYPE)


def build_block_params(key, d):
    ks = jax.random.split(key, 4)
    return {
        "ln1_g": jnp.ones((d,), DTYPE), "ln1_b": jnp.zeros((d,), DTYPE),
        "ln2_g": jnp.ones((d,), DTYPE), "ln2_b": jnp.zeros((d,), DTYPE),
        "w_qkv": _normal(ks[0], (d, 3 * d), 0.02), "b_qkv": jnp.zeros((3 * d,), DTYPE),
        "w_out": _normal(ks[1], (d, d), 0.02), "b_out": jnp.zeros((d,), DTYPE),
        "w_fc1": _normal(ks[2], (d, 4 * d), 0.02), "b_fc1": jnp.zeros((4 * d,), DTYPE),
        "w_fc2": _normal(ks[3], (4 * d, d), 0.02), "b_fc2": jnp.zeros((d,), DTYPE),
    }


def build_adapter(key, d_model, mid_dim, n_layers):
    """Mirrors AdapterLearner._build_adapter: kaiming_normal_(fan_out, relu), bias=0."""
    adapters = [None]  # index 0 is None (l_start = 1)
    keys = jax.random.split(key, n_layers)
    for i in range(n_layers):
        k1, k2 = jax.random.split(keys[i])
        if mid_dim == d_model:  # shared adapter: Linear(d, mid) + ReLU
            adapters.append({
                "w": _normal(k1, (d_model, mid_dim), math.sqrt(2.0 / mid_dim)),
                "b": jnp.zeros((mid_dim,), DTYPE),
            })
        else:
            adapters.append({
                "wd": _normal(k1, (d_model, mid_dim), math.sqrt(2.0 / mid_dim)),
                "bd": jnp.zeros((mid_dim,), DTYPE),
                "wu": _normal(k2, (mid_dim, d_model), math.sqrt(2.0 / d_model)),
                "bu": jnp.zeros((d_model,), DTYPE),
            })
    return adapters


def build_modal_adapter(key, d_model, mid_dim, n_layers):
    # down/up adapter (mirrors the mid_dim != d_model path of the real-scale CLIP)
    adapters = [None]
    keys = jax.random.split(key, n_layers)
    for i in range(n_layers):
        k1, k2 = jax.random.split(keys[i])
        adapters.append({
            "wd": _normal(k1, (d_model, mid_dim), math.sqrt(2.0 / mid_dim)),
            "bd": jnp.zeros((mid_dim,), DTYPE),
            "wu": _normal(k2, (mid_dim, d_model), math.sqrt(2.0 / d_model)),
            "bu": jnp.zeros((d_model,), DTYPE),
        })
    return adapters


def build_params(key):
    keys = jax.random.split(key, 16)

    # synthetic tokenized prompts ("a photo of a <cls>.") with EOT = largest id
    tokenized = jnp.zeros((N_CLS, S_TEXT), jnp.int32)
    tokenized = tokenized.at[:, 0].set(49406)                               # SOT
    eot_pos = jnp.array([5, 6, 7], jnp.int32)
    tokenized = tokenized.at[jnp.arange(N_CLS), eot_pos].set(49407)         # EOT (argmax target)
    token_embedding = _normal(keys[0], (N_CLS, S_TEXT, D_TEXT), 0.02)

    text = {
        "pos_emb": _normal(keys[1], (S_TEXT, D_TEXT), 0.01),
        "blocks": [build_block_params(keys[2 + i], D_TEXT) for i in range(N_LAYERS)],
        "lnf_g": jnp.ones((D_TEXT,), DTYPE), "lnf_b": jnp.zeros((D_TEXT,), DTYPE),
        "text_proj": _normal(keys[6], (D_TEXT, EMBED), D_TEXT ** -0.5),
    }

    visual = {
        "conv_w": _normal(keys[7], (3 * PATCH * PATCH, D_VIS), 0.02),
        "cls_emb": _normal(keys[8], (D_VIS,), D_VIS ** -0.5),
        "pos_emb": _normal(keys[9], (S_VIS, D_VIS), 0.01),
        "ln_pre_g": jnp.ones((D_VIS,), DTYPE), "ln_pre_b": jnp.zeros((D_VIS,), DTYPE),
        "blocks": [build_block_params(keys[10 + i], D_VIS) for i in range(N_LAYERS)],
        "ln_post_g": jnp.ones((D_VIS,), DTYPE), "ln_post_b": jnp.zeros((D_VIS,), DTYPE),
        "proj": _normal(keys[13], (D_VIS, EMBED), D_VIS ** -0.5),
    }

    adapters = {
        "text": build_modal_adapter(keys[14], D_TEXT, MID_DIM, N_LAYERS),
        "visual": build_modal_adapter(keys[15], D_VIS, MID_DIM, N_LAYERS),
        "shared": build_adapter(jax.random.fold_in(key, 99), MID_DIM, MID_DIM, N_LAYERS),
    }

    return {
        "token_embedding": token_embedding,
        "tokenized_prompts": tokenized,
        "text": text,
        "visual": visual,
        "adapters": adapters,
    }


# ----------------------------- main -----------------------------------------

if __name__ == "__main__":
    key = jax.random.PRNGKey(0)
    params = build_params(key)
    image = jax.random.normal(jax.random.fold_in(key, 1), (B_IMG, 3, IMG, IMG), DTYPE)

    # Pack all weights / constants into the single per-tower slab once (host side).
    packed, text_slots, vis_slots = pack_params(params)

    fwd = jax.jit(functools.partial(maple_forward, packed=packed,
                                    text_slots=text_slots, vis_slots=vis_slots))
    image_features, text_features = fwd(image)
    jax.block_until_ready((image_features, text_features))

    assert image_features.shape == (B_IMG, EMBED)
    assert text_features.shape == (N_CLS, EMBED)
    # both outputs are L2-normalized
    assert jnp.allclose(jnp.linalg.norm(image_features, axis=-1), 1.0, atol=1e-4)
    assert jnp.allclose(jnp.linalg.norm(text_features, axis=-1), 1.0, atol=1e-4)
    assert bool(jnp.all(jnp.isfinite(image_features))) and bool(jnp.all(jnp.isfinite(text_features)))

    print("KERNEL_OK")
</pallas_src>

<mosaic_0001>
module attributes {stable_mosaic.version = 11 : i64} {
  func.func @_maple_fused_kernel(%arg0: i32, %arg1: memref<1x1136x128xf32, #tpu.memory_space<vmem>>, %arg2: memref<8x192xf32, #tpu.memory_space<vmem>>, %arg3: memref<1x8x128xf32, #tpu.memory_space<vmem>>) attributes {dimension_semantics = [#tpu.dimension_semantics<parallel>], iteration_bounds = array<i64: 2>, scalar_prefetch = 0 : i64, scratch_operands = 0 : i64, tpu.core_type = #tpu.core_type<tc>, window_params = [{transform_indices = @transform_0, window_bounds = array<i64: 1, 1136, 128>}, {pipeline_mode = #tpu.pipeline_mode<synchronous>, transform_indices = @transform_1, window_bounds = array<i64: 8, 192>}, {transform_indices = @transform_2, window_bounds = array<i64: 1, 8, 128>}]} {
    %c0_i32 = arith.constant 0 : i32
    %0 = arith.cmpi eq, %arg0, %c0_i32 : i32
    %1 = arith.extui %0 : i1 to i32
    %c0_i32_0 = arith.constant 0 : i32
    %2 = arith.cmpi ne, %1, %c0_i32_0 : i32
    scf.if %2 {
      %c0 = arith.constant 0 : index
      %c0_2 = arith.constant 0 : index
      %c0_3 = arith.constant 0 : index
      %6 = vector.load %arg1[%c0, %c0_2, %c0_3] : memref<1x1136x128xf32, #tpu.memory_space<vmem>>, vector<1x24x32xf32>
      %7 = vector.shape_cast %6 : vector<1x24x32xf32> to vector<24x32xf32>
      %c0_4 = arith.constant 0 : index
      %c48 = arith.constant 48 : index
      %c0_5 = arith.constant 0 : index
      %8 = vector.load %arg1[%c0_4, %c48, %c0_5] : memref<1x1136x128xf32, #tpu.memory_space<vmem>>, vector<1x96x32xf32>
      %9 = vector.shape_cast %8 : vector<1x96x32xf32> to vector<96x32xf32>
      %c0_6 = arith.constant 0 : index
      %c24 = arith.constant 24 : index
      %c0_7 = arith.constant 0 : index
      %10 = vector.load %arg1[%c0_6, %c24, %c0_7] : memref<1x1136x128xf32, #tpu.memory_space<vmem>>, vector<1x24x96xf32>
      %11 = vector.shape_cast %10 : vector<1x24x96xf32> to vector<24x96xf32>
      %c0_8 = arith.constant 0 : index
      %c200 = arith.constant 200 : index
      %c0_9 = arith.constant 0 : index
      %12 = vector.load %arg1[%c0_8, %c200, %c0_9] : memref<1x1136x128xf32, #tpu.memory_space<vmem>>, vector<1x1x32xf32>
      %13 = vector.shape_cast %12 : vector<1x1x32xf32> to vector<1x32xf32>
      %c0_10 = arith.constant 0 : index
      %c208 = arith.constant 208 : index
      %c0_11 = arith.constant 0 : index
      %14 = vector.load %arg1[%c0_10, %c208, %c0_11] : memref<1x1136x128xf32, #tpu.memory_space<vmem>>, vector<1x1x32xf32>
      %15 = vector.shape_cast %14 : vector<1x1x32xf32> to vector<1x32xf32>
      %cst = arith.constant dense<0.000000e+00> : vector<24xf32>
      %16 = vector.multi_reduction <add>, %7, %cst [1] : vector<24x32xf32> to vector<24xf32>
      %17 = vector.shape_cast %16 : vector<24xf32> to vector<24x1xf32>
      %cst_12 = arith.constant 3.200000e+01 : f32
      %18 = vector.broadcast %cst_12 : f32 to vector<24x1xf32>
      %19 = arith.divf %17, %18 : vector<24x1xf32>
      %20 = vector.broadcast %19 : vector<24x1xf32> to vector<24x32xf32>
      %21 = arith.subf %7, %20 : vector<24x32xf32>
      %22 = arith.mulf %21, %21 : vector<24x32xf32>
      %cst_13 = arith.constant dense<0.000000e+00> : vector<24xf32>
      %23 = vector.multi_reduction <add>, %22, %cst_13 [1] : vector<24x32xf32> to vector<24xf32>
      %24 = vector.shape_cast %23 : vector<24xf32> to vector<24x1xf32>
      %cst_14 = arith.constant 3.200000e+01 : f32
      %25 = vector.broadcast %cst_14 : f32 to vector<24x1xf32>
      %26 = arith.divf %24, %25 : vector<24x1xf32>
      %cst_15 = arith.constant 9.99999974E-6 : f32
      %27 = vector.broadcast %cst_15 : f32 to vector<24x1xf32>
      %28 = arith.addf %26, %27 : vector<24x1xf32>
      %29 = math.rsqrt %28 : vector<24x1xf32>
      %30 = vector.broadcast %29 : vector<24x1xf32> to vector<24x32xf32>
      %31 = arith.mulf %21, %30 : vector<24x32xf32>
      %32 = vector.broadcast %13 : vector<1x32xf32> to vector<24x32xf32>
      %33 = arith.mulf %31, %32 : vector<24x32xf32>
      %34 = vector.broadcast %15 : vector<1x32xf32> to vector<24x32xf32>
      %35 = arith.addf %33, %34 : vector<24x32xf32>
      %c0_16 = arith.constant 0 : index
      %c216 = arith.constant 216 : index
      %c0_17 = arith.constant 0 : index
      %36 = vector.load %arg1[%c0_16, %c216, %c0_17] : memref<1x1136x128xf32, #tpu.memory_space<vmem>>, vector<1x32x32xf32>
      %37 = vector.shape_cast %36 : vector<1x32x32xf32> to vector<32x32xf32>
      %cst_18 = arith.constant dense<0.000000e+00> : vector<24x32xf32>
      %38 = tpu.matmul %35, %37, %cst_18 {dimension_numbers = #tpu.dot_dimension_numbers<[1], [0], [0], [1], [0, 0, 1, 1], [], []>} : vector<24x32xf32>, vector<32x32xf32>, vector<24x32xf32> -> vector<24x32xf32>
      %c0_19 = arith.constant 0 : index
      %c248 = arith.constant 248 : index
      %c0_20 = arith.constant 0 : index
      %39 = vector.load %arg1[%c0_19, %c248, %c0_20] : memref<1x1136x128xf32, #tpu.memory_space<vmem>>, vector<1x1x32xf32>
      %40 = vector.shape_cast %39 : vector<1x1x32xf32> to vector<1x32xf32>
      %41 = vector.broadcast %40 : vector<1x32xf32> to vector<24x32xf32>
      %42 = arith.addf %38, %41 : vector<24x32xf32>
      %c0_21 = arith.constant 0 : index
      %c256 = arith.constant 256 : index
      %c0_22 = arith.constant 0 : index
      %43 = vector.load %arg1[%c0_21, %c256, %c0_22] : memref<1x1136x128xf32, #tpu.memory_space<vmem>>, vector<1x32x32xf32>
      %44 = vector.shape_cast %43 : vector<1x32x32xf32> to vector<32x32xf32>
      %cst_23 = arith.constant dense<0.000000e+00> : vector<24x32xf32>
      %45 = tpu.matmul %35, %44, %cst_23 {dimension_numbers = #tpu.dot_dimension_numbers<[1], [0], [0], [1], [0, 0, 1, 1], [], []>} : vector<24x32xf32>, vector<32x32xf32>, vector<24x32xf32> -> vector<24x32xf32>
      %c0_24 = arith.constant 0 : index
      %c288 = arith.constant 288 : index
      %c0_25 = arith.constant 0 : index
      %46 = vector.load %arg1[%c0_24, %c288, %c0_25] : memref<1x1136x128xf32, #tpu.memory_space<vmem>>, vector<1x1x32xf32>
      %47 = vector.shape_cast %46 : vector<1x1x32xf32> to vector<1x32xf32>
      %48 = vector.broadcast %47 : vector<1x32xf32> to vector<24x32xf32>
      %49 = arith.addf %45, %48 : vector<24x32xf32>
      %c0_26 = arith.constant 0 : index
      %c296 = arith.constant 296 : index
      %c0_27 = arith.constant 0 : index
      %50 = vector.load %arg1[%c0_26, %c296, %c0_27] : memref<1x1136x128xf32, #tpu.memory_space<vmem>>, vector<1x32x32xf32>
      %51 = vector.shape_cast %50 : vector<1x32x32xf32> to vector<32x32xf32>
      %cst_28 = arith.constant dense<0.000000e+00> : vector<24x32xf32>
      %52 = tpu.matmul %35, %51, %cst_28 {dimension_numbers = #tpu.dot_dimension_numbers<[1], [0], [0], [1], [0, 0, 1, 1], [], []>} : vector<24x32xf32>, vector<32x32xf32>, vector<24x32xf32> -> vector<24x32xf32>
      %c0_29 = arith.constant 0 : index
      %c328 = arith.constant 328 : index
      %c0_30 = arith.constant 0 : index
      %53 = vector.load %arg1[%c0_29, %c328, %c0_30] : memref<1x1136x128xf32, #tpu.memory_space<vmem>>, vector<1x1x32xf32>
      %54 = vector.shape_cast %53 : vector<1x1x32xf32> to vector<1x32xf32>
      %55 = vector.broadcast %54 : vector<1x32xf32> to vector<24x32xf32>
      %56 = arith.addf %52, %55 : vector<24x32xf32>
      %57 = tpu.concatenate %49, %49, %49, %49 in 0 : vector<24x32xf32>, vector<24x32xf32>, vector<24x32xf32>, vector<24x32xf32> -> vector<96x32xf32>
      %58 = arith.mulf %57, %9 : vector<96x32xf32>
      %59 = tpu.concatenate %56, %56, %56, %56 in 0 : vector<24x32xf32>, vector<24x32xf32>, vector<24x32xf32>, vector<24x32xf32> -> vector<96x32xf32>
      %60 = arith.mulf %59, %9 : vector<96x32xf32>
      %cst_31 = arith.constant dense<0.000000e+00> : vector<24x96xf32>
      %61 = tpu.matmul %42, %58, %cst_31 {dimension_numbers = #tpu.dot_dimension_numbers<[1], [1], [0], [0], [0, 0, 1, 0], [], []>} : vector<24x32xf32>, vector<96x32xf32>, vector<24x96xf32> -> vector<24x96xf32>
      %62 = arith.addf %61, %11 : vector<24x96xf32>
      %cst_32 = arith.constant dense<0xFF800000> : vector<24xf32>
      %63 = vector.multi_reduction <maximumf>, %62, %cst_32 [1] : vector<24x96xf32> to vector<24xf32>
      %64 = vector.shape_cast %63 : vector<24xf32> to vector<24x1xf32>
      %65 = vector.broadcast %64 : vector<24x1xf32> to vector<24x96xf32>
      %66 = arith.subf %62, %65 : vector<24x96xf32>
      %67 = math.exp %66 : vector<24x96xf32>
      %cst_33 = arith.constant dense<0.000000e+00> : vector<24x32xf32>
      %68 = tpu.matmul %67, %9, %cst_33 {dimension_numbers = #tpu.dot_dimension_numbers<[1], [0], [0], [1], [0, 0, 1, 1], [], []>} : vector<24x96xf32>, vector<96x32xf32>, vector<24x32xf32> -> vector<24x32xf32>
      %cst_34 = arith.constant dense<0.000000e+00> : vector<24x32xf32>
      %69 = tpu.matmul %67, %60, %cst_34 {dimension_numbers = #tpu.dot_dimension_numbers<[1], [0], [0], [1], [0, 0, 1, 1], [], []>} : vector<24x96xf32>, vector<96x32xf32>, vector<24x32xf32> -> vector<24x32xf32>
      %70 = arith.divf %69, %68 : vector<24x32xf32>
      %c0_35 = arith.constant 0 : index
      %c336 = arith.constant 336 : index
      %c0_36 = arith.constant 0 : index
      %71 = vector.load %arg1[%c0_35, %c336, %c0_36] : memref<1x1136x128xf32, #tpu.memory_space<vmem>>, vector<1x32x32xf32>
      %72 = vector.shape_cast %71 : vector<1x32x32xf32> to vector<32x32xf32>
      %cst_37 = arith.constant dense<0.000000e+00> : vector<24x32xf32>
      %73 = tpu.matmul %70, %72, %cst_37 {dimension_numbers = #tpu.dot_dimension_numbers<[1], [0], [0], [1], [0, 0, 1, 1], [], []>} : vector<24x32xf32>, vector<32x32xf32>, vector<24x32xf32> -> vector<24x32xf32>
      %74 = arith.addf %7, %73 : vector<24x32xf32>
      %c0_38 = arith.constant 0 : index
      %c368 = arith.constant 368 : index
      %c0_39 = arith.constant 0 : index
      %75 = vector.load %arg1[%c0_38, %c368, %c0_39] : memref<1x1136x128xf32, #tpu.memory_space<vmem>>, vector<1x1x32xf32>
      %76 = vector.shape_cast %75 : vector<1x1x32xf32> to vector<1x32xf32>
      %77 = vector.broadcast %76 : vector<1x32xf32> to vector<24x32xf32>
      %78 = arith.addf %74, %77 : vector<24x32xf32>
      %c0_40 = arith.constant 0 : index
      %c376 = arith.constant 376 : index
      %c0_41 = arith.constant 0 : index
      %79 = vector.load %arg1[%c0_40, %c376, %c0_41] : memref<1x1136x128xf32, #tpu.memory_space<vmem>>, vector<1x1x32xf32>
      %80 = vector.shape_cast %79 : vector<1x1x32xf32> to vector<1x32xf32>
      %c0_42 = arith.constant 0 : index
      %c384 = arith.constant 384 : index
      %c0_43 = arith.constant 0 : index
      %81 = vector.load %arg1[%c0_42, %c384, %c0_43] : memref<1x1136x128xf32, #tpu.memory_space<vmem>>, vector<1x1x32xf32>
      %82 = vector.shape_cast %81 : vector<1x1x32xf32> to vector<1x32xf32>
      %cst_44 = arith.constant dense<0.000000e+00> : vector<24xf32>
      %83 = vector.multi_reduction <add>, %78, %cst_44 [1] : vector<24x32xf32> to vector<24xf32>
      %84 = vector.shape_cast %83 : vector<24xf32> to vector<24x1xf32>
      %cst_45 = arith.constant 3.200000e+01 : f32
      %85 = vector.broadcast %cst_45 : f32 to vector<24x1xf32>
      %86 = arith.divf %84, %85 : vector<24x1xf32>
      %87 = vector.broadcast %86 : vector<24x1xf32> to vector<24x32xf32>
      %88 = arith.subf %78, %87 : vector<24x32xf32>
      %89 = arith.mulf %88, %88 : vector<24x32xf32>
      %cst_46 = arith.constant dense<0.000000e+00> : vector<24xf32>
      %90 = vector.multi_reduction <add>, %89, %cst_46 [1] : vector<24x32xf32> to vector<24xf32>
      %91 = vector.shape_cast %90 : vector<24xf32> to vector<24x1xf32>
      %cst_47 = arith.constant 3.200000e+01 : f32
      %92 = vector.broadcast %cst_47 : f32 to vector<24x1xf32>
      %93 = arith.divf %91, %92 : vector<24x1xf32>
      %cst_48 = arith.constant 9.99999974E-6 : f32
      %94 = vector.broadcast %cst_48 : f32 to vector<24x1xf32>
      %95 = arith.addf %93, %94 : vector<24x1xf32>
      %96 = math.rsqrt %95 : vector<24x1xf32>
      %97 = vector.broadcast %96 : vector<24x1xf32> to vector<24x32xf32>
      %98 = arith.mulf %88, %97 : vector<24x32xf32>
      %99 = vector.broadcast %80 : vector<1x32xf32> to vector<24x32xf32>
      %100 = arith.mulf %98, %99 : vector<24x32xf32>
      %101 = vector.broadcast %82 : vector<1x32xf32> to vector<24x32xf32>
      %102 = arith.addf %100, %101 : vector<24x32xf32>
      %c0_49 = arith.constant 0 : index
      %c392 = arith.constant 392 : index
      %c0_50 = arith.constant 0 : index
      %103 = vector.load %arg1[%c0_49, %c392, %c0_50] : memref<1x1136x128xf32, #tpu.memory_space<vmem>>, vector<1x32x128xf32>
      %104 = vector.shape_cast %103 : vector<1x32x128xf32> to vector<32x128xf32>
      %cst_51 = arith.constant dense<0.000000e+00> : vector<24x128xf32>
      %105 = tpu.matmul %102, %104, %cst_51 {dimension_numbers = #tpu.dot_dimension_numbers<[1], [0], [0], [1], [0, 0, 1, 1], [], []>} : vector<24x32xf32>, vector<32x128xf32>, vector<24x128xf32> -> vector<24x128xf32>
      %c0_52 = arith.constant 0 : index
      %c424 = arith.constant 424 : index
      %c0_53 = arith.constant 0 : index
      %106 = vector.load %arg1[%c0_52, %c424, %c0_53] : memref<1x1136x128xf32, #tpu.memory_space<vmem>>, vector<1x1x128xf32>
      %107 = vector.shape_cast %106 : vector<1x1x128xf32> to vector<1x128xf32>
      %108 = vector.broadcast %107 : vector<1x128xf32> to vector<24x128xf32>
      %109 = arith.addf %105, %108 : vector<24x128xf32>
      %cst_54 = arith.constant 1.702000e+00 : f32
      %110 = vector.broadcast %cst_54 : f32 to vector<24x128xf32>
      %111 = arith.mulf %110, %109 : vector<24x128xf32>
      %112 = arith.negf %111 : vector<24x128xf32>
      %113 = math.exp %112 : vector<24x128xf32>
      %cst_55 = arith.constant 1.000000e+00 : f32
      %114 = vector.broadcast %cst_55 : f32 to vector<24x128xf32>
      %115 = arith.addf %114, %113 : vector<24x128xf32>
      %116 = arith.divf %114, %115 : vector<24x128xf32>
      %117 = arith.mulf %109, %116 : vector<24x128xf32>
      %c0_56 = arith.constant 0 : index
      %c432 = arith.constant 432 : index
      %c0_57 = arith.constant 0 : index
      %118 = vector.load %arg1[%c0_56, %c432, %c0_57] : memref<1x1136x128xf32, #tpu.memory_space<vmem>>, vector<1x32x128xf32>
      %119 = vector.shape_cast %118 : vector<1x32x128xf32> to vector<32x128xf32>
      %cst_58 = arith.constant dense<0.000000e+00> : vector<24x32xf32>
      %120 = tpu.matmul %117, %119, %cst_58 {dimension_numbers = #tpu.dot_dimension_numbers<[1], [1], [0], [0], [0, 0, 1, 0], [], []>} : vector<24x128xf32>, vector<32x128xf32>, vector<24x32xf32> -> vector<24x32xf32>
      %c0_59 = arith.constant 0 : index
      %c464 = arith.constant 464 : index
      %c0_60 = arith.constant 0 : index
      %121 = vector.load %arg1[%c0_59, %c464, %c0_60] : memref<1x1136x128xf32, #tpu.memory_space<vmem>>, vector<1x1x32xf32>
      %122 = vector.shape_cast %121 : vector<1x1x32xf32> to vector<1x32xf32>
      %123 = vector.broadcast %122 : vector<1x32xf32> to vector<24x32xf32>
      %124 = arith.addf %120, %123 : vector<24x32xf32>
      %125 = arith.addf %78, %124 : vector<24x32xf32>
      %c0_61 = arith.constant 0 : index
      %c472 = arith.constant 472 : index
      %c0_62 = arith.constant 0 : index
      %126 = vector.load %arg1[%c0_61, %c472, %c0_62] : memref<1x1136x128xf32, #tpu.memory_space<vmem>>, vector<1x32x32xf32>
      %127 = vector.shape_cast %126 : vector<1x32x32xf32> to vector<32x32xf32>
      %cst_63 = arith.constant dense<0.000000e+00> : vector<24x32xf32>
      %128 = tpu.matmul %125, %127, %cst_63 {dimension_numbers = #tpu.dot_dimension_numbers<[1], [0], [0], [1], [0, 0, 1, 1], [], []>} : vector<24x32xf32>, vector<32x32xf32>, vector<24x32xf32> -> vector<24x32xf32>
      %c0_64 = arith.constant 0 : index
      %c504 = arith.constant 504 : index
      %c0_65 = arith.constant 0 : index
      %129 = vector.load %arg1[%c0_64, %c504, %c0_65] : memref<1x1136x128xf32, #tpu.memory_space<vmem>>, vector<1x1x32xf32>
      %130 = vector.shape_cast %129 : vector<1x1x32xf32> to vector<1x32xf32>
      %131 = vector.broadcast %130 : vector<1x32xf32> to vector<24x32xf32>
      %132 = arith.addf %128, %131 : vector<24x32xf32>
      %cst_66 = arith.constant 0.000000e+00 : f32
      %133 = vector.broadcast %cst_66 : f32 to vector<24x32xf32>
      %134 = arith.maximumf %132, %133 : vector<24x32xf32>
      %c0_67 = arith.constant 0 : index
      %c512 = arith.constant 512 : index
      %c0_68 = arith.constant 0 : index
      %135 = vector.load %arg1[%c0_67, %c512, %c0_68] : memref<1x1136x128xf32, #tpu.memory_space<vmem>>, vector<1x32x32xf32>
      %136 = vector.shape_cast %135 : vector<1x32x32xf32> to vector<32x32xf32>
      %cst_69 = arith.constant dense<0.000000e+00> : vector<24x32xf32>
      %137 = tpu.matmul %134, %136, %cst_69 {dimension_numbers = #tpu.dot_dimension_numbers<[1], [0], [0], [1], [0, 0, 1, 1], [], []>} : vector<24x32xf32>, vector<32x32xf32>, vector<24x32xf32> -> vector<24x32xf32>
      %c0_70 = arith.constant 0 : index
      %c544 = arith.constant 544 : index
      %c0_71 = arith.constant 0 : index
      %138 = vector.load %arg1[%c0_70, %c544, %c0_71] : memref<1x1136x128xf32, #tpu.memory_space<vmem>>, vector<1x1x32xf32>
      %139 = vector.shape_cast %138 : vector<1x1x32xf32> to vector<1x32xf32>
      %140 = vector.broadcast %139 : vector<1x32xf32> to vector<24x32xf32>
      %141 = arith.addf %137, %140 : vector<24x32xf32>
      %cst_72 = arith.constant 0.000000e+00 : f32
      %142 = vector.broadcast %cst_72 : f32 to vector<24x32xf32>
      %143 = arith.maximumf %141, %142 : vector<24x32xf32>
      %c0_73 = arith.constant 0 : index
      %c552 = arith.constant 552 : index
      %c0_74 = arith.constant 0 : index
      %144 = vector.load %arg1[%c0_73, %c552, %c0_74] : memref<1x1136x128xf32, #tpu.memory_space<vmem>>, vector<1x32x32xf32>
      %145 = vector.shape_cast %144 : vector<1x32x32xf32> to vector<32x32xf32>
      %cst_75 = arith.constant dense<0.000000e+00> : vector<24x32xf32>
      %146 = tpu.matmul %143, %145, %cst_75 {dimension_numbers = #tpu.dot_dimension_numbers<[1], [0], [0], [1], [0, 0, 1, 1], [], []>} : vector<24x32xf32>, vector<32x32xf32>, vector<24x32xf32> -> vector<24x32xf32>
      %c0_76 = arith.constant 0 : index
      %c584 = arith.constant 584 : index
      %c0_77 = arith.constant 0 : index
      %147 = vector.load %arg1[%c0_76, %c584, %c0_77] : memref<1x1136x128xf32, #tpu.memory_space<vmem>>, vector<1x1x32xf32>
      %148 = vector.shape_cast %147 : vector<1x1x32xf32> to vector<1x32xf32>
      %149 = vector.broadcast %148 : vector<1x32xf32> to vector<24x32xf32>
      %150 = arith.addf %146, %149 : vector<24x32xf32>
      %cst_78 = arith.constant 1.000000e-03 : f32
      %151 = vector.broadcast %cst_78 : f32 to vector<24x32xf32>
      %152 = arith.mulf %151, %150 : vector<24x32xf32>
      %153 = arith.addf %125, %152 : vector<24x32xf32>
      %c0_79 = arith.constant 0 : index
      %c592 = arith.constant 592 : index
      %c0_80 = arith.constant 0 : index
      %154 = vector.load %arg1[%c0_79, %c592, %c0_80] : memref<1x1136x128xf32, #tpu.memory_space<vmem>>, vector<1x1x32xf32>
      %155 = vector.shape_cast %154 : vector<1x1x32xf32> to vector<1x32xf32>
      %c0_81 = arith.constant 0 : index
      %c600 = arith.constant 600 : index
      %c0_82 = arith.constant 0 : index
      %156 = vector.load %arg1[%c0_81, %c600, %c0_82] : memref<1x1136x128xf32, #tpu.memory_space<vmem>>, vector<1x1x32xf32>
      %157 = vector.shape_cast %156 : vector<1x1x32xf32> to vector<1x32xf32>
      %cst_83 = arith.constant dense<0.000000e+00> : vector<24xf32>
      %158 = vector.multi_reduction <add>, %153, %cst_83 [1] : vector<24x32xf32> to vector<24xf32>
      %159 = vector.shape_cast %158 : vector<24xf32> to vector<24x1xf32>
      %cst_84 = arith.constant 3.200000e+01 : f32
      %160 = vector.broadcast %cst_84 : f32 to vector<24x1xf32>
      %161 = arith.divf %159, %160 : vector<24x1xf32>
      %162 = vector.broadcast %161 : vector<24x1xf32> to vector<24x32xf32>
      %163 = arith.subf %153, %162 : vector<24x32xf32>
      %164 = arith.mulf %163, %163 : vector<24x32xf32>
      %cst_85 = arith.constant dense<0.000000e+00> : vector<24xf32>
      %165 = vector.multi_reduction <add>, %164, %cst_85 [1] : vector<24x32xf32> to vector<24xf32>
      %166 = vector.shape_cast %165 : vector<24xf32> to vector<24x1xf32>
      %cst_86 = arith.constant 3.200000e+01 : f32
      %167 = vector.broadcast %cst_86 : f32 to vector<24x1xf32>
      %168 = arith.divf %166, %167 : vector<24x1xf32>
      %cst_87 = arith.constant 9.99999974E-6 : f32
      %169 = vector.broadcast %cst_87 : f32 to vector<24x1xf32>
      %170 = arith.addf %168, %169 : vector<24x1xf32>
      %171 = math.rsqrt %170 : vector<24x1xf32>
      %172 = vector.broadcast %171 : vector<24x1xf32> to vector<24x32xf32>
      %173 = arith.mulf %163, %172 : vector<24x32xf32>
      %174 = vector.broadcast %155 : vector<1x32xf32> to vector<24x32xf32>
      %175 = arith.mulf %173, %174 : vector<24x32xf32>
      %176 = vector.broadcast %157 : vector<1x32xf32> to vector<24x32xf32>
      %177 = arith.addf %175, %176 : vector<24x32xf32>
      %c0_88 = arith.constant 0 : index
      %c608 = arith.constant 608 : index
      %c0_89 = arith.constant 0 : index
      %178 = vector.load %arg1[%c0_88, %c608, %c0_89] : memref<1x1136x128xf32, #tpu.memory_space<vmem>>, vector<1x32x32xf32>
      %179 = vector.shape_cast %178 : vector<1x32x32xf32> to vector<32x32xf32>
      %cst_90 = arith.constant dense<0.000000e+00> : vector<24x32xf32>
      %180 = tpu.matmul %177, %179, %cst_90 {dimension_numbers = #tpu.dot_dimension_numbers<[1], [0], [0], [1], [0, 0, 1, 1], [], []>} : vector<24x32xf32>, vector<32x32xf32>, vector<24x32xf32> -> vector<24x32xf32>
      %c0_91 = arith.constant 0 : index
      %c640 = arith.constant 640 : index
      %c0_92 = arith.constant 0 : index
      %181 = vector.load %arg1[%c0_91, %c640, %c0_92] : memref<1x1136x128xf32, #tpu.memory_space<vmem>>, vector<1x1x32xf32>
      %182 = vector.shape_cast %181 : vector<1x1x32xf32> to vector<1x32xf32>
      %183 = vector.broadcast %182 : vector<1x32xf32> to vector<24x32xf32>
      %184 = arith.addf %180, %183 : vector<24x32xf32>
      %c0_93 = arith.constant 0 : index
      %c648 = arith.constant 648 : index
      %c0_94 = arith.constant 0 : index
      %185 = vector.load %arg1[%c0_93, %c648, %c0_94] : memref<1x1136x128xf32, #tpu.memory_space<vmem>>, vector<1x32x32xf32>
      %186 = vector.shape_cast %185 : vector<1x32x32xf32> to vector<32x32xf32>
      %cst_95 = arith.constant dense<0.000000e+00> : vector<24x32xf32>
      %187 = tpu.matmul %177, %186, %cst_95 {dimension_numbers = #tpu.dot_dimension_numbers<[1], [0], [0], [1], [0, 0, 1, 1], [], []>} : vector<24x32xf32>, vector<32x32xf32>, vector<24x32xf32> -> vector<24x32xf32>
      %c0_96 = arith.constant 0 : index
      %c680 = arith.constant 680 : index
      %c0_97 = arith.constant 0 : index
      %188 = vector.load %arg1[%c0_96, %c680, %c0_97] : memref<1x1136x128xf32, #tpu.memory_space<vmem>>, vector<1x1x32xf32>
      %189 = vector.shape_cast %188 : vector<1x1x32xf32> to vector<1x32xf32>
      %190 = vector.broadcast %189 : vector<1x32xf32> to vector<24x32xf32>
      %191 = arith.addf %187, %190 : vector<24x32xf32>
      %c0_98 = arith.constant 0 : index
      %c688 = arith.constant 688 : index
      %c0_99 = arith.constant 0 : index
      %192 = vector.load %arg1[%c0_98, %c688, %c0_99] : memref<1x1136x128xf32, #tpu.memory_space<vmem>>, vector<1x32x32xf32>
      %193 = vector.shape_cast %192 : vector<1x32x32xf32> to vector<32x32xf32>
      %cst_100 = arith.constant dense<0.000000e+00> : vector<24x32xf32>
      %194 = tpu.matmul %177, %193, %cst_100 {dimension_numbers = #tpu.dot_dimension_numbers<[1], [0], [0], [1], [0, 0, 1, 1], [], []>} : vector<24x32xf32>, vector<32x32xf32>, vector<24x32xf32> -> vector<24x32xf32>
      %c0_101 = arith.constant 0 : index
      %c720 = arith.constant 720 : index
      %c0_102 = arith.constant 0 : index
      %195 = vector.load %arg1[%c0_101, %c720, %c0_102] : memref<1x1136x128xf32, #tpu.memory_space<vmem>>, vector<1x1x32xf32>
      %196 = vector.shape_cast %195 : vector<1x1x32xf32> to vector<1x32xf32>
      %197 = vector.broadcast %196 : vector<1x32xf32> to vector<24x32xf32>
      %198 = arith.addf %194, %197 : vector<24x32xf32>
      %199 = tpu.concatenate %191, %191, %191, %191 in 0 : vector<24x32xf32>, vector<24x32xf32>, vector<24x32xf32>, vector<24x32xf32> -> vector<96x32xf32>
      %200 = arith.mulf %199, %9 : vector<96x32xf32>
      %201 = tpu.concatenate %198, %198, %198, %198 in 0 : vector<24x32xf32>, vector<24x32xf32>, vector<24x32xf32>, vector<24x32xf32> -> vector<96x32xf32>
      %202 = arith.mulf %201, %9 : vector<96x32xf32>
      %cst_103 = arith.constant dense<0.000000e+00> : vector<24x96xf32>
      %203 = tpu.matmul %184, %200, %cst_103 {dimension_numbers = #tpu.dot_dimension_numbers<[1], [1], [0], [0], [0, 0, 1, 0], [], []>} : vector<24x32xf32>, vector<96x32xf32>, vector<24x96xf32> -> vector<24x96xf32>
      %204 = arith.addf %203, %11 : vector<24x96xf32>
      %cst_104 = arith.constant dense<0xFF800000> : vector<24xf32>
      %205 = vector.multi_reduction <maximumf>, %204, %cst_104 [1] : vector<24x96xf32> to vector<24xf32>
      %206 = vector.shape_cast %205 : vector<24xf32> to vector<24x1xf32>
      %207 = vector.broadcast %206 : vector<24x1xf32> to vector<24x96xf32>
      %208 = arith.subf %204, %207 : vector<24x96xf32>
      %209 = math.exp %208 : vector<24x96xf32>
      %cst_105 = arith.constant dense<0.000000e+00> : vector<24x32xf32>
      %210 = tpu.matmul %209, %9, %cst_105 {dimension_numbers = #tpu.dot_dimension_numbers<[1], [0], [0], [1], [0, 0, 1, 1], [], []>} : vector<24x96xf32>, vector<96x32xf32>, vector<24x32xf32> -> vector<24x32xf32>
      %cst_106 = arith.constant dense<0.000000e+00> : vector<24x32xf32>
      %211 = tpu.matmul %209, %202, %cst_106 {dimension_numbers = #tpu.dot_dimension_numbers<[1], [0], [0], [1], [0, 0, 1, 1], [], []>} : vector<24x96xf32>, vector<96x32xf32>, vector<24x32xf32> -> vector<24x32xf32>
      %212 = arith.divf %211, %210 : vector<24x32xf32>
      %c0_107 = arith.constant 0 : index
      %c728 = arith.constant 728 : index
      %c0_108 = arith.constant 0 : index
      %213 = vector.load %arg1[%c0_107, %c728, %c0_108] : memref<1x1136x128xf32, #tpu.memory_space<vmem>>, vector<1x32x32xf32>
      %214 = vector.shape_cast %213 : vector<1x32x32xf32> to vector<32x32xf32>
      %cst_109 = arith.constant dense<0.000000e+00> : vector<24x32xf32>
      %215 = tpu.matmul %212, %214, %cst_109 {dimension_numbers = #tpu.dot_dimension_numbers<[1], [0], [0], [1], [0, 0, 1, 1], [], []>} : vector<24x32xf32>, vector<32x32xf32>, vector<24x32xf32> -> vector<24x32xf32>
      %216 = arith.addf %153, %215 : vector<24x32xf32>
      %c0_110 = arith.constant 0 : index
      %c760 = arith.constant 760 : index
      %c0_111 = arith.constant 0 : index
      %217 = vector.load %arg1[%c0_110, %c760, %c0_111] : memref<1x1136x128xf32, #tpu.memory_space<vmem>>, vector<1x1x32xf32>
      %218 = vector.shape_cast %217 : vector<1x1x32xf32> to vector<1x32xf32>
      %219 = vector.broadcast %218 : vector<1x32xf32> to vector<24x32xf32>
      %220 = arith.addf %216, %219 : vector<24x32xf32>
      %c0_112 = arith.constant 0 : index
      %c768 = arith.constant 768 : index
      %c0_113 = arith.constant 0 : index
      %221 = vector.load %arg1[%c0_112, %c768, %c0_113] : memref<1x1136x128xf32, #tpu.memory_space<vmem>>, vector<1x1x32xf32>
      %222 = vector.shape_cast %221 : vector<1x1x32xf32> to vector<1x32xf32>
      %c0_114 = arith.constant 0 : index
      %c776 = arith.constant 776 : index
      %c0_115 = arith.constant 0 : index
      %223 = vector.load %arg1[%c0_114, %c776, %c0_115] : memref<1x1136x128xf32, #tpu.memory_space<vmem>>, vector<1x1x32xf32>
      %224 = vector.shape_cast %223 : vector<1x1x32xf32> to vector<1x32xf32>
      %cst_116 = arith.constant dense<0.000000e+00> : vector<24xf32>
      %225 = vector.multi_reduction <add>, %220, %cst_116 [1] : vector<24x32xf32> to vector<24xf32>
      %226 = vector.shape_cast %225 : vector<24xf32> to vector<24x1xf32>
      %cst_117 = arith.constant 3.200000e+01 : f32
      %227 = vector.broadcast %cst_117 : f32 to vector<24x1xf32>
      %228 = arith.divf %226, %227 : vector<24x1xf32>
      %229 = vector.broadcast %228 : vector<24x1xf32> to vector<24x32xf32>
      %230 = arith.subf %220, %229 : vector<24x32xf32>
      %231 = arith.mulf %230, %230 : vector<24x32xf32>
      %cst_118 = arith.constant dense<0.000000e+00> : vector<24xf32>
      %232 = vector.multi_reduction <add>, %231, %cst_118 [1] : vector<24x32xf32> to vector<24xf32>
      %233 = vector.shape_cast %232 : vector<24xf32> to vector<24x1xf32>
      %cst_119 = arith.constant 3.200000e+01 : f32
      %234 = vector.broadcast %cst_119 : f32 to vector<24x1xf32>
      %235 = arith.divf %233, %234 : vector<24x1xf32>
      %cst_120 = arith.constant 9.99999974E-6 : f32
      %236 = vector.broadcast %cst_120 : f32 to vector<24x1xf32>
      %237 = arith.addf %235, %236 : vector<24x1xf32>
      %238 = math.rsqrt %237 : vector<24x1xf32>
      %239 = vector.broadcast %238 : vector<24x1xf32> to vector<24x32xf32>
      %240 = arith.mulf %230, %239 : vector<24x32xf32>
      %241 = vector.broadcast %222 : vector<1x32xf32> to vector<24x32xf32>
      %242 = arith.mulf %240, %241 : vector<24x32xf32>
      %243 = vector.broadcast %224 : vector<1x32xf32> to vector<24x32xf32>
      %244 = arith.addf %242, %243 : vector<24x32xf32>
      %c0_121 = arith.constant 0 : index
      %c784 = arith.constant 784 : index
      %c0_122 = arith.constant 0 : index
      %245 = vector.load %arg1[%c0_121, %c784, %c0_122] : memref<1x1136x128xf32, #tpu.memory_space<vmem>>, vector<1x32x128xf32>
      %246 = vector.shape_cast %245 : vector<1x32x128xf32> to vector<32x128xf32>
      %cst_123 = arith.constant dense<0.000000e+00> : vector<24x128xf32>
      %247 = tpu.matmul %244, %246, %cst_123 {dimension_numbers = #tpu.dot_dimension_numbers<[1], [0], [0], [1], [0, 0, 1, 1], [], []>} : vector<24x32xf32>, vector<32x128xf32>, vector<24x128xf32> -> vector<24x128xf32>
      %c0_124 = arith.constant 0 : index
      %c816 = arith.constant 816 : index
      %c0_125 = arith.constant 0 : index
      %248 = vector.load %arg1[%c0_124, %c816, %c0_125] : memref<1x1136x128xf32, #tpu.memory_space<vmem>>, vector<1x1x128xf32>
      %249 = vector.shape_cast %248 : vector<1x1x128xf32> to vector<1x128xf32>
      %250 = vector.broadcast %249 : vector<1x128xf32> to vector<24x128xf32>
      %251 = arith.addf %247, %250 : vector<24x128xf32>
      %cst_126 = arith.constant 1.702000e+00 : f32
      %252 = vector.broadcast %cst_126 : f32 to vector<24x128xf32>
      %253 = arith.mulf %252, %251 : vector<24x128xf32>
      %254 = arith.negf %253 : vector<24x128xf32>
      %255 = math.exp %254 : vector<24x128xf32>
      %cst_127 = arith.constant 1.000000e+00 : f32
      %256 = vector.broadcast %cst_127 : f32 to vector<24x128xf32>
      %257 = arith.addf %256, %255 : vector<24x128xf32>
      %258 = arith.divf %256, %257 : vector<24x128xf32>
      %259 = arith.mulf %251, %258 : vector<24x128xf32>
      %c0_128 = arith.constant 0 : index
      %c824 = arith.constant 824 : index
      %c0_129 = arith.constant 0 : index
      %260 = vector.load %arg1[%c0_128, %c824, %c0_129] : memref<1x1136x128xf32, #tpu.memory_space<vmem>>, vector<1x32x128xf32>
      %261 = vector.shape_cast %260 : vector<1x32x128xf32> to vector<32x128xf32>
      %cst_130 = arith.constant dense<0.000000e+00> : vector<24x32xf32>
      %262 = tpu.matmul %259, %261, %cst_130 {dimension_numbers = #tpu.dot_dimension_numbers<[1], [1], [0], [0], [0, 0, 1, 0], [], []>} : vector<24x128xf32>, vector<32x128xf32>, vector<24x32xf32> -> vector<24x32xf32>
      %c0_131 = arith.constant 0 : index
      %c856 = arith.constant 856 : index
      %c0_132 = arith.constant 0 : index
      %263 = vector.load %arg1[%c0_131, %c856, %c0_132] : memref<1x1136x128xf32, #tpu.memory_space<vmem>>, vector<1x1x32xf32>
      %264 = vector.shape_cast %263 : vector<1x1x32xf32> to vector<1x32xf32>
      %265 = vector.broadcast %264 : vector<1x32xf32> to vector<24x32xf32>
      %266 = arith.addf %262, %265 : vector<24x32xf32>
      %267 = arith.addf %220, %266 : vector<24x32xf32>
      %c0_133 = arith.constant 0 : index
      %c864 = arith.constant 864 : index
      %c0_134 = arith.constant 0 : index
      %268 = vector.load %arg1[%c0_133, %c864, %c0_134] : memref<1x1136x128xf32, #tpu.memory_space<vmem>>, vector<1x32x32xf32>
      %269 = vector.shape_cast %268 : vector<1x32x32xf32> to vector<32x32xf32>
      %cst_135 = arith.constant dense<0.000000e+00> : vector<24x32xf32>
      %270 = tpu.matmul %267, %269, %cst_135 {dimension_numbers = #tpu.dot_dimension_numbers<[1], [0], [0], [1], [0, 0, 1, 1], [], []>} : vector<24x32xf32>, vector<32x32xf32>, vector<24x32xf32> -> vector<24x32xf32>
      %c0_136 = arith.constant 0 : index
      %c896 = arith.constant 896 : index
      %c0_137 = arith.constant 0 : index
      %271 = vector.load %arg1[%c0_136, %c896, %c0_137] : memref<1x1136x128xf32, #tpu.memory_space<vmem>>, vector<1x1x32xf32>
      %272 = vector.shape_cast %271 : vector<1x1x32xf32> to vector<1x32xf32>
      %273 = vector.broadcast %272 : vector<1x32xf32> to vector<24x32xf32>
      %274 = arith.addf %270, %273 : vector<24x32xf32>
      %cst_138 = arith.constant 0.000000e+00 : f32
      %275 = vector.broadcast %cst_138 : f32 to vector<24x32xf32>
      %276 = arith.maximumf %274, %275 : vector<24x32xf32>
      %c0_139 = arith.constant 0 : index
      %c904 = arith.constant 904 : index
      %c0_140 = arith.constant 0 : index
      %277 = vector.load %arg1[%c0_139, %c904, %c0_140] : memref<1x1136x128xf32, #tpu.memory_space<vmem>>, vector<1x32x32xf32>
      %278 = vector.shape_cast %277 : vector<1x32x32xf32> to vector<32x32xf32>
      %cst_141 = arith.constant dense<0.000000e+00> : vector<24x32xf32>
      %279 = tpu.matmul %276, %278, %cst_141 {dimension_numbers = #tpu.dot_dimension_numbers<[1], [0], [0], [1], [0, 0, 1, 1], [], []>} : vector<24x32xf32>, vector<32x32xf32>, vector<24x32xf32> -> vector<24x32xf32>
      %c0_142 = arith.constant 0 : index
      %c936 = arith.constant 936 : index
      %c0_143 = arith.constant 0 : index
      %280 = vector.load %arg1[%c0_142, %c936, %c0_143] : memref<1x1136x128xf32, #tpu.memory_space<vmem>>, vector<1x1x32xf32>
      %281 = vector.shape_cast %280 : vector<1x1x32xf32> to vector<1x32xf32>
      %282 = vector.broadcast %281 : vector<1x32xf32> to vector<24x32xf32>
      %283 = arith.addf %279, %282 : vector<24x32xf32>
      %cst_144 = arith.constant 0.000000e+00 : f32
      %284 = vector.broadcast %cst_144 : f32 to vector<24x32xf32>
      %285 = arith.maximumf %283, %284 : vector<24x32xf32>
      %c0_145 = arith.constant 0 : index
      %c944 = arith.constant 944 : index
      %c0_146 = arith.constant 0 : index
      %286 = vector.load %arg1[%c0_145, %c944, %c0_146] : memref<1x1136x128xf32, #tpu.memory_space<vmem>>, vector<1x32x32xf32>
      %287 = vector.shape_cast %286 : vector<1x32x32xf32> to vector<32x32xf32>
      %cst_147 = arith.constant dense<0.000000e+00> : vector<24x32xf32>
      %288 = tpu.matmul %285, %287, %cst_147 {dimension_numbers = #tpu.dot_dimension_numbers<[1], [0], [0], [1], [0, 0, 1, 1], [], []>} : vector<24x32xf32>, vector<32x32xf32>, vector<24x32xf32> -> vector<24x32xf32>
      %c0_148 = arith.constant 0 : index
      %c976 = arith.constant 976 : index
      %c0_149 = arith.constant 0 : index
      %289 = vector.load %arg1[%c0_148, %c976, %c0_149] : memref<1x1136x128xf32, #tpu.memory_space<vmem>>, vector<1x1x32xf32>
      %290 = vector.shape_cast %289 : vector<1x1x32xf32> to vector<1x32xf32>
      %291 = vector.broadcast %290 : vector<1x32xf32> to vector<24x32xf32>
      %292 = arith.addf %288, %291 : vector<24x32xf32>
      %cst_150 = arith.constant 1.000000e-03 : f32
      %293 = vector.broadcast %cst_150 : f32 to vector<24x32xf32>
      %294 = arith.mulf %293, %292 : vector<24x32xf32>
      %295 = arith.addf %267, %294 : vector<24x32xf32>
      %c0_151 = arith.constant 0 : index
      %c152 = arith.constant 152 : index
      %c0_152 = arith.constant 0 : index
      %296 = vector.load %arg1[%c0_151, %c152, %c0_152] : memref<1x1136x128xf32, #tpu.memory_space<vmem>>, vector<1x1x32xf32>
      %297 = vector.shape_cast %296 : vector<1x1x32xf32> to vector<1x32xf32>
      %c0_153 = arith.constant 0 : index
      %c160 = arith.constant 160 : index
      %c0_154 = arith.constant 0 : index
      %298 = vector.load %arg1[%c0_153, %c160, %c0_154] : memref<1x1136x128xf32, #tpu.memory_space<vmem>>, vector<1x1x32xf32>
      %299 = vector.shape_cast %298 : vector<1x1x32xf32> to vector<1x32xf32>
      %cst_155 = arith.constant dense<0.000000e+00> : vector<24xf32>
      %300 = vector.multi_reduction <add>, %295, %cst_155 [1] : vector<24x32xf32> to vector<24xf32>
      %301 = vector.shape_cast %300 : vector<24xf32> to vector<24x1xf32>
      %cst_156 = arith.constant 3.200000e+01 : f32
      %302 = vector.broadcast %cst_156 : f32 to vector<24x1xf32>
      %303 = arith.divf %301, %302 : vector<24x1xf32>
      %304 = vector.broadcast %303 : vector<24x1xf32> to vector<24x32xf32>
      %305 = arith.subf %295, %304 : vector<24x32xf32>
      %306 = arith.mulf %305, %305 : vector<24x32xf32>
      %cst_157 = arith.constant dense<0.000000e+00> : vector<24xf32>
      %307 = vector.multi_reduction <add>, %306, %cst_157 [1] : vector<24x32xf32> to vector<24xf32>
      %308 = vector.shape_cast %307 : vector<24xf32> to vector<24x1xf32>
      %cst_158 = arith.constant 3.200000e+01 : f32
      %309 = vector.broadcast %cst_158 : f32 to vector<24x1xf32>
      %310 = arith.divf %308, %309 : vector<24x1xf32>
      %cst_159 = arith.constant 9.99999974E-6 : f32
      %311 = vector.broadcast %cst_159 : f32 to vector<24x1xf32>
      %312 = arith.addf %310, %311 : vector<24x1xf32>
      %313 = math.rsqrt %312 : vector<24x1xf32>
      %314 = vector.broadcast %313 : vector<24x1xf32> to vector<24x32xf32>
      %315 = arith.mulf %305, %314 : vector<24x32xf32>
      %316 = vector.broadcast %297 : vector<1x32xf32> to vector<24x32xf32>
      %317 = arith.mulf %315, %316 : vector<24x32xf32>
      %318 = vector.broadcast %299 : vector<1x32xf32> to vector<24x32xf32>
      %319 = arith.addf %317, %318 : vector<24x32xf32>
      %c0_160 = arith.constant 0 : index
      %c144 = arith.constant 144 : index
      %c0_161 = arith.constant 0 : index
      %320 = vector.load %arg1[%c0_160, %c144, %c0_161] : memref<1x1136x128xf32, #tpu.memory_space<vmem>>, vector<1x8x24xf32>
      %321 = vector.shape_cast %320 : vector<1x8x24xf32> to vector<8x24xf32>
      %cst_162 = arith.constant dense<0.000000e+00> : vector<8x32xf32>
      %322 = tpu.matmul %321, %319, %cst_162 {dimension_numbers = #tpu.dot_dimension_numbers<[1], [0], [0], [1], [0, 0, 1, 1], [], []>} : vector<8x24xf32>, vector<24x32xf32>, vector<8x32xf32> -> vector<8x32xf32>
      %c0_163 = arith.constant 0 : index
      %c168 = arith.constant 168 : index
      %c0_164 = arith.constant 0 : index
      %323 = vector.load %arg1[%c0_163, %c168, %c0_164] : memref<1x1136x128xf32, #tpu.memory_space<vmem>>, vector<1x32x128xf32>
      %324 = vector.shape_cast %323 : vector<1x32x128xf32> to vector<32x128xf32>
      %cst_165 = arith.constant dense<0.000000e+00> : vector<8x128xf32>
      %325 = tpu.matmul %322, %324, %cst_165 {dimension_numbers = #tpu.dot_dimension_numbers<[1], [0], [0], [1], [0, 0, 1, 1], [], []>} : vector<8x32xf32>, vector<32x128xf32>, vector<8x128xf32> -> vector<8x128xf32>
      %326 = arith.mulf %325, %325 : vector<8x128xf32>
      %cst_166 = arith.constant dense<0.000000e+00> : vector<8xf32>
      %327 = vector.multi_reduction <add>, %326, %cst_166 [1] : vector<8x128xf32> to vector<8xf32>
      %328 = vector.shape_cast %327 : vector<8xf32> to vector<8x1xf32>
      %cst_167 = arith.constant 9.99999996E-13 : f32
      %329 = vector.broadcast %cst_167 : f32 to vector<8x1xf32>
      %330 = arith.addf %328, %329 : vector<8x1xf32>
      %331 = math.rsqrt %330 : vector<8x1xf32>
      %332 = vector.broadcast %331 : vector<8x1xf32> to vector<8x128xf32>
      %333 = arith.mulf %325, %332 : vector<8x128xf32>
      %c0_168 = arith.constant 0 : index
      %c0_169 = arith.constant 0 : index
      %c0_170 = arith.constant 0 : index
      %334 = vector.load %arg3[%c0_168, %c0_169, %c0_170] : memref<1x8x128xf32, #tpu.memory_space<vmem>>, vector<1x8x128xf32>
      %335 = vector.shape_cast %334 : vector<1x8x128xf32> to vector<8x128xf32>
      %336 = vector.shape_cast %333 : vector<8x128xf32> to vector<1x8x128xf32>
      tpu.vector_store %arg3[%c0_168, %c0_169, %c0_170], %336 {strides = array<i32>} : memref<1x8x128xf32, #tpu.memory_space<vmem>>, vector<1x8x128xf32>,
    } else {
    }
    %c1_i32 = arith.constant 1 : i32
    %3 = arith.cmpi eq, %arg0, %c1_i32 : i32
    %4 = arith.extui %3 : i1 to i32
    %c0_i32_1 = arith.constant 0 : i32
    %5 = arith.cmpi ne, %4, %c0_i32_1 : i32
    scf.if %5 {
      %c0 = arith.constant 0 : index
      %c0_2 = arith.constant 0 : index
      %6 = vector.load %arg2[%c0, %c0_2] : memref<8x192xf32, #tpu.memory_space<vmem>>, vector<8x192xf32>
      %c0_3 = arith.constant 0 : index
      %c0_4 = arith.constant 0 : index
      %c0_5 = arith.constant 0 : index
      %7 = vector.load %arg1[%c0_3, %c0_4, %c0_5] : memref<1x1136x128xf32, #tpu.memory_space<vmem>>, vector<1x192x32xf32>
      %8 = vector.shape_cast %7 : vector<1x192x32xf32> to vector<192x32xf32>
      %cst = arith.constant dense<0.000000e+00> : vector<8x32xf32>
      %9 = tpu.matmul %6, %8, %cst {dimension_numbers = #tpu.dot_dimension_numbers<[1], [0], [0], [1], [0, 0, 1, 1], [], []>} : vector<8x192xf32>, vector<192x32xf32>, vector<8x32xf32> -> vector<8x32xf32>
      %c0_6 = arith.constant 0 : index
      %c192 = arith.constant 192 : index
      %c0_7 = arith.constant 0 : index
      %10 = vector.load %arg1[%c0_6, %c192, %c0_7] : memref<1x1136x128xf32, #tpu.memory_space<vmem>>, vector<1x10x8xf32>
      %11 = vector.shape_cast %10 : vector<1x10x8xf32> to vector<10x8xf32>
      %cst_8 = arith.constant dense<0.000000e+00> : vector<10x32xf32>
      %12 = tpu.matmul %11, %9, %cst_8 {dimension_numbers = #tpu.dot_dimension_numbers<[1], [0], [0], [1], [0, 0, 1, 1], [], []>} : vector<10x8xf32>, vector<8x32xf32>, vector<10x32xf32> -> vector<10x32xf32>
      %c0_9 = arith.constant 0 : index
      %c208 = arith.constant 208 : index
      %c0_10 = arith.constant 0 : index
      %13 = vector.load %arg1[%c0_9, %c208, %c0_10] : memref<1x1136x128xf32, #tpu.memory_space<vmem>>, vector<1x10x32xf32>
      %14 = vector.shape_cast %13 : vector<1x10x32xf32> to vector<10x32xf32>
      %15 = arith.addf %12, %14 : vector<10x32xf32>
      %c0_11 = arith.constant 0 : index
      %c288 = arith.constant 288 : index
      %c0_12 = arith.constant 0 : index
      %16 = vector.load %arg1[%c0_11, %c288, %c0_12] : memref<1x1136x128xf32, #tpu.memory_space<vmem>>, vector<1x1x32xf32>
      %17 = vector.shape_cast %16 : vector<1x1x32xf32> to vector<1x32xf32>
      %c0_13 = arith.constant 0 : index
      %c296 = arith.constant 296 : index
      %c0_14 = arith.constant 0 : index
      %18 = vector.load %arg1[%c0_13, %c296, %c0_14] : memref<1x1136x128xf32, #tpu.memory_space<vmem>>, vector<1x1x32xf32>
      %19 = vector.shape_cast %18 : vector<1x1x32xf32> to vector<1x32xf32>
      %cst_15 = arith.constant dense<0.000000e+00> : vector<10xf32>
      %20 = vector.multi_reduction <add>, %15, %cst_15 [1] : vector<10x32xf32> to vector<10xf32>
      %21 = vector.shape_cast %20 : vector<10xf32> to vector<10x1xf32>
      %cst_16 = arith.constant 3.200000e+01 : f32
      %22 = vector.broadcast %cst_16 : f32 to vector<10x1xf32>
      %23 = arith.divf %21, %22 : vector<10x1xf32>
      %24 = vector.broadcast %23 : vector<10x1xf32> to vector<10x32xf32>
      %25 = arith.subf %15, %24 : vector<10x32xf32>
      %26 = arith.mulf %25, %25 : vector<10x32xf32>
      %cst_17 = arith.constant dense<0.000000e+00> : vector<10xf32>
      %27 = vector.multi_reduction <add>, %26, %cst_17 [1] : vector<10x32xf32> to vector<10xf32>
      %28 = vector.shape_cast %27 : vector<10xf32> to vector<10x1xf32>
      %cst_18 = arith.constant 3.200000e+01 : f32
      %29 = vector.broadcast %cst_18 : f32 to vector<10x1xf32>
      %30 = arith.divf %28, %29 : vector<10x1xf32>
      %cst_19 = arith.constant 9.99999974E-6 : f32
      %31 = vector.broadcast %cst_19 : f32 to vector<10x1xf32>
      %32 = arith.addf %30, %31 : vector<10x1xf32>
      %33 = math.rsqrt %32 : vector<10x1xf32>
      %34 = vector.broadcast %33 : vector<10x1xf32> to vector<10x32xf32>
      %35 = arith.mulf %25, %34 : vector<10x32xf32>
      %36 = vector.broadcast %17 : vector<1x32xf32> to vector<10x32xf32>
      %37 = arith.mulf %35, %36 : vector<10x32xf32>
      %38 = vector.broadcast %19 : vector<1x32xf32> to vector<10x32xf32>
      %39 = arith.addf %37, %38 : vector<10x32xf32>
      %c0_20 = arith.constant 0 : index
      %c248 = arith.constant 248 : index
      %c0_21 = arith.constant 0 : index
      %40 = vector.load %arg1[%c0_20, %c248, %c0_21] : memref<1x1136x128xf32, #tpu.memory_space<vmem>>, vector<1x40x32xf32>
      %41 = vector.shape_cast %40 : vector<1x40x32xf32> to vector<40x32xf32>
      %c0_22 = arith.constant 0 : index
      %c232 = arith.constant 232 : index
      %c0_23 = arith.constant 0 : index
      %42 = vector.load %arg1[%c0_22, %c232, %c0_23] : memref<1x1136x128xf32, #tpu.memory_space<vmem>>, vector<1x10x40xf32>
      %43 = vector.shape_cast %42 : vector<1x10x40xf32> to vector<10x40xf32>
      %c0_24 = arith.constant 0 : index
      %c352 = arith.constant 352 : index
      %c0_25 = arith.constant 0 : index
      %44 = vector.load %arg1[%c0_24, %c352, %c0_25] : memref<1x1136x128xf32, #tpu.memory_space<vmem>>, vector<1x1x32xf32>
      %45 = vector.shape_cast %44 : vector<1x1x32xf32> to vector<1x32xf32>
      %c0_26 = arith.constant 0 : index
      %c360 = arith.constant 360 : index
      %c0_27 = arith.constant 0 : index
      %46 = vector.load %arg1[%c0_26, %c360, %c0_27] : memref<1x1136x128xf32, #tpu.memory_space<vmem>>, vector<1x1x32xf32>
      %47 = vector.shape_cast %46 : vector<1x1x32xf32> to vector<1x32xf32>
      %cst_28 = arith.constant dense<0.000000e+00> : vector<10xf32>
      %48 = vector.multi_reduction <add>, %39, %cst_28 [1] : vector<10x32xf32> to vector<10xf32>
      %49 = vector.shape_cast %48 : vector<10xf32> to vector<10x1xf32>
      %cst_29 = arith.constant 3.200000e+01 : f32
      %50 = vector.broadcast %cst_29 : f32 to vector<10x1xf32>
      %51 = arith.divf %49, %50 : vector<10x1xf32>
      %52 = vector.broadcast %51 : vector<10x1xf32> to vector<10x32xf32>
      %53 = arith.subf %39, %52 : vector<10x32xf32>
      %54 = arith.mulf %53, %53 : vector<10x32xf32>
      %cst_30 = arith.constant dense<0.000000e+00> : vector<10xf32>
      %55 = vector.multi_reduction <add>, %54, %cst_30 [1] : vector<10x32xf32> to vector<10xf32>
      %56 = vector.shape_cast %55 : vector<10xf32> to vector<10x1xf32>
      %cst_31 = arith.constant 3.200000e+01 : f32
      %57 = vector.broadcast %cst_31 : f32 to vector<10x1xf32>
      %58 = arith.divf %56, %57 : vector<10x1xf32>
      %cst_32 = arith.constant 9.99999974E-6 : f32
      %59 = vector.broadcast %cst_32 : f32 to vector<10x1xf32>
      %60 = arith.addf %58, %59 : vector<10x1xf32>
      %61 = math.rsqrt %60 : vector<10x1xf32>
      %62 = vector.broadcast %61 : vector<10x1xf32> to vector<10x32xf32>
      %63 = arith.mulf %53, %62 : vector<10x32xf32>
      %64 = vector.broadcast %45 : vector<1x32xf32> to vector<10x32xf32>
      %65 = arith.mulf %63, %64 : vector<10x32xf32>
      %66 = vector.broadcast %47 : vector<1x32xf32> to vector<10x32xf32>
      %67 = arith.addf %65, %66 : vector<10x32xf32>
      %c0_33 = arith.constant 0 : index
      %c368 = arith.constant 368 : index
      %c0_34 = arith.constant 0 : index
      %68 = vector.load %arg1[%c0_33, %c368, %c0_34] : memref<1x1136x128xf32, #tpu.memory_space<vmem>>, vector<1x32x32xf32>
      %69 = vector.shape_cast %68 : vector<1x32x32xf32> to vector<32x32xf32>
      %cst_35 = arith.constant dense<0.000000e+00> : vector<10x32xf32>
      %70 = tpu.matmul %67, %69, %cst_35 {dimension_numbers = #tpu.dot_dimension_numbers<[1], [0], [0], [1], [0, 0, 1, 1], [], []>} : vector<10x32xf32>, vector<32x32xf32>, vector<10x32xf32> -> vector<10x32xf32>
      %c0_36 = arith.constant 0 : index
      %c400 = arith.constant 400 : index
      %c0_37 = arith.constant 0 : index
      %71 = vector.load %arg1[%c0_36, %c400, %c0_37] : memref<1x1136x128xf32, #tpu.memory_space<vmem>>, vector<1x1x32xf32>
      %72 = vector.shape_cast %71 : vector<1x1x32xf32> to vector<1x32xf32>
      %73 = vector.broadcast %72 : vector<1x32xf32> to vector<10x32xf32>
      %74 = arith.addf %70, %73 : vector<10x32xf32>
      %c0_38 = arith.constant 0 : index
      %c408 = arith.constant 408 : index
      %c0_39 = arith.constant 0 : index
      %75 = vector.load %arg1[%c0_38, %c408, %c0_39] : memref<1x1136x128xf32, #tpu.memory_space<vmem>>, vector<1x32x32xf32>
      %76 = vector.shape_cast %75 : vector<1x32x32xf32> to vector<32x32xf32>
      %cst_40 = arith.constant dense<0.000000e+00> : vector<10x32xf32>
      %77 = tpu.matmul %67, %76, %cst_40 {dimension_numbers = #tpu.dot_dimension_numbers<[1], [0], [0], [1], [0, 0, 1, 1], [], []>} : vector<10x32xf32>, vector<32x32xf32>, vector<10x32xf32> -> vector<10x32xf32>
      %c0_41 = arith.constant 0 : index
      %c440 = arith.constant 440 : index
      %c0_42 = arith.constant 0 : index
      %78 = vector.load %arg1[%c0_41, %c440, %c0_42] : memref<1x1136x128xf32, #tpu.memory_space<vmem>>, vector<1x1x32xf32>
      %79 = vector.shape_cast %78 : vector<1x1x32xf32> to vector<1x32xf32>
      %80 = vector.broadcast %79 : vector<1x32xf32> to vector<10x32xf32>
      %81 = arith.addf %77, %80 : vector<10x32xf32>
      %c0_43 = arith.constant 0 : index
      %c448 = arith.constant 448 : index
      %c0_44 = arith.constant 0 : index
      %82 = vector.load %arg1[%c0_43, %c448, %c0_44] : memref<1x1136x128xf32, #tpu.memory_space<vmem>>, vector<1x32x32xf32>
      %83 = vector.shape_cast %82 : vector<1x32x32xf32> to vector<32x32xf32>
      %cst_45 = arith.constant dense<0.000000e+00> : vector<10x32xf32>
      %84 = tpu.matmul %67, %83, %cst_45 {dimension_numbers = #tpu.dot_dimension_numbers<[1], [0], [0], [1], [0, 0, 1, 1], [], []>} : vector<10x32xf32>, vector<32x32xf32>, vector<10x32xf32> -> vector<10x32xf32>
      %c0_46 = arith.constant 0 : index
      %c480 = arith.constant 480 : index
      %c0_47 = arith.constant 0 : index
      %85 = vector.load %arg1[%c0_46, %c480, %c0_47] : memref<1x1136x128xf32, #tpu.memory_space<vmem>>, vector<1x1x32xf32>
      %86 = vector.shape_cast %85 : vector<1x1x32xf32> to vector<1x32xf32>
      %87 = vector.broadcast %86 : vector<1x32xf32> to vector<10x32xf32>
      %88 = arith.addf %84, %87 : vector<10x32xf32>
      %89 = tpu.concatenate %81, %81, %81, %81 in 0 : vector<10x32xf32>, vector<10x32xf32>, vector<10x32xf32>, vector<10x32xf32> -> vector<40x32xf32>
      %90 = arith.mulf %89, %41 : vector<40x32xf32>
      %91 = tpu.concatenate %88, %88, %88, %88 in 0 : vector<10x32xf32>, vector<10x32xf32>, vector<10x32xf32>, vector<10x32xf32> -> vector<40x32xf32>
      %92 = arith.mulf %91, %41 : vector<40x32xf32>
      %cst_48 = arith.constant dense<0.000000e+00> : vector<10x40xf32>
      %93 = tpu.matmul %74, %90, %cst_48 {dimension_numbers = #tpu.dot_dimension_numbers<[1], [1], [0], [0], [0, 0, 1, 0], [], []>} : vector<10x32xf32>, vector<40x32xf32>, vector<10x40xf32> -> vector<10x40xf32>
      %94 = arith.addf %93, %43 : vector<10x40xf32>
      %cst_49 = arith.constant dense<0xFF800000> : vector<10xf32>
      %95 = vector.multi_reduction <maximumf>, %94, %cst_49 [1] : vector<10x40xf32> to vector<10xf32>
      %96 = vector.shape_cast %95 : vector<10xf32> to vector<10x1xf32>
      %97 = vector.broadcast %96 : vector<10x1xf32> to vector<10x40xf32>
      %98 = arith.subf %94, %97 : vector<10x40xf32>
      %99 = math.exp %98 : vector<10x40xf32>
      %cst_50 = arith.constant dense<0.000000e+00> : vector<10x32xf32>
      %100 = tpu.matmul %99, %41, %cst_50 {dimension_numbers = #tpu.dot_dimension_numbers<[1], [0], [0], [1], [0, 0, 1, 1], [], []>} : vector<10x40xf32>, vector<40x32xf32>, vector<10x32xf32> -> vector<10x32xf32>
      %cst_51 = arith.constant dense<0.000000e+00> : vector<10x32xf32>
      %101 = tpu.matmul %99, %92, %cst_51 {dimension_numbers = #tpu.dot_dimension_numbers<[1], [0], [0], [1], [0, 0, 1, 1], [], []>} : vector<10x40xf32>, vector<40x32xf32>, vector<10x32xf32> -> vector<10x32xf32>
      %102 = arith.divf %101, %100 : vector<10x32xf32>
      %c0_52 = arith.constant 0 : index
      %c488 = arith.constant 488 : index
      %c0_53 = arith.constant 0 : index
      %103 = vector.load %arg1[%c0_52, %c488, %c0_53] : memref<1x1136x128xf32, #tpu.memory_space<vmem>>, vector<1x32x32xf32>
      %104 = vector.shape_cast %103 : vector<1x32x32xf32> to vector<32x32xf32>
      %cst_54 = arith.constant dense<0.000000e+00> : vector<10x32xf32>
      %105 = tpu.matmul %102, %104, %cst_54 {dimension_numbers = #tpu.dot_dimension_numbers<[1], [0], [0], [1], [0, 0, 1, 1], [], []>} : vector<10x32xf32>, vector<32x32xf32>, vector<10x32xf32> -> vector<10x32xf32>
      %106 = arith.addf %39, %105 : vector<10x32xf32>
      %c0_55 = arith.constant 0 : index
      %c520 = arith.constant 520 : index
      %c0_56 = arith.constant 0 : index
      %107 = vector.load %arg1[%c0_55, %c520, %c0_56] : memref<1x1136x128xf32, #tpu.memory_space<vmem>>, vector<1x1x32xf32>
      %108 = vector.shape_cast %107 : vector<1x1x32xf32> to vector<1x32xf32>
      %109 = vector.broadcast %108 : vector<1x32xf32> to vector<10x32xf32>
      %110 = arith.addf %106, %109 : vector<10x32xf32>
      %c0_57 = arith.constant 0 : index
      %c528 = arith.constant 528 : index
      %c0_58 = arith.constant 0 : index
      %111 = vector.load %arg1[%c0_57, %c528, %c0_58] : memref<1x1136x128xf32, #tpu.memory_space<vmem>>, vector<1x1x32xf32>
      %112 = vector.shape_cast %111 : vector<1x1x32xf32> to vector<1x32xf32>
      %c0_59 = arith.constant 0 : index
      %c536 = arith.constant 536 : index
      %c0_60 = arith.constant 0 : index
      %113 = vector.load %arg1[%c0_59, %c536, %c0_60] : memref<1x1136x128xf32, #tpu.memory_space<vmem>>, vector<1x1x32xf32>
      %114 = vector.shape_cast %113 : vector<1x1x32xf32> to vector<1x32xf32>
      %cst_61 = arith.constant dense<0.000000e+00> : vector<10xf32>
      %115 = vector.multi_reduction <add>, %110, %cst_61 [1] : vector<10x32xf32> to vector<10xf32>
      %116 = vector.shape_cast %115 : vector<10xf32> to vector<10x1xf32>
      %cst_62 = arith.constant 3.200000e+01 : f32
      %117 = vector.broadcast %cst_62 : f32 to vector<10x1xf32>
      %118 = arith.divf %116, %117 : vector<10x1xf32>
      %119 = vector.broadcast %118 : vector<10x1xf32> to vector<10x32xf32>
      %120 = arith.subf %110, %119 : vector<10x32xf32>
      %121 = arith.mulf %120, %120 : vector<10x32xf32>
      %cst_63 = arith.constant dense<0.000000e+00> : vector<10xf32>
      %122 = vector.multi_reduction <add>, %121, %cst_63 [1] : vector<10x32xf32> to vector<10xf32>
      %123 = vector.shape_cast %122 : vector<10xf32> to vector<10x1xf32>
      %cst_64 = arith.constant 3.200000e+01 : f32
      %124 = vector.broadcast %cst_64 : f32 to vector<10x1xf32>
      %125 = arith.divf %123, %124 : vector<10x1xf32>
      %cst_65 = arith.constant 9.99999974E-6 : f32
      %126 = vector.broadcast %cst_65 : f32 to vector<10x1xf32>
      %127 = arith.addf %125, %126 : vector<10x1xf32>
      %128 = math.rsqrt %127 : vector<10x1xf32>
      %129 = vector.broadcast %128 : vector<10x1xf32> to vector<10x32xf32>
      %130 = arith.mulf %120, %129 : vector<10x32xf32>
      %131 = vector.broadcast %112 : vector<1x32xf32> to vector<10x32xf32>
      %132 = arith.mulf %130, %131 : vector<10x32xf32>
      %133 = vector.broadcast %114 : vector<1x32xf32> to vector<10x32xf32>
      %134 = arith.addf %132, %133 : vector<10x32xf32>
      %c0_66 = arith.constant 0 : index
      %c544 = arith.constant 544 : index
      %c0_67 = arith.constant 0 : index
      %135 = vector.load %arg1[%c0_66, %c544, %c0_67] : memref<1x1136x128xf32, #tpu.memory_space<vmem>>, vector<1x32x128xf32>
      %136 = vector.shape_cast %135 : vector<1x32x128xf32> to vector<32x128xf32>
      %cst_68 = arith.constant dense<0.000000e+00> : vector<10x128xf32>
      %137 = tpu.matmul %134, %136, %cst_68 {dimension_numbers = #tpu.dot_dimension_numbers<[1], [0], [0], [1], [0, 0, 1, 1], [], []>} : vector<10x32xf32>, vector<32x128xf32>, vector<10x128xf32> -> vector<10x128xf32>
      %c0_69 = arith.constant 0 : index
      %c576 = arith.constant 576 : index
      %c0_70 = arith.constant 0 : index
      %138 = vector.load %arg1[%c0_69, %c576, %c0_70] : memref<1x1136x128xf32, #tpu.memory_space<vmem>>, vector<1x1x128xf32>
      %139 = vector.shape_cast %138 : vector<1x1x128xf32> to vector<1x128xf32>
      %140 = vector.broadcast %139 : vector<1x128xf32> to vector<10x128xf32>
      %141 = arith.addf %137, %140 : vector<10x128xf32>
      %cst_71 = arith.constant 1.702000e+00 : f32
      %142 = vector.broadcast %cst_71 : f32 to vector<10x128xf32>
      %143 = arith.mulf %142, %141 : vector<10x128xf32>
      %144 = arith.negf %143 : vector<10x128xf32>
      %145 = math.exp %144 : vector<10x128xf32>
      %cst_72 = arith.constant 1.000000e+00 : f32
      %146 = vector.broadcast %cst_72 : f32 to vector<10x128xf32>
      %147 = arith.addf %146, %145 : vector<10x128xf32>
      %148 = arith.divf %146, %147 : vector<10x128xf32>
      %149 = arith.mulf %141, %148 : vector<10x128xf32>
      %c0_73 = arith.constant 0 : index
      %c584 = arith.constant 584 : index
      %c0_74 = arith.constant 0 : index
      %150 = vector.load %arg1[%c0_73, %c584, %c0_74] : memref<1x1136x128xf32, #tpu.memory_space<vmem>>, vector<1x32x128xf32>
      %151 = vector.shape_cast %150 : vector<1x32x128xf32> to vector<32x128xf32>
      %cst_75 = arith.constant dense<0.000000e+00> : vector<10x32xf32>
      %152 = tpu.matmul %149, %151, %cst_75 {dimension_numbers = #tpu.dot_dimension_numbers<[1], [1], [0], [0], [0, 0, 1, 0], [], []>} : vector<10x128xf32>, vector<32x128xf32>, vector<10x32xf32> -> vector<10x32xf32>
      %c0_76 = arith.constant 0 : index
      %c616 = arith.constant 616 : index
      %c0_77 = arith.constant 0 : index
      %153 = vector.load %arg1[%c0_76, %c616, %c0_77] : memref<1x1136x128xf32, #tpu.memory_space<vmem>>, vector<1x1x32xf32>
      %154 = vector.shape_cast %153 : vector<1x1x32xf32> to vector<1x32xf32>
      %155 = vector.broadcast %154 : vector<1x32xf32> to vector<10x32xf32>
      %156 = arith.addf %152, %155 : vector<10x32xf32>
      %157 = arith.addf %110, %156 : vector<10x32xf32>
      %c0_78 = arith.constant 0 : index
      %c624 = arith.constant 624 : index
      %c0_79 = arith.constant 0 : index
      %158 = vector.load %arg1[%c0_78, %c624, %c0_79] : memref<1x1136x128xf32, #tpu.memory_space<vmem>>, vector<1x32x32xf32>
      %159 = vector.shape_cast %158 : vector<1x32x32xf32> to vector<32x32xf32>
      %cst_80 = arith.constant dense<0.000000e+00> : vector<10x32xf32>
      %160 = tpu.matmul %157, %159, %cst_80 {dimension_numbers = #tpu.dot_dimension_numbers<[1], [0], [0], [1], [0, 0, 1, 1], [], []>} : vector<10x32xf32>, vector<32x32xf32>, vector<10x32xf32> -> vector<10x32xf32>
      %c0_81 = arith.constant 0 : index
      %c656 = arith.constant 656 : index
      %c0_82 = arith.constant 0 : index
      %161 = vector.load %arg1[%c0_81, %c656, %c0_82] : memref<1x1136x128xf32, #tpu.memory_space<vmem>>, vector<1x1x32xf32>
      %162 = vector.shape_cast %161 : vector<1x1x32xf32> to vector<1x32xf32>
      %163 = vector.broadcast %162 : vector<1x32xf32> to vector<10x32xf32>
      %164 = arith.addf %160, %163 : vector<10x32xf32>
      %cst_83 = arith.constant 0.000000e+00 : f32
      %165 = vector.broadcast %cst_83 : f32 to vector<10x32xf32>
      %166 = arith.maximumf %164, %165 : vector<10x32xf32>
      %c0_84 = arith.constant 0 : index
      %c664 = arith.constant 664 : index
      %c0_85 = arith.constant 0 : index
      %167 = vector.load %arg1[%c0_84, %c664, %c0_85] : memref<1x1136x128xf32, #tpu.memory_space<vmem>>, vector<1x32x32xf32>
      %168 = vector.shape_cast %167 : vector<1x32x32xf32> to vector<32x32xf32>
      %cst_86 = arith.constant dense<0.000000e+00> : vector<10x32xf32>
      %169 = tpu.matmul %166, %168, %cst_86 {dimension_numbers = #tpu.dot_dimension_numbers<[1], [0], [0], [1], [0, 0, 1, 1], [], []>} : vector<10x32xf32>, vector<32x32xf32>, vector<10x32xf32> -> vector<10x32xf32>
      %c0_87 = arith.constant 0 : index
      %c696 = arith.constant 696 : index
      %c0_88 = arith.constant 0 : index
      %170 = vector.load %arg1[%c0_87, %c696, %c0_88] : memref<1x1136x128xf32, #tpu.memory_space<vmem>>, vector<1x1x32xf32>
      %171 = vector.shape_cast %170 : vector<1x1x32xf32> to vector<1x32xf32>
      %172 = vector.broadcast %171 : vector<1x32xf32> to vector<10x32xf32>
      %173 = arith.addf %169, %172 : vector<10x32xf32>
      %cst_89 = arith.constant 0.000000e+00 : f32
      %174 = vector.broadcast %cst_89 : f32 to vector<10x32xf32>
      %175 = arith.maximumf %173, %174 : vector<10x32xf32>
      %c0_90 = arith.constant 0 : index
      %c704 = arith.constant 704 : index
      %c0_91 = arith.constant 0 : index
      %176 = vector.load %arg1[%c0_90, %c704, %c0_91] : memref<1x1136x128xf32, #tpu.memory_space<vmem>>, vector<1x32x32xf32>
      %177 = vector.shape_cast %176 : vector<1x32x32xf32> to vector<32x32xf32>
      %cst_92 = arith.constant dense<0.000000e+00> : vector<10x32xf32>
      %178 = tpu.matmul %175, %177, %cst_92 {dimension_numbers = #tpu.dot_dimension_numbers<[1], [0], [0], [1], [0, 0, 1, 1], [], []>} : vector<10x32xf32>, vector<32x32xf32>, vector<10x32xf32> -> vector<10x32xf32>
      %c0_93 = arith.constant 0 : index
      %c736 = arith.constant 736 : index
      %c0_94 = arith.constant 0 : index
      %179 = vector.load %arg1[%c0_93, %c736, %c0_94] : memref<1x1136x128xf32, #tpu.memory_space<vmem>>, vector<1x1x32xf32>
      %180 = vector.shape_cast %179 : vector<1x1x32xf32> to vector<1x32xf32>
      %181 = vector.broadcast %180 : vector<1x32xf32> to vector<10x32xf32>
      %182 = arith.addf %178, %181 : vector<10x32xf32>
      %cst_95 = arith.constant 1.000000e-03 : f32
      %183 = vector.broadcast %cst_95 : f32 to vector<10x32xf32>
      %184 = arith.mulf %183, %182 : vector<10x32xf32>
      %185 = arith.addf %157, %184 : vector<10x32xf32>
      %c0_96 = arith.constant 0 : index
      %c744 = arith.constant 744 : index
      %c0_97 = arith.constant 0 : index
      %186 = vector.load %arg1[%c0_96, %c744, %c0_97] : memref<1x1136x128xf32, #tpu.memory_space<vmem>>, vector<1x1x32xf32>
      %187 = vector.shape_cast %186 : vector<1x1x32xf32> to vector<1x32xf32>
      %c0_98 = arith.constant 0 : index
      %c752 = arith.constant 752 : index
      %c0_99 = arith.constant 0 : index
      %188 = vector.load %arg1[%c0_98, %c752, %c0_99] : memref<1x1136x128xf32, #tpu.memory_space<vmem>>, vector<1x1x32xf32>
      %189 = vector.shape_cast %188 : vector<1x1x32xf32> to vector<1x32xf32>
      %cst_100 = arith.constant dense<0.000000e+00> : vector<10xf32>
      %190 = vector.multi_reduction <add>, %185, %cst_100 [1] : vector<10x32xf32> to vector<10xf32>
      %191 = vector.shape_cast %190 : vector<10xf32> to vector<10x1xf32>
      %cst_101 = arith.constant 3.200000e+01 : f32
      %192 = vector.broadcast %cst_101 : f32 to vector<10x1xf32>
      %193 = arith.divf %191, %192 : vector<10x1xf32>
      %194 = vector.broadcast %193 : vector<10x1xf32> to vector<10x32xf32>
      %195 = arith.subf %185, %194 : vector<10x32xf32>
      %196 = arith.mulf %195, %195 : vector<10x32xf32>
      %cst_102 = arith.constant dense<0.000000e+00> : vector<10xf32>
      %197 = vector.multi_reduction <add>, %196, %cst_102 [1] : vector<10x32xf32> to vector<10xf32>
      %198 = vector.shape_cast %197 : vector<10xf32> to vector<10x1xf32>
      %cst_103 = arith.constant 3.200000e+01 : f32
      %199 = vector.broadcast %cst_103 : f32 to vector<10x1xf32>
      %200 = arith.divf %198, %199 : vector<10x1xf32>
      %cst_104 = arith.constant 9.99999974E-6 : f32
      %201 = vector.broadcast %cst_104 : f32 to vector<10x1xf32>
      %202 = arith.addf %200, %201 : vector<10x1xf32>
      %203 = math.rsqrt %202 : vector<10x1xf32>
      %204 = vector.broadcast %203 : vector<10x1xf32> to vector<10x32xf32>
      %205 = arith.mulf %195, %204 : vector<10x32xf32>
      %206 = vector.broadcast %187 : vector<1x32xf32> to vector<10x32xf32>
      %207 = arith.mulf %205, %206 : vector<10x32xf32>
      %208 = vector.broadcast %189 : vector<1x32xf32> to vector<10x32xf32>
      %209 = arith.addf %207, %208 : vector<10x32xf32>
      %c0_105 = arith.constant 0 : index
      %c760 = arith.constant 760 : index
      %c0_106 = arith.constant 0 : index
      %210 = vector.load %arg1[%c0_105, %c760, %c0_106] : memref<1x1136x128xf32, #tpu.memory_space<vmem>>, vector<1x32x32xf32>
      %211 = vector.shape_cast %210 : vector<1x32x32xf32> to vector<32x32xf32>
      %cst_107 = arith.constant dense<0.000000e+00> : vector<10x32xf32>
      %212 = tpu.matmul %209, %211, %cst_107 {dimension_numbers = #tpu.dot_dimension_numbers<[1], [0], [0], [1], [0, 0, 1, 1], [], []>} : vector<10x32xf32>, vector<32x32xf32>, vector<10x32xf32> -> vector<10x32xf32>
      %c0_108 = arith.constant 0 : index
      %c792 = arith.constant 792 : index
      %c0_109 = arith.constant 0 : index
      %213 = vector.load %arg1[%c0_108, %c792, %c0_109] : memref<1x1136x128xf32, #tpu.memory_space<vmem>>, vector<1x1x32xf32>
      %214 = vector.shape_cast %213 : vector<1x1x32xf32> to vector<1x32xf32>
      %215 = vector.broadcast %214 : vector<1x32xf32> to vector<10x32xf32>
      %216 = arith.addf %212, %215 : vector<10x32xf32>
      %c0_110 = arith.constant 0 : index
      %c800 = arith.constant 800 : index
      %c0_111 = arith.constant 0 : index
      %217 = vector.load %arg1[%c0_110, %c800, %c0_111] : memref<1x1136x128xf32, #tpu.memory_space<vmem>>, vector<1x32x32xf32>
      %218 = vector.shape_cast %217 : vector<1x32x32xf32> to vector<32x32xf32>
      %cst_112 = arith.constant dense<0.000000e+00> : vector<10x32xf32>
      %219 = tpu.matmul %209, %218, %cst_112 {dimension_numbers = #tpu.dot_dimension_numbers<[1], [0], [0], [1], [0, 0, 1, 1], [], []>} : vector<10x32xf32>, vector<32x32xf32>, vector<10x32xf32> -> vector<10x32xf32>
      %c0_113 = arith.constant 0 : index
      %c832 = arith.constant 832 : index
      %c0_114 = arith.constant 0 : index
      %220 = vector.load %arg1[%c0_113, %c832, %c0_114] : memref<1x1136x128xf32, #tpu.memory_space<vmem>>, vector<1x1x32xf32>
      %221 = vector.shape_cast %220 : vector<1x1x32xf32> to vector<1x32xf32>
      %222 = vector.broadcast %221 : vector<1x32xf32> to vector<10x32xf32>
      %223 = arith.addf %219, %222 : vector<10x32xf32>
      %c0_115 = arith.constant 0 : index
      %c840 = arith.constant 840 : index
      %c0_116 = arith.constant 0 : index
      %224 = vector.load %arg1[%c0_115, %c840, %c0_116] : memref<1x1136x128xf32, #tpu.memory_space<vmem>>, vector<1x32x32xf32>
      %225 = vector.shape_cast %224 : vector<1x32x32xf32> to vector<32x32xf32>
      %cst_117 = arith.constant dense<0.000000e+00> : vector<10x32xf32>
      %226 = tpu.matmul %209, %225, %cst_117 {dimension_numbers = #tpu.dot_dimension_numbers<[1], [0], [0], [1], [0, 0, 1, 1], [], []>} : vector<10x32xf32>, vector<32x32xf32>, vector<10x32xf32> -> vector<10x32xf32>
      %c0_118 = arith.constant 0 : index
      %c872 = arith.constant 872 : index
      %c0_119 = arith.constant 0 : index
      %227 = vector.load %arg1[%c0_118, %c872, %c0_119] : memref<1x1136x128xf32, #tpu.memory_space<vmem>>, vector<1x1x32xf32>
      %228 = vector.shape_cast %227 : vector<1x1x32xf32> to vector<1x32xf32>
      %229 = vector.broadcast %228 : vector<1x32xf32> to vector<10x32xf32>
      %230 = arith.addf %226, %229 : vector<10x32xf32>
      %231 = tpu.concatenate %223, %223, %223, %223 in 0 : vector<10x32xf32>, vector<10x32xf32>, vector<10x32xf32>, vector<10x32xf32> -> vector<40x32xf32>
      %232 = arith.mulf %231, %41 : vector<40x32xf32>
      %233 = tpu.concatenate %230, %230, %230, %230 in 0 : vector<10x32xf32>, vector<10x32xf32>, vector<10x32xf32>, vector<10x32xf32> -> vector<40x32xf32>
      %234 = arith.mulf %233, %41 : vector<40x32xf32>
      %cst_120 = arith.constant dense<0.000000e+00> : vector<10x40xf32>
      %235 = tpu.matmul %216, %232, %cst_120 {dimension_numbers = #tpu.dot_dimension_numbers<[1], [1], [0], [0], [0, 0, 1, 0], [], []>} : vector<10x32xf32>, vector<40x32xf32>, vector<10x40xf32> -> vector<10x40xf32>
      %236 = arith.addf %235, %43 : vector<10x40xf32>
      %cst_121 = arith.constant dense<0xFF800000> : vector<10xf32>
      %237 = vector.multi_reduction <maximumf>, %236, %cst_121 [1] : vector<10x40xf32> to vector<10xf32>
      %238 = vector.shape_cast %237 : vector<10xf32> to vector<10x1xf32>
      %239 = vector.broadcast %238 : vector<10x1xf32> to vector<10x40xf32>
      %240 = arith.subf %236, %239 : vector<10x40xf32>
      %241 = math.exp %240 : vector<10x40xf32>
      %cst_122 = arith.constant dense<0.000000e+00> : vector<10x32xf32>
      %242 = tpu.matmul %241, %41, %cst_122 {dimension_numbers = #tpu.dot_dimension_numbers<[1], [0], [0], [1], [0, 0, 1, 1], [], []>} : vector<10x40xf32>, vector<40x32xf32>, vector<10x32xf32> -> vector<10x32xf32>
      %cst_123 = arith.constant dense<0.000000e+00> : vector<10x32xf32>
      %243 = tpu.matmul %241, %234, %cst_123 {dimension_numbers = #tpu.dot_dimension_numbers<[1], [0], [0], [1], [0, 0, 1, 1], [], []>} : vector<10x40xf32>, vector<40x32xf32>, vector<10x32xf32> -> vector<10x32xf32>
      %244 = arith.divf %243, %242 : vector<10x32xf32>
      %c0_124 = arith.constant 0 : index
      %c880 = arith.constant 880 : index
      %c0_125 = arith.constant 0 : index
      %245 = vector.load %arg1[%c0_124, %c880, %c0_125] : memref<1x1136x128xf32, #tpu.memory_space<vmem>>, vector<1x32x32xf32>
      %246 = vector.shape_cast %245 : vector<1x32x32xf32> to vector<32x32xf32>
      %cst_126 = arith.constant dense<0.000000e+00> : vector<10x32xf32>
      %247 = tpu.matmul %244, %246, %cst_126 {dimension_numbers = #tpu.dot_dimension_numbers<[1], [0], [0], [1], [0, 0, 1, 1], [], []>} : vector<10x32xf32>, vector<32x32xf32>, vector<10x32xf32> -> vector<10x32xf32>
      %248 = arith.addf %185, %247 : vector<10x32xf32>
      %c0_127 = arith.constant 0 : index
      %c912 = arith.constant 912 : index
      %c0_128 = arith.constant 0 : index
      %249 = vector.load %arg1[%c0_127, %c912, %c0_128] : memref<1x1136x128xf32, #tpu.memory_space<vmem>>, vector<1x1x32xf32>
      %250 = vector.shape_cast %249 : vector<1x1x32xf32> to vector<1x32xf32>
      %251 = vector.broadcast %250 : vector<1x32xf32> to vector<10x32xf32>
      %252 = arith.addf %248, %251 : vector<10x32xf32>
      %c0_129 = arith.constant 0 : index
      %c920 = arith.constant 920 : index
      %c0_130 = arith.constant 0 : index
      %253 = vector.load %arg1[%c0_129, %c920, %c0_130] : memref<1x1136x128xf32, #tpu.memory_space<vmem>>, vector<1x1x32xf32>
      %254 = vector.shape_cast %253 : vector<1x1x32xf32> to vector<1x32xf32>
      %c0_131 = arith.constant 0 : index
      %c928 = arith.constant 928 : index
      %c0_132 = arith.constant 0 : index
      %255 = vector.load %arg1[%c0_131, %c928, %c0_132] : memref<1x1136x128xf32, #tpu.memory_space<vmem>>, vector<1x1x32xf32>
      %256 = vector.shape_cast %255 : vector<1x1x32xf32> to vector<1x32xf32>
      %cst_133 = arith.constant dense<0.000000e+00> : vector<10xf32>
      %257 = vector.multi_reduction <add>, %252, %cst_133 [1] : vector<10x32xf32> to vector<10xf32>
      %258 = vector.shape_cast %257 : vector<10xf32> to vector<10x1xf32>
      %cst_134 = arith.constant 3.200000e+01 : f32
      %259 = vector.broadcast %cst_134 : f32 to vector<10x1xf32>
      %260 = arith.divf %258, %259 : vector<10x1xf32>
      %261 = vector.broadcast %260 : vector<10x1xf32> to vector<10x32xf32>
      %262 = arith.subf %252, %261 : vector<10x32xf32>
      %263 = arith.mulf %262, %262 : vector<10x32xf32>
      %cst_135 = arith.constant dense<0.000000e+00> : vector<10xf32>
      %264 = vector.multi_reduction <add>, %263, %cst_135 [1] : vector<10x32xf32> to vector<10xf32>
      %265 = vector.shape_cast %264 : vector<10xf32> to vector<10x1xf32>
      %cst_136 = arith.constant 3.200000e+01 : f32
      %266 = vector.broadcast %cst_136 : f32 to vector<10x1xf32>
      %267 = arith.divf %265, %266 : vector<10x1xf32>
      %cst_137 = arith.constant 9.99999974E-6 : f32
      %268 = vector.broadcast %cst_137 : f32 to vector<10x1xf32>
      %269 = arith.addf %267, %268 : vector<10x1xf32>
      %270 = math.rsqrt %269 : vector<10x1xf32>
      %271 = vector.broadcast %270 : vector<10x1xf32> to vector<10x32xf32>
      %272 = arith.mulf %262, %271 : vector<10x32xf32>
      %273 = vector.broadcast %254 : vector<1x32xf32> to vector<10x32xf32>
      %274 = arith.mulf %272, %273 : vector<10x32xf32>
      %275 = vector.broadcast %256 : vector<1x32xf32> to vector<10x32xf32>
      %276 = arith.addf %274, %275 : vector<10x32xf32>
      %c0_138 = arith.constant 0 : index
      %c936 = arith.constant 936 : index
      %c0_139 = arith.constant 0 : index
      %277 = vector.load %arg1[%c0_138, %c936, %c0_139] : memref<1x1136x128xf32, #tpu.memory_space<vmem>>, vector<1x32x128xf32>
      %278 = vector.shape_cast %277 : vector<1x32x128xf32> to vector<32x128xf32>
      %cst_140 = arith.constant dense<0.000000e+00> : vector<10x128xf32>
      %279 = tpu.matmul %276, %278, %cst_140 {dimension_numbers = #tpu.dot_dimension_numbers<[1], [0], [0], [1], [0, 0, 1, 1], [], []>} : vector<10x32xf32>, vector<32x128xf32>, vector<10x128xf32> -> vector<10x128xf32>
      %c0_141 = arith.constant 0 : index
      %c968 = arith.constant 968 : index
      %c0_142 = arith.constant 0 : index
      %280 = vector.load %arg1[%c0_141, %c968, %c0_142] : memref<1x1136x128xf32, #tpu.memory_space<vmem>>, vector<1x1x128xf32>
      %281 = vector.shape_cast %280 : vector<1x1x128xf32> to vector<1x128xf32>
      %282 = vector.broadcast %281 : vector<1x128xf32> to vector<10x128xf32>
      %283 = arith.addf %279, %282 : vector<10x128xf32>
      %cst_143 = arith.constant 1.702000e+00 : f32
      %284 = vector.broadcast %cst_143 : f32 to vector<10x128xf32>
      %285 = arith.mulf %284, %283 : vector<10x128xf32>
      %286 = arith.negf %285 : vector<10x128xf32>
      %287 = math.exp %286 : vector<10x128xf32>
      %cst_144 = arith.constant 1.000000e+00 : f32
      %288 = vector.broadcast %cst_144 : f32 to vector<10x128xf32>
      %289 = arith.addf %288, %287 : vector<10x128xf32>
      %290 = arith.divf %288, %289 : vector<10x128xf32>
      %291 = arith.mulf %283, %290 : vector<10x128xf32>
      %c0_145 = arith.constant 0 : index
      %c976 = arith.constant 976 : index
      %c0_146 = arith.constant 0 : index
      %292 = vector.load %arg1[%c0_145, %c976, %c0_146] : memref<1x1136x128xf32, #tpu.memory_space<vmem>>, vector<1x32x128xf32>
      %293 = vector.shape_cast %292 : vector<1x32x128xf32> to vector<32x128xf32>
      %cst_147 = arith.constant dense<0.000000e+00> : vector<10x32xf32>
      %294 = tpu.matmul %291, %293, %cst_147 {dimension_numbers = #tpu.dot_dimension_numbers<[1], [1], [0], [0], [0, 0, 1, 0], [], []>} : vector<10x128xf32>, vector<32x128xf32>, vector<10x32xf32> -> vector<10x32xf32>
      %c0_148 = arith.constant 0 : index
      %c1008 = arith.constant 1008 : index
      %c0_149 = arith.constant 0 : index
      %295 = vector.load %arg1[%c0_148, %c1008, %c0_149] : memref<1x1136x128xf32, #tpu.memory_space<vmem>>, vector<1x1x32xf32>
      %296 = vector.shape_cast %295 : vector<1x1x32xf32> to vector<1x32xf32>
      %297 = vector.broadcast %296 : vector<1x32xf32> to vector<10x32xf32>
      %298 = arith.addf %294, %297 : vector<10x32xf32>
      %299 = arith.addf %252, %298 : vector<10x32xf32>
      %c0_150 = arith.constant 0 : index
      %c1016 = arith.constant 1016 : index
      %c0_151 = arith.constant 0 : index
      %300 = vector.load %arg1[%c0_150, %c1016, %c0_151] : memref<1x1136x128xf32, #tpu.memory_space<vmem>>, vector<1x32x32xf32>
      %301 = vector.shape_cast %300 : vector<1x32x32xf32> to vector<32x32xf32>
      %cst_152 = arith.constant dense<0.000000e+00> : vector<10x32xf32>
      %302 = tpu.matmul %299, %301, %cst_152 {dimension_numbers = #tpu.dot_dimension_numbers<[1], [0], [0], [1], [0, 0, 1, 1], [], []>} : vector<10x32xf32>, vector<32x32xf32>, vector<10x32xf32> -> vector<10x32xf32>
      %c0_153 = arith.constant 0 : index
      %c1048 = arith.constant 1048 : index
      %c0_154 = arith.constant 0 : index
      %303 = vector.load %arg1[%c0_153, %c1048, %c0_154] : memref<1x1136x128xf32, #tpu.memory_space<vmem>>, vector<1x1x32xf32>
      %304 = vector.shape_cast %303 : vector<1x1x32xf32> to vector<1x32xf32>
      %305 = vector.broadcast %304 : vector<1x32xf32> to vector<10x32xf32>
      %306 = arith.addf %302, %305 : vector<10x32xf32>
      %cst_155 = arith.constant 0.000000e+00 : f32
      %307 = vector.broadcast %cst_155 : f32 to vector<10x32xf32>
      %308 = arith.maximumf %306, %307 : vector<10x32xf32>
      %c0_156 = arith.constant 0 : index
      %c1056 = arith.constant 1056 : index
      %c0_157 = arith.constant 0 : index
      %309 = vector.load %arg1[%c0_156, %c1056, %c0_157] : memref<1x1136x128xf32, #tpu.memory_space<vmem>>, vector<1x32x32xf32>
      %310 = vector.shape_cast %309 : vector<1x32x32xf32> to vector<32x32xf32>
      %cst_158 = arith.constant dense<0.000000e+00> : vector<10x32xf32>
      %311 = tpu.matmul %308, %310, %cst_158 {dimension_numbers = #tpu.dot_dimension_numbers<[1], [0], [0], [1], [0, 0, 1, 1], [], []>} : vector<10x32xf32>, vector<32x32xf32>, vector<10x32xf32> -> vector<10x32xf32>
      %c0_159 = arith.constant 0 : index
      %c1088 = arith.constant 1088 : index
      %c0_160 = arith.constant 0 : index
      %312 = vector.load %arg1[%c0_159, %c1088, %c0_160] : memref<1x1136x128xf32, #tpu.memory_space<vmem>>, vector<1x1x32xf32>
      %313 = vector.shape_cast %312 : vector<1x1x32xf32> to vector<1x32xf32>
      %314 = vector.broadcast %313 : vector<1x32xf32> to vector<10x32xf32>
      %315 = arith.addf %311, %314 : vector<10x32xf32>
      %cst_161 = arith.constant 0.000000e+00 : f32
      %316 = vector.broadcast %cst_161 : f32 to vector<10x32xf32>
      %317 = arith.maximumf %315, %316 : vector<10x32xf32>
      %c0_162 = arith.constant 0 : index
      %c1096 = arith.constant 1096 : index
      %c0_163 = arith.constant 0 : index
      %318 = vector.load %arg1[%c0_162, %c1096, %c0_163] : memref<1x1136x128xf32, #tpu.memory_space<vmem>>, vector<1x32x32xf32>
      %319 = vector.shape_cast %318 : vector<1x32x32xf32> to vector<32x32xf32>
      %cst_164 = arith.constant dense<0.000000e+00> : vector<10x32xf32>
      %320 = tpu.matmul %317, %319, %cst_164 {dimension_numbers = #tpu.dot_dimension_numbers<[1], [0], [0], [1], [0, 0, 1, 1], [], []>} : vector<10x32xf32>, vector<32x32xf32>, vector<10x32xf32> -> vector<10x32xf32>
      %c0_165 = arith.constant 0 : index
      %c1128 = arith.constant 1128 : index
      %c0_166 = arith.constant 0 : index
      %321 = vector.load %arg1[%c0_165, %c1128, %c0_166] : memref<1x1136x128xf32, #tpu.memory_space<vmem>>, vector<1x1x32xf32>
      %322 = vector.shape_cast %321 : vector<1x1x32xf32> to vector<1x32xf32>
      %323 = vector.broadcast %322 : vector<1x32xf32> to vector<10x32xf32>
      %324 = arith.addf %320, %323 : vector<10x32xf32>
      %cst_167 = arith.constant 1.000000e-03 : f32
      %325 = vector.broadcast %cst_167 : f32 to vector<10x32xf32>
      %326 = arith.mulf %325, %324 : vector<10x32xf32>
      %327 = arith.addf %299, %326 : vector<10x32xf32>
      %c0_168 = arith.constant 0 : index
      %c224 = arith.constant 224 : index
      %c0_169 = arith.constant 0 : index
      %328 = vector.load %arg1[%c0_168, %c224, %c0_169] : memref<1x1136x128xf32, #tpu.memory_space<vmem>>, vector<1x8x10xf32>
      %329 = vector.shape_cast %328 : vector<1x8x10xf32> to vector<8x10xf32>
      %cst_170 = arith.constant dense<0.000000e+00> : vector<8x32xf32>
      %330 = tpu.matmul %329, %327, %cst_170 {dimension_numbers = #tpu.dot_dimension_numbers<[1], [0], [0], [1], [0, 0, 1, 1], [], []>} : vector<8x10xf32>, vector<10x32xf32>, vector<8x32xf32> -> vector<8x32xf32>
      %c0_171 = arith.constant 0 : index
      %c304 = arith.constant 304 : index
      %c0_172 = arith.constant 0 : index
      %331 = vector.load %arg1[%c0_171, %c304, %c0_172] : memref<1x1136x128xf32, #tpu.memory_space<vmem>>, vector<1x1x32xf32>
      %332 = vector.shape_cast %331 : vector<1x1x32xf32> to vector<1x32xf32>
      %c0_173 = arith.constant 0 : index
      %c312 = arith.constant 312 : index
      %c0_174 = arith.constant 0 : index
      %333 = vector.load %arg1[%c0_173, %c312, %c0_174] : memref<1x1136x128xf32, #tpu.memory_space<vmem>>, vector<1x1x32xf32>
      %334 = vector.shape_cast %333 : vector<1x1x32xf32> to vector<1x32xf32>
      %cst_175 = arith.constant dense<0.000000e+00> : vector<8xf32>
      %335 = vector.multi_reduction <add>, %330, %cst_175 [1] : vector<8x32xf32> to vector<8xf32>
      %336 = vector.shape_cast %335 : vector<8xf32> to vector<8x1xf32>
      %cst_176 = arith.constant 3.200000e+01 : f32
      %337 = vector.broadcast %cst_176 : f32 to vector<8x1xf32>
      %338 = arith.divf %336, %337 : vector<8x1xf32>
      %339 = vector.broadcast %338 : vector<8x1xf32> to vector<8x32xf32>
      %340 = arith.subf %330, %339 : vector<8x32xf32>
      %341 = arith.mulf %340, %340 : vector<8x32xf32>
      %cst_177 = arith.constant dense<0.000000e+00> : vector<8xf32>
      %342 = vector.multi_reduction <add>, %341, %cst_177 [1] : vector<8x32xf32> to vector<8xf32>
      %343 = vector.shape_cast %342 : vector<8xf32> to vector<8x1xf32>
      %cst_178 = arith.constant 3.200000e+01 : f32
      %344 = vector.broadcast %cst_178 : f32 to vector<8x1xf32>
      %345 = arith.divf %343, %344 : vector<8x1xf32>
      %cst_179 = arith.constant 9.99999974E-6 : f32
      %346 = vector.broadcast %cst_179 : f32 to vector<8x1xf32>
      %347 = arith.addf %345, %346 : vector<8x1xf32>
      %348 = math.rsqrt %347 : vector<8x1xf32>
      %349 = vector.broadcast %348 : vector<8x1xf32> to vector<8x32xf32>
      %350 = arith.mulf %340, %349 : vector<8x32xf32>
      %351 = vector.broadcast %332 : vector<1x32xf32> to vector<8x32xf32>
      %352 = arith.mulf %350, %351 : vector<8x32xf32>
      %353 = vector.broadcast %334 : vector<1x32xf32> to vector<8x32xf32>
      %354 = arith.addf %352, %353 : vector<8x32xf32>
      %c0_180 = arith.constant 0 : index
      %c320 = arith.constant 320 : index
      %c0_181 = arith.constant 0 : index
      %355 = vector.load %arg1[%c0_180, %c320, %c0_181] : memref<1x1136x128xf32, #tpu.memory_space<vmem>>, vector<1x32x128xf32>
      %356 = vector.shape_cast %355 : vector<1x32x128xf32> to vector<32x128xf32>
      %cst_182 = arith.constant dense<0.000000e+00> : vector<8x128xf32>
      %357 = tpu.matmul %354, %356, %cst_182 {dimension_numbers = #tpu.dot_dimension_numbers<[1], [0], [0], [1], [0, 0, 1, 1], [], []>} : vector<8x32xf32>, vector<32x128xf32>, vector<8x128xf32> -> vector<8x128xf32>
      %358 = arith.mulf %357, %357 : vector<8x128xf32>
      %cst_183 = arith.constant dense<0.000000e+00> : vector<8xf32>
      %359 = vector.multi_reduction <add>, %358, %cst_183 [1] : vector<8x128xf32> to vector<8xf32>
      %360 = vector.shape_cast %359 : vector<8xf32> to vector<8x1xf32>
      %cst_184 = arith.constant 9.99999996E-13 : f32
      %361 = vector.broadcast %cst_184 : f32 to vector<8x1xf32>
      %362 = arith.addf %360, %361 : vector<8x1xf32>
      %363 = math.rsqrt %362 : vector<8x1xf32>
      %364 = vector.broadcast %363 : vector<8x1xf32> to vector<8x128xf32>
      %365 = arith.mulf %357, %364 : vector<8x128xf32>
      %c0_185 = arith.constant 0 : index
      %c0_186 = arith.constant 0 : index
      %c0_187 = arith.constant 0 : index
      %366 = vector.load %arg3[%c0_185, %c0_186, %c0_187] : memref<1x8x128xf32, #tpu.memory_space<vmem>>, vector<1x8x128xf32>
      %367 = vector.shape_cast %366 : vector<1x8x128xf32> to vector<8x128xf32>
      %368 = vector.shape_cast %365 : vector<8x128xf32> to vector<1x8x128xf32>
      tpu.vector_store %arg3[%c0_185, %c0_186, %c0_187], %368 {strides = array<i32>} : memref<1x8x128xf32, #tpu.memory_space<vmem>>, vector<1x8x128xf32>,
    } else {
    }
    return
  }
  func.func @transform_0(%arg0: i32) -> (i32, i32, i32) {
    %c0_i32 = arith.constant 0 : i32
    %c0_i32_0 = arith.constant 0 : i32
    %c0_i32_1 = arith.constant 0 : i32
    return %arg0, %c0_i32, %c0_i32_0 : i32, i32, i32
  }
  func.func @transform_1(%arg0: i32) -> (i32, i32) {
    %c0_i32 = arith.constant 0 : i32
    %c0_i32_0 = arith.constant 0 : i32
    %c0_i32_1 = arith.constant 0 : i32
    return %c0_i32, %c0_i32_0 : i32, i32
  }
  func.func @transform_2(%arg0: i32) -> (i32, i32, i32) {
    %c0_i32 = arith.constant 0 : i32
    %c0_i32_0 = arith.constant 0 : i32
    %c0_i32_1 = arith.constant 0 : i32
    return %arg0, %c0_i32, %c0_i32_0 : i32, i32, i32
  }
}

</mosaic_0001>

<llo_original>
// kernel: maple_forward.1
$region0: #{maple_forward.1}
  #allocation0 [shape = 'u32[]', space=smem, size = 0x4, offset = 0x4, fixed_abs, tag = 'smem constant byte address 0x4 - core index']
  #allocation1 [shape = 'u32[144,128]{1,0:T(1,128)}', space=vmem, size = 0x12000, scoped, tag = 'internal scratch']
  %s0 = inlined_call_operand.hbm [shape: f32[2,1136,128], index: 0, kind: input, shape index: {}]
  %s1 = inlined_call_operand.vmem [shape: f32[8,192], index: 1, kind: input, shape index: {}]
  %s2 = inlined_call_operand.vmem [shape: f32[2,8,128], index: 2, kind: output, shape index: {}]
  %s3 = sld [smem:[#allocation0]]
  $region53: #{maple_forward.1} parent=0
    _
  %s5 = ssub.s32 1, %s3
  %s6 = scalar_select 0, %s5, %s3
  $region1: #{maple_forward.1} parent=0
    #allocation2 [shape = 'u8[1163264]{0}', space=vmem, size = 0x11c000, scoped, tag = 'input window, operand 0']
    #allocation3 [shape = 's32[2]{0}', space=sflag, size = 0x8, scoped, tag = 'scoped memory for maple_forward.1']
    %7 = vsyncpa [#allocation3], 0
    %s8 = scalar_lea.sflag [#allocation3], 1
    %9 = vsyncpa %s8, 0
    loop: start=0, step=1, limit=4
    $region2: #{maple_forward.1} parent=1 // loop_pre_header
      _
    $region3: #{maple_forward.1} parent=1 // loop_header
      %s11 = sphi 0, %s15
      %p12 = scmp.ge.s32.totalorder %s11, 4
      %s21 = sphi 0, %s23
      %s24 = sphi 0, %s21
      %s25 = sphi 0, %s24
      %s41 = sphi 0, %s25
      %s45 = sphi 0, %s45
      %s47 = sphi 0, %s45
      %s48 = sphi 0, %s47
      %s62 = sphi 0, %s48
      %s68 = sphi 0, %s70
      %s71 = sphi 0, %s68
      %s72 = sphi 0, %s71
      %s88 = sphi 0, %s72
    $region4: #{maple_forward.1} parent=1 // loop_header_branch
      %14 = sbr.rel (%p12) target = $region8
    $region5: #{maple_forward.1} parent=1 // loop_body
      %s16 = ssub.s32 %s11, 1
      %s17 = ssub.s32 %s11, 2
      %s18 = sadd.s32 %s11, 1
      %s19 = ssub.s32 %s11, %s18
      %p20 = scmp.eq.s32.totalorder %s19, 0
      %s22 = sadd.s32 %s21, 1
      %s23 = scalar_select %p20, %s21, %s22
      %p26 = pneg %p20
      %p27 = scmp.eq.s32.totalorder %s11, 1
      %p28 = por %p26, %p27
      %p29 = scmp.ne.s32.totalorder %s21, %s24
      %p30 = scmp.eq.s32.totalorder %s11, 0
      %p31 = por %p29, %p30
      %p32 = scmp.ne.s32.totalorder %s21, %s24
      %p33 = scmp.eq.s32.totalorder %s16, 1
      %p34 = por %p32, %p33
      %p35 = scmp.ne.s32.totalorder %s24, %s25
      %p36 = scmp.eq.s32.totalorder %s16, 0
      %p37 = por %p35, %p36
      %p38 = scmp.ne.s32.totalorder %s24, %s25
      %p39 = scmp.eq.s32.totalorder %s17, 1
      %p40 = por %p38, %p39
      %p42 = scmp.ne.s32.totalorder %s25, %s41
      %p43 = scmp.eq.s32.totalorder %s17, 0
      %p44 = por %p42, %p43
      %s46 = sadd.s32 %s45, 1
      %p49 = scmp.eq.s32.totalorder %s11, 1
      %p50 = scmp.ne.s32.totalorder %s45, %s47
      %p51 = scmp.eq.s32.totalorder %s11, 0
      %p52 = por %p50, %p51
      %p53 = scmp.ne.s32.totalorder %s45, %s47
      %p54 = scmp.eq.s32.totalorder %s16, 1
      %p55 = por %p53, %p54
      %p56 = scmp.ne.s32.totalorder %s47, %s48
      %p57 = scmp.eq.s32.totalorder %s16, 0
      %p58 = por %p56, %p57
      %p59 = scmp.ne.s32.totalorder %s47, %s48
      %p60 = scmp.eq.s32.totalorder %s17, 1
      %p61 = por %p59, %p60
      %p63 = scmp.ne.s32.totalorder %s48, %s62
      %p64 = scmp.eq.s32.totalorder %s17, 0
      %p65 = por %p63, %p64
      %s66 = ssub.s32 %s11, %s18
      %p67 = scmp.eq.s32.totalorder %s66, 0
      %s69 = sadd.s32 %s68, 1
      %s70 = scalar_select %p67, %s68, %s69
      %p73 = pneg %p67
      %p74 = scmp.eq.s32.totalorder %s11, 1
      %p75 = por %p73, %p74
      %p76 = scmp.ne.s32.totalorder %s68, %s71
      %p77 = scmp.eq.s32.totalorder %s11, 0
      %p78 = por %p76, %p77
      %p79 = scmp.ne.s32.totalorder %s68, %s71
      %p80 = scmp.eq.s32.totalorder %s16, 1
      %p81 = por %p79, %p80
      %p82 = scmp.ne.s32.totalorder %s71, %s72
      %p83 = scmp.eq.s32.totalorder %s16, 0
      %p84 = por %p82, %p83
      %p85 = scmp.ne.s32.totalorder %s71, %s72
      %p86 = scmp.eq.s32.totalorder %s17, 1
      %p87 = por %p85, %p86
      %p89 = scmp.ne.s32.totalorder %s72, %s88
      %p90 = scmp.eq.s32.totalorder %s17, 0
      %p91 = por %p89, %p90
      %p92 = scmp.le.s32.totalorder 1, %s11
      %p93 = scmp.lt.s32.totalorder %s11, 3
      %p94 = pnand %p92, %p93
      %p95 = pneg %p94
      // Predicated region
      $region9: #{maple_forward.1} parent=5 // pred_check
        _
      $region10: #{maple_forward.1} parent=5 // pred_check_branch
        %97 = sbr.rel (%p94) target = $region12
      $region11: #{maple_forward.1} parent=5 // pred_region
        %s98 = ssub.s32 %s11, 1
        // Predicated region
        $region13: #{maple_forward.1} parent=11 // pred_check
          %p99 = pneg %p58
        $region14: #{maple_forward.1} parent=11 // pred_check_branch
          %101 = sbr.rel (%p99) target = $region16
        $region15: #{maple_forward.1} parent=11 // pred_region
          _
        $region16: #{maple_forward.1} parent=11 // pred_fallthru
          _
      $region12: #{maple_forward.1} parent=5 // pred_fallthru
        _
      %p102 = scmp.lt.s32.totalorder %s11, 2
      // Predicated region
      $region17: #{maple_forward.1} parent=5 // pred_check
        %p103 = pneg %p102
      $region18: #{maple_forward.1} parent=5 // pred_check_branch
        %105 = sbr.rel (%p103) target = $region20
      $region19: #{maple_forward.1} parent=5 // pred_region
        // Predicated region
        $region21: #{maple_forward.1} parent=19 // pred_check
          %p106 = pneg %p31
        $region22: #{maple_forward.1} parent=19 // pred_check_branch
          %108 = sbr.rel (%p106) target = $region24
        $region23: #{maple_forward.1} parent=19 // pred_region
          %s109 = sand.u32 %s21, 1
          %s110 = scalar_lea.sflag [#allocation3], %s109
          %s111 = sand.u32 %s21, 1
          %s112 = smul.addr %s111, 1136
          %s113 = scalar_lea.vmem [#allocation2], %s112
          %s115 = ssub.s32 18176, 18176
          %116 = vsyncadd %s110, %s115
          %s117 = smul.addr %s11, 142
          %s118 = smul.addr %s117, 128
          %s119 = scalar_lea.hbm %s0, %s118
          %s120 = sshll.u32 %s113, 4
          %s121 = int_to_ptr.vmem [resolvable:$true] %s120
          %126 = dma.hbm_to_vmem [thread:$0]  %s119, 18176, %s121, %s110, 128, 128, 8
        $region24: #{maple_forward.1} parent=19 // pred_fallthru
          _
      $region20: #{maple_forward.1} parent=5 // pred_fallthru
        _
      %p127 = scmp.le.s32.totalorder 1, %s11
      %p128 = scmp.lt.s32.totalorder %s11, 3
      %p129 = pnand %p127, %p128
      %p130 = pneg %p129
      // Predicated region
      $region25: #{maple_forward.1} parent=5 // pred_check
        _
      $region26: #{maple_forward.1} parent=5 // pred_check_branch
        %132 = sbr.rel (%p129) target = $region28
      $region27: #{maple_forward.1} parent=5 // pred_region
        %s133 = ssub.s32 %s11, 1
        %s134 = sand.u32 %s24, 1
        %s135 = scalar_lea.sflag [#allocation3], %s134
        %s136 = sand.u32 %s24, 1
        %s137 = smul.addr %s136, 1136
        %s138 = scalar_lea.vmem [#allocation2], %s137
        // Predicated region
        $region29: #{maple_forward.1} parent=27 // pred_check
          %p139 = pneg %p37
        $region30: #{maple_forward.1} parent=27 // pred_check_branch
          %141 = sbr.rel (%p139) target = $region32
        $region31: #{maple_forward.1} parent=27 // pred_region
          %142 = dma.done %s135, 18176
        $region32: #{maple_forward.1} parent=27 // pred_fallthru
          _
        %s143 = sand.u32 %s24, 1
        %s144 = scalar_lea.sflag [#allocation3], %s143
        %s145 = sand.u32 %s24, 1
        %s146 = smul.addr %s145, 1136
        %s147 = scalar_lea.vmem [#allocation2], %s146
        %p148 = pneg %p37
        %p149 = pneg %p34
        %p150 = pneg %p58
        %p151 = pneg %p55
        %p152 = pneg %p84
        %p153 = pneg %p81
        %p154 = scmp.lt.s32.totalorder %s16, 1
        %s155 = scalar_select %p154, %s16, 1
        %s156 = smul.addr %s155, 8
        %s157 = scalar_lea.vmem %s2, %s156
        %p158 = scmp.lt.s32.totalorder %s16, 1
        %s159 = scalar_select %p158, %s16, 1
        %s160 = smul.addr %s159, 8
        %s161 = scalar_lea.vmem %s2, %s160
        %p162 = scmp.eq.s32.totalorder %s16, 0
        // Predicated region
        $region33: #{maple_forward.1} parent=27 // pred_check
          %p163 = pneg %p162
        $region34: #{maple_forward.1} parent=27 // pred_check_branch
          %165 = sbr.rel (%p163) target = $region36
        $region35: #{maple_forward.1} parent=27 // pred_region
          %v166 = vld [vmem:[%s138] sm:$0xff]
          %v167 = vld [vmem:[%s138 + $0x8] sm:$0xff]
          %v168 = vld [vmem:[%s138 + $0x10] sm:$0xff]
          %v169 = vld [vmem:[%s138 + $0x30] sm:$0xff]
          %v170 = vld [vmem:[%s138 + $0x38] sm:$0xff]
          %v171 = vld [vmem:[%s138 + $0x40] sm:$0xff]
          %v172 = vld [vmem:[%s138 + $0x48] sm:$0xff]
          %v173 = vld [vmem:[%s138 + $0x50] sm:$0xff]
          %v174 = vld [vmem:[%s138 + $0x58] sm:$0xff]
          %v175 = vld [vmem:[%s138 + $0x60] sm:$0xff]
          %v176 = vld [vmem:[%s138 + $0x68] sm:$0xff]
          %v177 = vld [vmem:[%s138 + $0x70] sm:$0xff]
          %v178 = vld [vmem:[%s138 + $0x78] sm:$0xff]
          %v179 = vld [vmem:[%s138 + $0x80] sm:$0xff]
          %v180 = vld [vmem:[%s138 + $0x88] sm:$0xff]
          %v181 = vld [vmem:[%s138 + $0x18] sm:$0xff]
          %v182 = vld [vmem:[%s138 + $0x20] sm:$0xff]
          %v183 = vld [vmem:[%s138 + $0x28] sm:$0xff]
          %v184 = vld [vmem:[%s138 + $0xc8] sm:$0x1]
          %v185 = vld [vmem:[%s138 + $0xd0] sm:$0x1]
          %vm186 = vcmask 261120
          %v187 = vsel %vm186, %v166, 0.0
          %188 = vadd.xlane.f32.xlu0 %v187
          %v189 = vpop.xlane.xlu0 %188
          %v190 = vsel %vm186, %v167, 0.0
          %191 = vadd.xlane.f32.xlu0 %v190
          %v192 = vpop.xlane.xlu0 %191
          %v193 = vsel %vm186, %v168, 0.0
          %194 = vadd.xlane.f32.xlu0 %v193
          %v195 = vpop.xlane.xlu0 %194
          %v196 = vrcp.pop 32.0
          %v197 = vmul.f32 %v189, %v196
          %v198 = vmul.f32 %v192, %v196
          %v199 = vmul.f32 %v195, %v196
          %v200 = vsub.f32 %v166, %v197
          %v201 = vsub.f32 %v167, %v198
          %v202 = vsub.f32 %v168, %v199
          %v203 = vmul.f32 %v200, %v200
          %v204 = vmul.f32 %v201, %v201
          %v205 = vmul.f32 %v202, %v202
          %v206 = vsel %vm186, %v203, 0.0
          %207 = vadd.xlane.f32.xlu0 %v206
          %v208 = vpop.xlane.xlu0 %207
          %v209 = vsel %vm186, %v204, 0.0
          %210 = vadd.xlane.f32.xlu0 %v209
          %v211 = vpop.xlane.xlu0 %210
          %v212 = vsel %vm186, %v205, 0.0
          %213 = vadd.xlane.f32.xlu0 %v212
          %v214 = vpop.xlane.xlu0 %213
          %v215 = vmul.f32 %v208, %v196
          %v216 = vmul.f32 %v211, %v196
          %v217 = vmul.f32 %v214, %v196
          %v218 = vadd.f32 %v215, 1e-05
          %v219 = vadd.f32 %v216, 1e-05
          %v220 = vadd.f32 %v217, 1e-05
          %v221 = vrsqrt.pop %v218
          %v222 = vrsqrt.pop %v219
          %v223 = vrsqrt.pop %v220
          %v224 = vmul.f32 %v200, %v221
          %v225 = vmul.f32 %v201, %v222
          %v226 = vmul.f32 %v202, %v223
          %v227 = vlaneseq
          %v228 = vshrl.u32 %v227, 7
          %v229 = vsub.s32 0, %v228
          %v230 = vrot.slane %v184, %v229
          %v231 = vmul.f32 %v224, %v230
          %v232 = vmul.f32 %v225, %v230
          %v233 = vmul.f32 %v226, %v230
          %v234 = vlaneseq
          %v235 = vshrl.u32 %v234, 7
          %v236 = vsub.s32 0, %v235
          %v237 = vrot.slane %v185, %v236
          %v238 = vadd.f32 %v231, %v237
          %v239 = vadd.f32 %v232, %v237
          %v240 = vadd.f32 %v233, %v237
          %v241 = vld [vmem:[%s138 + $0xd8] sm:$0xff]
          %v242 = vld [vmem:[%s138 + $0xe0] sm:$0xff]
          %v243 = vld [vmem:[%s138 + $0xe8] sm:$0xff]
          %v244 = vld [vmem:[%s138 + $0xf0] sm:$0xff]
          %v245 = vld [vmem:[%s138 + $0xf8] sm:$0x1]
          %v246 = vlaneseq
          %v247 = vshrl.u32 %v246, 7
          %v248 = vsub.s32 0, %v247
          %v249 = vrot.slane %v245, %v248
          %v251 = vsel %vm186, %v238, 0
          %v254 = vsel %vm186, %v239, 0
          %v257 = vsel %vm186, %v240, 0
          %259 = vmatprep.subr.mxu0 0.0
          %260 = vmatpush1.msra.mxu0 0.0
          %261 = vmatprep.subr.mxu0 0.0
          %262 = vmatpush1.msra.mxu0 0.0
          %263 = vmatprep.subr.mxu0 0.0
          %264 = vmatpush1.msra.mxu0 0.0
          %265 = vmatprep.subr.mxu0 0.0
          %266 = vmatpush1.msra.mxu0 0.0
          %267 = vmatprep.subr.mxu0 0.0
          %268 = vmatpush1.msra.mxu0 0.0
          %269 = vmatprep.subr.mxu0 0.0
          %270 = vmatpush1.msra.mxu0 0.0
          %271 = vmatprep.subr.mxu0 0.0
          %272 = vmatpush1.msra.mxu0 0.0
          %273 = vmatprep.subr.mxu0 0.0
          %274 = vmatpush1.msra.mxu0 0.0
          %275 = vmatprep.subr.mxu0 0.0
          %276 = vmatpush1.msra.mxu0 0.0
          %277 = vmatprep.subr.mxu0 0.0
          %278 = vmatpush1.msra.mxu0 0.0
          %279 = vmatprep.subr.mxu0 0.0
          %280 = vmatpush1.msra.mxu0 0.0
          %281 = vmatprep.subr.mxu0 0.0
          %282 = vmatpush1.msra.mxu0 0.0
          %283 = vmatprep.subr.mxu0 0.0
          %284 = vmatpush1.msra.mxu0 %v244
          %285 = vmatprep.subr.mxu0 0.0
          %286 = vmatpush1.msra.mxu0 %v243
          %287 = vmatprep.subr.mxu0 0.0
          %288 = vmatpush1.msra.mxu0 %v242
          %289 = vmatprep.subr.mxu0 0.0
          %290 = vmatpush1.msra.mxu0 %v241
          %291 = vmatprep.subr.mxu0 0.0
          %292 = vmatpush2.msra.mxu0 0.0
          %293 = vmatprep.subr.mxu0 0.0
          %294 = vmatpush2.msra.mxu0 0.0
          %295 = vmatprep.subr.mxu0 0.0
          %296 = vmatpush2.msra.mxu0 0.0
          %297 = vmatprep.subr.mxu0 0.0
          %298 = vmatpush2.msra.mxu0 0.0
          %299 = vmatprep.subr.mxu0 0.0
          %300 = vmatpush2.msra.mxu0 0.0
          %301 = vmatprep.subr.mxu0 0.0
          %302 = vmatpush2.msra.mxu0 0.0
          %303 = vmatprep.subr.mxu0 0.0
          %304 = vmatpush2.msra.mxu0 0.0
          %305 = vmatprep.subr.mxu0 0.0
          %306 = vmatpush2.msra.mxu0 0.0
          %307 = vmatprep.subr.mxu0 0.0
          %308 = vmatpush2.msra.mxu0 0.0
          %309 = vmatprep.subr.mxu0 0.0
          %310 = vmatpush2.msra.mxu0 0.0
          %311 = vmatprep.subr.mxu0 0.0
          %312 = vmatpush2.msra.mxu0 0.0
          %313 = vmatprep.subr.mxu0 0.0
          %314 = vmatpush2.msra.mxu0 0.0
          %315 = vmatprep.subr.mxu0 0.0
          %316 = vmatpush2.msra.mxu0 0.0
          %317 = vmatprep.subr.mxu0 0.0
          %318 = vmatpush2.msra.mxu0 0.0
          %319 = vmatprep.subr.mxu0 0.0
          %320 = vmatpush2.msra.mxu0 0.0
          %321 = vmatprep.subr.mxu0 0.0
          %322 = vmatpush2.msra.mxu0 0.0
          %323 = vmatprep.mubr.f32.mxu0 0.0
          %324 = vmatmul.mubr.f32.gmra.mxu0 %v251
          %v325 = vpop.f32.mrf.mxu0
          %v326 = vadd.f32 %v249, %v325
          %v327 = vpop.f32.mrf.mxu0
          %328 = vmatprep.mubr.f32.mxu0 0.0
          %329 = vmatmul.mubr.f32.gmra.mxu0 %v254
          %v330 = vpop.f32.mrf.mxu0
          %v331 = vadd.f32 %v249, %v330
          %v332 = vpop.f32.mrf.mxu0
          %333 = vmatprep.mubr.f32.mxu0 0.0
          %334 = vmatmul.mubr.f32.gmra.mxu0 %v257
          %v335 = vpop.f32.mrf.mxu0
          %v336 = vadd.f32 %v249, %v335
          %v337 = vpop.f32.mrf.mxu0
          %338 = vdwg.mxu0
          %v339 = vld [vmem:[%s138 + $0x100] sm:$0xff]
          %v340 = vld [vmem:[%s138 + $0x108] sm:$0xff]
          %v341 = vld [vmem:[%s138 + $0x110] sm:$0xff]
          %v342 = vld [vmem:[%s138 + $0x118] sm:$0xff]
          %v343 = vld [vmem:[%s138 + $0x120] sm:$0x1]
          %v344 = vlaneseq
          %v345 = vshrl.u32 %v344, 7
          %v346 = vsub.s32 0, %v345
          %v347 = vrot.slane %v343, %v346
          %348 = vmatprep.subr.mxu0 0.0
          %349 = vmatpush1.msra.mxu0 0.0
          %350 = vmatprep.subr.mxu0 0.0
          %351 = vmatpush1.msra.mxu0 0.0
          %352 = vmatprep.subr.mxu0 0.0
          %353 = vmatpush1.msra.mxu0 0.0
          %354 = vmatprep.subr.mxu0 0.0
          %355 = vmatpush1.msra.mxu0 0.0
          %356 = vmatprep.subr.mxu0 0.0
          %357 = vmatpush1.msra.mxu0 0.0
          %358 = vmatprep.subr.mxu0 0.0
          %359 = vmatpush1.msra.mxu0 0.0
          %360 = vmatprep.subr.mxu0 0.0
          %361 = vmatpush1.msra.mxu0 0.0
          %362 = vmatprep.subr.mxu0 0.0
          %363 = vmatpush1.msra.mxu0 0.0
          %364 = vmatprep.subr.mxu0 0.0
          %365 = vmatpush1.msra.mxu0 0.0
          %366 = vmatprep.subr.mxu0 0.0
          %367 = vmatpush1.msra.mxu0 0.0
          %368 = vmatprep.subr.mxu0 0.0
          %369 = vmatpush1.msra.mxu0 0.0
          %370 = vmatprep.subr.mxu0 0.0
          %371 = vmatpush1.msra.mxu0 0.0
          %372 = vmatprep.subr.mxu0 0.0
          %373 = vmatpush1.msra.mxu0 %v342
          %374 = vmatprep.subr.mxu0 0.0
          %375 = vmatpush1.msra.mxu0 %v341
          %376 = vmatprep.subr.mxu0 0.0
          %377 = vmatpush1.msra.mxu0 %v340
          %378 = vmatprep.subr.mxu0 0.0
          %379 = vmatpush1.msra.mxu0 %v339
          %380 = vmatprep.subr.mxu0 0.0
          %381 = vmatpush2.msra.mxu0 0.0
          %382 = vmatprep.subr.mxu0 0.0
          %383 = vmatpush2.msra.mxu0 0.0
          %384 = vmatprep.subr.mxu0 0.0
          %385 = vmatpush2.msra.mxu0 0.0
          %386 = vmatprep.subr.mxu0 0.0
          %387 = vmatpush2.msra.mxu0 0.0
          %388 = vmatprep.subr.mxu0 0.0
          %389 = vmatpush2.msra.mxu0 0.0
          %390 = vmatprep.subr.mxu0 0.0
          %391 = vmatpush2.msra.mxu0 0.0
          %392 = vmatprep.subr.mxu0 0.0
          %393 = vmatpush2.msra.mxu0 0.0
          %394 = vmatprep.subr.mxu0 0.0
          %395 = vmatpush2.msra.mxu0 0.0
          %396 = vmatprep.subr.mxu0 0.0
          %397 = vmatpush2.msra.mxu0 0.0
          %398 = vmatprep.subr.mxu0 0.0
          %399 = vmatpush2.msra.mxu0 0.0
          %400 = vmatprep.subr.mxu0 0.0
          %401 = vmatpush2.msra.mxu0 0.0
          %402 = vmatprep.subr.mxu0 0.0
          %403 = vmatpush2.msra.mxu0 0.0
          %404 = vmatprep.subr.mxu0 0.0
          %405 = vmatpush2.msra.mxu0 0.0
          %406 = vmatprep.subr.mxu0 0.0
          %407 = vmatpush2.msra.mxu0 0.0
          %408 = vmatprep.subr.mxu0 0.0
          %409 = vmatpush2.msra.mxu0 0.0
          %410 = vmatprep.subr.mxu0 0.0
          %411 = vmatpush2.msra.mxu0 0.0
          %412 = vmatprep.mubr.f32.mxu0 0.0
          %413 = vmatmul.mubr.f32.gmra.mxu0 %v251
          %v414 = vpop.f32.mrf.mxu0
          %v415 = vadd.f32 %v347, %v414
          %v416 = vpop.f32.mrf.mxu0
          %417 = vmatprep.mubr.f32.mxu0 0.0
          %418 = vmatmul.mubr.f32.gmra.mxu0 %v254
          %v419 = vpop.f32.mrf.mxu0
          %v420 = vadd.f32 %v347, %v419
          %v421 = vpop.f32.mrf.mxu0
          %422 = vmatprep.mubr.f32.mxu0 0.0
          %423 = vmatmul.mubr.f32.gmra.mxu0 %v257
          %v424 = vpop.f32.mrf.mxu0
          %v425 = vadd.f32 %v347, %v424
          %v426 = vpop.f32.mrf.mxu0
          %427 = vdwg.mxu0
          %v428 = vld [vmem:[%s138 + $0x128] sm:$0xff]
          %v429 = vld [vmem:[%s138 + $0x130] sm:$0xff]
          %v430 = vld [vmem:[%s138 + $0x138] sm:$0xff]
          %v431 = vld [vmem:[%s138 + $0x140] sm:$0xff]
          %v432 = vld [vmem:[%s138 + $0x148] sm:$0x1]
          %v433 = vlaneseq
          %v434 = vshrl.u32 %v433, 7
          %v435 = vsub.s32 0, %v434
          %v436 = vrot.slane %v432, %v435
          %437 = vmatprep.subr.mxu0 0.0
          %438 = vmatpush1.msra.mxu0 0.0
          %439 = vmatprep.subr.mxu0 0.0
          %440 = vmatpush1.msra.mxu0 0.0
          %441 = vmatprep.subr.mxu0 0.0
          %442 = vmatpush1.msra.mxu0 0.0
          %443 = vmatprep.subr.mxu0 0.0
          %444 = vmatpush1.msra.mxu0 0.0
          %445 = vmatprep.subr.mxu0 0.0
          %446 = vmatpush1.msra.mxu0 0.0
          %447 = vmatprep.subr.mxu0 0.0
          %448 = vmatpush1.msra.mxu0 0.0
          %449 = vmatprep.subr.mxu0 0.0
          %450 = vmatpush1.msra.mxu0 0.0
          %451 = vmatprep.subr.mxu0 0.0
          %452 = vmatpush1.msra.mxu0 0.0
          %453 = vmatprep.subr.mxu0 0.0
          %454 = vmatpush1.msra.mxu0 0.0
          %455 = vmatprep.subr.mxu0 0.0
          %456 = vmatpush1.msra.mxu0 0.0
          %457 = vmatprep.subr.mxu0 0.0
          %458 = vmatpush1.msra.mxu0 0.0
          %459 = vmatprep.subr.mxu0 0.0
          %460 = vmatpush1.msra.mxu0 0.0
          %461 = vmatprep.subr.mxu0 0.0
          %462 = vmatpush1.msra.mxu0 %v431
          %463 = vmatprep.subr.mxu0 0.0
          %464 = vmatpush1.msra.mxu0 %v430
          %465 = vmatprep.subr.mxu0 0.0
          %466 = vmatpush1.msra.mxu0 %v429
          %467 = vmatprep.subr.mxu0 0.0
          %468 = vmatpush1.msra.mxu0 %v428
          %469 = vmatprep.subr.mxu0 0.0
          %470 = vmatpush2.msra.mxu0 0.0
          %471 = vmatprep.subr.mxu0 0.0
          %472 = vmatpush2.msra.mxu0 0.0
          %473 = vmatprep.subr.mxu0 0.0
          %474 = vmatpush2.msra.mxu0 0.0
          %475 = vmatprep.subr.mxu0 0.0
          %476 = vmatpush2.msra.mxu0 0.0
          %477 = vmatprep.subr.mxu0 0.0
          %478 = vmatpush2.msra.mxu0 0.0
          %479 = vmatprep.subr.mxu0 0.0
          %480 = vmatpush2.msra.mxu0 0.0
          %481 = vmatprep.subr.mxu0 0.0
          %482 = vmatpush2.msra.mxu0 0.0
          %483 = vmatprep.subr.mxu0 0.0
          %484 = vmatpush2.msra.mxu0 0.0
          %485 = vmatprep.subr.mxu0 0.0
          %486 = vmatpush2.msra.mxu0 0.0
          %487 = vmatprep.subr.mxu0 0.0
          %488 = vmatpush2.msra.mxu0 0.0
          %489 = vmatprep.subr.mxu0 0.0
          %490 = vmatpush2.msra.mxu0 0.0
          %491 = vmatprep.subr.mxu0 0.0
          %492 = vmatpush2.msra.mxu0 0.0
          %493 = vmatprep.subr.mxu0 0.0
          %494 = vmatpush2.msra.mxu0 0.0
          %495 = vmatprep.subr.mxu0 0.0
          %496 = vmatpush2.msra.mxu0 0.0
          %497 = vmatprep.subr.mxu0 0.0
          %498 = vmatpush2.msra.mxu0 0.0
          %499 = vmatprep.subr.mxu0 0.0
          %500 = vmatpush2.msra.mxu0 0.0
          %501 = vmatprep.mubr.f32.mxu0 0.0
          %502 = vmatmul.mubr.f32.gmra.mxu0 %v251
          %v503 = vpop.f32.mrf.mxu0
          %v504 = vadd.f32 %v436, %v503
          %v505 = vpop.f32.mrf.mxu0
          %506 = vmatprep.mubr.f32.mxu0 0.0
          %507 = vmatmul.mubr.f32.gmra.mxu0 %v254
          %v508 = vpop.f32.mrf.mxu0
          %v509 = vadd.f32 %v436, %v508
          %v510 = vpop.f32.mrf.mxu0
          %511 = vmatprep.mubr.f32.mxu0 0.0
          %512 = vmatmul.mubr.f32.gmra.mxu0 %v257
          %v513 = vpop.f32.mrf.mxu0
          %v514 = vadd.f32 %v436, %v513
          %v515 = vpop.f32.mrf.mxu0
          %516 = vdwg.mxu0
          %v517 = vmul.f32 %v415, %v169
          %v518 = vmul.f32 %v420, %v170
          %v519 = vmul.f32 %v425, %v171
          %v520 = vmul.f32 %v415, %v172
          %v521 = vmul.f32 %v420, %v173
          %v522 = vmul.f32 %v425, %v174
          %v523 = vmul.f32 %v415, %v175
          %v524 = vmul.f32 %v420, %v176
          %v525 = vmul.f32 %v425, %v177
          %v526 = vmul.f32 %v415, %v178
          %v527 = vmul.f32 %v420, %v179
          %v528 = vmul.f32 %v425, %v180
          %v529 = vmul.f32 %v504, %v169
          %v530 = vmul.f32 %v509, %v170
          %v531 = vmul.f32 %v514, %v171
          %v532 = vmul.f32 %v504, %v172
          %v533 = vmul.f32 %v509, %v173
          %v534 = vmul.f32 %v514, %v174
          %v535 = vmul.f32 %v504, %v175
          %v536 = vmul.f32 %v509, %v176
          %v537 = vmul.f32 %v514, %v177
          %v538 = vmul.f32 %v504, %v178
          %v539 = vmul.f32 %v509, %v179
          %v540 = vmul.f32 %v514, %v180
          %v542 = vsel %vm186, %v326, 0
          %v545 = vsel %vm186, %v331, 0
          %v548 = vsel %vm186, %v336, 0
          %v551 = vsel %vm186, %v517, 0
          %v554 = vsel %vm186, %v518, 0
          %v557 = vsel %vm186, %v519, 0
          %v560 = vsel %vm186, %v520, 0
          %v563 = vsel %vm186, %v521, 0
          %v566 = vsel %vm186, %v522, 0
          %v569 = vsel %vm186, %v523, 0
          %v572 = vsel %vm186, %v524, 0
          %v575 = vsel %vm186, %v525, 0
          %v578 = vsel %vm186, %v526, 0
          %v581 = vsel %vm186, %v527, 0
          %v584 = vsel %vm186, %v528, 0
          %586 = vmatprep.subr.mxu0 0.0
          %587 = vmatpush1.xpose.msra.mxu0 0.0
          %588 = vmatprep.subr.mxu0 0.0
          %589 = vmatpush1.xpose.msra.mxu0 0.0
          %590 = vmatprep.subr.mxu0 0.0
          %591 = vmatpush1.xpose.msra.mxu0 0.0
          %592 = vmatprep.subr.mxu0 0.0
          %593 = vmatpush1.xpose.msra.mxu0 0.0
          %594 = vmatprep.subr.mxu0 0.0
          %595 = vmatpush1.xpose.msra.mxu0 %v584
          %596 = vmatprep.subr.mxu0 0.0
          %597 = vmatpush1.xpose.msra.mxu0 %v581
          %598 = vmatprep.subr.mxu0 0.0
          %599 = vmatpush1.xpose.msra.mxu0 %v578
          %600 = vmatprep.subr.mxu0 0.0
          %601 = vmatpush1.xpose.msra.mxu0 %v575
          %602 = vmatprep.subr.mxu0 0.0
          %603 = vmatpush1.xpose.msra.mxu0 %v572
          %604 = vmatprep.subr.mxu0 0.0
          %605 = vmatpush1.xpose.msra.mxu0 %v569
          %606 = vmatprep.subr.mxu0 0.0
          %607 = vmatpush1.xpose.msra.mxu0 %v566
          %608 = vmatprep.subr.mxu0 0.0
          %609 = vmatpush1.xpose.msra.mxu0 %v563
          %610 = vmatprep.subr.mxu0 0.0
          %611 = vmatpush1.xpose.msra.mxu0 %v560
          %612 = vmatprep.subr.mxu0 0.0
          %613 = vmatpush1.xpose.msra.mxu0 %v557
          %614 = vmatprep.subr.mxu0 0.0
          %615 = vmatpush1.xpose.msra.mxu0 %v554
          %616 = vmatprep.subr.mxu0 0.0
          %617 = vmatpush1.xpose.msra.mxu0 %v551
          %618 = vmatprep.subr.mxu0 0.0
          %619 = vmatpush2.xpose.msra.mxu0 0.0
          %620 = vmatprep.subr.mxu0 0.0
          %621 = vmatpush2.xpose.msra.mxu0 0.0
          %622 = vmatprep.subr.mxu0 0.0
          %623 = vmatpush2.xpose.msra.mxu0 0.0
          %624 = vmatprep.subr.mxu0 0.0
          %625 = vmatpush2.xpose.msra.mxu0 0.0
          %626 = vmatprep.subr.mxu0 0.0
          %627 = vmatpush2.xpose.msra.mxu0 0.0
          %628 = vmatprep.subr.mxu0 0.0
          %629 = vmatpush2.xpose.msra.mxu0 0.0
          %630 = vmatprep.subr.mxu0 0.0
          %631 = vmatpush2.xpose.msra.mxu0 0.0
          %632 = vmatprep.subr.mxu0 0.0
          %633 = vmatpush2.xpose.msra.mxu0 0.0
          %634 = vmatprep.subr.mxu0 0.0
          %635 = vmatpush2.xpose.msra.mxu0 0.0
          %636 = vmatprep.subr.mxu0 0.0
          %637 = vmatpush2.xpose.msra.mxu0 0.0
          %638 = vmatprep.subr.mxu0 0.0
          %639 = vmatpush2.xpose.msra.mxu0 0.0
          %640 = vmatprep.subr.mxu0 0.0
          %641 = vmatpush2.xpose.msra.mxu0 0.0
          %642 = vmatprep.subr.mxu0 0.0
          %643 = vmatpush2.xpose.msra.mxu0 0.0
          %644 = vmatprep.subr.mxu0 0.0
          %645 = vmatpush2.xpose.msra.mxu0 0.0
          %646 = vmatprep.subr.mxu0 0.0
          %647 = vmatpush2.xpose.msra.mxu0 0.0
          %648 = vmatprep.subr.mxu0 0.0
          %649 = vmatpush2.xpose.msra.mxu0 0.0
          %650 = vmatprep.mubr.f32.mxu0 0.0
          %651 = vmatmul.mubr.f32.gmra.mxu0 %v542
          %v652 = vpop.f32.mrf.mxu0
          %v653 = vadd.f32 %v181, %v652
          %v654 = vpop.f32.mrf.mxu0
          %655 = vmatprep.mubr.f32.mxu0 0.0
          %656 = vmatmul.mubr.f32.gmra.mxu0 %v545
          %v657 = vpop.f32.mrf.mxu0
          %v658 = vadd.f32 %v182, %v657
          %v659 = vpop.f32.mrf.mxu0
          %660 = vmatprep.mubr.f32.mxu0 0.0
          %661 = vmatmul.mubr.f32.gmra.mxu0 %v548
          %v662 = vpop.f32.mrf.mxu0
          %v663 = vadd.f32 %v183, %v662
          %v664 = vpop.f32.mrf.mxu0
          %665 = vdwg.mxu0
          %vm666 = vcmask 785408
          %v667 = vsel %vm666, %v653, -inf
          %668 = vmax.xlane.f32.xlu0 %v667
          %v669 = vpop.xlane.xlu0 %668
          %v670 = vsel %vm666, %v658, -inf
          %671 = vmax.xlane.f32.xlu0 %v670
          %v672 = vpop.xlane.xlu0 %671
          %v673 = vsel %vm666, %v663, -inf
          %674 = vmax.xlane.f32.xlu0 %v673
          %v675 = vpop.xlane.xlu0 %674
          %v676 = vsub.f32 %v653, %v669
          %v677 = vsub.f32 %v658, %v672
          %v678 = vsub.f32 %v663, %v675
          %v679 = vmul.f32 %v676, 1.442695
          %v680 = vpow.pop %v679
          %v681 = vmul.f32 %v677, 1.442695
          %v682 = vpow.pop %v681
          %v683 = vmul.f32 %v678, 1.442695
          %v684 = vpow.pop %v683
          %v686 = vsel %vm666, %v680, 0
          %v689 = vsel %vm666, %v682, 0
          %v692 = vsel %vm666, %v684, 0
          %694 = vmatprep.subr.mxu0 0.0
          %695 = vmatpush1.msra.mxu0 0.0
          %696 = vmatprep.subr.mxu0 0.0
          %697 = vmatpush1.msra.mxu0 0.0
          %698 = vmatprep.subr.mxu0 0.0
          %699 = vmatpush1.msra.mxu0 0.0
          %700 = vmatprep.subr.mxu0 0.0
          %701 = vmatpush1.msra.mxu0 0.0
          %702 = vmatprep.subr.mxu0 0.0
          %703 = vmatpush1.msra.mxu0 %v180
          %704 = vmatprep.subr.mxu0 0.0
          %705 = vmatpush1.msra.mxu0 %v179
          %706 = vmatprep.subr.mxu0 0.0
          %707 = vmatpush1.msra.mxu0 %v178
          %708 = vmatprep.subr.mxu0 0.0
          %709 = vmatpush1.msra.mxu0 %v177
          %710 = vmatprep.subr.mxu0 0.0
          %711 = vmatpush1.msra.mxu0 %v176
          %712 = vmatprep.subr.mxu0 0.0
          %713 = vmatpush1.msra.mxu0 %v175
          %714 = vmatprep.subr.mxu0 0.0
          %715 = vmatpush1.msra.mxu0 %v174
          %716 = vmatprep.subr.mxu0 0.0
          %717 = vmatpush1.msra.mxu0 %v173
          %718 = vmatprep.subr.mxu0 0.0
          %719 = vmatpush1.msra.mxu0 %v172
          %720 = vmatprep.subr.mxu0 0.0
          %721 = vmatpush1.msra.mxu0 %v171
          %722 = vmatprep.subr.mxu0 0.0
          %723 = vmatpush1.msra.mxu0 %v170
          %724 = vmatprep.subr.mxu0 0.0
          %725 = vmatpush1.msra.mxu0 %v169
          %726 = vmatprep.subr.mxu0 0.0
          %727 = vmatpush2.msra.mxu0 0.0
          %728 = vmatprep.subr.mxu0 0.0
          %729 = vmatpush2.msra.mxu0 0.0
          %730 = vmatprep.subr.mxu0 0.0
          %731 = vmatpush2.msra.mxu0 0.0
          %732 = vmatprep.subr.mxu0 0.0
          %733 = vmatpush2.msra.mxu0 0.0
          %734 = vmatprep.subr.mxu0 0.0
          %735 = vmatpush2.msra.mxu0 0.0
          %736 = vmatprep.subr.mxu0 0.0
          %737 = vmatpush2.msra.mxu0 0.0
          %738 = vmatprep.subr.mxu0 0.0
          %739 = vmatpush2.msra.mxu0 0.0
          %740 = vmatprep.subr.mxu0 0.0
          %741 = vmatpush2.msra.mxu0 0.0
          %742 = vmatprep.subr.mxu0 0.0
          %743 = vmatpush2.msra.mxu0 0.0
          %744 = vmatprep.subr.mxu0 0.0
          %745 = vmatpush2.msra.mxu0 0.0
          %746 = vmatprep.subr.mxu0 0.0
          %747 = vmatpush2.msra.mxu0 0.0
          %748 = vmatprep.subr.mxu0 0.0
          %749 = vmatpush2.msra.mxu0 0.0
          %750 = vmatprep.subr.mxu0 0.0
          %751 = vmatpush2.msra.mxu0 0.0
          %752 = vmatprep.subr.mxu0 0.0
          %753 = vmatpush2.msra.mxu0 0.0
          %754 = vmatprep.subr.mxu0 0.0
          %755 = vmatpush2.msra.mxu0 0.0
          %756 = vmatprep.subr.mxu0 0.0
          %757 = vmatpush2.msra.mxu0 0.0
          %758 = vmatprep.mubr.f32.mxu0 0.0
          %759 = vmatmul.mubr.f32.gmra.mxu0 %v686
          %v760 = vpop.f32.mrf.mxu0
          %v761 = vadd.f32 0.0, %v760
          %v762 = vpop.f32.mrf.mxu0
          %763 = vmatprep.mubr.f32.mxu0 0.0
          %764 = vmatmul.mubr.f32.gmra.mxu0 %v689
          %v765 = vpop.f32.mrf.mxu0
          %v766 = vadd.f32 0.0, %v765
          %v767 = vpop.f32.mrf.mxu0
          %768 = vmatprep.mubr.f32.mxu0 0.0
          %769 = vmatmul.mubr.f32.gmra.mxu0 %v692
          %v770 = vpop.f32.mrf.mxu0
          %v771 = vadd.f32 0.0, %v770
          %v772 = vpop.f32.mrf.mxu0
          %773 = vdwg.mxu0
          %774 = vmatprep.subr.mxu0 0.0
          %775 = vmatpush1.msra.mxu0 0.0
          %776 = vmatprep.subr.mxu0 0.0
          %777 = vmatpush1.msra.mxu0 0.0
          %778 = vmatprep.subr.mxu0 0.0
          %779 = vmatpush1.msra.mxu0 0.0
          %780 = vmatprep.subr.mxu0 0.0
          %781 = vmatpush1.msra.mxu0 0.0
          %782 = vmatprep.subr.mxu0 0.0
          %783 = vmatpush1.msra.mxu0 %v540
          %784 = vmatprep.subr.mxu0 0.0
          %785 = vmatpush1.msra.mxu0 %v539
          %786 = vmatprep.subr.mxu0 0.0
          %787 = vmatpush1.msra.mxu0 %v538
          %788 = vmatprep.subr.mxu0 0.0
          %789 = vmatpush1.msra.mxu0 %v537
          %790 = vmatprep.subr.mxu0 0.0
          %791 = vmatpush1.msra.mxu0 %v536
          %792 = vmatprep.subr.mxu0 0.0
          %793 = vmatpush1.msra.mxu0 %v535
          %794 = vmatprep.subr.mxu0 0.0
          %795 = vmatpush1.msra.mxu0 %v534
          %796 = vmatprep.subr.mxu0 0.0
          %797 = vmatpush1.msra.mxu0 %v533
          %798 = vmatprep.subr.mxu0 0.0
          %799 = vmatpush1.msra.mxu0 %v532
          %800 = vmatprep.subr.mxu0 0.0
          %801 = vmatpush1.msra.mxu0 %v531
          %802 = vmatprep.subr.mxu0 0.0
          %803 = vmatpush1.msra.mxu0 %v530
          %804 = vmatprep.subr.mxu0 0.0
          %805 = vmatpush1.msra.mxu0 %v529
          %806 = vmatprep.subr.mxu0 0.0
          %807 = vmatpush2.msra.mxu0 0.0
          %808 = vmatprep.subr.mxu0 0.0
          %809 = vmatpush2.msra.mxu0 0.0
          %810 = vmatprep.subr.mxu0 0.0
          %811 = vmatpush2.msra.mxu0 0.0
          %812 = vmatprep.subr.mxu0 0.0
          %813 = vmatpush2.msra.mxu0 0.0
          %814 = vmatprep.subr.mxu0 0.0
          %815 = vmatpush2.msra.mxu0 0.0
          %816 = vmatprep.subr.mxu0 0.0
          %817 = vmatpush2.msra.mxu0 0.0
          %818 = vmatprep.subr.mxu0 0.0
          %819 = vmatpush2.msra.mxu0 0.0
          %820 = vmatprep.subr.mxu0 0.0
          %821 = vmatpush2.msra.mxu0 0.0
          %822 = vmatprep.subr.mxu0 0.0
          %823 = vmatpush2.msra.mxu0 0.0
          %824 = vmatprep.subr.mxu0 0.0
          %825 = vmatpush2.msra.mxu0 0.0
          %826 = vmatprep.subr.mxu0 0.0
          %827 = vmatpush2.msra.mxu0 0.0
          %828 = vmatprep.subr.mxu0 0.0
          %829 = vmatpush2.msra.mxu0 0.0
          %830 = vmatprep.subr.mxu0 0.0
          %831 = vmatpush2.msra.mxu0 0.0
          %832 = vmatprep.subr.mxu0 0.0
          %833 = vmatpush2.msra.mxu0 0.0
          %834 = vmatprep.subr.mxu0 0.0
          %835 = vmatpush2.msra.mxu0 0.0
          %836 = vmatprep.subr.mxu0 0.0
          %837 = vmatpush2.msra.mxu0 0.0
          %838 = vmatprep.mubr.f32.mxu0 0.0
          %839 = vmatmul.mubr.f32.gmra.mxu0 %v686
          %v840 = vpop.f32.mrf.mxu0
          %v841 = vadd.f32 0.0, %v840
          %v842 = vpop.f32.mrf.mxu0
          %843 = vmatprep.mubr.f32.mxu0 0.0
          %844 = vmatmul.mubr.f32.gmra.mxu0 %v689
          %v845 = vpop.f32.mrf.mxu0
          %v846 = vadd.f32 0.0, %v845
          %v847 = vpop.f32.mrf.mxu0
          %848 = vmatprep.mubr.f32.mxu0 0.0
          %849 = vmatmul.mubr.f32.gmra.mxu0 %v692
          %v850 = vpop.f32.mrf.mxu0
          %v851 = vadd.f32 0.0, %v850
          %v852 = vpop.f32.mrf.mxu0
          %853 = vdwg.mxu0
          %v854 = vrcp.pop %v761
          %v855 = vmul.f32 %v841, %v854
          %v856 = vrcp.pop %v766
          %v857 = vmul.f32 %v846, %v856
          %v858 = vrcp.pop %v771
          %v859 = vmul.f32 %v851, %v858
          %v860 = vld [vmem:[%s138 + $0x150] sm:$0xff]
          %v861 = vld [vmem:[%s138 + $0x158] sm:$0xff]
          %v862 = vld [vmem:[%s138 + $0x160] sm:$0xff]
          %v863 = vld [vmem:[%s138 + $0x168] sm:$0xff]
          %v865 = vsel %vm186, %v855, 0
          %v868 = vsel %vm186, %v857, 0
          %v871 = vsel %vm186, %v859, 0
          %873 = vmatprep.subr.mxu0 0.0
          %874 = vmatpush1.msra.mxu0 0.0
          %875 = vmatprep.subr.mxu0 0.0
          %876 = vmatpush1.msra.mxu0 0.0
          %877 = vmatprep.subr.mxu0 0.0
          %878 = vmatpush1.msra.mxu0 0.0
          %879 = vmatprep.subr.mxu0 0.0
          %880 = vmatpush1.msra.mxu0 0.0
          %881 = vmatprep.subr.mxu0 0.0
          %882 = vmatpush1.msra.mxu0 0.0
          %883 = vmatprep.subr.mxu0 0.0
          %884 = vmatpush1.msra.mxu0 0.0
          %885 = vmatprep.subr.mxu0 0.0
          %886 = vmatpush1.msra.mxu0 0.0
          %887 = vmatprep.subr.mxu0 0.0
          %888 = vmatpush1.msra.mxu0 0.0
          %889 = vmatprep.subr.mxu0 0.0
          %890 = vmatpush1.msra.mxu0 0.0
          %891 = vmatprep.subr.mxu0 0.0
          %892 = vmatpush1.msra.mxu0 0.0
          %893 = vmatprep.subr.mxu0 0.0
          %894 = vmatpush1.msra.mxu0 0.0
          %895 = vmatprep.subr.mxu0 0.0
          %896 = vmatpush1.msra.mxu0 0.0
          %897 = vmatprep.subr.mxu0 0.0
          %898 = vmatpush1.msra.mxu0 %v863
          %899 = vmatprep.subr.mxu0 0.0
          %900 = vmatpush1.msra.mxu0 %v862
          %901 = vmatprep.subr.mxu0 0.0
          %902 = vmatpush1.msra.mxu0 %v861
          %903 = vmatprep.subr.mxu0 0.0
          %904 = vmatpush1.msra.mxu0 %v860
          %905 = vmatprep.subr.mxu0 0.0
          %906 = vmatpush2.msra.mxu0 0.0
          %907 = vmatprep.subr.mxu0 0.0
          %908 = vmatpush2.msra.mxu0 0.0
          %909 = vmatprep.subr.mxu0 0.0
          %910 = vmatpush2.msra.mxu0 0.0
          %911 = vmatprep.subr.mxu0 0.0
          %912 = vmatpush2.msra.mxu0 0.0
          %913 = vmatprep.subr.mxu0 0.0
          %914 = vmatpush2.msra.mxu0 0.0
          %915 = vmatprep.subr.mxu0 0.0
          %916 = vmatpush2.msra.mxu0 0.0
          %917 = vmatprep.subr.mxu0 0.0
          %918 = vmatpush2.msra.mxu0 0.0
          %919 = vmatprep.subr.mxu0 0.0
          %920 = vmatpush2.msra.mxu0 0.0
          %921 = vmatprep.subr.mxu0 0.0
          %922 = vmatpush2.msra.mxu0 0.0
          %923 = vmatprep.subr.mxu0 0.0
          %924 = vmatpush2.msra.mxu0 0.0
          %925 = vmatprep.subr.mxu0 0.0
          %926 = vmatpush2.msra.mxu0 0.0
          %927 = vmatprep.subr.mxu0 0.0
          %928 = vmatpush2.msra.mxu0 0.0
          %929 = vmatprep.subr.mxu0 0.0
          %930 = vmatpush2.msra.mxu0 0.0
          %931 = vmatprep.subr.mxu0 0.0
          %932 = vmatpush2.msra.mxu0 0.0
          %933 = vmatprep.subr.mxu0 0.0
          %934 = vmatpush2.msra.mxu0 0.0
          %935 = vmatprep.subr.mxu0 0.0
          %936 = vmatpush2.msra.mxu0 0.0
          %937 = vmatprep.mubr.f32.mxu0 0.0
          %938 = vmatmul.mubr.f32.gmra.mxu0 %v865
          %v939 = vpop.f32.mrf.mxu0
          %v940 = vadd.f32 0.0, %v939
          %v941 = vpop.f32.mrf.mxu0
          %942 = vmatprep.mubr.f32.mxu0 0.0
          %943 = vmatmul.mubr.f32.gmra.mxu0 %v868
          %v944 = vpop.f32.mrf.mxu0
          %v945 = vadd.f32 0.0, %v944
          %v946 = vpop.f32.mrf.mxu0
          %947 = vmatprep.mubr.f32.mxu0 0.0
          %948 = vmatmul.mubr.f32.gmra.mxu0 %v871
          %v949 = vpop.f32.mrf.mxu0
          %v950 = vadd.f32 0.0, %v949
          %v951 = vpop.f32.mrf.mxu0
          %952 = vdwg.mxu0
          %v953 = vadd.f32 %v166, %v940
          %v954 = vadd.f32 %v167, %v945
          %v955 = vadd.f32 %v168, %v950
          %v956 = vld [vmem:[%s138 + $0x170] sm:$0x1]
          %v957 = vlaneseq
          %v958 = vshrl.u32 %v957, 7
          %v959 = vsub.s32 0, %v958
          %v960 = vrot.slane %v956, %v959
          %v961 = vadd.f32 %v953, %v960
          %v962 = vadd.f32 %v954, %v960
          %v963 = vadd.f32 %v955, %v960
          %v964 = vld [vmem:[%s138 + $0x178] sm:$0x1]
          %v965 = vld [vmem:[%s138 + $0x180] sm:$0x1]
          %v966 = vsel %vm186, %v961, 0.0
          %967 = vadd.xlane.f32.xlu0 %v966
          %v968 = vpop.xlane.xlu0 %967
          %v969 = vsel %vm186, %v962, 0.0
          %970 = vadd.xlane.f32.xlu0 %v969
          %v971 = vpop.xlane.xlu0 %970
          %v972 = vsel %vm186, %v963, 0.0
          %973 = vadd.xlane.f32.xlu0 %v972
          %v974 = vpop.xlane.xlu0 %973
          %v975 = vmul.f32 %v968, %v196
          %v976 = vmul.f32 %v971, %v196
          %v977 = vmul.f32 %v974, %v196
          %v978 = vsub.f32 %v961, %v975
          %v979 = vsub.f32 %v962, %v976
          %v980 = vsub.f32 %v963, %v977
          %v981 = vmul.f32 %v978, %v978
          %v982 = vmul.f32 %v979, %v979
          %v983 = vmul.f32 %v980, %v980
          %v984 = vsel %vm186, %v981, 0.0
          %985 = vadd.xlane.f32.xlu0 %v984
          %v986 = vpop.xlane.xlu0 %985
          %v987 = vsel %vm186, %v982, 0.0
          %988 = vadd.xlane.f32.xlu0 %v987
          %v989 = vpop.xlane.xlu0 %988
          %v990 = vsel %vm186, %v983, 0.0
          %991 = vadd.xlane.f32.xlu0 %v990
          %v992 = vpop.xlane.xlu0 %991
          %v993 = vmul.f32 %v986, %v196
          %v994 = vmul.f32 %v989, %v196
          %v995 = vmul.f32 %v992, %v196
          %v996 = vadd.f32 %v993, 1e-05
          %v997 = vadd.f32 %v994, 1e-05
          %v998 = vadd.f32 %v995, 1e-05
          %v999 = vrsqrt.pop %v996
          %v1000 = vrsqrt.pop %v997
          %v1001 = vrsqrt.pop %v998
          %v1002 = vmul.f32 %v978, %v999
          %v1003 = vmul.f32 %v979, %v1000
          %v1004 = vmul.f32 %v980, %v1001
          %v1005 = vlaneseq
          %v1006 = vshrl.u32 %v1005, 7
          %v1007 = vsub.s32 0, %v1006
          %v1008 = vrot.slane %v964, %v1007
          %v1009 = vmul.f32 %v1002, %v1008
          %v1010 = vmul.f32 %v1003, %v1008
          %v1011 = vmul.f32 %v1004, %v1008
          %v1012 = vlaneseq
          %v1013 = vshrl.u32 %v1012, 7
          %v1014 = vsub.s32 0, %v1013
          %v1015 = vrot.slane %v965, %v1014
          %v1016 = vadd.f32 %v1009, %v1015
          %v1017 = vadd.f32 %v1010, %v1015
          %v1018 = vadd.f32 %v1011, %v1015
          %v1019 = vld [vmem:[%s138 + $0x188] sm:$0xff]
          %v1020 = vld [vmem:[%s138 + $0x190] sm:$0xff]
          %v1021 = vld [vmem:[%s138 + $0x198] sm:$0xff]
          %v1022 = vld [vmem:[%s138 + $0x1a0] sm:$0xff]
          %v1023 = vld [vmem:[%s138 + $0x1a8] sm:$0x1]
          %v1024 = vlaneseq
          %v1025 = vshrl.u32 %v1024, 7
          %v1026 = vsub.s32 0, %v1025
          %v1027 = vrot.slane %v1023, %v1026
          %v1029 = vsel %vm186, %v1016, 0
          %v1032 = vsel %vm186, %v1017, 0
          %v1035 = vsel %vm186, %v1018, 0
          %1037 = vmatprep.subr.mxu0 0.0
          %1038 = vmatpush1.msra.mxu0 0.0
          %1039 = vmatprep.subr.mxu0 0.0
          %1040 = vmatpush1.msra.mxu0 0.0
          %1041 = vmatprep.subr.mxu0 0.0
          %1042 = vmatpush1.msra.mxu0 0.0
          %1043 = vmatprep.subr.mxu0 0.0
          %1044 = vmatpush1.msra.mxu0 0.0
          %1045 = vmatprep.subr.mxu0 0.0
          %1046 = vmatpush1.msra.mxu0 0.0
          %1047 = vmatprep.subr.mxu0 0.0
          %1048 = vmatpush1.msra.mxu0 0.0
          %1049 = vmatprep.subr.mxu0 0.0
          %1050 = vmatpush1.msra.mxu0 0.0
          %1051 = vmatprep.subr.mxu0 0.0
          %1052 = vmatpush1.msra.mxu0 0.0
          %1053 = vmatprep.subr.mxu0 0.0
          %1054 = vmatpush1.msra.mxu0 0.0
          %1055 = vmatprep.subr.mxu0 0.0
          %1056 = vmatpush1.msra.mxu0 0.0
          %1057 = vmatprep.subr.mxu0 0.0
          %1058 = vmatpush1.msra.mxu0 0.0
          %1059 = vmatprep.subr.mxu0 0.0
          %1060 = vmatpush1.msra.mxu0 0.0
          %1061 = vmatprep.subr.mxu0 0.0
          %1062 = vmatpush1.msra.mxu0 %v1022
          %1063 = vmatprep.subr.mxu0 0.0
          %1064 = vmatpush1.msra.mxu0 %v1021
          %1065 = vmatprep.subr.mxu0 0.0
          %1066 = vmatpush1.msra.mxu0 %v1020
          %1067 = vmatprep.subr.mxu0 0.0
          %1068 = vmatpush1.msra.mxu0 %v1019
          %1069 = vmatprep.subr.mxu0 0.0
          %1070 = vmatpush2.msra.mxu0 0.0
          %1071 = vmatprep.subr.mxu0 0.0
          %1072 = vmatpush2.msra.mxu0 0.0
          %1073 = vmatprep.subr.mxu0 0.0
          %1074 = vmatpush2.msra.mxu0 0.0
          %1075 = vmatprep.subr.mxu0 0.0
          %1076 = vmatpush2.msra.mxu0 0.0
          %1077 = vmatprep.subr.mxu0 0.0
          %1078 = vmatpush2.msra.mxu0 0.0
          %1079 = vmatprep.subr.mxu0 0.0
          %1080 = vmatpush2.msra.mxu0 0.0
          %1081 = vmatprep.subr.mxu0 0.0
          %1082 = vmatpush2.msra.mxu0 0.0
          %1083 = vmatprep.subr.mxu0 0.0
          %1084 = vmatpush2.msra.mxu0 0.0
          %1085 = vmatprep.subr.mxu0 0.0
          %1086 = vmatpush2.msra.mxu0 0.0
          %1087 = vmatprep.subr.mxu0 0.0
          %1088 = vmatpush2.msra.mxu0 0.0
          %1089 = vmatprep.subr.mxu0 0.0
          %1090 = vmatpush2.msra.mxu0 0.0
          %1091 = vmatprep.subr.mxu0 0.0
          %1092 = vmatpush2.msra.mxu0 0.0
          %1093 = vmatprep.subr.mxu0 0.0
          %1094 = vmatpush2.msra.mxu0 0.0
          %1095 = vmatprep.subr.mxu0 0.0
          %1096 = vmatpush2.msra.mxu0 0.0
          %1097 = vmatprep.subr.mxu0 0.0
          %1098 = vmatpush2.msra.mxu0 0.0
          %1099 = vmatprep.subr.mxu0 0.0
          %1100 = vmatpush2.msra.mxu0 0.0
          %1101 = vmatprep.mubr.f32.mxu0 0.0
          %1102 = vmatmul.mubr.f32.gmra.mxu0 %v1029
          %v1103 = vpop.f32.mrf.mxu0
          %v1104 = vadd.f32 %v1027, %v1103
          %v1105 = vpop.f32.mrf.mxu0
          %1106 = vmatprep.mubr.f32.mxu0 0.0
          %1107 = vmatmul.mubr.f32.gmra.mxu0 %v1032
          %v1108 = vpop.f32.mrf.mxu0
          %v1109 = vadd.f32 %v1027, %v1108
          %v1110 = vpop.f32.mrf.mxu0
          %1111 = vmatprep.mubr.f32.mxu0 0.0
          %1112 = vmatmul.mubr.f32.gmra.mxu0 %v1035
          %v1113 = vpop.f32.mrf.mxu0
          %v1114 = vadd.f32 %v1027, %v1113
          %v1115 = vpop.f32.mrf.mxu0
          %1116 = vdwg.mxu0
          %v1117 = vmul.f32 %v1104, 1.702
          %v1118 = vmul.f32 %v1109, 1.702
          %v1119 = vmul.f32 %v1114, 1.702
          %v1120 = vxor.u32 %v1117, 2147483648
          %v1121 = vxor.u32 %v1118, 2147483648
          %v1122 = vxor.u32 %v1119, 2147483648
          %v1123 = vmul.f32 %v1120, 1.442695
          %v1124 = vpow.pop %v1123
          %v1125 = vmul.f32 %v1121, 1.442695
          %v1126 = vpow.pop %v1125
          %v1127 = vmul.f32 %v1122, 1.442695
          %v1128 = vpow.pop %v1127
          %v1129 = vadd.f32 %v1124, 1.0
          %v1130 = vadd.f32 %v1126, 1.0
          %v1131 = vadd.f32 %v1128, 1.0
          %v1132 = vrcp.pop %v1129
          %v1133 = vmul.f32 1.0, %v1132
          %v1134 = vrcp.pop %v1130
          %v1135 = vmul.f32 1.0, %v1134
          %v1136 = vrcp.pop %v1131
          %v1137 = vmul.f32 1.0, %v1136
          %v1138 = vmul.f32 %v1104, %v1133
          %v1139 = vmul.f32 %v1109, %v1135
          %v1140 = vmul.f32 %v1114, %v1137
          %v1141 = vld [vmem:[%s138 + $0x1b0] sm:$0xff]
          %v1142 = vld [vmem:[%s138 + $0x1b8] sm:$0xff]
          %v1143 = vld [vmem:[%s138 + $0x1c0] sm:$0xff]
          %v1144 = vld [vmem:[%s138 + $0x1c8] sm:$0xff]
          %v1145 = vld [vmem:[%s138 + $0x1d0] sm:$0x1]
          %v1146 = vlaneseq
          %v1147 = vshrl.u32 %v1146, 7
          %v1148 = vsub.s32 0, %v1147
          %v1149 = vrot.slane %v1145, %v1148
          %1150 = vmatprep.subr.mxu0 0.0
          %1151 = vmatpush1.xpose.msra.mxu0 0.0
          %1152 = vmatprep.subr.mxu0 0.0
          %1153 = vmatpush1.xpose.msra.mxu0 0.0
          %1154 = vmatprep.subr.mxu0 0.0
          %1155 = vmatpush1.xpose.msra.mxu0 0.0
          %1156 = vmatprep.subr.mxu0 0.0
          %1157 = vmatpush1.xpose.msra.mxu0 0.0
          %1158 = vmatprep.subr.mxu0 0.0
          %1159 = vmatpush1.xpose.msra.mxu0 0.0
          %1160 = vmatprep.subr.mxu0 0.0
          %1161 = vmatpush1.xpose.msra.mxu0 0.0
          %1162 = vmatprep.subr.mxu0 0.0
          %1163 = vmatpush1.xpose.msra.mxu0 0.0
          %1164 = vmatprep.subr.mxu0 0.0
          %1165 = vmatpush1.xpose.msra.mxu0 0.0
          %1166 = vmatprep.subr.mxu0 0.0
          %1167 = vmatpush1.xpose.msra.mxu0 0.0
          %1168 = vmatprep.subr.mxu0 0.0
          %1169 = vmatpush1.xpose.msra.mxu0 0.0
          %1170 = vmatprep.subr.mxu0 0.0
          %1171 = vmatpush1.xpose.msra.mxu0 0.0
          %1172 = vmatprep.subr.mxu0 0.0
          %1173 = vmatpush1.xpose.msra.mxu0 0.0
          %1174 = vmatprep.subr.mxu0 0.0
          %1175 = vmatpush1.xpose.msra.mxu0 %v1144
          %1176 = vmatprep.subr.mxu0 0.0
          %1177 = vmatpush1.xpose.msra.mxu0 %v1143
          %1178 = vmatprep.subr.mxu0 0.0
          %1179 = vmatpush1.xpose.msra.mxu0 %v1142
          %1180 = vmatprep.subr.mxu0 0.0
          %1181 = vmatpush1.xpose.msra.mxu0 %v1141
          %1182 = vmatprep.subr.mxu0 0.0
          %1183 = vmatpush2.xpose.msra.mxu0 0.0
          %1184 = vmatprep.subr.mxu0 0.0
          %1185 = vmatpush2.xpose.msra.mxu0 0.0
          %1186 = vmatprep.subr.mxu0 0.0
          %1187 = vmatpush2.xpose.msra.mxu0 0.0
          %1188 = vmatprep.subr.mxu0 0.0
          %1189 = vmatpush2.xpose.msra.mxu0 0.0
          %1190 = vmatprep.subr.mxu0 0.0
          %1191 = vmatpush2.xpose.msra.mxu0 0.0
          %1192 = vmatprep.subr.mxu0 0.0
          %1193 = vmatpush2.xpose.msra.mxu0 0.0
          %1194 = vmatprep.subr.mxu0 0.0
          %1195 = vmatpush2.xpose.msra.mxu0 0.0
          %1196 = vmatprep.subr.mxu0 0.0
          %1197 = vmatpush2.xpose.msra.mxu0 0.0
          %1198 = vmatprep.subr.mxu0 0.0
          %1199 = vmatpush2.xpose.msra.mxu0 0.0
          %1200 = vmatprep.subr.mxu0 0.0
          %1201 = vmatpush2.xpose.msra.mxu0 0.0
          %1202 = vmatprep.subr.mxu0 0.0
          %1203 = vmatpush2.xpose.msra.mxu0 0.0
          %1204 = vmatprep.subr.mxu0 0.0
          %1205 = vmatpush2.xpose.msra.mxu0 0.0
          %1206 = vmatprep.subr.mxu0 0.0
          %1207 = vmatpush2.xpose.msra.mxu0 0.0
          %1208 = vmatprep.subr.mxu0 0.0
          %1209 = vmatpush2.xpose.msra.mxu0 0.0
          %1210 = vmatprep.subr.mxu0 0.0
          %1211 = vmatpush2.xpose.msra.mxu0 0.0
          %1212 = vmatprep.subr.mxu0 0.0
          %1213 = vmatpush2.xpose.msra.mxu0 0.0
          %1214 = vmatprep.mubr.f32.mxu0 0.0
          %1215 = vmatmul.mubr.f32.gmra.mxu0 %v1138
          %v1216 = vpop.f32.mrf.mxu0
          %v1217 = vadd.f32 %v1149, %v1216
          %v1218 = vpop.f32.mrf.mxu0
          %1219 = vmatprep.mubr.f32.mxu0 0.0
          %1220 = vmatmul.mubr.f32.gmra.mxu0 %v1139
          %v1221 = vpop.f32.mrf.mxu0
          %v1222 = vadd.f32 %v1149, %v1221
          %v1223 = vpop.f32.mrf.mxu0
          %1224 = vmatprep.mubr.f32.mxu0 0.0
          %1225 = vmatmul.mubr.f32.gmra.mxu0 %v1140
          %v1226 = vpop.f32.mrf.mxu0
          %v1227 = vadd.f32 %v1149, %v1226
          %v1228 = vpop.f32.mrf.mxu0
          %1229 = vdwg.mxu0
          %v1230 = vadd.f32 %v961, %v1217
          %v1231 = vadd.f32 %v962, %v1222
          %v1232 = vadd.f32 %v963, %v1227
          %v1233 = vld [vmem:[%s138 + $0x1d8] sm:$0xff]
          %v1234 = vld [vmem:[%s138 + $0x1e0] sm:$0xff]
          %v1235 = vld [vmem:[%s138 + $0x1e8] sm:$0xff]
          %v1236 = vld [vmem:[%s138 + $0x1f0] sm:$0xff]
          %v1237 = vld [vmem:[%s138 + $0x1f8] sm:$0x1]
          %v1238 = vlaneseq
          %v1239 = vshrl.u32 %v1238, 7
          %v1240 = vsub.s32 0, %v1239
          %v1241 = vrot.slane %v1237, %v1240
          %v1243 = vsel %vm186, %v1230, 0
          %v1246 = vsel %vm186, %v1231, 0
          %v1249 = vsel %vm186, %v1232, 0
          %1251 = vmatprep.subr.mxu0 0.0
          %1252 = vmatpush1.msra.mxu0 0.0
          %1253 = vmatprep.subr.mxu0 0.0
          %1254 = vmatpush1.msra.mxu0 0.0
          %1255 = vmatprep.subr.mxu0 0.0
          %1256 = vmatpush1.msra.mxu0 0.0
          %1257 = vmatprep.subr.mxu0 0.0
          %1258 = vmatpush1.msra.mxu0 0.0
          %1259 = vmatprep.subr.mxu0 0.0
          %1260 = vmatpush1.msra.mxu0 0.0
          %1261 = vmatprep.subr.mxu0 0.0
          %1262 = vmatpush1.msra.mxu0 0.0
          %1263 = vmatprep.subr.mxu0 0.0
          %1264 = vmatpush1.msra.mxu0 0.0
          %1265 = vmatprep.subr.mxu0 0.0
          %1266 = vmatpush1.msra.mxu0 0.0
          %1267 = vmatprep.subr.mxu0 0.0
          %1268 = vmatpush1.msra.mxu0 0.0
          %1269 = vmatprep.subr.mxu0 0.0
          %1270 = vmatpush1.msra.mxu0 0.0
          %1271 = vmatprep.subr.mxu0 0.0
          %1272 = vmatpush1.msra.mxu0 0.0
          %1273 = vmatprep.subr.mxu0 0.0
          %1274 = vmatpush1.msra.mxu0 0.0
          %1275 = vmatprep.subr.mxu0 0.0
          %1276 = vmatpush1.msra.mxu0 %v1236
          %1277 = vmatprep.subr.mxu0 0.0
          %1278 = vmatpush1.msra.mxu0 %v1235
          %1279 = vmatprep.subr.mxu0 0.0
          %1280 = vmatpush1.msra.mxu0 %v1234
          %1281 = vmatprep.subr.mxu0 0.0
          %1282 = vmatpush1.msra.mxu0 %v1233
          %1283 = vmatprep.subr.mxu0 0.0
          %1284 = vmatpush2.msra.mxu0 0.0
          %1285 = vmatprep.subr.mxu0 0.0
          %1286 = vmatpush2.msra.mxu0 0.0
          %1287 = vmatprep.subr.mxu0 0.0
          %1288 = vmatpush2.msra.mxu0 0.0
          %1289 = vmatprep.subr.mxu0 0.0
          %1290 = vmatpush2.msra.mxu0 0.0
          %1291 = vmatprep.subr.mxu0 0.0
          %1292 = vmatpush2.msra.mxu0 0.0
          %1293 = vmatprep.subr.mxu0 0.0
          %1294 = vmatpush2.msra.mxu0 0.0
          %1295 = vmatprep.subr.mxu0 0.0
          %1296 = vmatpush2.msra.mxu0 0.0
          %1297 = vmatprep.subr.mxu0 0.0
          %1298 = vmatpush2.msra.mxu0 0.0
          %1299 = vmatprep.subr.mxu0 0.0
          %1300 = vmatpush2.msra.mxu0 0.0
          %1301 = vmatprep.subr.mxu0 0.0
          %1302 = vmatpush2.msra.mxu0 0.0
          %1303 = vmatprep.subr.mxu0 0.0
          %1304 = vmatpush2.msra.mxu0 0.0
          %1305 = vmatprep.subr.mxu0 0.0
          %1306 = vmatpush2.msra.mxu0 0.0
          %1307 = vmatprep.subr.mxu0 0.0
          %1308 = vmatpush2.msra.mxu0 0.0
          %1309 = vmatprep.subr.mxu0 0.0
          %1310 = vmatpush2.msra.mxu0 0.0
          %1311 = vmatprep.subr.mxu0 0.0
          %1312 = vmatpush2.msra.mxu0 0.0
          %1313 = vmatprep.subr.mxu0 0.0
          %1314 = vmatpush2.msra.mxu0 0.0
          %1315 = vmatprep.mubr.f32.mxu0 0.0
          %1316 = vmatmul.mubr.f32.gmra.mxu0 %v1243
          %v1317 = vpop.f32.mrf.mxu0
          %v1318 = vadd.f32 %v1241, %v1317
          %v1319 = vpop.f32.mrf.mxu0
          %1320 = vmatprep.mubr.f32.mxu0 0.0
          %1321 = vmatmul.mubr.f32.gmra.mxu0 %v1246
          %v1322 = vpop.f32.mrf.mxu0
          %v1323 = vadd.f32 %v1241, %v1322
          %v1324 = vpop.f32.mrf.mxu0
          %1325 = vmatprep.mubr.f32.mxu0 0.0
          %1326 = vmatmul.mubr.f32.gmra.mxu0 %v1249
          %v1327 = vpop.f32.mrf.mxu0
          %v1328 = vadd.f32 %v1241, %v1327
          %v1329 = vpop.f32.mrf.mxu0
          %1330 = vdwg.mxu0
          %v1331 = vmax.f32 %v1318, 0.0
          %v1332 = vmax.f32 %v1323, 0.0
          %v1333 = vmax.f32 %v1328, 0.0
          %v1334 = vld [vmem:[%s138 + $0x200] sm:$0xff]
          %v1335 = vld [vmem:[%s138 + $0x208] sm:$0xff]
          %v1336 = vld [vmem:[%s138 + $0x210] sm:$0xff]
          %v1337 = vld [vmem:[%s138 + $0x218] sm:$0xff]
          %v1338 = vld [vmem:[%s138 + $0x220] sm:$0x1]
          %v1339 = vlaneseq
          %v1340 = vshrl.u32 %v1339, 7
          %v1341 = vsub.s32 0, %v1340
          %v1342 = vrot.slane %v1338, %v1341
          %v1344 = vsel %vm186, %v1331, 0
          %v1347 = vsel %vm186, %v1332, 0
          %v1350 = vsel %vm186, %v1333, 0
          %1352 = vmatprep.subr.mxu0 0.0
          %1353 = vmatpush1.msra.mxu0 0.0
          %1354 = vmatprep.subr.mxu0 0.0
          %1355 = vmatpush1.msra.mxu0 0.0
          %1356 = vmatprep.subr.mxu0 0.0
          %1357 = vmatpush1.msra.mxu0 0.0
          %1358 = vmatprep.subr.mxu0 0.0
          %1359 = vmatpush1.msra.mxu0 0.0
          %1360 = vmatprep.subr.mxu0 0.0
          %1361 = vmatpush1.msra.mxu0 0.0
          %1362 = vmatprep.subr.mxu0 0.0
          %1363 = vmatpush1.msra.mxu0 0.0
          %1364 = vmatprep.subr.mxu0 0.0
          %1365 = vmatpush1.msra.mxu0 0.0
          %1366 = vmatprep.subr.mxu0 0.0
          %1367 = vmatpush1.msra.mxu0 0.0
          %1368 = vmatprep.subr.mxu0 0.0
          %1369 = vmatpush1.msra.mxu0 0.0
          %1370 = vmatprep.subr.mxu0 0.0
          %1371 = vmatpush1.msra.mxu0 0.0
          %1372 = vmatprep.subr.mxu0 0.0
          %1373 = vmatpush1.msra.mxu0 0.0
          %1374 = vmatprep.subr.mxu0 0.0
          %1375 = vmatpush1.msra.mxu0 0.0
          %1376 = vmatprep.subr.mxu0 0.0
          %1377 = vmatpush1.msra.mxu0 %v1337
          %1378 = vmatprep.subr.mxu0 0.0
          %1379 = vmatpush1.msra.mxu0 %v1336
          %1380 = vmatprep.subr.mxu0 0.0
          %1381 = vmatpush1.msra.mxu0 %v1335
          %1382 = vmatprep.subr.mxu0 0.0
          %1383 = vmatpush1.msra.mxu0 %v1334
          %1384 = vmatprep.subr.mxu0 0.0
          %1385 = vmatpush2.msra.mxu0 0.0
          %1386 = vmatprep.subr.mxu0 0.0
          %1387 = vmatpush2.msra.mxu0 0.0
          %1388 = vmatprep.subr.mxu0 0.0
          %1389 = vmatpush2.msra.mxu0 0.0
          %1390 = vmatprep.subr.mxu0 0.0
          %1391 = vmatpush2.msra.mxu0 0.0
          %1392 = vmatprep.subr.mxu0 0.0
          %1393 = vmatpush2.msra.mxu0 0.0
          %1394 = vmatprep.subr.mxu0 0.0
          %1395 = vmatpush2.msra.mxu0 0.0
          %1396 = vmatprep.subr.mxu0 0.0
          %1397 = vmatpush2.msra.mxu0 0.0
          %1398 = vmatprep.subr.mxu0 0.0
          %1399 = vmatpush2.msra.mxu0 0.0
          %1400 = vmatprep.subr.mxu0 0.0
          %1401 = vmatpush2.msra.mxu0 0.0
          %1402 = vmatprep.subr.mxu0 0.0
          %1403 = vmatpush2.msra.mxu0 0.0
          %1404 = vmatprep.subr.mxu0 0.0
          %1405 = vmatpush2.msra.mxu0 0.0
          %1406 = vmatprep.subr.mxu0 0.0
          %1407 = vmatpush2.msra.mxu0 0.0
          %1408 = vmatprep.subr.mxu0 0.0
          %1409 = vmatpush2.msra.mxu0 0.0
          %1410 = vmatprep.subr.mxu0 0.0
          %1411 = vmatpush2.msra.mxu0 0.0
          %1412 = vmatprep.subr.mxu0 0.0
          %1413 = vmatpush2.msra.mxu0 0.0
          %1414 = vmatprep.subr.mxu0 0.0
          %1415 = vmatpush2.msra.mxu0 0.0
          %1416 = vmatprep.mubr.f32.mxu0 0.0
          %1417 = vmatmul.mubr.f32.gmra.mxu0 %v1344
          %v1418 = vpop.f32.mrf.mxu0
          %v1419 = vadd.f32 %v1342, %v1418
          %v1420 = vpop.f32.mrf.mxu0
          %1421 = vmatprep.mubr.f32.mxu0 0.0
          %1422 = vmatmul.mubr.f32.gmra.mxu0 %v1347
          %v1423 = vpop.f32.mrf.mxu0
          %v1424 = vadd.f32 %v1342, %v1423
          %v1425 = vpop.f32.mrf.mxu0
          %1426 = vmatprep.mubr.f32.mxu0 0.0
          %1427 = vmatmul.mubr.f32.gmra.mxu0 %v1350
          %v1428 = vpop.f32.mrf.mxu0
          %v1429 = vadd.f32 %v1342, %v1428
          %v1430 = vpop.f32.mrf.mxu0
          %1431 = vdwg.mxu0
          %v1432 = vmax.f32 %v1419, 0.0
          %v1433 = vmax.f32 %v1424, 0.0
          %v1434 = vmax.f32 %v1429, 0.0
          %v1435 = vld [vmem:[%s138 + $0x228] sm:$0xff]
          %v1436 = vld [vmem:[%s138 + $0x230] sm:$0xff]
          %v1437 = vld [vmem:[%s138 + $0x238] sm:$0xff]
          %v1438 = vld [vmem:[%s138 + $0x240] sm:$0xff]
          %v1439 = vld [vmem:[%s138 + $0x248] sm:$0x1]
          %v1440 = vlaneseq
          %v1441 = vshrl.u32 %v1440, 7
          %v1442 = vsub.s32 0, %v1441
          %v1443 = vrot.slane %v1439, %v1442
          %v1445 = vsel %vm186, %v1432, 0
          %v1448 = vsel %vm186, %v1433, 0
          %v1451 = vsel %vm186, %v1434, 0
          %1453 = vmatprep.subr.mxu0 0.0
          %1454 = vmatpush1.msra.mxu0 0.0
          %1455 = vmatprep.subr.mxu0 0.0
          %1456 = vmatpush1.msra.mxu0 0.0
          %1457 = vmatprep.subr.mxu0 0.0
          %1458 = vmatpush1.msra.mxu0 0.0
          %1459 = vmatprep.subr.mxu0 0.0
          %1460 = vmatpush1.msra.mxu0 0.0
          %1461 = vmatprep.subr.mxu0 0.0
          %1462 = vmatpush1.msra.mxu0 0.0
          %1463 = vmatprep.subr.mxu0 0.0
          %1464 = vmatpush1.msra.mxu0 0.0
          %1465 = vmatprep.subr.mxu0 0.0
          %1466 = vmatpush1.msra.mxu0 0.0
          %1467 = vmatprep.subr.mxu0 0.0
          %1468 = vmatpush1.msra.mxu0 0.0
          %1469 = vmatprep.subr.mxu0 0.0
          %1470 = vmatpush1.msra.mxu0 0.0
          %1471 = vmatprep.subr.mxu0 0.0
          %1472 = vmatpush1.msra.mxu0 0.0
          %1473 = vmatprep.subr.mxu0 0.0
          %1474 = vmatpush1.msra.mxu0 0.0
          %1475 = vmatprep.subr.mxu0 0.0
          %1476 = vmatpush1.msra.mxu0 0.0
          %1477 = vmatprep.subr.mxu0 0.0
          %1478 = vmatpush1.msra.mxu0 %v1438
          %1479 = vmatprep.subr.mxu0 0.0
          %1480 = vmatpush1.msra.mxu0 %v1437
          %1481 = vmatprep.subr.mxu0 0.0
          %1482 = vmatpush1.msra.mxu0 %v1436
          %1483 = vmatprep.subr.mxu0 0.0
          %1484 = vmatpush1.msra.mxu0 %v1435
          %1485 = vmatprep.subr.mxu0 0.0
          %1486 = vmatpush2.msra.mxu0 0.0
          %1487 = vmatprep.subr.mxu0 0.0
          %1488 = vmatpush2.msra.mxu0 0.0
          %1489 = vmatprep.subr.mxu0 0.0
          %1490 = vmatpush2.msra.mxu0 0.0
          %1491 = vmatprep.subr.mxu0 0.0
          %1492 = vmatpush2.msra.mxu0 0.0
          %1493 = vmatprep.subr.mxu0 0.0
          %1494 = vmatpush2.msra.mxu0 0.0
          %1495 = vmatprep.subr.mxu0 0.0
          %1496 = vmatpush2.msra.mxu0 0.0
          %1497 = vmatprep.subr.mxu0 0.0
          %1498 = vmatpush2.msra.mxu0 0.0
          %1499 = vmatprep.subr.mxu0 0.0
          %1500 = vmatpush2.msra.mxu0 0.0
          %1501 = vmatprep.subr.mxu0 0.0
          %1502 = vmatpush2.msra.mxu0 0.0
          %1503 = vmatprep.subr.mxu0 0.0
          %1504 = vmatpush2.msra.mxu0 0.0
          %1505 = vmatprep.subr.mxu0 0.0
          %1506 = vmatpush2.msra.mxu0 0.0
          %1507 = vmatprep.subr.mxu0 0.0
          %1508 = vmatpush2.msra.mxu0 0.0
          %1509 = vmatprep.subr.mxu0 0.0
          %1510 = vmatpush2.msra.mxu0 0.0
          %1511 = vmatprep.subr.mxu0 0.0
          %1512 = vmatpush2.msra.mxu0 0.0
          %1513 = vmatprep.subr.mxu0 0.0
          %1514 = vmatpush2.msra.mxu0 0.0
          %1515 = vmatprep.subr.mxu0 0.0
          %1516 = vmatpush2.msra.mxu0 0.0
          %1517 = vmatprep.mubr.f32.mxu0 0.0
          %1518 = vmatmul.mubr.f32.gmra.mxu0 %v1445
          %v1519 = vpop.f32.mrf.mxu0
          %v1520 = vadd.f32 %v1443, %v1519
          %v1521 = vpop.f32.mrf.mxu0
          %1522 = vmatprep.mubr.f32.mxu0 0.0
          %1523 = vmatmul.mubr.f32.gmra.mxu0 %v1448
          %v1524 = vpop.f32.mrf.mxu0
          %v1525 = vadd.f32 %v1443, %v1524
          %v1526 = vpop.f32.mrf.mxu0
          %1527 = vmatprep.mubr.f32.mxu0 0.0
          %1528 = vmatmul.mubr.f32.gmra.mxu0 %v1451
          %v1529 = vpop.f32.mrf.mxu0
          %v1530 = vadd.f32 %v1443, %v1529
          %v1531 = vpop.f32.mrf.mxu0
          %1532 = vdwg.mxu0
          %v1533 = vmul.f32 %v1520, 0.001
          %v1534 = vmul.f32 %v1525, 0.001
          %v1535 = vmul.f32 %v1530, 0.001
          %v1536 = vadd.f32 %v1230, %v1533
          %v1537 = vadd.f32 %v1231, %v1534
          %v1538 = vadd.f32 %v1232, %v1535
          %v1539 = vld [vmem:[%s138 + $0x250] sm:$0x1]
          %v1540 = vld [vmem:[%s138 + $0x258] sm:$0x1]
          %v1541 = vsel %vm186, %v1536, 0.0
          %1542 = vadd.xlane.f32.xlu0 %v1541
          %v1543 = vpop.xlane.xlu0 %1542
          %v1544 = vsel %vm186, %v1537, 0.0
          %1545 = vadd.xlane.f32.xlu0 %v1544
          %v1546 = vpop.xlane.xlu0 %1545
          %v1547 = vsel %vm186, %v1538, 0.0
          %1548 = vadd.xlane.f32.xlu0 %v1547
          %v1549 = vpop.xlane.xlu0 %1548
          %v1550 = vmul.f32 %v1543, %v196
          %v1551 = vmul.f32 %v1546, %v196
          %v1552 = vmul.f32 %v1549, %v196
          %v1553 = vsub.f32 %v1536, %v1550
          %v1554 = vsub.f32 %v1537, %v1551
          %v1555 = vsub.f32 %v1538, %v1552
          %v1556 = vmul.f32 %v1553, %v1553
          %v1557 = vmul.f32 %v1554, %v1554
          %v1558 = vmul.f32 %v1555, %v1555
          %v1559 = vsel %vm186, %v1556, 0.0
          %1560 = vadd.xlane.f32.xlu0 %v1559
          %v1561 = vpop.xlane.xlu0 %1560
          %v1562 = vsel %vm186, %v1557, 0.0
          %1563 = vadd.xlane.f32.xlu0 %v1562
          %v1564 = vpop.xlane.xlu0 %1563
          %v1565 = vsel %vm186, %v1558, 0.0
          %1566 = vadd.xlane.f32.xlu0 %v1565
          %v1567 = vpop.xlane.xlu0 %1566
          %v1568 = vmul.f32 %v1561, %v196
          %v1569 = vmul.f32 %v1564, %v196
          %v1570 = vmul.f32 %v1567, %v196
          %v1571 = vadd.f32 %v1568, 1e-05
          %v1572 = vadd.f32 %v1569, 1e-05
          %v1573 = vadd.f32 %v1570, 1e-05
          %v1574 = vrsqrt.pop %v1571
          %v1575 = vrsqrt.pop %v1572
          %v1576 = vrsqrt.pop %v1573
          %v1577 = vmul.f32 %v1553, %v1574
          %v1578 = vmul.f32 %v1554, %v1575
          %v1579 = vmul.f32 %v1555, %v1576
          %v1580 = vlaneseq
          %v1581 = vshrl.u32 %v1580, 7
          %v1582 = vsub.s32 0, %v1581
          %v1583 = vrot.slane %v1539, %v1582
          %v1584 = vmul.f32 %v1577, %v1583
          %v1585 = vmul.f32 %v1578, %v1583
          %v1586 = vmul.f32 %v1579, %v1583
          %v1587 = vlaneseq
          %v1588 = vshrl.u32 %v1587, 7
          %v1589 = vsub.s32 0, %v1588
          %v1590 = vrot.slane %v1540, %v1589
          %v1591 = vadd.f32 %v1584, %v1590
          %v1592 = vadd.f32 %v1585, %v1590
          %v1593 = vadd.f32 %v1586, %v1590
          %v1594 = vld [vmem:[%s138 + $0x260] sm:$0xff]
          %v1595 = vld [vmem:[%s138 + $0x268] sm:$0xff]
          %v1596 = vld [vmem:[%s138 + $0x270] sm:$0xff]
          %v1597 = vld [vmem:[%s138 + $0x278] sm:$0xff]
          %v1598 = vld [vmem:[%s138 + $0x280] sm:$0x1]
          %v1599 = vlaneseq
          %v1600 = vshrl.u32 %v1599, 7
          %v1601 = vsub.s32 0, %v1600
          %v1602 = vrot.slane %v1598, %v1601
          %v1604 = vsel %vm186, %v1591, 0
          %v1607 = vsel %vm186, %v1592, 0
          %v1610 = vsel %vm186, %v1593, 0
          %1612 = vmatprep.subr.mxu0 0.0
          %1613 = vmatpush1.msra.mxu0 0.0
          %1614 = vmatprep.subr.mxu0 0.0
          %1615 = vmatpush1.msra.mxu0 0.0
          %1616 = vmatprep.subr.mxu0 0.0
          %1617 = vmatpush1.msra.mxu0 0.0
          %1618 = vmatprep.subr.mxu0 0.0
          %1619 = vmatpush1.msra.mxu0 0.0
          %1620 = vmatprep.subr.mxu0 0.0
          %1621 = vmatpush1.msra.mxu0 0.0
          %1622 = vmatprep.subr.mxu0 0.0
          %1623 = vmatpush1.msra.mxu0 0.0
          %1624 = vmatprep.subr.mxu0 0.0
          %1625 = vmatpush1.msra.mxu0 0.0
          %1626 = vmatprep.subr.mxu0 0.0
          %1627 = vmatpush1.msra.mxu0 0.0
          %1628 = vmatprep.subr.mxu0 0.0
          %1629 = vmatpush1.msra.mxu0 0.0
          %1630 = vmatprep.subr.mxu0 0.0
          %1631 = vmatpush1.msra.mxu0 0.0
          %1632 = vmatprep.subr.mxu0 0.0
          %1633 = vmatpush1.msra.mxu0 0.0
          %1634 = vmatprep.subr.mxu0 0.0
          %1635 = vmatpush1.msra.mxu0 0.0
          %1636 = vmatprep.subr.mxu0 0.0
          %1637 = vmatpush1.msra.mxu0 %v1597
          %1638 = vmatprep.subr.mxu0 0.0
          %1639 = vmatpush1.msra.mxu0 %v1596
          %1640 = vmatprep.subr.mxu0 0.0
          %1641 = vmatpush1.msra.mxu0 %v1595
          %1642 = vmatprep.subr.mxu0 0.0
          %1643 = vmatpush1.msra.mxu0 %v1594
          %1644 = vmatprep.subr.mxu0 0.0
          %1645 = vmatpush2.msra.mxu0 0.0
          %1646 = vmatprep.subr.mxu0 0.0
          %1647 = vmatpush2.msra.mxu0 0.0
          %1648 = vmatprep.subr.mxu0 0.0
          %1649 = vmatpush2.msra.mxu0 0.0
          %1650 = vmatprep.subr.mxu0 0.0
          %1651 = vmatpush2.msra.mxu0 0.0
          %1652 = vmatprep.subr.mxu0 0.0
          %1653 = vmatpush2.msra.mxu0 0.0
          %1654 = vmatprep.subr.mxu0 0.0
          %1655 = vmatpush2.msra.mxu0 0.0
          %1656 = vmatprep.subr.mxu0 0.0
          %1657 = vmatpush2.msra.mxu0 0.0
          %1658 = vmatprep.subr.mxu0 0.0
          %1659 = vmatpush2.msra.mxu0 0.0
          %1660 = vmatprep.subr.mxu0 0.0
          %1661 = vmatpush2.msra.mxu0 0.0
          %1662 = vmatprep.subr.mxu0 0.0
          %1663 = vmatpush2.msra.mxu0 0.0
          %1664 = vmatprep.subr.mxu0 0.0
          %1665 = vmatpush2.msra.mxu0 0.0
          %1666 = vmatprep.subr.mxu0 0.0
          %1667 = vmatpush2.msra.mxu0 0.0
          %1668 = vmatprep.subr.mxu0 0.0
          %1669 = vmatpush2.msra.mxu0 0.0
          %1670 = vmatprep.subr.mxu0 0.0
          %1671 = vmatpush2.msra.mxu0 0.0
          %1672 = vmatprep.subr.mxu0 0.0
          %1673 = vmatpush2.msra.mxu0 0.0
          %1674 = vmatprep.subr.mxu0 0.0
          %1675 = vmatpush2.msra.mxu0 0.0
          %1676 = vmatprep.mubr.f32.mxu0 0.0
          %1677 = vmatmul.mubr.f32.gmra.mxu0 %v1604
          %v1678 = vpop.f32.mrf.mxu0
          %v1679 = vadd.f32 %v1602, %v1678
          %v1680 = vpop.f32.mrf.mxu0
          %1681 = vmatprep.mubr.f32.mxu0 0.0
          %1682 = vmatmul.mubr.f32.gmra.mxu0 %v1607
          %v1683 = vpop.f32.mrf.mxu0
          %v1684 = vadd.f32 %v1602, %v1683
          %v1685 = vpop.f32.mrf.mxu0
          %1686 = vmatprep.mubr.f32.mxu0 0.0
          %1687 = vmatmul.mubr.f32.gmra.mxu0 %v1610
          %v1688 = vpop.f32.mrf.mxu0
          %v1689 = vadd.f32 %v1602, %v1688
          %v1690 = vpop.f32.mrf.mxu0
          %1691 = vdwg.mxu0
          %v1692 = vld [vmem:[%s138 + $0x288] sm:$0xff]
          %v1693 = vld [vmem:[%s138 + $0x290] sm:$0xff]
          %v1694 = vld [vmem:[%s138 + $0x298] sm:$0xff]
          %v1695 = vld [vmem:[%s138 + $0x2a0] sm:$0xff]
          %v1696 = vld [vmem:[%s138 + $0x2a8] sm:$0x1]
          %v1697 = vlaneseq
          %v1698 = vshrl.u32 %v1697, 7
          %v1699 = vsub.s32 0, %v1698
          %v1700 = vrot.slane %v1696, %v1699
          %1701 = vmatprep.subr.mxu0 0.0
          %1702 = vmatpush1.msra.mxu0 0.0
          %1703 = vmatprep.subr.mxu0 0.0
          %1704 = vmatpush1.msra.mxu0 0.0
          %1705 = vmatprep.subr.mxu0 0.0
          %1706 = vmatpush1.msra.mxu0 0.0
          %1707 = vmatprep.subr.mxu0 0.0
          %1708 = vmatpush1.msra.mxu0 0.0
          %1709 = vmatprep.subr.mxu0 0.0
          %1710 = vmatpush1.msra.mxu0 0.0
          %1711 = vmatprep.subr.mxu0 0.0
          %1712 = vmatpush1.msra.mxu0 0.0
          %1713 = vmatprep.subr.mxu0 0.0
          %1714 = vmatpush1.msra.mxu0 0.0
          %1715 = vmatprep.subr.mxu0 0.0
          %1716 = vmatpush1.msra.mxu0 0.0
          %1717 = vmatprep.subr.mxu0 0.0
          %1718 = vmatpush1.msra.mxu0 0.0
          %1719 = vmatprep.subr.mxu0 0.0
          %1720 = vmatpush1.msra.mxu0 0.0
          %1721 = vmatprep.subr.mxu0 0.0
          %1722 = vmatpush1.msra.mxu0 0.0
          %1723 = vmatprep.subr.mxu0 0.0
          %1724 = vmatpush1.msra.mxu0 0.0
          %1725 = vmatprep.subr.mxu0 0.0
          %1726 = vmatpush1.msra.mxu0 %v1695
          %1727 = vmatprep.subr.mxu0 0.0
          %1728 = vmatpush1.msra.mxu0 %v1694
          %1729 = vmatprep.subr.mxu0 0.0
          %1730 = vmatpush1.msra.mxu0 %v1693
          %1731 = vmatprep.subr.mxu0 0.0
          %1732 = vmatpush1.msra.mxu0 %v1692
          %1733 = vmatprep.subr.mxu0 0.0
          %1734 = vmatpush2.msra.mxu0 0.0
          %1735 = vmatprep.subr.mxu0 0.0
          %1736 = vmatpush2.msra.mxu0 0.0
          %1737 = vmatprep.subr.mxu0 0.0
          %1738 = vmatpush2.msra.mxu0 0.0
          %1739 = vmatprep.subr.mxu0 0.0
          %1740 = vmatpush2.msra.mxu0 0.0
          %1741 = vmatprep.subr.mxu0 0.0
          %1742 = vmatpush2.msra.mxu0 0.0
          %1743 = vmatprep.subr.mxu0 0.0
          %1744 = vmatpush2.msra.mxu0 0.0
          %1745 = vmatprep.subr.mxu0 0.0
          %1746 = vmatpush2.msra.mxu0 0.0
          %1747 = vmatprep.subr.mxu0 0.0
          %1748 = vmatpush2.msra.mxu0 0.0
          %1749 = vmatprep.subr.mxu0 0.0
          %1750 = vmatpush2.msra.mxu0 0.0
          %1751 = vmatprep.subr.mxu0 0.0
          %1752 = vmatpush2.msra.mxu0 0.0
          %1753 = vmatprep.subr.mxu0 0.0
          %1754 = vmatpush2.msra.mxu0 0.0
          %1755 = vmatprep.subr.mxu0 0.0
          %1756 = vmatpush2.msra.mxu0 0.0
          %1757 = vmatprep.subr.mxu0 0.0
          %1758 = vmatpush2.msra.mxu0 0.0
          %1759 = vmatprep.subr.mxu0 0.0
          %1760 = vmatpush2.msra.mxu0 0.0
          %1761 = vmatprep.subr.mxu0 0.0
          %1762 = vmatpush2.msra.mxu0 0.0
          %1763 = vmatprep.subr.mxu0 0.0
          %1764 = vmatpush2.msra.mxu0 0.0
          %1765 = vmatprep.mubr.f32.mxu0 0.0
          %1766 = vmatmul.mubr.f32.gmra.mxu0 %v1604
          %v1767 = vpop.f32.mrf.mxu0
          %v1768 = vadd.f32 %v1700, %v1767
          %v1769 = vpop.f32.mrf.mxu0
          %1770 = vmatprep.mubr.f32.mxu0 0.0
          %1771 = vmatmul.mubr.f32.gmra.mxu0 %v1607
          %v1772 = vpop.f32.mrf.mxu0
          %v1773 = vadd.f32 %v1700, %v1772
          %v1774 = vpop.f32.mrf.mxu0
          %1775 = vmatprep.mubr.f32.mxu0 0.0
          %1776 = vmatmul.mubr.f32.gmra.mxu0 %v1610
          %v1777 = vpop.f32.mrf.mxu0
          %v1778 = vadd.f32 %v1700, %v1777
          %v1779 = vpop.f32.mrf.mxu0
          %1780 = vdwg.mxu0
          %v1781 = vld [vmem:[%s138 + $0x2b0] sm:$0xff]
          %v1782 = vld [vmem:[%s138 + $0x2b8] sm:$0xff]
          %v1783 = vld [vmem:[%s138 + $0x2c0] sm:$0xff]
          %v1784 = vld [vmem:[%s138 + $0x2c8] sm:$0xff]
          %v1785 = vld [vmem:[%s138 + $0x2d0] sm:$0x1]
          %v1786 = vlaneseq
          %v1787 = vshrl.u32 %v1786, 7
          %v1788 = vsub.s32 0, %v1787
          %v1789 = vrot.slane %v1785, %v1788
          %1790 = vmatprep.subr.mxu0 0.0
          %1791 = vmatpush1.msra.mxu0 0.0
          %1792 = vmatprep.subr.mxu0 0.0
          %1793 = vmatpush1.msra.mxu0 0.0
          %1794 = vmatprep.subr.mxu0 0.0
          %1795 = vmatpush1.msra.mxu0 0.0
          %1796 = vmatprep.subr.mxu0 0.0
          %1797 = vmatpush1.msra.mxu0 0.0
          %1798 = vmatprep.subr.mxu0 0.0
          %1799 = vmatpush1.msra.mxu0 0.0
          %1800 = vmatprep.subr.mxu0 0.0
          %1801 = vmatpush1.msra.mxu0 0.0
          %1802 = vmatprep.subr.mxu0 0.0
          %1803 = vmatpush1.msra.mxu0 0.0
          %1804 = vmatprep.subr.mxu0 0.0
          %1805 = vmatpush1.msra.mxu0 0.0
          %1806 = vmatprep.subr.mxu0 0.0
          %1807 = vmatpush1.msra.mxu0 0.0
          %1808 = vmatprep.subr.mxu0 0.0
          %1809 = vmatpush1.msra.mxu0 0.0
          %1810 = vmatprep.subr.mxu0 0.0
          %1811 = vmatpush1.msra.mxu0 0.0
          %1812 = vmatprep.subr.mxu0 0.0
          %1813 = vmatpush1.msra.mxu0 0.0
          %1814 = vmatprep.subr.mxu0 0.0
          %1815 = vmatpush1.msra.mxu0 %v1784
          %1816 = vmatprep.subr.mxu0 0.0
          %1817 = vmatpush1.msra.mxu0 %v1783
          %1818 = vmatprep.subr.mxu0 0.0
          %1819 = vmatpush1.msra.mxu0 %v1782
          %1820 = vmatprep.subr.mxu0 0.0
          %1821 = vmatpush1.msra.mxu0 %v1781
          %1822 = vmatprep.subr.mxu0 0.0
          %1823 = vmatpush2.msra.mxu0 0.0
          %1824 = vmatprep.subr.mxu0 0.0
          %1825 = vmatpush2.msra.mxu0 0.0
          %1826 = vmatprep.subr.mxu0 0.0
          %1827 = vmatpush2.msra.mxu0 0.0
          %1828 = vmatprep.subr.mxu0 0.0
          %1829 = vmatpush2.msra.mxu0 0.0
          %1830 = vmatprep.subr.mxu0 0.0
          %1831 = vmatpush2.msra.mxu0 0.0
          %1832 = vmatprep.subr.mxu0 0.0
          %1833 = vmatpush2.msra.mxu0 0.0
          %1834 = vmatprep.subr.mxu0 0.0
          %1835 = vmatpush2.msra.mxu0 0.0
          %1836 = vmatprep.subr.mxu0 0.0
          %1837 = vmatpush2.msra.mxu0 0.0
          %1838 = vmatprep.subr.mxu0 0.0
          %1839 = vmatpush2.msra.mxu0 0.0
          %1840 = vmatprep.subr.mxu0 0.0
          %1841 = vmatpush2.msra.mxu0 0.0
          %1842 = vmatprep.subr.mxu0 0.0
          %1843 = vmatpush2.msra.mxu0 0.0
          %1844 = vmatprep.subr.mxu0 0.0
          %1845 = vmatpush2.msra.mxu0 0.0
          %1846 = vmatprep.subr.mxu0 0.0
          %1847 = vmatpush2.msra.mxu0 0.0
          %1848 = vmatprep.subr.mxu0 0.0
          %1849 = vmatpush2.msra.mxu0 0.0
          %1850 = vmatprep.subr.mxu0 0.0
          %1851 = vmatpush2.msra.mxu0 0.0
          %1852 = vmatprep.subr.mxu0 0.0
          %1853 = vmatpush2.msra.mxu0 0.0
          %1854 = vmatprep.mubr.f32.mxu0 0.0
          %1855 = vmatmul.mubr.f32.gmra.mxu0 %v1604
          %v1856 = vpop.f32.mrf.mxu0
          %v1857 = vadd.f32 %v1789, %v1856
          %v1858 = vpop.f32.mrf.mxu0
          %1859 = vmatprep.mubr.f32.mxu0 0.0
          %1860 = vmatmul.mubr.f32.gmra.mxu0 %v1607
          %v1861 = vpop.f32.mrf.mxu0
          %v1862 = vadd.f32 %v1789, %v1861
          %v1863 = vpop.f32.mrf.mxu0
          %1864 = vmatprep.mubr.f32.mxu0 0.0
          %1865 = vmatmul.mubr.f32.gmra.mxu0 %v1610
          %v1866 = vpop.f32.mrf.mxu0
          %v1867 = vadd.f32 %v1789, %v1866
          %v1868 = vpop.f32.mrf.mxu0
          %1869 = vdwg.mxu0
          %v1870 = vmul.f32 %v1768, %v169
          %v1871 = vmul.f32 %v1773, %v170
          %v1872 = vmul.f32 %v1778, %v171
          %v1873 = vmul.f32 %v1768, %v172
          %v1874 = vmul.f32 %v1773, %v173
          %v1875 = vmul.f32 %v1778, %v174
          %v1876 = vmul.f32 %v1768, %v175
          %v1877 = vmul.f32 %v1773, %v176
          %v1878 = vmul.f32 %v1778, %v177
          %v1879 = vmul.f32 %v1768, %v178
          %v1880 = vmul.f32 %v1773, %v179
          %v1881 = vmul.f32 %v1778, %v180
          %v1882 = vmul.f32 %v1857, %v169
          %v1883 = vmul.f32 %v1862, %v170
          %v1884 = vmul.f32 %v1867, %v171
          %v1885 = vmul.f32 %v1857, %v172
          %v1886 = vmul.f32 %v1862, %v173
          %v1887 = vmul.f32 %v1867, %v174
          %v1888 = vmul.f32 %v1857, %v175
          %v1889 = vmul.f32 %v1862, %v176
          %v1890 = vmul.f32 %v1867, %v177
          %v1891 = vmul.f32 %v1857, %v178
          %v1892 = vmul.f32 %v1862, %v179
          %v1893 = vmul.f32 %v1867, %v180
          %v1895 = vsel %vm186, %v1679, 0
          %v1898 = vsel %vm186, %v1684, 0
          %v1901 = vsel %vm186, %v1689, 0
          %v1904 = vsel %vm186, %v1870, 0
          %v1907 = vsel %vm186, %v1871, 0
          %v1910 = vsel %vm186, %v1872, 0
          %v1913 = vsel %vm186, %v1873, 0
          %v1916 = vsel %vm186, %v1874, 0
          %v1919 = vsel %vm186, %v1875, 0
          %v1922 = vsel %vm186, %v1876, 0
          %v1925 = vsel %vm186, %v1877, 0
          %v1928 = vsel %vm186, %v1878, 0
          %v1931 = vsel %vm186, %v1879, 0
          %v1934 = vsel %vm186, %v1880, 0
          %v1937 = vsel %vm186, %v1881, 0
          %1939 = vmatprep.subr.mxu0 0.0
          %1940 = vmatpush1.xpose.msra.mxu0 0.0
          %1941 = vmatprep.subr.mxu0 0.0
          %1942 = vmatpush1.xpose.msra.mxu0 0.0
          %1943 = vmatprep.subr.mxu0 0.0
          %1944 = vmatpush1.xpose.msra.mxu0 0.0
          %1945 = vmatprep.subr.mxu0 0.0
          %1946 = vmatpush1.xpose.msra.mxu0 0.0
          %1947 = vmatprep.subr.mxu0 0.0
          %1948 = vmatpush1.xpose.msra.mxu0 %v1937
          %1949 = vmatprep.subr.mxu0 0.0
          %1950 = vmatpush1.xpose.msra.mxu0 %v1934
          %1951 = vmatprep.subr.mxu0 0.0
          %1952 = vmatpush1.xpose.msra.mxu0 %v1931
          %1953 = vmatprep.subr.mxu0 0.0
          %1954 = vmatpush1.xpose.msra.mxu0 %v1928
          %1955 = vmatprep.subr.mxu0 0.0
          %1956 = vmatpush1.xpose.msra.mxu0 %v1925
          %1957 = vmatprep.subr.mxu0 0.0
          %1958 = vmatpush1.xpose.msra.mxu0 %v1922
          %1959 = vmatprep.subr.mxu0 0.0
          %1960 = vmatpush1.xpose.msra.mxu0 %v1919
          %1961 = vmatprep.subr.mxu0 0.0
          %1962 = vmatpush1.xpose.msra.mxu0 %v1916
          %1963 = vmatprep.subr.mxu0 0.0
          %1964 = vmatpush1.xpose.msra.mxu0 %v1913
          %1965 = vmatprep.subr.mxu0 0.0
          %1966 = vmatpush1.xpose.msra.mxu0 %v1910
          %1967 = vmatprep.subr.mxu0 0.0
          %1968 = vmatpush1.xpose.msra.mxu0 %v1907
          %1969 = vmatprep.subr.mxu0 0.0
          %1970 = vmatpush1.xpose.msra.mxu0 %v1904
          %1971 = vmatprep.subr.mxu0 0.0
          %1972 = vmatpush2.xpose.msra.mxu0 0.0
          %1973 = vmatprep.subr.mxu0 0.0
          %1974 = vmatpush2.xpose.msra.mxu0 0.0
          %1975 = vmatprep.subr.mxu0 0.0
          %1976 = vmatpush2.xpose.msra.mxu0 0.0
          %1977 = vmatprep.subr.mxu0 0.0
          %1978 = vmatpush2.xpose.msra.mxu0 0.0
          %1979 = vmatprep.subr.mxu0 0.0
          %1980 = vmatpush2.xpose.msra.mxu0 0.0
          %1981 = vmatprep.subr.mxu0 0.0
          %1982 = vmatpush2.xpose.msra.mxu0 0.0
          %1983 = vmatprep.subr.mxu0 0.0
          %1984 = vmatpush2.xpose.msra.mxu0 0.0
          %1985 = vmatprep.subr.mxu0 0.0
          %1986 = vmatpush2.xpose.msra.mxu0 0.0
          %1987 = vmatprep.subr.mxu0 0.0
          %1988 = vmatpush2.xpose.msra.mxu0 0.0
          %1989 = vmatprep.subr.mxu0 0.0
          %1990 = vmatpush2.xpose.msra.mxu0 0.0
          %1991 = vmatprep.subr.mxu0 0.0
          %1992 = vmatpush2.xpose.msra.mxu0 0.0
          %1993 = vmatprep.subr.mxu0 0.0
          %1994 = vmatpush2.xpose.msra.mxu0 0.0
          %1995 = vmatprep.subr.mxu0 0.0
          %1996 = vmatpush2.xpose.msra.mxu0 0.0
          %1997 = vmatprep.subr.mxu0 0.0
          %1998 = vmatpush2.xpose.msra.mxu0 0.0
          %1999 = vmatprep.subr.mxu0 0.0
          %2000 = vmatpush2.xpose.msra.mxu0 0.0
          %2001 = vmatprep.subr.mxu0 0.0
          %2002 = vmatpush2.xpose.msra.mxu0 0.0
          %2003 = vmatprep.mubr.f32.mxu0 0.0
          %2004 = vmatmul.mubr.f32.gmra.mxu0 %v1895
          %v2005 = vpop.f32.mrf.mxu0
          %v2006 = vadd.f32 %v181, %v2005
          %v2007 = vpop.f32.mrf.mxu0
          %2008 = vmatprep.mubr.f32.mxu0 0.0
          %2009 = vmatmul.mubr.f32.gmra.mxu0 %v1898
          %v2010 = vpop.f32.mrf.mxu0
          %v2011 = vadd.f32 %v182, %v2010
          %v2012 = vpop.f32.mrf.mxu0
          %2013 = vmatprep.mubr.f32.mxu0 0.0
          %2014 = vmatmul.mubr.f32.gmra.mxu0 %v1901
          %v2015 = vpop.f32.mrf.mxu0
          %v2016 = vadd.f32 %v183, %v2015
          %v2017 = vpop.f32.mrf.mxu0
          %2018 = vdwg.mxu0
          %v2019 = vsel %vm666, %v2006, -inf
          %2020 = vmax.xlane.f32.xlu0 %v2019
          %v2021 = vpop.xlane.xlu0 %2020
          %v2022 = vsel %vm666, %v2011, -inf
          %2023 = vmax.xlane.f32.xlu0 %v2022
          %v2024 = vpop.xlane.xlu0 %2023
          %v2025 = vsel %vm666, %v2016, -inf
          %2026 = vmax.xlane.f32.xlu0 %v2025
          %v2027 = vpop.xlane.xlu0 %2026
          %v2028 = vsub.f32 %v2006, %v2021
          %v2029 = vsub.f32 %v2011, %v2024
          %v2030 = vsub.f32 %v2016, %v2027
          %v2031 = vmul.f32 %v2028, 1.442695
          %v2032 = vpow.pop %v2031
          %v2033 = vmul.f32 %v2029, 1.442695
          %v2034 = vpow.pop %v2033
          %v2035 = vmul.f32 %v2030, 1.442695
          %v2036 = vpow.pop %v2035
          %v2038 = vsel %vm666, %v2032, 0
          %v2041 = vsel %vm666, %v2034, 0
          %v2044 = vsel %vm666, %v2036, 0
          %2046 = vmatprep.subr.mxu0 0.0
          %2047 = vmatpush1.msra.mxu0 0.0
          %2048 = vmatprep.subr.mxu0 0.0
          %2049 = vmatpush1.msra.mxu0 0.0
          %2050 = vmatprep.subr.mxu0 0.0
          %2051 = vmatpush1.msra.mxu0 0.0
          %2052 = vmatprep.subr.mxu0 0.0
          %2053 = vmatpush1.msra.mxu0 0.0
          %2054 = vmatprep.subr.mxu0 0.0
          %2055 = vmatpush1.msra.mxu0 %v180
          %2056 = vmatprep.subr.mxu0 0.0
          %2057 = vmatpush1.msra.mxu0 %v179
          %2058 = vmatprep.subr.mxu0 0.0
          %2059 = vmatpush1.msra.mxu0 %v178
          %2060 = vmatprep.subr.mxu0 0.0
          %2061 = vmatpush1.msra.mxu0 %v177
          %2062 = vmatprep.subr.mxu0 0.0
          %2063 = vmatpush1.msra.mxu0 %v176
          %2064 = vmatprep.subr.mxu0 0.0
          %2065 = vmatpush1.msra.mxu0 %v175
          %2066 = vmatprep.subr.mxu0 0.0
          %2067 = vmatpush1.msra.mxu0 %v174
          %2068 = vmatprep.subr.mxu0 0.0
          %2069 = vmatpush1.msra.mxu0 %v173
          %2070 = vmatprep.subr.mxu0 0.0
          %2071 = vmatpush1.msra.mxu0 %v172
          %2072 = vmatprep.subr.mxu0 0.0
          %2073 = vmatpush1.msra.mxu0 %v171
          %2074 = vmatprep.subr.mxu0 0.0
          %2075 = vmatpush1.msra.mxu0 %v170
          %2076 = vmatprep.subr.mxu0 0.0
          %2077 = vmatpush1.msra.mxu0 %v169
          %2078 = vmatprep.subr.mxu0 0.0
          %2079 = vmatpush2.msra.mxu0 0.0
          %2080 = vmatprep.subr.mxu0 0.0
          %2081 = vmatpush2.msra.mxu0 0.0
          %2082 = vmatprep.subr.mxu0 0.0
          %2083 = vmatpush2.msra.mxu0 0.0
          %2084 = vmatprep.subr.mxu0 0.0
          %2085 = vmatpush2.msra.mxu0 0.0
          %2086 = vmatprep.subr.mxu0 0.0
          %2087 = vmatpush2.msra.mxu0 0.0
          %2088 = vmatprep.subr.mxu0 0.0
          %2089 = vmatpush2.msra.mxu0 0.0
          %2090 = vmatprep.subr.mxu0 0.0
          %2091 = vmatpush2.msra.mxu0 0.0
          %2092 = vmatprep.subr.mxu0 0.0
          %2093 = vmatpush2.msra.mxu0 0.0
          %2094 = vmatprep.subr.mxu0 0.0
          %2095 = vmatpush2.msra.mxu0 0.0
          %2096 = vmatprep.subr.mxu0 0.0
          %2097 = vmatpush2.msra.mxu0 0.0
          %2098 = vmatprep.subr.mxu0 0.0
          %2099 = vmatpush2.msra.mxu0 0.0
          %2100 = vmatprep.subr.mxu0 0.0
          %2101 = vmatpush2.msra.mxu0 0.0
          %2102 = vmatprep.subr.mxu0 0.0
          %2103 = vmatpush2.msra.mxu0 0.0
          %2104 = vmatprep.subr.mxu0 0.0
          %2105 = vmatpush2.msra.mxu0 0.0
          %2106 = vmatprep.subr.mxu0 0.0
          %2107 = vmatpush2.msra.mxu0 0.0
          %2108 = vmatprep.subr.mxu0 0.0
          %2109 = vmatpush2.msra.mxu0 0.0
          %2110 = vmatprep.mubr.f32.mxu0 0.0
          %2111 = vmatmul.mubr.f32.gmra.mxu0 %v2038
          %v2112 = vpop.f32.mrf.mxu0
          %v2113 = vadd.f32 0.0, %v2112
          %v2114 = vpop.f32.mrf.mxu0
          %2115 = vmatprep.mubr.f32.mxu0 0.0
          %2116 = vmatmul.mubr.f32.gmra.mxu0 %v2041
          %v2117 = vpop.f32.mrf.mxu0
          %v2118 = vadd.f32 0.0, %v2117
          %v2119 = vpop.f32.mrf.mxu0
          %2120 = vmatprep.mubr.f32.mxu0 0.0
          %2121 = vmatmul.mubr.f32.gmra.mxu0 %v2044
          %v2122 = vpop.f32.mrf.mxu0
          %v2123 = vadd.f32 0.0, %v2122
          %v2124 = vpop.f32.mrf.mxu0
          %2125 = vdwg.mxu0
          %2126 = vmatprep.subr.mxu0 0.0
          %2127 = vmatpush1.msra.mxu0 0.0
          %2128 = vmatprep.subr.mxu0 0.0
          %2129 = vmatpush1.msra.mxu0 0.0
          %2130 = vmatprep.subr.mxu0 0.0
          %2131 = vmatpush1.msra.mxu0 0.0
          %2132 = vmatprep.subr.mxu0 0.0
          %2133 = vmatpush1.msra.mxu0 0.0
          %2134 = vmatprep.subr.mxu0 0.0
          %2135 = vmatpush1.msra.mxu0 %v1893
          %2136 = vmatprep.subr.mxu0 0.0
          %2137 = vmatpush1.msra.mxu0 %v1892
          %2138 = vmatprep.subr.mxu0 0.0
          %2139 = vmatpush1.msra.mxu0 %v1891
          %2140 = vmatprep.subr.mxu0 0.0
          %2141 = vmatpush1.msra.mxu0 %v1890
          %2142 = vmatprep.subr.mxu0 0.0
          %2143 = vmatpush1.msra.mxu0 %v1889
          %2144 = vmatprep.subr.mxu0 0.0
          %2145 = vmatpush1.msra.mxu0 %v1888
          %2146 = vmatprep.subr.mxu0 0.0
          %2147 = vmatpush1.msra.mxu0 %v1887
          %2148 = vmatprep.subr.mxu0 0.0
          %2149 = vmatpush1.msra.mxu0 %v1886
          %2150 = vmatprep.subr.mxu0 0.0
          %2151 = vmatpush1.msra.mxu0 %v1885
          %2152 = vmatprep.subr.mxu0 0.0
          %2153 = vmatpush1.msra.mxu0 %v1884
          %2154 = vmatprep.subr.mxu0 0.0
          %2155 = vmatpush1.msra.mxu0 %v1883
          %2156 = vmatprep.subr.mxu0 0.0
          %2157 = vmatpush1.msra.mxu0 %v1882
          %2158 = vmatprep.subr.mxu0 0.0
          %2159 = vmatpush2.msra.mxu0 0.0
          %2160 = vmatprep.subr.mxu0 0.0
          %2161 = vmatpush2.msra.mxu0 0.0
          %2162 = vmatprep.subr.mxu0 0.0
          %2163 = vmatpush2.msra.mxu0 0.0
          %2164 = vmatprep.subr.mxu0 0.0
          %2165 = vmatpush2.msra.mxu0 0.0
          %2166 = vmatprep.subr.mxu0 0.0
          %2167 = vmatpush2.msra.mxu0 0.0
          %2168 = vmatprep.subr.mxu0 0.0
          %2169 = vmatpush2.msra.mxu0 0.0
          %2170 = vmatprep.subr.mxu0 0.0
          %2171 = vmatpush2.msra.mxu0 0.0
          %2172 = vmatprep.subr.mxu0 0.0
          %2173 = vmatpush2.msra.mxu0 0.0
          %2174 = vmatprep.subr.mxu0 0.0
          %2175 = vmatpush2.msra.mxu0 0.0
          %2176 = vmatprep.subr.mxu0 0.0
          %2177 = vmatpush2.msra.mxu0 0.0
          %2178 = vmatprep.subr.mxu0 0.0
          %2179 = vmatpush2.msra.mxu0 0.0
          %2180 = vmatprep.subr.mxu0 0.0
          %2181 = vmatpush2.msra.mxu0 0.0
          %2182 = vmatprep.subr.mxu0 0.0
          %2183 = vmatpush2.msra.mxu0 0.0
          %2184 = vmatprep.subr.mxu0 0.0
          %2185 = vmatpush2.msra.mxu0 0.0
          %2186 = vmatprep.subr.mxu0 0.0
          %2187 = vmatpush2.msra.mxu0 0.0
          %2188 = vmatprep.subr.mxu0 0.0
          %2189 = vmatpush2.msra.mxu0 0.0
          %2190 = vmatprep.mubr.f32.mxu0 0.0
          %2191 = vmatmul.mubr.f32.gmra.mxu0 %v2038
          %v2192 = vpop.f32.mrf.mxu0
          %v2193 = vadd.f32 0.0, %v2192
          %v2194 = vpop.f32.mrf.mxu0
          %2195 = vmatprep.mubr.f32.mxu0 0.0
          %2196 = vmatmul.mubr.f32.gmra.mxu0 %v2041
          %v2197 = vpop.f32.mrf.mxu0
          %v2198 = vadd.f32 0.0, %v2197
          %v2199 = vpop.f32.mrf.mxu0
          %2200 = vmatprep.mubr.f32.mxu0 0.0
          %2201 = vmatmul.mubr.f32.gmra.mxu0 %v2044
          %v2202 = vpop.f32.mrf.mxu0
          %v2203 = vadd.f32 0.0, %v2202
          %v2204 = vpop.f32.mrf.mxu0
          %2205 = vdwg.mxu0
          %v2206 = vrcp.pop %v2113
          %v2207 = vmul.f32 %v2193, %v2206
          %v2208 = vrcp.pop %v2118
          %v2209 = vmul.f32 %v2198, %v2208
          %v2210 = vrcp.pop %v2123
          %v2211 = vmul.f32 %v2203, %v2210
          %v2212 = vld [vmem:[%s138 + $0x2d8] sm:$0xff]
          %v2213 = vld [vmem:[%s138 + $0x2e0] sm:$0xff]
          %v2214 = vld [vmem:[%s138 + $0x2e8] sm:$0xff]
          %v2215 = vld [vmem:[%s138 + $0x2f0] sm:$0xff]
          %v2217 = vsel %vm186, %v2207, 0
          %v2220 = vsel %vm186, %v2209, 0
          %v2223 = vsel %vm186, %v2211, 0
          %2225 = vmatprep.subr.mxu0 0.0
          %2226 = vmatpush1.msra.mxu0 0.0
          %2227 = vmatprep.subr.mxu0 0.0
          %2228 = vmatpush1.msra.mxu0 0.0
          %2229 = vmatprep.subr.mxu0 0.0
          %2230 = vmatpush1.msra.mxu0 0.0
          %2231 = vmatprep.subr.mxu0 0.0
          %2232 = vmatpush1.msra.mxu0 0.0
          %2233 = vmatprep.subr.mxu0 0.0
          %2234 = vmatpush1.msra.mxu0 0.0
          %2235 = vmatprep.subr.mxu0 0.0
          %2236 = vmatpush1.msra.mxu0 0.0
          %2237 = vmatprep.subr.mxu0 0.0
          %2238 = vmatpush1.msra.mxu0 0.0
          %2239 = vmatprep.subr.mxu0 0.0
          %2240 = vmatpush1.msra.mxu0 0.0
          %2241 = vmatprep.subr.mxu0 0.0
          %2242 = vmatpush1.msra.mxu0 0.0
          %2243 = vmatprep.subr.mxu0 0.0
          %2244 = vmatpush1.msra.mxu0 0.0
          %2245 = vmatprep.subr.mxu0 0.0
          %2246 = vmatpush1.msra.mxu0 0.0
          %2247 = vmatprep.subr.mxu0 0.0
          %2248 = vmatpush1.msra.mxu0 0.0
          %2249 = vmatprep.subr.mxu0 0.0
          %2250 = vmatpush1.msra.mxu0 %v2215
          %2251 = vmatprep.subr.mxu0 0.0
          %2252 = vmatpush1.msra.mxu0 %v2214
          %2253 = vmatprep.subr.mxu0 0.0
          %2254 = vmatpush1.msra.mxu0 %v2213
          %2255 = vmatprep.subr.mxu0 0.0
          %2256 = vmatpush1.msra.mxu0 %v2212
          %2257 = vmatprep.subr.mxu0 0.0
          %2258 = vmatpush2.msra.mxu0 0.0
          %2259 = vmatprep.subr.mxu0 0.0
          %2260 = vmatpush2.msra.mxu0 0.0
          %2261 = vmatprep.subr.mxu0 0.0
          %2262 = vmatpush2.msra.mxu0 0.0
          %2263 = vmatprep.subr.mxu0 0.0
          %2264 = vmatpush2.msra.mxu0 0.0
          %2265 = vmatprep.subr.mxu0 0.0
          %2266 = vmatpush2.msra.mxu0 0.0
          %2267 = vmatprep.subr.mxu0 0.0
          %2268 = vmatpush2.msra.mxu0 0.0
          %2269 = vmatprep.subr.mxu0 0.0
          %2270 = vmatpush2.msra.mxu0 0.0
          %2271 = vmatprep.subr.mxu0 0.0
          %2272 = vmatpush2.msra.mxu0 0.0
          %2273 = vmatprep.subr.mxu0 0.0
          %2274 = vmatpush2.msra.mxu0 0.0
          %2275 = vmatprep.subr.mxu0 0.0
          %2276 = vmatpush2.msra.mxu0 0.0
          %2277 = vmatprep.subr.mxu0 0.0
          %2278 = vmatpush2.msra.mxu0 0.0
          %2279 = vmatprep.subr.mxu0 0.0
          %2280 = vmatpush2.msra.mxu0 0.0
          %2281 = vmatprep.subr.mxu0 0.0
          %2282 = vmatpush2.msra.mxu0 0.0
          %2283 = vmatprep.subr.mxu0 0.0
          %2284 = vmatpush2.msra.mxu0 0.0
          %2285 = vmatprep.subr.mxu0 0.0
          %2286 = vmatpush2.msra.mxu0 0.0
          %2287 = vmatprep.subr.mxu0 0.0
          %2288 = vmatpush2.msra.mxu0 0.0
          %2289 = vmatprep.mubr.f32.mxu0 0.0
          %2290 = vmatmul.mubr.f32.gmra.mxu0 %v2217
          %v2291 = vpop.f32.mrf.mxu0
          %v2292 = vadd.f32 0.0, %v2291
          %v2293 = vpop.f32.mrf.mxu0
          %2294 = vmatprep.mubr.f32.mxu0 0.0
          %2295 = vmatmul.mubr.f32.gmra.mxu0 %v2220
          %v2296 = vpop.f32.mrf.mxu0
          %v2297 = vadd.f32 0.0, %v2296
          %v2298 = vpop.f32.mrf.mxu0
          %2299 = vmatprep.mubr.f32.mxu0 0.0
          %2300 = vmatmul.mubr.f32.gmra.mxu0 %v2223
          %v2301 = vpop.f32.mrf.mxu0
          %v2302 = vadd.f32 0.0, %v2301
          %v2303 = vpop.f32.mrf.mxu0
          %2304 = vdwg.mxu0
          %v2305 = vadd.f32 %v1536, %v2292
          %v2306 = vadd.f32 %v1537, %v2297
          %v2307 = vadd.f32 %v1538, %v2302
          %v2308 = vld [vmem:[%s138 + $0x2f8] sm:$0x1]
          %v2309 = vlaneseq
          %v2310 = vshrl.u32 %v2309, 7
          %v2311 = vsub.s32 0, %v2310
          %v2312 = vrot.slane %v2308, %v2311
          %v2313 = vadd.f32 %v2305, %v2312
          %v2314 = vadd.f32 %v2306, %v2312
          %v2315 = vadd.f32 %v2307, %v2312
          %v2316 = vld [vmem:[%s138 + $0x300] sm:$0x1]
          %v2317 = vld [vmem:[%s138 + $0x308] sm:$0x1]
          %v2318 = vsel %vm186, %v2313, 0.0
          %2319 = vadd.xlane.f32.xlu0 %v2318
          %v2320 = vpop.xlane.xlu0 %2319
          %v2321 = vsel %vm186, %v2314, 0.0
          %2322 = vadd.xlane.f32.xlu0 %v2321
          %v2323 = vpop.xlane.xlu0 %2322
          %v2324 = vsel %vm186, %v2315, 0.0
          %2325 = vadd.xlane.f32.xlu0 %v2324
          %v2326 = vpop.xlane.xlu0 %2325
          %v2327 = vmul.f32 %v2320, %v196
          %v2328 = vmul.f32 %v2323, %v196
          %v2329 = vmul.f32 %v2326, %v196
          %v2330 = vsub.f32 %v2313, %v2327
          %v2331 = vsub.f32 %v2314, %v2328
          %v2332 = vsub.f32 %v2315, %v2329
          %v2333 = vmul.f32 %v2330, %v2330
          %v2334 = vmul.f32 %v2331, %v2331
          %v2335 = vmul.f32 %v2332, %v2332
          %v2336 = vsel %vm186, %v2333, 0.0
          %2337 = vadd.xlane.f32.xlu0 %v2336
          %v2338 = vpop.xlane.xlu0 %2337
          %v2339 = vsel %vm186, %v2334, 0.0
          %2340 = vadd.xlane.f32.xlu0 %v2339
          %v2341 = vpop.xlane.xlu0 %2340
          %v2342 = vsel %vm186, %v2335, 0.0
          %2343 = vadd.xlane.f32.xlu0 %v2342
          %v2344 = vpop.xlane.xlu0 %2343
          %v2345 = vmul.f32 %v2338, %v196
          %v2346 = vmul.f32 %v2341, %v196
          %v2347 = vmul.f32 %v2344, %v196
          %v2348 = vadd.f32 %v2345, 1e-05
          %v2349 = vadd.f32 %v2346, 1e-05
          %v2350 = vadd.f32 %v2347, 1e-05
          %v2351 = vrsqrt.pop %v2348
          %v2352 = vrsqrt.pop %v2349
          %v2353 = vrsqrt.pop %v2350
          %v2354 = vmul.f32 %v2330, %v2351
          %v2355 = vmul.f32 %v2331, %v2352
          %v2356 = vmul.f32 %v2332, %v2353
          %v2357 = vlaneseq
          %v2358 = vshrl.u32 %v2357, 7
          %v2359 = vsub.s32 0, %v2358
          %v2360 = vrot.slane %v2316, %v2359
          %v2361 = vmul.f32 %v2354, %v2360
          %v2362 = vmul.f32 %v2355, %v2360
          %v2363 = vmul.f32 %v2356, %v2360
          %v2364 = vlaneseq
          %v2365 = vshrl.u32 %v2364, 7
          %v2366 = vsub.s32 0, %v2365
          %v2367 = vrot.slane %v2317, %v2366
          %v2368 = vadd.f32 %v2361, %v2367
          %v2369 = vadd.f32 %v2362, %v2367
          %v2370 = vadd.f32 %v2363, %v2367
          %v2371 = vld [vmem:[%s138 + $0x310] sm:$0xff]
          %v2372 = vld [vmem:[%s138 + $0x318] sm:$0xff]
          %v2373 = vld [vmem:[%s138 + $0x320] sm:$0xff]
          %v2374 = vld [vmem:[%s138 + $0x328] sm:$0xff]
          %v2375 = vld [vmem:[%s138 + $0x330] sm:$0x1]
          %v2376 = vlaneseq
          %v2377 = vshrl.u32 %v2376, 7
          %v2378 = vsub.s32 0, %v2377
          %v2379 = vrot.slane %v2375, %v2378
          %v2381 = vsel %vm186, %v2368, 0
          %v2384 = vsel %vm186, %v2369, 0
          %v2387 = vsel %vm186, %v2370, 0
          %2389 = vmatprep.subr.mxu0 0.0
          %2390 = vmatpush1.msra.mxu0 0.0
          %2391 = vmatprep.subr.mxu0 0.0
          %2392 = vmatpush1.msra.mxu0 0.0
          %2393 = vmatprep.subr.mxu0 0.0
          %2394 = vmatpush1.msra.mxu0 0.0
          %2395 = vmatprep.subr.mxu0 0.0
          %2396 = vmatpush1.msra.mxu0 0.0
          %2397 = vmatprep.subr.mxu0 0.0
          %2398 = vmatpush1.msra.mxu0 0.0
          %2399 = vmatprep.subr.mxu0 0.0
          %2400 = vmatpush1.msra.mxu0 0.0
          %2401 = vmatprep.subr.mxu0 0.0
          %2402 = vmatpush1.msra.mxu0 0.0
          %2403 = vmatprep.subr.mxu0 0.0
          %2404 = vmatpush1.msra.mxu0 0.0
          %2405 = vmatprep.subr.mxu0 0.0
          %2406 = vmatpush1.msra.mxu0 0.0
          %2407 = vmatprep.subr.mxu0 0.0
          %2408 = vmatpush1.msra.mxu0 0.0
          %2409 = vmatprep.subr.mxu0 0.0
          %2410 = vmatpush1.msra.mxu0 0.0
          %2411 = vmatprep.subr.mxu0 0.0
          %2412 = vmatpush1.msra.mxu0 0.0
          %2413 = vmatprep.subr.mxu0 0.0
          %2414 = vmatpush1.msra.mxu0 %v2374
          %2415 = vmatprep.subr.mxu0 0.0
          %2416 = vmatpush1.msra.mxu0 %v2373
          %2417 = vmatprep.subr.mxu0 0.0
          %2418 = vmatpush1.msra.mxu0 %v2372
          %2419 = vmatprep.subr.mxu0 0.0
          %2420 = vmatpush1.msra.mxu0 %v2371
          %2421 = vmatprep.subr.mxu0 0.0
          %2422 = vmatpush2.msra.mxu0 0.0
          %2423 = vmatprep.subr.mxu0 0.0
          %2424 = vmatpush2.msra.mxu0 0.0
          %2425 = vmatprep.subr.mxu0 0.0
          %2426 = vmatpush2.msra.mxu0 0.0
          %2427 = vmatprep.subr.mxu0 0.0
          %2428 = vmatpush2.msra.mxu0 0.0
          %2429 = vmatprep.subr.mxu0 0.0
          %2430 = vmatpush2.msra.mxu0 0.0
          %2431 = vmatprep.subr.mxu0 0.0
          %2432 = vmatpush2.msra.mxu0 0.0
          %2433 = vmatprep.subr.mxu0 0.0
          %2434 = vmatpush2.msra.mxu0 0.0
          %2435 = vmatprep.subr.mxu0 0.0
          %2436 = vmatpush2.msra.mxu0 0.0
          %2437 = vmatprep.subr.mxu0 0.0
          %2438 = vmatpush2.msra.mxu0 0.0
          %2439 = vmatprep.subr.mxu0 0.0
          %2440 = vmatpush2.msra.mxu0 0.0
          %2441 = vmatprep.subr.mxu0 0.0
          %2442 = vmatpush2.msra.mxu0 0.0
          %2443 = vmatprep.subr.mxu0 0.0
          %2444 = vmatpush2.msra.mxu0 0.0
          %2445 = vmatprep.subr.mxu0 0.0
          %2446 = vmatpush2.msra.mxu0 0.0
          %2447 = vmatprep.subr.mxu0 0.0
          %2448 = vmatpush2.msra.mxu0 0.0
          %2449 = vmatprep.subr.mxu0 0.0
          %2450 = vmatpush2.msra.mxu0 0.0
          %2451 = vmatprep.subr.mxu0 0.0
          %2452 = vmatpush2.msra.mxu0 0.0
          %2453 = vmatprep.mubr.f32.mxu0 0.0
          %2454 = vmatmul.mubr.f32.gmra.mxu0 %v2381
          %v2455 = vpop.f32.mrf.mxu0
          %v2456 = vadd.f32 %v2379, %v2455
          %v2457 = vpop.f32.mrf.mxu0
          %2458 = vmatprep.mubr.f32.mxu0 0.0
          %2459 = vmatmul.mubr.f32.gmra.mxu0 %v2384
          %v2460 = vpop.f32.mrf.mxu0
          %v2461 = vadd.f32 %v2379, %v2460
          %v2462 = vpop.f32.mrf.mxu0
          %2463 = vmatprep.mubr.f32.mxu0 0.0
          %2464 = vmatmul.mubr.f32.gmra.mxu0 %v2387
          %v2465 = vpop.f32.mrf.mxu0
          %v2466 = vadd.f32 %v2379, %v2465
          %v2467 = vpop.f32.mrf.mxu0
          %2468 = vdwg.mxu0
          %v2469 = vmul.f32 %v2456, 1.702
          %v2470 = vmul.f32 %v2461, 1.702
          %v2471 = vmul.f32 %v2466, 1.702
          %v2472 = vxor.u32 %v2469, 2147483648
          %v2473 = vxor.u32 %v2470, 2147483648
          %v2474 = vxor.u32 %v2471, 2147483648
          %v2475 = vmul.f32 %v2472, 1.442695
          %v2476 = vpow.pop %v2475
          %v2477 = vmul.f32 %v2473, 1.442695
          %v2478 = vpow.pop %v2477
          %v2479 = vmul.f32 %v2474, 1.442695
          %v2480 = vpow.pop %v2479
          %v2481 = vadd.f32 %v2476, 1.0
          %v2482 = vadd.f32 %v2478, 1.0
          %v2483 = vadd.f32 %v2480, 1.0
          %v2484 = vrcp.pop %v2481
          %v2485 = vmul.f32 1.0, %v2484
          %v2486 = vrcp.pop %v2482
          %v2487 = vmul.f32 1.0, %v2486
          %v2488 = vrcp.pop %v2483
          %v2489 = vmul.f32 1.0, %v2488
          %v2490 = vmul.f32 %v2456, %v2485
          %v2491 = vmul.f32 %v2461, %v2487
          %v2492 = vmul.f32 %v2466, %v2489
          %v2493 = vld [vmem:[%s138 + $0x338] sm:$0xff]
          %v2494 = vld [vmem:[%s138 + $0x340] sm:$0xff]
          %v2495 = vld [vmem:[%s138 + $0x348] sm:$0xff]
          %v2496 = vld [vmem:[%s138 + $0x350] sm:$0xff]
          %v2497 = vld [vmem:[%s138 + $0x358] sm:$0x1]
          %v2498 = vlaneseq
          %v2499 = vshrl.u32 %v2498, 7
          %v2500 = vsub.s32 0, %v2499
          %v2501 = vrot.slane %v2497, %v2500
          %2502 = vmatprep.subr.mxu0 0.0
          %2503 = vmatpush1.xpose.msra.mxu0 0.0
          %2504 = vmatprep.subr.mxu0 0.0
          %2505 = vmatpush1.xpose.msra.mxu0 0.0
          %2506 = vmatprep.subr.mxu0 0.0
          %2507 = vmatpush1.xpose.msra.mxu0 0.0
          %2508 = vmatprep.subr.mxu0 0.0
          %2509 = vmatpush1.xpose.msra.mxu0 0.0
          %2510 = vmatprep.subr.mxu0 0.0
          %2511 = vmatpush1.xpose.msra.mxu0 0.0
          %2512 = vmatprep.subr.mxu0 0.0
          %2513 = vmatpush1.xpose.msra.mxu0 0.0
          %2514 = vmatprep.subr.mxu0 0.0
          %2515 = vmatpush1.xpose.msra.mxu0 0.0
          %2516 = vmatprep.subr.mxu0 0.0
          %2517 = vmatpush1.xpose.msra.mxu0 0.0
          %2518 = vmatprep.subr.mxu0 0.0
          %2519 = vmatpush1.xpose.msra.mxu0 0.0
          %2520 = vmatprep.subr.mxu0 0.0
          %2521 = vmatpush1.xpose.msra.mxu0 0.0
          %2522 = vmatprep.subr.mxu0 0.0
          %2523 = vmatpush1.xpose.msra.mxu0 0.0
          %2524 = vmatprep.subr.mxu0 0.0
          %2525 = vmatpush1.xpose.msra.mxu0 0.0
          %2526 = vmatprep.subr.mxu0 0.0
          %2527 = vmatpush1.xpose.msra.mxu0 %v2496
          %2528 = vmatprep.subr.mxu0 0.0
          %2529 = vmatpush1.xpose.msra.mxu0 %v2495
          %2530 = vmatprep.subr.mxu0 0.0
          %2531 = vmatpush1.xpose.msra.mxu0 %v2494
          %2532 = vmatprep.subr.mxu0 0.0
          %2533 = vmatpush1.xpose.msra.mxu0 %v2493
          %2534 = vmatprep.subr.mxu0 0.0
          %2535 = vmatpush2.xpose.msra.mxu0 0.0
          %2536 = vmatprep.subr.mxu0 0.0
          %2537 = vmatpush2.xpose.msra.mxu0 0.0
          %2538 = vmatprep.subr.mxu0 0.0
          %2539 = vmatpush2.xpose.msra.mxu0 0.0
          %2540 = vmatprep.subr.mxu0 0.0
          %2541 = vmatpush2.xpose.msra.mxu0 0.0
          %2542 = vmatprep.subr.mxu0 0.0
          %2543 = vmatpush2.xpose.msra.mxu0 0.0
          %2544 = vmatprep.subr.mxu0 0.0
          %2545 = vmatpush2.xpose.msra.mxu0 0.0
          %2546 = vmatprep.subr.mxu0 0.0
          %2547 = vmatpush2.xpose.msra.mxu0 0.0
          %2548 = vmatprep.subr.mxu0 0.0
          %2549 = vmatpush2.xpose.msra.mxu0 0.0
          %2550 = vmatprep.subr.mxu0 0.0
          %2551 = vmatpush2.xpose.msra.mxu0 0.0
          %2552 = vmatprep.subr.mxu0 0.0
          %2553 = vmatpush2.xpose.msra.mxu0 0.0
          %2554 = vmatprep.subr.mxu0 0.0
          %2555 = vmatpush2.xpose.msra.mxu0 0.0
          %2556 = vmatprep.subr.mxu0 0.0
          %2557 = vmatpush2.xpose.msra.mxu0 0.0
          %2558 = vmatprep.subr.mxu0 0.0
          %2559 = vmatpush2.xpose.msra.mxu0 0.0
          %2560 = vmatprep.subr.mxu0 0.0
          %2561 = vmatpush2.xpose.msra.mxu0 0.0
          %2562 = vmatprep.subr.mxu0 0.0
          %2563 = vmatpush2.xpose.msra.mxu0 0.0
          %2564 = vmatprep.subr.mxu0 0.0
          %2565 = vmatpush2.xpose.msra.mxu0 0.0
          %2566 = vmatprep.mubr.f32.mxu0 0.0
          %2567 = vmatmul.mubr.f32.gmra.mxu0 %v2490
          %v2568 = vpop.f32.mrf.mxu0
          %v2569 = vadd.f32 %v2501, %v2568
          %v2570 = vpop.f32.mrf.mxu0
          %2571 = vmatprep.mubr.f32.mxu0 0.0
          %2572 = vmatmul.mubr.f32.gmra.mxu0 %v2491
          %v2573 = vpop.f32.mrf.mxu0
          %v2574 = vadd.f32 %v2501, %v2573
          %v2575 = vpop.f32.mrf.mxu0
          %2576 = vmatprep.mubr.f32.mxu0 0.0
          %2577 = vmatmul.mubr.f32.gmra.mxu0 %v2492
          %v2578 = vpop.f32.mrf.mxu0
          %v2579 = vadd.f32 %v2501, %v2578
          %v2580 = vpop.f32.mrf.mxu0
          %2581 = vdwg.mxu0
          %v2582 = vadd.f32 %v2313, %v2569
          %v2583 = vadd.f32 %v2314, %v2574
          %v2584 = vadd.f32 %v2315, %v2579
          %v2585 = vld [vmem:[%s138 + $0x360] sm:$0xff]
          %v2586 = vld [vmem:[%s138 + $0x368] sm:$0xff]
          %v2587 = vld [vmem:[%s138 + $0x370] sm:$0xff]
          %v2588 = vld [vmem:[%s138 + $0x378] sm:$0xff]
          %v2589 = vld [vmem:[%s138 + $0x380] sm:$0x1]
          %v2590 = vlaneseq
          %v2591 = vshrl.u32 %v2590, 7
          %v2592 = vsub.s32 0, %v2591
          %v2593 = vrot.slane %v2589, %v2592
          %v2595 = vsel %vm186, %v2582, 0
          %v2598 = vsel %vm186, %v2583, 0
          %v2601 = vsel %vm186, %v2584, 0
          %2603 = vmatprep.subr.mxu0 0.0
          %2604 = vmatpush1.msra.mxu0 0.0
          %2605 = vmatprep.subr.mxu0 0.0
          %2606 = vmatpush1.msra.mxu0 0.0
          %2607 = vmatprep.subr.mxu0 0.0
          %2608 = vmatpush1.msra.mxu0 0.0
          %2609 = vmatprep.subr.mxu0 0.0
          %2610 = vmatpush1.msra.mxu0 0.0
          %2611 = vmatprep.subr.mxu0 0.0
          %2612 = vmatpush1.msra.mxu0 0.0
          %2613 = vmatprep.subr.mxu0 0.0
          %2614 = vmatpush1.msra.mxu0 0.0
          %2615 = vmatprep.subr.mxu0 0.0
          %2616 = vmatpush1.msra.mxu0 0.0
          %2617 = vmatprep.subr.mxu0 0.0
          %2618 = vmatpush1.msra.mxu0 0.0
          %2619 = vmatprep.subr.mxu0 0.0
          %2620 = vmatpush1.msra.mxu0 0.0
          %2621 = vmatprep.subr.mxu0 0.0
          %2622 = vmatpush1.msra.mxu0 0.0
          %2623 = vmatprep.subr.mxu0 0.0
          %2624 = vmatpush1.msra.mxu0 0.0
          %2625 = vmatprep.subr.mxu0 0.0
          %2626 = vmatpush1.msra.mxu0 0.0
          %2627 = vmatprep.subr.mxu0 0.0
          %2628 = vmatpush1.msra.mxu0 %v2588
          %2629 = vmatprep.subr.mxu0 0.0
          %2630 = vmatpush1.msra.mxu0 %v2587
          %2631 = vmatprep.subr.mxu0 0.0
          %2632 = vmatpush1.msra.mxu0 %v2586
          %2633 = vmatprep.subr.mxu0 0.0
          %2634 = vmatpush1.msra.mxu0 %v2585
          %2635 = vmatprep.subr.mxu0 0.0
          %2636 = vmatpush2.msra.mxu0 0.0
          %2637 = vmatprep.subr.mxu0 0.0
          %2638 = vmatpush2.msra.mxu0 0.0
          %2639 = vmatprep.subr.mxu0 0.0
          %2640 = vmatpush2.msra.mxu0 0.0
          %2641 = vmatprep.subr.mxu0 0.0
          %2642 = vmatpush2.msra.mxu0 0.0
          %2643 = vmatprep.subr.mxu0 0.0
          %2644 = vmatpush2.msra.mxu0 0.0
          %2645 = vmatprep.subr.mxu0 0.0
          %2646 = vmatpush2.msra.mxu0 0.0
          %2647 = vmatprep.subr.mxu0 0.0
          %2648 = vmatpush2.msra.mxu0 0.0
          %2649 = vmatprep.subr.mxu0 0.0
          %2650 = vmatpush2.msra.mxu0 0.0
          %2651 = vmatprep.subr.mxu0 0.0
          %2652 = vmatpush2.msra.mxu0 0.0
          %2653 = vmatprep.subr.mxu0 0.0
          %2654 = vmatpush2.msra.mxu0 0.0
          %2655 = vmatprep.subr.mxu0 0.0
          %2656 = vmatpush2.msra.mxu0 0.0
          %2657 = vmatprep.subr.mxu0 0.0
          %2658 = vmatpush2.msra.mxu0 0.0
          %2659 = vmatprep.subr.mxu0 0.0
          %2660 = vmatpush2.msra.mxu0 0.0
          %2661 = vmatprep.subr.mxu0 0.0
          %2662 = vmatpush2.msra.mxu0 0.0
          %2663 = vmatprep.subr.mxu0 0.0
          %2664 = vmatpush2.msra.mxu0 0.0
          %2665 = vmatprep.subr.mxu0 0.0
          %2666 = vmatpush2.msra.mxu0 0.0
          %2667 = vmatprep.mubr.f32.mxu0 0.0
          %2668 = vmatmul.mubr.f32.gmra.mxu0 %v2595
          %v2669 = vpop.f32.mrf.mxu0
          %v2670 = vadd.f32 %v2593, %v2669
          %v2671 = vpop.f32.mrf.mxu0
          %2672 = vmatprep.mubr.f32.mxu0 0.0
          %2673 = vmatmul.mubr.f32.gmra.mxu0 %v2598
          %v2674 = vpop.f32.mrf.mxu0
          %v2675 = vadd.f32 %v2593, %v2674
          %v2676 = vpop.f32.mrf.mxu0
          %2677 = vmatprep.mubr.f32.mxu0 0.0
          %2678 = vmatmul.mubr.f32.gmra.mxu0 %v2601
          %v2679 = vpop.f32.mrf.mxu0
          %v2680 = vadd.f32 %v2593, %v2679
          %v2681 = vpop.f32.mrf.mxu0
          %2682 = vdwg.mxu0
          %v2683 = vmax.f32 %v2670, 0.0
          %v2684 = vmax.f32 %v2675, 0.0
          %v2685 = vmax.f32 %v2680, 0.0
          %v2686 = vld [vmem:[%s138 + $0x388] sm:$0xff]
          %v2687 = vld [vmem:[%s138 + $0x390] sm:$0xff]
          %v2688 = vld [vmem:[%s138 + $0x398] sm:$0xff]
          %v2689 = vld [vmem:[%s138 + $0x3a0] sm:$0xff]
          %v2690 = vld [vmem:[%s138 + $0x3a8] sm:$0x1]
          %v2691 = vlaneseq
          %v2692 = vshrl.u32 %v2691, 7
          %v2693 = vsub.s32 0, %v2692
          %v2694 = vrot.slane %v2690, %v2693
          %v2696 = vsel %vm186, %v2683, 0
          %v2699 = vsel %vm186, %v2684, 0
          %v2702 = vsel %vm186, %v2685, 0
          %2704 = vmatprep.subr.mxu0 0.0
          %2705 = vmatpush1.msra.mxu0 0.0
          %2706 = vmatprep.subr.mxu0 0.0
          %2707 = vmatpush1.msra.mxu0 0.0
          %2708 = vmatprep.subr.mxu0 0.0
          %2709 = vmatpush1.msra.mxu0 0.0
          %2710 = vmatprep.subr.mxu0 0.0
          %2711 = vmatpush1.msra.mxu0 0.0
          %2712 = vmatprep.subr.mxu0 0.0
          %2713 = vmatpush1.msra.mxu0 0.0
          %2714 = vmatprep.subr.mxu0 0.0
          %2715 = vmatpush1.msra.mxu0 0.0
          %2716 = vmatprep.subr.mxu0 0.0
          %2717 = vmatpush1.msra.mxu0 0.0
          %2718 = vmatprep.subr.mxu0 0.0
          %2719 = vmatpush1.msra.mxu0 0.0
          %2720 = vmatprep.subr.mxu0 0.0
          %2721 = vmatpush1.msra.mxu0 0.0
          %2722 = vmatprep.subr.mxu0 0.0
          %2723 = vmatpush1.msra.mxu0 0.0
          %2724 = vmatprep.subr.mxu0 0.0
          %2725 = vmatpush1.msra.mxu0 0.0
          %2726 = vmatprep.subr.mxu0 0.0
          %2727 = vmatpush1.msra.mxu0 0.0
          %2728 = vmatprep.subr.mxu0 0.0
          %2729 = vmatpush1.msra.mxu0 %v2689
          %2730 = vmatprep.subr.mxu0 0.0
          %2731 = vmatpush1.msra.mxu0 %v2688
          %2732 = vmatprep.subr.mxu0 0.0
          %2733 = vmatpush1.msra.mxu0 %v2687
          %2734 = vmatprep.subr.mxu0 0.0
          %2735 = vmatpush1.msra.mxu0 %v2686
          %2736 = vmatprep.subr.mxu0 0.0
          %2737 = vmatpush2.msra.mxu0 0.0
          %2738 = vmatprep.subr.mxu0 0.0
          %2739 = vmatpush2.msra.mxu0 0.0
          %2740 = vmatprep.subr.mxu0 0.0
          %2741 = vmatpush2.msra.mxu0 0.0
          %2742 = vmatprep.subr.mxu0 0.0
          %2743 = vmatpush2.msra.mxu0 0.0
          %2744 = vmatprep.subr.mxu0 0.0
          %2745 = vmatpush2.msra.mxu0 0.0
          %2746 = vmatprep.subr.mxu0 0.0
          %2747 = vmatpush2.msra.mxu0 0.0
          %2748 = vmatprep.subr.mxu0 0.0
          %2749 = vmatpush2.msra.mxu0 0.0
          %2750 = vmatprep.subr.mxu0 0.0
          %2751 = vmatpush2.msra.mxu0 0.0
          %2752 = vmatprep.subr.mxu0 0.0
          %2753 = vmatpush2.msra.mxu0 0.0
          %2754 = vmatprep.subr.mxu0 0.0
          %2755 = vmatpush2.msra.mxu0 0.0
          %2756 = vmatprep.subr.mxu0 0.0
          %2757 = vmatpush2.msra.mxu0 0.0
          %2758 = vmatprep.subr.mxu0 0.0
          %2759 = vmatpush2.msra.mxu0 0.0
          %2760 = vmatprep.subr.mxu0 0.0
          %2761 = vmatpush2.msra.mxu0 0.0
          %2762 = vmatprep.subr.mxu0 0.0
          %2763 = vmatpush2.msra.mxu0 0.0
          %2764 = vmatprep.subr.mxu0 0.0
          %2765 = vmatpush2.msra.mxu0 0.0
          %2766 = vmatprep.subr.mxu0 0.0
          %2767 = vmatpush2.msra.mxu0 0.0
          %2768 = vmatprep.mubr.f32.mxu0 0.0
          %2769 = vmatmul.mubr.f32.gmra.mxu0 %v2696
          %v2770 = vpop.f32.mrf.mxu0
          %v2771 = vadd.f32 %v2694, %v2770
          %v2772 = vpop.f32.mrf.mxu0
          %2773 = vmatprep.mubr.f32.mxu0 0.0
          %2774 = vmatmul.mubr.f32.gmra.mxu0 %v2699
          %v2775 = vpop.f32.mrf.mxu0
          %v2776 = vadd.f32 %v2694, %v2775
          %v2777 = vpop.f32.mrf.mxu0
          %2778 = vmatprep.mubr.f32.mxu0 0.0
          %2779 = vmatmul.mubr.f32.gmra.mxu0 %v2702
          %v2780 = vpop.f32.mrf.mxu0
          %v2781 = vadd.f32 %v2694, %v2780
          %v2782 = vpop.f32.mrf.mxu0
          %2783 = vdwg.mxu0
          %v2784 = vmax.f32 %v2771, 0.0
          %v2785 = vmax.f32 %v2776, 0.0
          %v2786 = vmax.f32 %v2781, 0.0
          %v2787 = vld [vmem:[%s138 + $0x3b0] sm:$0xff]
          %v2788 = vld [vmem:[%s138 + $0x3b8] sm:$0xff]
          %v2789 = vld [vmem:[%s138 + $0x3c0] sm:$0xff]
          %v2790 = vld [vmem:[%s138 + $0x3c8] sm:$0xff]
          %v2791 = vld [vmem:[%s138 + $0x3d0] sm:$0x1]
          %v2792 = vlaneseq
          %v2793 = vshrl.u32 %v2792, 7
          %v2794 = vsub.s32 0, %v2793
          %v2795 = vrot.slane %v2791, %v2794
          %v2797 = vsel %vm186, %v2784, 0
          %v2800 = vsel %vm186, %v2785, 0
          %v2803 = vsel %vm186, %v2786, 0
          %2805 = vmatprep.subr.mxu0 0.0
          %2806 = vmatpush1.msra.mxu0 0.0
          %2807 = vmatprep.subr.mxu0 0.0
          %2808 = vmatpush1.msra.mxu0 0.0
          %2809 = vmatprep.subr.mxu0 0.0
          %2810 = vmatpush1.msra.mxu0 0.0
          %2811 = vmatprep.subr.mxu0 0.0
          %2812 = vmatpush1.msra.mxu0 0.0
          %2813 = vmatprep.subr.mxu0 0.0
          %2814 = vmatpush1.msra.mxu0 0.0
          %2815 = vmatprep.subr.mxu0 0.0
          %2816 = vmatpush1.msra.mxu0 0.0
          %2817 = vmatprep.subr.mxu0 0.0
          %2818 = vmatpush1.msra.mxu0 0.0
          %2819 = vmatprep.subr.mxu0 0.0
          %2820 = vmatpush1.msra.mxu0 0.0
          %2821 = vmatprep.subr.mxu0 0.0
          %2822 = vmatpush1.msra.mxu0 0.0
          %2823 = vmatprep.subr.mxu0 0.0
          %2824 = vmatpush1.msra.mxu0 0.0
          %2825 = vmatprep.subr.mxu0 0.0
          %2826 = vmatpush1.msra.mxu0 0.0
          %2827 = vmatprep.subr.mxu0 0.0
          %2828 = vmatpush1.msra.mxu0 0.0
          %2829 = vmatprep.subr.mxu0 0.0
          %2830 = vmatpush1.msra.mxu0 %v2790
          %2831 = vmatprep.subr.mxu0 0.0
          %2832 = vmatpush1.msra.mxu0 %v2789
          %2833 = vmatprep.subr.mxu0 0.0
          %2834 = vmatpush1.msra.mxu0 %v2788
          %2835 = vmatprep.subr.mxu0 0.0
          %2836 = vmatpush1.msra.mxu0 %v2787
          %2837 = vmatprep.subr.mxu0 0.0
          %2838 = vmatpush2.msra.mxu0 0.0
          %2839 = vmatprep.subr.mxu0 0.0
          %2840 = vmatpush2.msra.mxu0 0.0
          %2841 = vmatprep.subr.mxu0 0.0
          %2842 = vmatpush2.msra.mxu0 0.0
          %2843 = vmatprep.subr.mxu0 0.0
          %2844 = vmatpush2.msra.mxu0 0.0
          %2845 = vmatprep.subr.mxu0 0.0
          %2846 = vmatpush2.msra.mxu0 0.0
          %2847 = vmatprep.subr.mxu0 0.0
          %2848 = vmatpush2.msra.mxu0 0.0
          %2849 = vmatprep.subr.mxu0 0.0
          %2850 = vmatpush2.msra.mxu0 0.0
          %2851 = vmatprep.subr.mxu0 0.0
          %2852 = vmatpush2.msra.mxu0 0.0
          %2853 = vmatprep.subr.mxu0 0.0
          %2854 = vmatpush2.msra.mxu0 0.0
          %2855 = vmatprep.subr.mxu0 0.0
          %2856 = vmatpush2.msra.mxu0 0.0
          %2857 = vmatprep.subr.mxu0 0.0
          %2858 = vmatpush2.msra.mxu0 0.0
          %2859 = vmatprep.subr.mxu0 0.0
          %2860 = vmatpush2.msra.mxu0 0.0
          %2861 = vmatprep.subr.mxu0 0.0
          %2862 = vmatpush2.msra.mxu0 0.0
          %2863 = vmatprep.subr.mxu0 0.0
          %2864 = vmatpush2.msra.mxu0 0.0
          %2865 = vmatprep.subr.mxu0 0.0
          %2866 = vmatpush2.msra.mxu0 0.0
          %2867 = vmatprep.subr.mxu0 0.0
          %2868 = vmatpush2.msra.mxu0 0.0
          %2869 = vmatprep.mubr.f32.mxu0 0.0
          %2870 = vmatmul.mubr.f32.gmra.mxu0 %v2797
          %v2871 = vpop.f32.mrf.mxu0
          %v2872 = vadd.f32 %v2795, %v2871
          %v2873 = vpop.f32.mrf.mxu0
          %2874 = vmatprep.mubr.f32.mxu0 0.0
          %2875 = vmatmul.mubr.f32.gmra.mxu0 %v2800
          %v2876 = vpop.f32.mrf.mxu0
          %v2877 = vadd.f32 %v2795, %v2876
          %v2878 = vpop.f32.mrf.mxu0
          %2879 = vmatprep.mubr.f32.mxu0 0.0
          %2880 = vmatmul.mubr.f32.gmra.mxu0 %v2803
          %v2881 = vpop.f32.mrf.mxu0
          %v2882 = vadd.f32 %v2795, %v2881
          %v2883 = vpop.f32.mrf.mxu0
          %2884 = vdwg.mxu0
          %v2885 = vmul.f32 %v2872, 0.001
          %v2886 = vmul.f32 %v2877, 0.001
          %v2887 = vmul.f32 %v2882, 0.001
          %v2888 = vadd.f32 %v2582, %v2885
          %v2889 = vadd.f32 %v2583, %v2886
          %v2890 = vadd.f32 %v2584, %v2887
          %v2891 = vld [vmem:[%s138 + $0x98] sm:$0x1]
          %v2892 = vld [vmem:[%s138 + $0xa0] sm:$0x1]
          %v2893 = vsel %vm186, %v2888, 0.0
          %2894 = vadd.xlane.f32.xlu0 %v2893
          %v2895 = vpop.xlane.xlu0 %2894
          %v2896 = vsel %vm186, %v2889, 0.0
          %2897 = vadd.xlane.f32.xlu0 %v2896
          %v2898 = vpop.xlane.xlu0 %2897
          %v2899 = vsel %vm186, %v2890, 0.0
          %2900 = vadd.xlane.f32.xlu0 %v2899
          %v2901 = vpop.xlane.xlu0 %2900
          %v2902 = vmul.f32 %v2895, %v196
          %v2903 = vmul.f32 %v2898, %v196
          %v2904 = vmul.f32 %v2901, %v196
          %v2905 = vsub.f32 %v2888, %v2902
          %v2906 = vsub.f32 %v2889, %v2903
          %v2907 = vsub.f32 %v2890, %v2904
          %v2908 = vmul.f32 %v2905, %v2905
          %v2909 = vmul.f32 %v2906, %v2906
          %v2910 = vmul.f32 %v2907, %v2907
          %v2911 = vsel %vm186, %v2908, 0.0
          %2912 = vadd.xlane.f32.xlu0 %v2911
          %v2913 = vpop.xlane.xlu0 %2912
          %v2914 = vsel %vm186, %v2909, 0.0
          %2915 = vadd.xlane.f32.xlu0 %v2914
          %v2916 = vpop.xlane.xlu0 %2915
          %v2917 = vsel %vm186, %v2910, 0.0
          %2918 = vadd.xlane.f32.xlu0 %v2917
          %v2919 = vpop.xlane.xlu0 %2918
          %v2920 = vmul.f32 %v2913, %v196
          %v2921 = vmul.f32 %v2916, %v196
          %v2922 = vmul.f32 %v2919, %v196
          %v2923 = vadd.f32 %v2920, 1e-05
          %v2924 = vadd.f32 %v2921, 1e-05
          %v2925 = vadd.f32 %v2922, 1e-05
          %v2926 = vrsqrt.pop %v2923
          %v2927 = vrsqrt.pop %v2924
          %v2928 = vrsqrt.pop %v2925
          %v2929 = vmul.f32 %v2905, %v2926
          %v2930 = vmul.f32 %v2906, %v2927
          %v2931 = vmul.f32 %v2907, %v2928
          %v2932 = vlaneseq
          %v2933 = vshrl.u32 %v2932, 7
          %v2934 = vsub.s32 0, %v2933
          %v2935 = vrot.slane %v2891, %v2934
          %v2936 = vmul.f32 %v2929, %v2935
          %v2937 = vmul.f32 %v2930, %v2935
          %v2938 = vmul.f32 %v2931, %v2935
          %v2939 = vlaneseq
          %v2940 = vshrl.u32 %v2939, 7
          %v2941 = vsub.s32 0, %v2940
          %v2942 = vrot.slane %v2892, %v2941
          %v2943 = vadd.f32 %v2936, %v2942
          %v2944 = vadd.f32 %v2937, %v2942
          %v2945 = vadd.f32 %v2938, %v2942
          %v2946 = vld [vmem:[%s138 + $0x90] sm:$0xff]
          %vm2947 = vcmask 195584
          %v2949 = vsel %vm2947, %v2946, 0
          %2951 = vmatprep.subr.mxu0 0.0
          %2952 = vmatpush1.msra.mxu0 0.0
          %2953 = vmatprep.subr.mxu0 0.0
          %2954 = vmatpush1.msra.mxu0 0.0
          %2955 = vmatprep.subr.mxu0 0.0
          %2956 = vmatpush1.msra.mxu0 0.0
          %2957 = vmatprep.subr.mxu0 0.0
          %2958 = vmatpush1.msra.mxu0 0.0
          %2959 = vmatprep.subr.mxu0 0.0
          %2960 = vmatpush1.msra.mxu0 0.0
          %2961 = vmatprep.subr.mxu0 0.0
          %2962 = vmatpush1.msra.mxu0 0.0
          %2963 = vmatprep.subr.mxu0 0.0
          %2964 = vmatpush1.msra.mxu0 0.0
          %2965 = vmatprep.subr.mxu0 0.0
          %2966 = vmatpush1.msra.mxu0 0.0
          %2967 = vmatprep.subr.mxu0 0.0
          %2968 = vmatpush1.msra.mxu0 0.0
          %2969 = vmatprep.subr.mxu0 0.0
          %2970 = vmatpush1.msra.mxu0 0.0
          %2971 = vmatprep.subr.mxu0 0.0
          %2972 = vmatpush1.msra.mxu0 0.0
          %2973 = vmatprep.subr.mxu0 0.0
          %2974 = vmatpush1.msra.mxu0 0.0
          %2975 = vmatprep.subr.mxu0 0.0
          %2976 = vmatpush1.msra.mxu0 0.0
          %2977 = vmatprep.subr.mxu0 0.0
          %2978 = vmatpush1.msra.mxu0 %v2945
          %2979 = vmatprep.subr.mxu0 0.0
          %2980 = vmatpush1.msra.mxu0 %v2944
          %2981 = vmatprep.subr.mxu0 0.0
          %2982 = vmatpush1.msra.mxu0 %v2943
          %2983 = vmatprep.subr.mxu0 0.0
          %2984 = vmatpush2.msra.mxu0 0.0
          %2985 = vmatprep.subr.mxu0 0.0
          %2986 = vmatpush2.msra.mxu0 0.0
          %2987 = vmatprep.subr.mxu0 0.0
          %2988 = vmatpush2.msra.mxu0 0.0
          %2989 = vmatprep.subr.mxu0 0.0
          %2990 = vmatpush2.msra.mxu0 0.0
          %2991 = vmatprep.subr.mxu0 0.0
          %2992 = vmatpush2.msra.mxu0 0.0
          %2993 = vmatprep.subr.mxu0 0.0
          %2994 = vmatpush2.msra.mxu0 0.0
          %2995 = vmatprep.subr.mxu0 0.0
          %2996 = vmatpush2.msra.mxu0 0.0
          %2997 = vmatprep.subr.mxu0 0.0
          %2998 = vmatpush2.msra.mxu0 0.0
          %2999 = vmatprep.subr.mxu0 0.0
          %3000 = vmatpush2.msra.mxu0 0.0
          %3001 = vmatprep.subr.mxu0 0.0
          %3002 = vmatpush2.msra.mxu0 0.0
          %3003 = vmatprep.subr.mxu0 0.0
          %3004 = vmatpush2.msra.mxu0 0.0
          %3005 = vmatprep.subr.mxu0 0.0
          %3006 = vmatpush2.msra.mxu0 0.0
          %3007 = vmatprep.subr.mxu0 0.0
          %3008 = vmatpush2.msra.mxu0 0.0
          %3009 = vmatprep.subr.mxu0 0.0
          %3010 = vmatpush2.msra.mxu0 0.0
          %3011 = vmatprep.subr.mxu0 0.0
          %3012 = vmatpush2.msra.mxu0 0.0
          %3013 = vmatprep.subr.mxu0 0.0
          %3014 = vmatpush2.msra.mxu0 0.0
          %3015 = vmatprep.mubr.f32.mxu0 0.0
          %3016 = vmatmul.mubr.f32.gmra.mxu0 %v2949
          %v3017 = vpop.f32.mrf.mxu0
          %v3018 = vadd.f32 0.0, %v3017
          %v3019 = vpop.f32.mrf.mxu0
          %3020 = vdwg.mxu0
          %v3021 = vld [vmem:[%s138 + $0xa8] sm:$0xff]
          %v3022 = vld [vmem:[%s138 + $0xb0] sm:$0xff]
          %v3023 = vld [vmem:[%s138 + $0xb8] sm:$0xff]
          %v3024 = vld [vmem:[%s138 + $0xc0] sm:$0xff]
          %v3026 = vsel %vm186, %v3018, 0
          %3028 = vmatprep.subr.mxu0 0.0
          %3029 = vmatpush1.msra.mxu0 0.0
          %3030 = vmatprep.subr.mxu0 0.0
          %3031 = vmatpush1.msra.mxu0 0.0
          %3032 = vmatprep.subr.mxu0 0.0
          %3033 = vmatpush1.msra.mxu0 0.0
          %3034 = vmatprep.subr.mxu0 0.0
          %3035 = vmatpush1.msra.mxu0 0.0
          %3036 = vmatprep.subr.mxu0 0.0
          %3037 = vmatpush1.msra.mxu0 0.0
          %3038 = vmatprep.subr.mxu0 0.0
          %3039 = vmatpush1.msra.mxu0 0.0
          %3040 = vmatprep.subr.mxu0 0.0
          %3041 = vmatpush1.msra.mxu0 0.0
          %3042 = vmatprep.subr.mxu0 0.0
          %3043 = vmatpush1.msra.mxu0 0.0
          %3044 = vmatprep.subr.mxu0 0.0
          %3045 = vmatpush1.msra.mxu0 0.0
          %3046 = vmatprep.subr.mxu0 0.0
          %3047 = vmatpush1.msra.mxu0 0.0
          %3048 = vmatprep.subr.mxu0 0.0
          %3049 = vmatpush1.msra.mxu0 0.0
          %3050 = vmatprep.subr.mxu0 0.0
          %3051 = vmatpush1.msra.mxu0 0.0
          %3052 = vmatprep.subr.mxu0 0.0
          %3053 = vmatpush1.msra.mxu0 %v3024
          %3054 = vmatprep.subr.mxu0 0.0
          %3055 = vmatpush1.msra.mxu0 %v3023
          %3056 = vmatprep.subr.mxu0 0.0
          %3057 = vmatpush1.msra.mxu0 %v3022
          %3058 = vmatprep.subr.mxu0 0.0
          %3059 = vmatpush1.msra.mxu0 %v3021
          %3060 = vmatprep.subr.mxu0 0.0
          %3061 = vmatpush2.msra.mxu0 0.0
          %3062 = vmatprep.subr.mxu0 0.0
          %3063 = vmatpush2.msra.mxu0 0.0
          %3064 = vmatprep.subr.mxu0 0.0
          %3065 = vmatpush2.msra.mxu0 0.0
          %3066 = vmatprep.subr.mxu0 0.0
          %3067 = vmatpush2.msra.mxu0 0.0
          %3068 = vmatprep.subr.mxu0 0.0
          %3069 = vmatpush2.msra.mxu0 0.0
          %3070 = vmatprep.subr.mxu0 0.0
          %3071 = vmatpush2.msra.mxu0 0.0
          %3072 = vmatprep.subr.mxu0 0.0
          %3073 = vmatpush2.msra.mxu0 0.0
          %3074 = vmatprep.subr.mxu0 0.0
          %3075 = vmatpush2.msra.mxu0 0.0
          %3076 = vmatprep.subr.mxu0 0.0
          %3077 = vmatpush2.msra.mxu0 0.0
          %3078 = vmatprep.subr.mxu0 0.0
          %3079 = vmatpush2.msra.mxu0 0.0
          %3080 = vmatprep.subr.mxu0 0.0
          %3081 = vmatpush2.msra.mxu0 0.0
          %3082 = vmatprep.subr.mxu0 0.0
          %3083 = vmatpush2.msra.mxu0 0.0
          %3084 = vmatprep.subr.mxu0 0.0
          %3085 = vmatpush2.msra.mxu0 0.0
          %3086 = vmatprep.subr.mxu0 0.0
          %3087 = vmatpush2.msra.mxu0 0.0
          %3088 = vmatprep.subr.mxu0 0.0
          %3089 = vmatpush2.msra.mxu0 0.0
          %3090 = vmatprep.subr.mxu0 0.0
          %3091 = vmatpush2.msra.mxu0 0.0
          %3092 = vmatprep.mubr.f32.mxu0 0.0
          %3093 = vmatmul.mubr.f32.gmra.mxu0 %v3026
          %v3094 = vpop.f32.mrf.mxu0
          %v3095 = vadd.f32 0.0, %v3094
          %v3096 = vpop.f32.mrf.mxu0
          %3097 = vdwg.mxu0
          %v3098 = vmul.f32 %v3095, %v3095
          %3099 = vadd.xlane.f32.xlu0 %v3098
          %v3100 = vpop.xlane.xlu0 %3099
          %v3101 = vadd.f32 %v3100, 1e-12
          %v3102 = vrsqrt.pop %v3101
          %v3103 = vmul.f32 %v3095, %v3102
          %3104 = vst [vmem:[%s161] sm:$0xff] %v3103
        $region36: #{maple_forward.1} parent=27 // pred_fallthru
          _
        %p3105 = scmp.eq.s32.totalorder %s16, 1
        // Predicated region
        $region37: #{maple_forward.1} parent=27 // pred_check
          %p3106 = pneg %p3105
        $region38: #{maple_forward.1} parent=27 // pred_check_branch
          %3108 = sbr.rel (%p3106) target = $region40
        $region39: #{maple_forward.1} parent=27 // pred_region
          %v3109 = vld [vmem:[%s1] sm:$0xff]
          %v3110 = vld [vmem:[%s1 + $0x8] sm:$0xff]
          %v3111 = vld [vmem:[%s138] sm:$0xff]
          %v3112 = vld [vmem:[%s138 + $0x8] sm:$0xff]
          %v3113 = vld [vmem:[%s138 + $0x10] sm:$0xff]
          %v3114 = vld [vmem:[%s138 + $0x18] sm:$0xff]
          %v3115 = vld [vmem:[%s138 + $0x20] sm:$0xff]
          %v3116 = vld [vmem:[%s138 + $0x28] sm:$0xff]
          %v3117 = vld [vmem:[%s138 + $0x30] sm:$0xff]
          %v3118 = vld [vmem:[%s138 + $0x38] sm:$0xff]
          %v3119 = vld [vmem:[%s138 + $0x40] sm:$0xff]
          %v3120 = vld [vmem:[%s138 + $0x48] sm:$0xff]
          %v3121 = vld [vmem:[%s138 + $0x50] sm:$0xff]
          %v3122 = vld [vmem:[%s138 + $0x58] sm:$0xff]
          %v3123 = vld [vmem:[%s138 + $0x60] sm:$0xff]
          %v3124 = vld [vmem:[%s138 + $0x68] sm:$0xff]
          %v3125 = vld [vmem:[%s138 + $0x70] sm:$0xff]
          %v3126 = vld [vmem:[%s138 + $0x78] sm:$0xff]
          %v3127 = vld [vmem:[%s138 + $0x80] sm:$0xff]
          %v3128 = vld [vmem:[%s138 + $0x88] sm:$0xff]
          %v3129 = vld [vmem:[%s138 + $0x90] sm:$0xff]
          %v3130 = vld [vmem:[%s138 + $0x98] sm:$0xff]
          %v3131 = vld [vmem:[%s138 + $0xa0] sm:$0xff]
          %v3132 = vld [vmem:[%s138 + $0xa8] sm:$0xff]
          %v3133 = vld [vmem:[%s138 + $0xb0] sm:$0xff]
          %v3134 = vld [vmem:[%s138 + $0xb8] sm:$0xff]
          %vm3135 = vcmask 523264
          %v3137 = vsel %vm3135, %v3110, 0
          %3139 = vmatprep.subr.mxu0 0.0
          %3140 = vmatpush1.msra.mxu0 %v3126
          %3141 = vmatprep.subr.mxu0 0.0
          %3142 = vmatpush1.msra.mxu0 %v3125
          %3143 = vmatprep.subr.mxu0 0.0
          %3144 = vmatpush1.msra.mxu0 %v3124
          %3145 = vmatprep.subr.mxu0 0.0
          %3146 = vmatpush1.msra.mxu0 %v3123
          %3147 = vmatprep.subr.mxu0 0.0
          %3148 = vmatpush1.msra.mxu0 %v3122
          %3149 = vmatprep.subr.mxu0 0.0
          %3150 = vmatpush1.msra.mxu0 %v3121
          %3151 = vmatprep.subr.mxu0 0.0
          %3152 = vmatpush1.msra.mxu0 %v3120
          %3153 = vmatprep.subr.mxu0 0.0
          %3154 = vmatpush1.msra.mxu0 %v3119
          %3155 = vmatprep.subr.mxu0 0.0
          %3156 = vmatpush1.msra.mxu0 %v3118
          %3157 = vmatprep.subr.mxu0 0.0
          %3158 = vmatpush1.msra.mxu0 %v3117
          %3159 = vmatprep.subr.mxu0 0.0
          %3160 = vmatpush1.msra.mxu0 %v3116
          %3161 = vmatprep.subr.mxu0 0.0
          %3162 = vmatpush1.msra.mxu0 %v3115
          %3163 = vmatprep.subr.mxu0 0.0
          %3164 = vmatpush1.msra.mxu0 %v3114
          %3165 = vmatprep.subr.mxu0 0.0
          %3166 = vmatpush1.msra.mxu0 %v3113
          %3167 = vmatprep.subr.mxu0 0.0
          %3168 = vmatpush1.msra.mxu0 %v3112
          %3169 = vmatprep.subr.mxu0 0.0
          %3170 = vmatpush1.msra.mxu0 %v3111
          %3171 = vmatprep.subr.mxu0 0.0
          %3172 = vmatpush2.msra.mxu0 0.0
          %3173 = vmatprep.subr.mxu0 0.0
          %3174 = vmatpush2.msra.mxu0 0.0
          %3175 = vmatprep.subr.mxu0 0.0
          %3176 = vmatpush2.msra.mxu0 0.0
          %3177 = vmatprep.subr.mxu0 0.0
          %3178 = vmatpush2.msra.mxu0 0.0
          %3179 = vmatprep.subr.mxu0 0.0
          %3180 = vmatpush2.msra.mxu0 0.0
          %3181 = vmatprep.subr.mxu0 0.0
          %3182 = vmatpush2.msra.mxu0 0.0
          %3183 = vmatprep.subr.mxu0 0.0
          %3184 = vmatpush2.msra.mxu0 0.0
          %3185 = vmatprep.subr.mxu0 0.0
          %3186 = vmatpush2.msra.mxu0 0.0
          %3187 = vmatprep.subr.mxu0 0.0
          %3188 = vmatpush2.msra.mxu0 %v3134
          %3189 = vmatprep.subr.mxu0 0.0
          %3190 = vmatpush2.msra.mxu0 %v3133
          %3191 = vmatprep.subr.mxu0 0.0
          %3192 = vmatpush2.msra.mxu0 %v3132
          %3193 = vmatprep.subr.mxu0 0.0
          %3194 = vmatpush2.msra.mxu0 %v3131
          %3195 = vmatprep.subr.mxu0 0.0
          %3196 = vmatpush2.msra.mxu0 %v3130
          %3197 = vmatprep.subr.mxu0 0.0
          %3198 = vmatpush2.msra.mxu0 %v3129
          %3199 = vmatprep.subr.mxu0 0.0
          %3200 = vmatpush2.msra.mxu0 %v3128
          %3201 = vmatprep.subr.mxu0 0.0
          %3202 = vmatpush2.msra.mxu0 %v3127
          %3203 = vmatprep.mubr.f32.mxu0 %v3137
          %3204 = vmatmul.mubr.f32.gmra.mxu0 %v3109
          %v3205 = vpop.f32.mrf.mxu0
          %v3206 = vadd.f32 0.0, %v3205
          %v3207 = vpop.f32.mrf.mxu0
          %3208 = vdwg.mxu0
          %v3209 = vld [vmem:[%s138 + $0xc0] sm:$0xff]
          %v3210 = vld [vmem:[%s138 + $0xc8] sm:$0x3]
          %v3211 = vld [vmem:[%s138 + $0xd0] sm:$0xff]
          %v3212 = vld [vmem:[%s138 + $0xd8] sm:$0x3]
          %vm3213 = vcmask 64512
          %v3215 = vsel %vm3213, %v3209, 0
          %v3218 = vsel %vm3213, %v3210, 0
          %3220 = vmatprep.subr.mxu0 0.0
          %3221 = vmatpush1.msra.mxu0 0.0
          %3222 = vmatprep.subr.mxu0 0.0
          %3223 = vmatpush1.msra.mxu0 0.0
          %3224 = vmatprep.subr.mxu0 0.0
          %3225 = vmatpush1.msra.mxu0 0.0
          %3226 = vmatprep.subr.mxu0 0.0
          %3227 = vmatpush1.msra.mxu0 0.0
          %3228 = vmatprep.subr.mxu0 0.0
          %3229 = vmatpush1.msra.mxu0 0.0
          %3230 = vmatprep.subr.mxu0 0.0
          %3231 = vmatpush1.msra.mxu0 0.0
          %3232 = vmatprep.subr.mxu0 0.0
          %3233 = vmatpush1.msra.mxu0 0.0
          %3234 = vmatprep.subr.mxu0 0.0
          %3235 = vmatpush1.msra.mxu0 0.0
          %3236 = vmatprep.subr.mxu0 0.0
          %3237 = vmatpush1.msra.mxu0 0.0
          %3238 = vmatprep.subr.mxu0 0.0
          %3239 = vmatpush1.msra.mxu0 0.0
          %3240 = vmatprep.subr.mxu0 0.0
          %3241 = vmatpush1.msra.mxu0 0.0
          %3242 = vmatprep.subr.mxu0 0.0
          %3243 = vmatpush1.msra.mxu0 0.0
          %3244 = vmatprep.subr.mxu0 0.0
          %3245 = vmatpush1.msra.mxu0 0.0
          %3246 = vmatprep.subr.mxu0 0.0
          %3247 = vmatpush1.msra.mxu0 0.0
          %3248 = vmatprep.subr.mxu0 0.0
          %3249 = vmatpush1.msra.mxu0 0.0
          %3250 = vmatprep.subr.mxu0 0.0
          %3251 = vmatpush1.msra.mxu0 %v3206
          %3252 = vmatprep.subr.mxu0 0.0
          %3253 = vmatpush2.msra.mxu0 0.0
          %3254 = vmatprep.subr.mxu0 0.0
          %3255 = vmatpush2.msra.mxu0 0.0
          %3256 = vmatprep.subr.mxu0 0.0
          %3257 = vmatpush2.msra.mxu0 0.0
          %3258 = vmatprep.subr.mxu0 0.0
          %3259 = vmatpush2.msra.mxu0 0.0
          %3260 = vmatprep.subr.mxu0 0.0
          %3261 = vmatpush2.msra.mxu0 0.0
          %3262 = vmatprep.subr.mxu0 0.0
          %3263 = vmatpush2.msra.mxu0 0.0
          %3264 = vmatprep.subr.mxu0 0.0
          %3265 = vmatpush2.msra.mxu0 0.0
          %3266 = vmatprep.subr.mxu0 0.0
          %3267 = vmatpush2.msra.mxu0 0.0
          %3268 = vmatprep.subr.mxu0 0.0
          %3269 = vmatpush2.msra.mxu0 0.0
          %3270 = vmatprep.subr.mxu0 0.0
          %3271 = vmatpush2.msra.mxu0 0.0
          %3272 = vmatprep.subr.mxu0 0.0
          %3273 = vmatpush2.msra.mxu0 0.0
          %3274 = vmatprep.subr.mxu0 0.0
          %3275 = vmatpush2.msra.mxu0 0.0
          %3276 = vmatprep.subr.mxu0 0.0
          %3277 = vmatpush2.msra.mxu0 0.0
          %3278 = vmatprep.subr.mxu0 0.0
          %3279 = vmatpush2.msra.mxu0 0.0
          %3280 = vmatprep.subr.mxu0 0.0
          %3281 = vmatpush2.msra.mxu0 0.0
          %3282 = vmatprep.subr.mxu0 0.0
          %3283 = vmatpush2.msra.mxu0 0.0
          %3284 = vmatprep.mubr.f32.mxu0 0.0
          %3285 = vmatmul.mubr.f32.gmra.mxu0 %v3215
          %v3286 = vpop.f32.mrf.mxu0
          %v3287 = vadd.f32 %v3211, %v3286
          %v3288 = vpop.f32.mrf.mxu0
          %3289 = vmatprep.mubr.f32.mxu0 0.0
          %3290 = vmatmul.mubr.f32.gmra.mxu0 %v3218
          %v3291 = vpop.f32.mrf.mxu0
          %v3292 = vadd.f32 %v3212, %v3291
          %v3293 = vpop.f32.mrf.mxu0
          %3294 = vdwg.mxu0
          %v3295 = vld [vmem:[%s138 + $0x120] sm:$0x1]
          %v3296 = vld [vmem:[%s138 + $0x128] sm:$0x1]
          %vm3297 = vcmask 261120
          %v3298 = vsel %vm3297, %v3287, 0.0
          %3299 = vadd.xlane.f32.xlu0 %v3298
          %v3300 = vpop.xlane.xlu0 %3299
          %vm3301 = vcmask 254976
          %v3302 = vsel %vm3301, %v3292, 0.0
          %3303 = vadd.xlane.f32.xlu0 %v3302
          %v3304 = vpop.xlane.xlu0 %3303
          %v3305 = vrcp.pop 32.0
          %v3306 = vmul.f32 %v3300, %v3305
          %v3307 = vmul.f32 %v3304, %v3305
          %v3308 = vsub.f32 %v3287, %v3306
          %v3309 = vsub.f32 %v3292, %v3307
          %v3310 = vmul.f32 %v3308, %v3308
          %v3311 = vmul.f32 %v3309, %v3309
          %v3312 = vsel %vm3297, %v3310, 0.0
          %3313 = vadd.xlane.f32.xlu0 %v3312
          %v3314 = vpop.xlane.xlu0 %3313
          %v3315 = vsel %vm3301, %v3311, 0.0
          %3316 = vadd.xlane.f32.xlu0 %v3315
          %v3317 = vpop.xlane.xlu0 %3316
          %v3318 = vmul.f32 %v3314, %v3305
          %v3319 = vmul.f32 %v3317, %v3305
          %v3320 = vadd.f32 %v3318, 1e-05
          %v3321 = vadd.f32 %v3319, 1e-05
          %v3322 = vrsqrt.pop %v3320
          %v3323 = vrsqrt.pop %v3321
          %v3324 = vmul.f32 %v3308, %v3322
          %v3325 = vmul.f32 %v3309, %v3323
          %v3326 = vlaneseq
          %v3327 = vshrl.u32 %v3326, 7
          %v3328 = vsub.s32 0, %v3327
          %v3329 = vrot.slane %v3295, %v3328
          %v3330 = vmul.f32 %v3324, %v3329
          %v3331 = vmul.f32 %v3325, %v3329
          %v3332 = vlaneseq
          %v3333 = vshrl.u32 %v3332, 7
          %v3334 = vsub.s32 0, %v3333
          %v3335 = vrot.slane %v3296, %v3334
          %v3336 = vadd.f32 %v3330, %v3335
          %v3337 = vadd.f32 %v3331, %v3335
          %v3338 = vld [vmem:[%s138 + $0xf8] sm:$0xff]
          %v3339 = vld [vmem:[%s138 + $0x100] sm:$0xff]
          %v3340 = vld [vmem:[%s138 + $0x108] sm:$0xff]
          %v3341 = vld [vmem:[%s138 + $0x110] sm:$0xff]
          %v3342 = vld [vmem:[%s138 + $0x118] sm:$0xff]
          %v3343 = vld [vmem:[%s138 + $0xe8] sm:$0xff]
          %v3344 = vld [vmem:[%s138 + $0xf0] sm:$0x3]
          %v3345 = vld [vmem:[%s138 + $0x160] sm:$0x1]
          %v3346 = vld [vmem:[%s138 + $0x168] sm:$0x1]
          %v3347 = vsel %vm3297, %v3336, 0.0
          %3348 = vadd.xlane.f32.xlu0 %v3347
          %v3349 = vpop.xlane.xlu0 %3348
          %v3350 = vsel %vm3301, %v3337, 0.0
          %3351 = vadd.xlane.f32.xlu0 %v3350
          %v3352 = vpop.xlane.xlu0 %3351
          %v3353 = vmul.f32 %v3349, %v3305
          %v3354 = vmul.f32 %v3352, %v3305
          %v3355 = vsub.f32 %v3336, %v3353
          %v3356 = vsub.f32 %v3337, %v3354
          %v3357 = vmul.f32 %v3355, %v3355
          %v3358 = vmul.f32 %v3356, %v3356
          %v3359 = vsel %vm3297, %v3357, 0.0
          %3360 = vadd.xlane.f32.xlu0 %v3359
          %v3361 = vpop.xlane.xlu0 %3360
          %v3362 = vsel %vm3301, %v3358, 0.0
          %3363 = vadd.xlane.f32.xlu0 %v3362
          %v3364 = vpop.xlane.xlu0 %3363
          %v3365 = vmul.f32 %v3361, %v3305
          %v3366 = vmul.f32 %v3364, %v3305
          %v3367 = vadd.f32 %v3365, 1e-05
          %v3368 = vadd.f32 %v3366, 1e-05
          %v3369 = vrsqrt.pop %v3367
          %v3370 = vrsqrt.pop %v3368
          %v3371 = vmul.f32 %v3355, %v3369
          %v3372 = vmul.f32 %v3356, %v3370
          %v3373 = vlaneseq
          %v3374 = vshrl.u32 %v3373, 7
          %v3375 = vsub.s32 0, %v3374
          %v3376 = vrot.slane %v3345, %v3375
          %v3377 = vmul.f32 %v3371, %v3376
          %v3378 = vmul.f32 %v3372, %v3376
          %v3379 = vlaneseq
          %v3380 = vshrl.u32 %v3379, 7
          %v3381 = vsub.s32 0, %v3380
          %v3382 = vrot.slane %v3346, %v3381
          %v3383 = vadd.f32 %v3377, %v3382
          %v3384 = vadd.f32 %v3378, %v3382
          %v3385 = vld [vmem:[%s138 + $0x170] sm:$0xff]
          %v3386 = vld [vmem:[%s138 + $0x178] sm:$0xff]
          %v3387 = vld [vmem:[%s138 + $0x180] sm:$0xff]
          %v3388 = vld [vmem:[%s138 + $0x188] sm:$0xff]
          %v3389 = vld [vmem:[%s138 + $0x190] sm:$0x1]
          %v3390 = vlaneseq
          %v3391 = vshrl.u32 %v3390, 7
          %v3392 = vsub.s32 0, %v3391
          %v3393 = vrot.slane %v3389, %v3392
          %v3395 = vsel %vm3297, %v3383, 0
          %v3398 = vsel %vm3297, %v3384, 0
          %3400 = vmatprep.subr.mxu0 0.0
          %3401 = vmatpush1.msra.mxu0 0.0
          %3402 = vmatprep.subr.mxu0 0.0
          %3403 = vmatpush1.msra.mxu0 0.0
          %3404 = vmatprep.subr.mxu0 0.0
          %3405 = vmatpush1.msra.mxu0 0.0
          %3406 = vmatprep.subr.mxu0 0.0
          %3407 = vmatpush1.msra.mxu0 0.0
          %3408 = vmatprep.subr.mxu0 0.0
          %3409 = vmatpush1.msra.mxu0 0.0
          %3410 = vmatprep.subr.mxu0 0.0
          %3411 = vmatpush1.msra.mxu0 0.0
          %3412 = vmatprep.subr.mxu0 0.0
          %3413 = vmatpush1.msra.mxu0 0.0
          %3414 = vmatprep.subr.mxu0 0.0
          %3415 = vmatpush1.msra.mxu0 0.0
          %3416 = vmatprep.subr.mxu0 0.0
          %3417 = vmatpush1.msra.mxu0 0.0
          %3418 = vmatprep.subr.mxu0 0.0
          %3419 = vmatpush1.msra.mxu0 0.0
          %3420 = vmatprep.subr.mxu0 0.0
          %3421 = vmatpush1.msra.mxu0 0.0
          %3422 = vmatprep.subr.mxu0 0.0
          %3423 = vmatpush1.msra.mxu0 0.0
          %3424 = vmatprep.subr.mxu0 0.0
          %3425 = vmatpush1.msra.mxu0 %v3388
          %3426 = vmatprep.subr.mxu0 0.0
          %3427 = vmatpush1.msra.mxu0 %v3387
          %3428 = vmatprep.subr.mxu0 0.0
          %3429 = vmatpush1.msra.mxu0 %v3386
          %3430 = vmatprep.subr.mxu0 0.0
          %3431 = vmatpush1.msra.mxu0 %v3385
          %3432 = vmatprep.subr.mxu0 0.0
          %3433 = vmatpush2.msra.mxu0 0.0
          %3434 = vmatprep.subr.mxu0 0.0
          %3435 = vmatpush2.msra.mxu0 0.0
          %3436 = vmatprep.subr.mxu0 0.0
          %3437 = vmatpush2.msra.mxu0 0.0
          %3438 = vmatprep.subr.mxu0 0.0
          %3439 = vmatpush2.msra.mxu0 0.0
          %3440 = vmatprep.subr.mxu0 0.0
          %3441 = vmatpush2.msra.mxu0 0.0
          %3442 = vmatprep.subr.mxu0 0.0
          %3443 = vmatpush2.msra.mxu0 0.0
          %3444 = vmatprep.subr.mxu0 0.0
          %3445 = vmatpush2.msra.mxu0 0.0
          %3446 = vmatprep.subr.mxu0 0.0
          %3447 = vmatpush2.msra.mxu0 0.0
          %3448 = vmatprep.subr.mxu0 0.0
          %3449 = vmatpush2.msra.mxu0 0.0
          %3450 = vmatprep.subr.mxu0 0.0
          %3451 = vmatpush2.msra.mxu0 0.0
          %3452 = vmatprep.subr.mxu0 0.0
          %3453 = vmatpush2.msra.mxu0 0.0
          %3454 = vmatprep.subr.mxu0 0.0
          %3455 = vmatpush2.msra.mxu0 0.0
          %3456 = vmatprep.subr.mxu0 0.0
          %3457 = vmatpush2.msra.mxu0 0.0
          %3458 = vmatprep.subr.mxu0 0.0
          %3459 = vmatpush2.msra.mxu0 0.0
          %3460 = vmatprep.subr.mxu0 0.0
          %3461 = vmatpush2.msra.mxu0 0.0
          %3462 = vmatprep.subr.mxu0 0.0
          %3463 = vmatpush2.msra.mxu0 0.0
          %3464 = vmatprep.mubr.f32.mxu0 0.0
          %3465 = vmatmul.mubr.f32.gmra.mxu0 %v3395
          %v3466 = vpop.f32.mrf.mxu0
          %v3467 = vadd.f32 %v3393, %v3466
          %v3468 = vpop.f32.mrf.mxu0
          %3469 = vmatprep.mubr.f32.mxu0 0.0
          %3470 = vmatmul.mubr.f32.gmra.mxu0 %v3398
          %v3471 = vpop.f32.mrf.mxu0
          %v3472 = vadd.f32 %v3393, %v3471
          %v3473 = vpop.f32.mrf.mxu0
          %3474 = vdwg.mxu0
          %v3475 = vld [vmem:[%s138 + $0x198] sm:$0xff]
          %v3476 = vld [vmem:[%s138 + $0x1a0] sm:$0xff]
          %v3477 = vld [vmem:[%s138 + $0x1a8] sm:$0xff]
          %v3478 = vld [vmem:[%s138 + $0x1b0] sm:$0xff]
          %v3479 = vld [vmem:[%s138 + $0x1b8] sm:$0x1]
          %v3480 = vlaneseq
          %v3481 = vshrl.u32 %v3480, 7
          %v3482 = vsub.s32 0, %v3481
          %v3483 = vrot.slane %v3479, %v3482
          %3484 = vmatprep.subr.mxu0 0.0
          %3485 = vmatpush1.msra.mxu0 0.0
          %3486 = vmatprep.subr.mxu0 0.0
          %3487 = vmatpush1.msra.mxu0 0.0
          %3488 = vmatprep.subr.mxu0 0.0
          %3489 = vmatpush1.msra.mxu0 0.0
          %3490 = vmatprep.subr.mxu0 0.0
          %3491 = vmatpush1.msra.mxu0 0.0
          %3492 = vmatprep.subr.mxu0 0.0
          %3493 = vmatpush1.msra.mxu0 0.0
          %3494 = vmatprep.subr.mxu0 0.0
          %3495 = vmatpush1.msra.mxu0 0.0
          %3496 = vmatprep.subr.mxu0 0.0
          %3497 = vmatpush1.msra.mxu0 0.0
          %3498 = vmatprep.subr.mxu0 0.0
          %3499 = vmatpush1.msra.mxu0 0.0
          %3500 = vmatprep.subr.mxu0 0.0
          %3501 = vmatpush1.msra.mxu0 0.0
          %3502 = vmatprep.subr.mxu0 0.0
          %3503 = vmatpush1.msra.mxu0 0.0
          %3504 = vmatprep.subr.mxu0 0.0
          %3505 = vmatpush1.msra.mxu0 0.0
          %3506 = vmatprep.subr.mxu0 0.0
          %3507 = vmatpush1.msra.mxu0 0.0
          %3508 = vmatprep.subr.mxu0 0.0
          %3509 = vmatpush1.msra.mxu0 %v3478
          %3510 = vmatprep.subr.mxu0 0.0
          %3511 = vmatpush1.msra.mxu0 %v3477
          %3512 = vmatprep.subr.mxu0 0.0
          %3513 = vmatpush1.msra.mxu0 %v3476
          %3514 = vmatprep.subr.mxu0 0.0
          %3515 = vmatpush1.msra.mxu0 %v3475
          %3516 = vmatprep.subr.mxu0 0.0
          %3517 = vmatpush2.msra.mxu0 0.0
          %3518 = vmatprep.subr.mxu0 0.0
          %3519 = vmatpush2.msra.mxu0 0.0
          %3520 = vmatprep.subr.mxu0 0.0
          %3521 = vmatpush2.msra.mxu0 0.0
          %3522 = vmatprep.subr.mxu0 0.0
          %3523 = vmatpush2.msra.mxu0 0.0
          %3524 = vmatprep.subr.mxu0 0.0
          %3525 = vmatpush2.msra.mxu0 0.0
          %3526 = vmatprep.subr.mxu0 0.0
          %3527 = vmatpush2.msra.mxu0 0.0
          %3528 = vmatprep.subr.mxu0 0.0
          %3529 = vmatpush2.msra.mxu0 0.0
          %3530 = vmatprep.subr.mxu0 0.0
          %3531 = vmatpush2.msra.mxu0 0.0
          %3532 = vmatprep.subr.mxu0 0.0
          %3533 = vmatpush2.msra.mxu0 0.0
          %3534 = vmatprep.subr.mxu0 0.0
          %3535 = vmatpush2.msra.mxu0 0.0
          %3536 = vmatprep.subr.mxu0 0.0
          %3537 = vmatpush2.msra.mxu0 0.0
          %3538 = vmatprep.subr.mxu0 0.0
          %3539 = vmatpush2.msra.mxu0 0.0
          %3540 = vmatprep.subr.mxu0 0.0
          %3541 = vmatpush2.msra.mxu0 0.0
          %3542 = vmatprep.subr.mxu0 0.0
          %3543 = vmatpush2.msra.mxu0 0.0
          %3544 = vmatprep.subr.mxu0 0.0
          %3545 = vmatpush2.msra.mxu0 0.0
          %3546 = vmatprep.subr.mxu0 0.0
          %3547 = vmatpush2.msra.mxu0 0.0
          %3548 = vmatprep.mubr.f32.mxu0 0.0
          %3549 = vmatmul.mubr.f32.gmra.mxu0 %v3395
          %v3550 = vpop.f32.mrf.mxu0
          %v3551 = vadd.f32 %v3483, %v3550
          %v3552 = vpop.f32.mrf.mxu0
          %3553 = vmatprep.mubr.f32.mxu0 0.0
          %3554 = vmatmul.mubr.f32.gmra.mxu0 %v3398
          %v3555 = vpop.f32.mrf.mxu0
          %v3556 = vadd.f32 %v3483, %v3555
          %v3557 = vpop.f32.mrf.mxu0
          %3558 = vdwg.mxu0
          %v3559 = vld [vmem:[%s138 + $0x1c0] sm:$0xff]
          %v3560 = vld [vmem:[%s138 + $0x1c8] sm:$0xff]
          %v3561 = vld [vmem:[%s138 + $0x1d0] sm:$0xff]
          %v3562 = vld [vmem:[%s138 + $0x1d8] sm:$0xff]
          %v3563 = vld [vmem:[%s138 + $0x1e0] sm:$0x1]
          %v3564 = vlaneseq
          %v3565 = vshrl.u32 %v3564, 7
          %v3566 = vsub.s32 0, %v3565
          %v3567 = vrot.slane %v3563, %v3566
          %3568 = vmatprep.subr.mxu0 0.0
          %3569 = vmatpush1.msra.mxu0 0.0
          %3570 = vmatprep.subr.mxu0 0.0
          %3571 = vmatpush1.msra.mxu0 0.0
          %3572 = vmatprep.subr.mxu0 0.0
          %3573 = vmatpush1.msra.mxu0 0.0
          %3574 = vmatprep.subr.mxu0 0.0
          %3575 = vmatpush1.msra.mxu0 0.0
          %3576 = vmatprep.subr.mxu0 0.0
          %3577 = vmatpush1.msra.mxu0 0.0
          %3578 = vmatprep.subr.mxu0 0.0
          %3579 = vmatpush1.msra.mxu0 0.0
          %3580 = vmatprep.subr.mxu0 0.0
          %3581 = vmatpush1.msra.mxu0 0.0
          %3582 = vmatprep.subr.mxu0 0.0
          %3583 = vmatpush1.msra.mxu0 0.0
          %3584 = vmatprep.subr.mxu0 0.0
          %3585 = vmatpush1.msra.mxu0 0.0
          %3586 = vmatprep.subr.mxu0 0.0
          %3587 = vmatpush1.msra.mxu0 0.0
          %3588 = vmatprep.subr.mxu0 0.0
          %3589 = vmatpush1.msra.mxu0 0.0
          %3590 = vmatprep.subr.mxu0 0.0
          %3591 = vmatpush1.msra.mxu0 0.0
          %3592 = vmatprep.subr.mxu0 0.0
          %3593 = vmatpush1.msra.mxu0 %v3562
          %3594 = vmatprep.subr.mxu0 0.0
          %3595 = vmatpush1.msra.mxu0 %v3561
          %3596 = vmatprep.subr.mxu0 0.0
          %3597 = vmatpush1.msra.mxu0 %v3560
          %3598 = vmatprep.subr.mxu0 0.0
          %3599 = vmatpush1.msra.mxu0 %v3559
          %3600 = vmatprep.subr.mxu0 0.0
          %3601 = vmatpush2.msra.mxu0 0.0
          %3602 = vmatprep.subr.mxu0 0.0
          %3603 = vmatpush2.msra.mxu0 0.0
          %3604 = vmatprep.subr.mxu0 0.0
          %3605 = vmatpush2.msra.mxu0 0.0
          %3606 = vmatprep.subr.mxu0 0.0
          %3607 = vmatpush2.msra.mxu0 0.0
          %3608 = vmatprep.subr.mxu0 0.0
          %3609 = vmatpush2.msra.mxu0 0.0
          %3610 = vmatprep.subr.mxu0 0.0
          %3611 = vmatpush2.msra.mxu0 0.0
          %3612 = vmatprep.subr.mxu0 0.0
          %3613 = vmatpush2.msra.mxu0 0.0
          %3614 = vmatprep.subr.mxu0 0.0
          %3615 = vmatpush2.msra.mxu0 0.0
          %3616 = vmatprep.subr.mxu0 0.0
          %3617 = vmatpush2.msra.mxu0 0.0
          %3618 = vmatprep.subr.mxu0 0.0
          %3619 = vmatpush2.msra.mxu0 0.0
          %3620 = vmatprep.subr.mxu0 0.0
          %3621 = vmatpush2.msra.mxu0 0.0
          %3622 = vmatprep.subr.mxu0 0.0
          %3623 = vmatpush2.msra.mxu0 0.0
          %3624 = vmatprep.subr.mxu0 0.0
          %3625 = vmatpush2.msra.mxu0 0.0
          %3626 = vmatprep.subr.mxu0 0.0
          %3627 = vmatpush2.msra.mxu0 0.0
          %3628 = vmatprep.subr.mxu0 0.0
          %3629 = vmatpush2.msra.mxu0 0.0
          %3630 = vmatprep.subr.mxu0 0.0
          %3631 = vmatpush2.msra.mxu0 0.0
          %3632 = vmatprep.mubr.f32.mxu0 0.0
          %3633 = vmatmul.mubr.f32.gmra.mxu0 %v3395
          %v3634 = vpop.f32.mrf.mxu0
          %v3635 = vadd.f32 %v3567, %v3634
          %v3636 = vpop.f32.mrf.mxu0
          %3637 = vmatprep.mubr.f32.mxu0 0.0
          %3638 = vmatmul.mubr.f32.gmra.mxu0 %v3398
          %v3639 = vpop.f32.mrf.mxu0
          %v3640 = vadd.f32 %v3567, %v3639
          %v3641 = vpop.f32.mrf.mxu0
          %3642 = vdwg.mxu0
          %vm3645 = vcmask 1041408
          %v3646 = vrot.slane %v3551, 6
          %v3647 = vrot.slane %v3556, 6
          %v3648 = vsel %vm3645, %v3646, %v3647
          %vm3651 = vcmask 1043456
          %v3652 = vrot.slane %v3551, 4
          %v3653 = vrot.slane %v3556, 4
          %v3654 = vsel %vm3651, %v3652, %v3653
          %vm3657 = vcmask 1045504
          %v3658 = vrot.slane %v3551, 2
          %v3659 = vrot.slane %v3556, 2
          %v3660 = vsel %vm3657, %v3658, %v3659
          %v3663 = vsel %vm3645, %v3556, %v3646
          %v3664 = vsel %vm3651, %v3648, %v3652
          %v3665 = vsel %vm3657, %v3654, %v3658
          %v3666 = vmul.f32 %v3551, %v3338
          %v3667 = vmul.f32 %v3663, %v3339
          %v3668 = vmul.f32 %v3664, %v3340
          %v3669 = vmul.f32 %v3665, %v3341
          %v3670 = vmul.f32 %v3660, %v3342
          %v3673 = vrot.slane %v3635, 6
          %v3674 = vrot.slane %v3640, 6
          %v3675 = vsel %vm3645, %v3673, %v3674
          %v3678 = vrot.slane %v3635, 4
          %v3679 = vrot.slane %v3640, 4
          %v3680 = vsel %vm3651, %v3678, %v3679
          %v3683 = vrot.slane %v3635, 2
          %v3684 = vrot.slane %v3640, 2
          %v3685 = vsel %vm3657, %v3683, %v3684
          %v3688 = vsel %vm3645, %v3640, %v3673
          %v3689 = vsel %vm3651, %v3675, %v3678
          %v3690 = vsel %vm3657, %v3680, %v3683
          %v3691 = vmul.f32 %v3635, %v3338
          %v3692 = vmul.f32 %v3688, %v3339
          %v3693 = vmul.f32 %v3689, %v3340
          %v3694 = vmul.f32 %v3690, %v3341
          %v3695 = vmul.f32 %v3685, %v3342
          %v3697 = vsel %vm3297, %v3467, 0
          %v3700 = vsel %vm3297, %v3472, 0
          %v3703 = vsel %vm3297, %v3666, 0
          %v3706 = vsel %vm3297, %v3667, 0
          %v3709 = vsel %vm3297, %v3668, 0
          %v3712 = vsel %vm3297, %v3669, 0
          %v3715 = vsel %vm3297, %v3670, 0
          %3717 = vmatprep.subr.mxu0 0.0
          %3718 = vmatpush1.xpose.msra.mxu0 0.0
          %3719 = vmatprep.subr.mxu0 0.0
          %3720 = vmatpush1.xpose.msra.mxu0 0.0
          %3721 = vmatprep.subr.mxu0 0.0
          %3722 = vmatpush1.xpose.msra.mxu0 0.0
          %3723 = vmatprep.subr.mxu0 0.0
          %3724 = vmatpush1.xpose.msra.mxu0 0.0
          %3725 = vmatprep.subr.mxu0 0.0
          %3726 = vmatpush1.xpose.msra.mxu0 0.0
          %3727 = vmatprep.subr.mxu0 0.0
          %3728 = vmatpush1.xpose.msra.mxu0 0.0
          %3729 = vmatprep.subr.mxu0 0.0
          %3730 = vmatpush1.xpose.msra.mxu0 0.0
          %3731 = vmatprep.subr.mxu0 0.0
          %3732 = vmatpush1.xpose.msra.mxu0 0.0
          %3733 = vmatprep.subr.mxu0 0.0
          %3734 = vmatpush1.xpose.msra.mxu0 0.0
          %3735 = vmatprep.subr.mxu0 0.0
          %3736 = vmatpush1.xpose.msra.mxu0 0.0
          %3737 = vmatprep.subr.mxu0 0.0
          %3738 = vmatpush1.xpose.msra.mxu0 0.0
          %3739 = vmatprep.subr.mxu0 0.0
          %3740 = vmatpush1.xpose.msra.mxu0 %v3715
          %3741 = vmatprep.subr.mxu0 0.0
          %3742 = vmatpush1.xpose.msra.mxu0 %v3712
          %3743 = vmatprep.subr.mxu0 0.0
          %3744 = vmatpush1.xpose.msra.mxu0 %v3709
          %3745 = vmatprep.subr.mxu0 0.0
          %3746 = vmatpush1.xpose.msra.mxu0 %v3706
          %3747 = vmatprep.subr.mxu0 0.0
          %3748 = vmatpush1.xpose.msra.mxu0 %v3703
          %3749 = vmatprep.subr.mxu0 0.0
          %3750 = vmatpush2.xpose.msra.mxu0 0.0
          %3751 = vmatprep.subr.mxu0 0.0
          %3752 = vmatpush2.xpose.msra.mxu0 0.0
          %3753 = vmatprep.subr.mxu0 0.0
          %3754 = vmatpush2.xpose.msra.mxu0 0.0
          %3755 = vmatprep.subr.mxu0 0.0
          %3756 = vmatpush2.xpose.msra.mxu0 0.0
          %3757 = vmatprep.subr.mxu0 0.0
          %3758 = vmatpush2.xpose.msra.mxu0 0.0
          %3759 = vmatprep.subr.mxu0 0.0
          %3760 = vmatpush2.xpose.msra.mxu0 0.0
          %3761 = vmatprep.subr.mxu0 0.0
          %3762 = vmatpush2.xpose.msra.mxu0 0.0
          %3763 = vmatprep.subr.mxu0 0.0
          %3764 = vmatpush2.xpose.msra.mxu0 0.0
          %3765 = vmatprep.subr.mxu0 0.0
          %3766 = vmatpush2.xpose.msra.mxu0 0.0
          %3767 = vmatprep.subr.mxu0 0.0
          %3768 = vmatpush2.xpose.msra.mxu0 0.0
          %3769 = vmatprep.subr.mxu0 0.0
          %3770 = vmatpush2.xpose.msra.mxu0 0.0
          %3771 = vmatprep.subr.mxu0 0.0
          %3772 = vmatpush2.xpose.msra.mxu0 0.0
          %3773 = vmatprep.subr.mxu0 0.0
          %3774 = vmatpush2.xpose.msra.mxu0 0.0
          %3775 = vmatprep.subr.mxu0 0.0
          %3776 = vmatpush2.xpose.msra.mxu0 0.0
          %3777 = vmatprep.subr.mxu0 0.0
          %3778 = vmatpush2.xpose.msra.mxu0 0.0
          %3779 = vmatprep.subr.mxu0 0.0
          %3780 = vmatpush2.xpose.msra.mxu0 0.0
          %3781 = vmatprep.mubr.f32.mxu0 0.0
          %3782 = vmatmul.mubr.f32.gmra.mxu0 %v3697
          %v3783 = vpop.f32.mrf.mxu0
          %v3784 = vadd.f32 %v3343, %v3783
          %v3785 = vpop.f32.mrf.mxu0
          %3786 = vmatprep.mubr.f32.mxu0 0.0
          %3787 = vmatmul.mubr.f32.gmra.mxu0 %v3700
          %v3788 = vpop.f32.mrf.mxu0
          %v3789 = vadd.f32 %v3344, %v3788
          %v3790 = vpop.f32.mrf.mxu0
          %3791 = vdwg.mxu0
          %vm3792 = vcmask 326656
          %v3793 = vsel %vm3792, %v3784, -inf
          %3794 = vmax.xlane.f32.xlu0 %v3793
          %v3795 = vpop.xlane.xlu0 %3794
          %vm3796 = vcmask 320512
          %v3797 = vsel %vm3796, %v3789, -inf
          %3798 = vmax.xlane.f32.xlu0 %v3797
          %v3799 = vpop.xlane.xlu0 %3798
          %v3800 = vsub.f32 %v3784, %v3795
          %v3801 = vsub.f32 %v3789, %v3799
          %v3802 = vmul.f32 %v3800, 1.442695
          %v3803 = vpow.pop %v3802
          %v3804 = vmul.f32 %v3801, 1.442695
          %v3805 = vpow.pop %v3804
          %v3807 = vsel %vm3792, %v3803, 0
          %v3810 = vsel %vm3792, %v3805, 0
          %3812 = vmatprep.subr.mxu0 0.0
          %3813 = vmatpush1.msra.mxu0 0.0
          %3814 = vmatprep.subr.mxu0 0.0
          %3815 = vmatpush1.msra.mxu0 0.0
          %3816 = vmatprep.subr.mxu0 0.0
          %3817 = vmatpush1.msra.mxu0 0.0
          %3818 = vmatprep.subr.mxu0 0.0
          %3819 = vmatpush1.msra.mxu0 0.0
          %3820 = vmatprep.subr.mxu0 0.0
          %3821 = vmatpush1.msra.mxu0 0.0
          %3822 = vmatprep.subr.mxu0 0.0
          %3823 = vmatpush1.msra.mxu0 0.0
          %3824 = vmatprep.subr.mxu0 0.0
          %3825 = vmatpush1.msra.mxu0 0.0
          %3826 = vmatprep.subr.mxu0 0.0
          %3827 = vmatpush1.msra.mxu0 0.0
          %3828 = vmatprep.subr.mxu0 0.0
          %3829 = vmatpush1.msra.mxu0 0.0
          %3830 = vmatprep.subr.mxu0 0.0
          %3831 = vmatpush1.msra.mxu0 0.0
          %3832 = vmatprep.subr.mxu0 0.0
          %3833 = vmatpush1.msra.mxu0 0.0
          %3834 = vmatprep.subr.mxu0 0.0
          %3835 = vmatpush1.msra.mxu0 %v3342
          %3836 = vmatprep.subr.mxu0 0.0
          %3837 = vmatpush1.msra.mxu0 %v3341
          %3838 = vmatprep.subr.mxu0 0.0
          %3839 = vmatpush1.msra.mxu0 %v3340
          %3840 = vmatprep.subr.mxu0 0.0
          %3841 = vmatpush1.msra.mxu0 %v3339
          %3842 = vmatprep.subr.mxu0 0.0
          %3843 = vmatpush1.msra.mxu0 %v3338
          %3844 = vmatprep.subr.mxu0 0.0
          %3845 = vmatpush2.msra.mxu0 0.0
          %3846 = vmatprep.subr.mxu0 0.0
          %3847 = vmatpush2.msra.mxu0 0.0
          %3848 = vmatprep.subr.mxu0 0.0
          %3849 = vmatpush2.msra.mxu0 0.0
          %3850 = vmatprep.subr.mxu0 0.0
          %3851 = vmatpush2.msra.mxu0 0.0
          %3852 = vmatprep.subr.mxu0 0.0
          %3853 = vmatpush2.msra.mxu0 0.0
          %3854 = vmatprep.subr.mxu0 0.0
          %3855 = vmatpush2.msra.mxu0 0.0
          %3856 = vmatprep.subr.mxu0 0.0
          %3857 = vmatpush2.msra.mxu0 0.0
          %3858 = vmatprep.subr.mxu0 0.0
          %3859 = vmatpush2.msra.mxu0 0.0
          %3860 = vmatprep.subr.mxu0 0.0
          %3861 = vmatpush2.msra.mxu0 0.0
          %3862 = vmatprep.subr.mxu0 0.0
          %3863 = vmatpush2.msra.mxu0 0.0
          %3864 = vmatprep.subr.mxu0 0.0
          %3865 = vmatpush2.msra.mxu0 0.0
          %3866 = vmatprep.subr.mxu0 0.0
          %3867 = vmatpush2.msra.mxu0 0.0
          %3868 = vmatprep.subr.mxu0 0.0
          %3869 = vmatpush2.msra.mxu0 0.0
          %3870 = vmatprep.subr.mxu0 0.0
          %3871 = vmatpush2.msra.mxu0 0.0
          %3872 = vmatprep.subr.mxu0 0.0
          %3873 = vmatpush2.msra.mxu0 0.0
          %3874 = vmatprep.subr.mxu0 0.0
          %3875 = vmatpush2.msra.mxu0 0.0
          %3876 = vmatprep.mubr.f32.mxu0 0.0
          %3877 = vmatmul.mubr.f32.gmra.mxu0 %v3807
          %v3878 = vpop.f32.mrf.mxu0
          %v3879 = vadd.f32 0.0, %v3878
          %v3880 = vpop.f32.mrf.mxu0
          %3881 = vmatprep.mubr.f32.mxu0 0.0
          %3882 = vmatmul.mubr.f32.gmra.mxu0 %v3810
          %v3883 = vpop.f32.mrf.mxu0
          %v3884 = vadd.f32 0.0, %v3883
          %v3885 = vpop.f32.mrf.mxu0
          %3886 = vdwg.mxu0
          %3887 = vmatprep.subr.mxu0 0.0
          %3888 = vmatpush1.msra.mxu0 0.0
          %3889 = vmatprep.subr.mxu0 0.0
          %3890 = vmatpush1.msra.mxu0 0.0
          %3891 = vmatprep.subr.mxu0 0.0
          %3892 = vmatpush1.msra.mxu0 0.0
          %3893 = vmatprep.subr.mxu0 0.0
          %3894 = vmatpush1.msra.mxu0 0.0
          %3895 = vmatprep.subr.mxu0 0.0
          %3896 = vmatpush1.msra.mxu0 0.0
          %3897 = vmatprep.subr.mxu0 0.0
          %3898 = vmatpush1.msra.mxu0 0.0
          %3899 = vmatprep.subr.mxu0 0.0
          %3900 = vmatpush1.msra.mxu0 0.0
          %3901 = vmatprep.subr.mxu0 0.0
          %3902 = vmatpush1.msra.mxu0 0.0
          %3903 = vmatprep.subr.mxu0 0.0
          %3904 = vmatpush1.msra.mxu0 0.0
          %3905 = vmatprep.subr.mxu0 0.0
          %3906 = vmatpush1.msra.mxu0 0.0
          %3907 = vmatprep.subr.mxu0 0.0
          %3908 = vmatpush1.msra.mxu0 0.0
          %3909 = vmatprep.subr.mxu0 0.0
          %3910 = vmatpush1.msra.mxu0 %v3695
          %3911 = vmatprep.subr.mxu0 0.0
          %3912 = vmatpush1.msra.mxu0 %v3694
          %3913 = vmatprep.subr.mxu0 0.0
          %3914 = vmatpush1.msra.mxu0 %v3693
          %3915 = vmatprep.subr.mxu0 0.0
          %3916 = vmatpush1.msra.mxu0 %v3692
          %3917 = vmatprep.subr.mxu0 0.0
          %3918 = vmatpush1.msra.mxu0 %v3691
          %3919 = vmatprep.subr.mxu0 0.0
          %3920 = vmatpush2.msra.mxu0 0.0
          %3921 = vmatprep.subr.mxu0 0.0
          %3922 = vmatpush2.msra.mxu0 0.0
          %3923 = vmatprep.subr.mxu0 0.0
          %3924 = vmatpush2.msra.mxu0 0.0
          %3925 = vmatprep.subr.mxu0 0.0
          %3926 = vmatpush2.msra.mxu0 0.0
          %3927 = vmatprep.subr.mxu0 0.0
          %3928 = vmatpush2.msra.mxu0 0.0
          %3929 = vmatprep.subr.mxu0 0.0
          %3930 = vmatpush2.msra.mxu0 0.0
          %3931 = vmatprep.subr.mxu0 0.0
          %3932 = vmatpush2.msra.mxu0 0.0
          %3933 = vmatprep.subr.mxu0 0.0
          %3934 = vmatpush2.msra.mxu0 0.0
          %3935 = vmatprep.subr.mxu0 0.0
          %3936 = vmatpush2.msra.mxu0 0.0
          %3937 = vmatprep.subr.mxu0 0.0
          %3938 = vmatpush2.msra.mxu0 0.0
          %3939 = vmatprep.subr.mxu0 0.0
          %3940 = vmatpush2.msra.mxu0 0.0
          %3941 = vmatprep.subr.mxu0 0.0
          %3942 = vmatpush2.msra.mxu0 0.0
          %3943 = vmatprep.subr.mxu0 0.0
          %3944 = vmatpush2.msra.mxu0 0.0
          %3945 = vmatprep.subr.mxu0 0.0
          %3946 = vmatpush2.msra.mxu0 0.0
          %3947 = vmatprep.subr.mxu0 0.0
          %3948 = vmatpush2.msra.mxu0 0.0
          %3949 = vmatprep.subr.mxu0 0.0
          %3950 = vmatpush2.msra.mxu0 0.0
          %3951 = vmatprep.mubr.f32.mxu0 0.0
          %3952 = vmatmul.mubr.f32.gmra.mxu0 %v3807
          %v3953 = vpop.f32.mrf.mxu0
          %v3954 = vadd.f32 0.0, %v3953
          %v3955 = vpop.f32.mrf.mxu0
          %3956 = vmatprep.mubr.f32.mxu0 0.0
          %3957 = vmatmul.mubr.f32.gmra.mxu0 %v3810
          %v3958 = vpop.f32.mrf.mxu0
          %v3959 = vadd.f32 0.0, %v3958
          %v3960 = vpop.f32.mrf.mxu0
          %3961 = vdwg.mxu0
          %v3962 = vrcp.pop %v3879
          %v3963 = vmul.f32 %v3954, %v3962
          %v3964 = vrcp.pop %v3884
          %v3965 = vmul.f32 %v3959, %v3964
          %v3966 = vld [vmem:[%s138 + $0x1e8] sm:$0xff]
          %v3967 = vld [vmem:[%s138 + $0x1f0] sm:$0xff]
          %v3968 = vld [vmem:[%s138 + $0x1f8] sm:$0xff]
          %v3969 = vld [vmem:[%s138 + $0x200] sm:$0xff]
          %v3971 = vsel %vm3297, %v3963, 0
          %v3974 = vsel %vm3297, %v3965, 0
          %3976 = vmatprep.subr.mxu0 0.0
          %3977 = vmatpush1.msra.mxu0 0.0
          %3978 = vmatprep.subr.mxu0 0.0
          %3979 = vmatpush1.msra.mxu0 0.0
          %3980 = vmatprep.subr.mxu0 0.0
          %3981 = vmatpush1.msra.mxu0 0.0
          %3982 = vmatprep.subr.mxu0 0.0
          %3983 = vmatpush1.msra.mxu0 0.0
          %3984 = vmatprep.subr.mxu0 0.0
          %3985 = vmatpush1.msra.mxu0 0.0
          %3986 = vmatprep.subr.mxu0 0.0
          %3987 = vmatpush1.msra.mxu0 0.0
          %3988 = vmatprep.subr.mxu0 0.0
          %3989 = vmatpush1.msra.mxu0 0.0
          %3990 = vmatprep.subr.mxu0 0.0
          %3991 = vmatpush1.msra.mxu0 0.0
          %3992 = vmatprep.subr.mxu0 0.0
          %3993 = vmatpush1.msra.mxu0 0.0
          %3994 = vmatprep.subr.mxu0 0.0
          %3995 = vmatpush1.msra.mxu0 0.0
          %3996 = vmatprep.subr.mxu0 0.0
          %3997 = vmatpush1.msra.mxu0 0.0
          %3998 = vmatprep.subr.mxu0 0.0
          %3999 = vmatpush1.msra.mxu0 0.0
          %4000 = vmatprep.subr.mxu0 0.0
          %4001 = vmatpush1.msra.mxu0 %v3969
          %4002 = vmatprep.subr.mxu0 0.0
          %4003 = vmatpush1.msra.mxu0 %v3968
          %4004 = vmatprep.subr.mxu0 0.0
          %4005 = vmatpush1.msra.mxu0 %v3967
          %4006 = vmatprep.subr.mxu0 0.0
          %4007 = vmatpush1.msra.mxu0 %v3966
          %4008 = vmatprep.subr.mxu0 0.0
          %4009 = vmatpush2.msra.mxu0 0.0
          %4010 = vmatprep.subr.mxu0 0.0
          %4011 = vmatpush2.msra.mxu0 0.0
          %4012 = vmatprep.subr.mxu0 0.0
          %4013 = vmatpush2.msra.mxu0 0.0
          %4014 = vmatprep.subr.mxu0 0.0
          %4015 = vmatpush2.msra.mxu0 0.0
          %4016 = vmatprep.subr.mxu0 0.0
          %4017 = vmatpush2.msra.mxu0 0.0
          %4018 = vmatprep.subr.mxu0 0.0
          %4019 = vmatpush2.msra.mxu0 0.0
          %4020 = vmatprep.subr.mxu0 0.0
          %4021 = vmatpush2.msra.mxu0 0.0
          %4022 = vmatprep.subr.mxu0 0.0
          %4023 = vmatpush2.msra.mxu0 0.0
          %4024 = vmatprep.subr.mxu0 0.0
          %4025 = vmatpush2.msra.mxu0 0.0
          %4026 = vmatprep.subr.mxu0 0.0
          %4027 = vmatpush2.msra.mxu0 0.0
          %4028 = vmatprep.subr.mxu0 0.0
          %4029 = vmatpush2.msra.mxu0 0.0
          %4030 = vmatprep.subr.mxu0 0.0
          %4031 = vmatpush2.msra.mxu0 0.0
          %4032 = vmatprep.subr.mxu0 0.0
          %4033 = vmatpush2.msra.mxu0 0.0
          %4034 = vmatprep.subr.mxu0 0.0
          %4035 = vmatpush2.msra.mxu0 0.0
          %4036 = vmatprep.subr.mxu0 0.0
          %4037 = vmatpush2.msra.mxu0 0.0
          %4038 = vmatprep.subr.mxu0 0.0
          %4039 = vmatpush2.msra.mxu0 0.0
          %4040 = vmatprep.mubr.f32.mxu0 0.0
          %4041 = vmatmul.mubr.f32.gmra.mxu0 %v3971
          %v4042 = vpop.f32.mrf.mxu0
          %v4043 = vadd.f32 0.0, %v4042
          %v4044 = vpop.f32.mrf.mxu0
          %4045 = vmatprep.mubr.f32.mxu0 0.0
          %4046 = vmatmul.mubr.f32.gmra.mxu0 %v3974
          %v4047 = vpop.f32.mrf.mxu0
          %v4048 = vadd.f32 0.0, %v4047
          %v4049 = vpop.f32.mrf.mxu0
          %4050 = vdwg.mxu0
          %v4051 = vadd.f32 %v3336, %v4043
          %v4052 = vadd.f32 %v3337, %v4048
          %v4053 = vld [vmem:[%s138 + $0x208] sm:$0x1]
          %v4054 = vlaneseq
          %v4055 = vshrl.u32 %v4054, 7
          %v4056 = vsub.s32 0, %v4055
          %v4057 = vrot.slane %v4053, %v4056
          %v4058 = vadd.f32 %v4051, %v4057
          %v4059 = vadd.f32 %v4052, %v4057
          %v4060 = vld [vmem:[%s138 + $0x210] sm:$0x1]
          %v4061 = vld [vmem:[%s138 + $0x218] sm:$0x1]
          %v4062 = vsel %vm3297, %v4058, 0.0
          %4063 = vadd.xlane.f32.xlu0 %v4062
          %v4064 = vpop.xlane.xlu0 %4063
          %v4065 = vsel %vm3301, %v4059, 0.0
          %4066 = vadd.xlane.f32.xlu0 %v4065
          %v4067 = vpop.xlane.xlu0 %4066
          %v4068 = vmul.f32 %v4064, %v3305
          %v4069 = vmul.f32 %v4067, %v3305
          %v4070 = vsub.f32 %v4058, %v4068
          %v4071 = vsub.f32 %v4059, %v4069
          %v4072 = vmul.f32 %v4070, %v4070
          %v4073 = vmul.f32 %v4071, %v4071
          %v4074 = vsel %vm3297, %v4072, 0.0
          %4075 = vadd.xlane.f32.xlu0 %v4074
          %v4076 = vpop.xlane.xlu0 %4075
          %v4077 = vsel %vm3301, %v4073, 0.0
          %4078 = vadd.xlane.f32.xlu0 %v4077
          %v4079 = vpop.xlane.xlu0 %4078
          %v4080 = vmul.f32 %v4076, %v3305
          %v4081 = vmul.f32 %v4079, %v3305
          %v4082 = vadd.f32 %v4080, 1e-05
          %v4083 = vadd.f32 %v4081, 1e-05
          %v4084 = vrsqrt.pop %v4082
          %v4085 = vrsqrt.pop %v4083
          %v4086 = vmul.f32 %v4070, %v4084
          %v4087 = vmul.f32 %v4071, %v4085
          %v4088 = vlaneseq
          %v4089 = vshrl.u32 %v4088, 7
          %v4090 = vsub.s32 0, %v4089
          %v4091 = vrot.slane %v4060, %v4090
          %v4092 = vmul.f32 %v4086, %v4091
          %v4093 = vmul.f32 %v4087, %v4091
          %v4094 = vlaneseq
          %v4095 = vshrl.u32 %v4094, 7
          %v4096 = vsub.s32 0, %v4095
          %v4097 = vrot.slane %v4061, %v4096
          %v4098 = vadd.f32 %v4092, %v4097
          %v4099 = vadd.f32 %v4093, %v4097
          %v4100 = vld [vmem:[%s138 + $0x220] sm:$0xff]
          %v4101 = vld [vmem:[%s138 + $0x228] sm:$0xff]
          %v4102 = vld [vmem:[%s138 + $0x230] sm:$0xff]
          %v4103 = vld [vmem:[%s138 + $0x238] sm:$0xff]
          %v4104 = vld [vmem:[%s138 + $0x240] sm:$0x1]
          %v4105 = vlaneseq
          %v4106 = vshrl.u32 %v4105, 7
          %v4107 = vsub.s32 0, %v4106
          %v4108 = vrot.slane %v4104, %v4107
          %v4110 = vsel %vm3297, %v4098, 0
          %v4113 = vsel %vm3297, %v4099, 0
          %4115 = vmatprep.subr.mxu0 0.0
          %4116 = vmatpush1.msra.mxu0 0.0
          %4117 = vmatprep.subr.mxu0 0.0
          %4118 = vmatpush1.msra.mxu0 0.0
          %4119 = vmatprep.subr.mxu0 0.0
          %4120 = vmatpush1.msra.mxu0 0.0
          %4121 = vmatprep.subr.mxu0 0.0
          %4122 = vmatpush1.msra.mxu0 0.0
          %4123 = vmatprep.subr.mxu0 0.0
          %4124 = vmatpush1.msra.mxu0 0.0
          %4125 = vmatprep.subr.mxu0 0.0
          %4126 = vmatpush1.msra.mxu0 0.0
          %4127 = vmatprep.subr.mxu0 0.0
          %4128 = vmatpush1.msra.mxu0 0.0
          %4129 = vmatprep.subr.mxu0 0.0
          %4130 = vmatpush1.msra.mxu0 0.0
          %4131 = vmatprep.subr.mxu0 0.0
          %4132 = vmatpush1.msra.mxu0 0.0
          %4133 = vmatprep.subr.mxu0 0.0
          %4134 = vmatpush1.msra.mxu0 0.0
          %4135 = vmatprep.subr.mxu0 0.0
          %4136 = vmatpush1.msra.mxu0 0.0
          %4137 = vmatprep.subr.mxu0 0.0
          %4138 = vmatpush1.msra.mxu0 0.0
          %4139 = vmatprep.subr.mxu0 0.0
          %4140 = vmatpush1.msra.mxu0 %v4103
          %4141 = vmatprep.subr.mxu0 0.0
          %4142 = vmatpush1.msra.mxu0 %v4102
          %4143 = vmatprep.subr.mxu0 0.0
          %4144 = vmatpush1.msra.mxu0 %v4101
          %4145 = vmatprep.subr.mxu0 0.0
          %4146 = vmatpush1.msra.mxu0 %v4100
          %4147 = vmatprep.subr.mxu0 0.0
          %4148 = vmatpush2.msra.mxu0 0.0
          %4149 = vmatprep.subr.mxu0 0.0
          %4150 = vmatpush2.msra.mxu0 0.0
          %4151 = vmatprep.subr.mxu0 0.0
          %4152 = vmatpush2.msra.mxu0 0.0
          %4153 = vmatprep.subr.mxu0 0.0
          %4154 = vmatpush2.msra.mxu0 0.0
          %4155 = vmatprep.subr.mxu0 0.0
          %4156 = vmatpush2.msra.mxu0 0.0
          %4157 = vmatprep.subr.mxu0 0.0
          %4158 = vmatpush2.msra.mxu0 0.0
          %4159 = vmatprep.subr.mxu0 0.0
          %4160 = vmatpush2.msra.mxu0 0.0
          %4161 = vmatprep.subr.mxu0 0.0
          %4162 = vmatpush2.msra.mxu0 0.0
          %4163 = vmatprep.subr.mxu0 0.0
          %4164 = vmatpush2.msra.mxu0 0.0
          %4165 = vmatprep.subr.mxu0 0.0
          %4166 = vmatpush2.msra.mxu0 0.0
          %4167 = vmatprep.subr.mxu0 0.0
          %4168 = vmatpush2.msra.mxu0 0.0
          %4169 = vmatprep.subr.mxu0 0.0
          %4170 = vmatpush2.msra.mxu0 0.0
          %4171 = vmatprep.subr.mxu0 0.0
          %4172 = vmatpush2.msra.mxu0 0.0
          %4173 = vmatprep.subr.mxu0 0.0
          %4174 = vmatpush2.msra.mxu0 0.0
          %4175 = vmatprep.subr.mxu0 0.0
          %4176 = vmatpush2.msra.mxu0 0.0
          %4177 = vmatprep.subr.mxu0 0.0
          %4178 = vmatpush2.msra.mxu0 0.0
          %4179 = vmatprep.mubr.f32.mxu0 0.0
          %4180 = vmatmul.mubr.f32.gmra.mxu0 %v4110
          %v4181 = vpop.f32.mrf.mxu0
          %v4182 = vadd.f32 %v4108, %v4181
          %v4183 = vpop.f32.mrf.mxu0
          %4184 = vmatprep.mubr.f32.mxu0 0.0
          %4185 = vmatmul.mubr.f32.gmra.mxu0 %v4113
          %v4186 = vpop.f32.mrf.mxu0
          %v4187 = vadd.f32 %v4108, %v4186
          %v4188 = vpop.f32.mrf.mxu0
          %4189 = vdwg.mxu0
          %v4190 = vmul.f32 %v4182, 1.702
          %v4191 = vmul.f32 %v4187, 1.702
          %v4192 = vxor.u32 %v4190, 2147483648
          %v4193 = vxor.u32 %v4191, 2147483648
          %v4194 = vmul.f32 %v4192, 1.442695
          %v4195 = vpow.pop %v4194
          %v4196 = vmul.f32 %v4193, 1.442695
          %v4197 = vpow.pop %v4196
          %v4198 = vadd.f32 %v4195, 1.0
          %v4199 = vadd.f32 %v4197, 1.0
          %v4200 = vrcp.pop %v4198
          %v4201 = vmul.f32 1.0, %v4200
          %v4202 = vrcp.pop %v4199
          %v4203 = vmul.f32 1.0, %v4202
          %v4204 = vmul.f32 %v4182, %v4201
          %v4205 = vmul.f32 %v4187, %v4203
          %v4206 = vld [vmem:[%s138 + $0x248] sm:$0xff]
          %v4207 = vld [vmem:[%s138 + $0x250] sm:$0xff]
          %v4208 = vld [vmem:[%s138 + $0x258] sm:$0xff]
          %v4209 = vld [vmem:[%s138 + $0x260] sm:$0xff]
          %v4210 = vld [vmem:[%s138 + $0x268] sm:$0x1]
          %v4211 = vlaneseq
          %v4212 = vshrl.u32 %v4211, 7
          %v4213 = vsub.s32 0, %v4212
          %v4214 = vrot.slane %v4210, %v4213
          %4215 = vmatprep.subr.mxu0 0.0
          %4216 = vmatpush1.xpose.msra.mxu0 0.0
          %4217 = vmatprep.subr.mxu0 0.0
          %4218 = vmatpush1.xpose.msra.mxu0 0.0
          %4219 = vmatprep.subr.mxu0 0.0
          %4220 = vmatpush1.xpose.msra.mxu0 0.0
          %4221 = vmatprep.subr.mxu0 0.0
          %4222 = vmatpush1.xpose.msra.mxu0 0.0
          %4223 = vmatprep.subr.mxu0 0.0
          %4224 = vmatpush1.xpose.msra.mxu0 0.0
          %4225 = vmatprep.subr.mxu0 0.0
          %4226 = vmatpush1.xpose.msra.mxu0 0.0
          %4227 = vmatprep.subr.mxu0 0.0
          %4228 = vmatpush1.xpose.msra.mxu0 0.0
          %4229 = vmatprep.subr.mxu0 0.0
          %4230 = vmatpush1.xpose.msra.mxu0 0.0
          %4231 = vmatprep.subr.mxu0 0.0
          %4232 = vmatpush1.xpose.msra.mxu0 0.0
          %4233 = vmatprep.subr.mxu0 0.0
          %4234 = vmatpush1.xpose.msra.mxu0 0.0
          %4235 = vmatprep.subr.mxu0 0.0
          %4236 = vmatpush1.xpose.msra.mxu0 0.0
          %4237 = vmatprep.subr.mxu0 0.0
          %4238 = vmatpush1.xpose.msra.mxu0 0.0
          %4239 = vmatprep.subr.mxu0 0.0
          %4240 = vmatpush1.xpose.msra.mxu0 %v4209
          %4241 = vmatprep.subr.mxu0 0.0
          %4242 = vmatpush1.xpose.msra.mxu0 %v4208
          %4243 = vmatprep.subr.mxu0 0.0
          %4244 = vmatpush1.xpose.msra.mxu0 %v4207
          %4245 = vmatprep.subr.mxu0 0.0
          %4246 = vmatpush1.xpose.msra.mxu0 %v4206
          %4247 = vmatprep.subr.mxu0 0.0
          %4248 = vmatpush2.xpose.msra.mxu0 0.0
          %4249 = vmatprep.subr.mxu0 0.0
          %4250 = vmatpush2.xpose.msra.mxu0 0.0
          %4251 = vmatprep.subr.mxu0 0.0
          %4252 = vmatpush2.xpose.msra.mxu0 0.0
          %4253 = vmatprep.subr.mxu0 0.0
          %4254 = vmatpush2.xpose.msra.mxu0 0.0
          %4255 = vmatprep.subr.mxu0 0.0
          %4256 = vmatpush2.xpose.msra.mxu0 0.0
          %4257 = vmatprep.subr.mxu0 0.0
          %4258 = vmatpush2.xpose.msra.mxu0 0.0
          %4259 = vmatprep.subr.mxu0 0.0
          %4260 = vmatpush2.xpose.msra.mxu0 0.0
          %4261 = vmatprep.subr.mxu0 0.0
          %4262 = vmatpush2.xpose.msra.mxu0 0.0
          %4263 = vmatprep.subr.mxu0 0.0
          %4264 = vmatpush2.xpose.msra.mxu0 0.0
          %4265 = vmatprep.subr.mxu0 0.0
          %4266 = vmatpush2.xpose.msra.mxu0 0.0
          %4267 = vmatprep.subr.mxu0 0.0
          %4268 = vmatpush2.xpose.msra.mxu0 0.0
          %4269 = vmatprep.subr.mxu0 0.0
          %4270 = vmatpush2.xpose.msra.mxu0 0.0
          %4271 = vmatprep.subr.mxu0 0.0
          %4272 = vmatpush2.xpose.msra.mxu0 0.0
          %4273 = vmatprep.subr.mxu0 0.0
          %4274 = vmatpush2.xpose.msra.mxu0 0.0
          %4275 = vmatprep.subr.mxu0 0.0
          %4276 = vmatpush2.xpose.msra.mxu0 0.0
          %4277 = vmatprep.subr.mxu0 0.0
          %4278 = vmatpush2.xpose.msra.mxu0 0.0
          %4279 = vmatprep.mubr.f32.mxu0 0.0
          %4280 = vmatmul.mubr.f32.gmra.mxu0 %v4204
          %v4281 = vpop.f32.mrf.mxu0
          %v4282 = vadd.f32 %v4214, %v4281
          %v4283 = vpop.f32.mrf.mxu0
          %4284 = vmatprep.mubr.f32.mxu0 0.0
          %4285 = vmatmul.mubr.f32.gmra.mxu0 %v4205
          %v4286 = vpop.f32.mrf.mxu0
          %v4287 = vadd.f32 %v4214, %v4286
          %v4288 = vpop.f32.mrf.mxu0
          %4289 = vdwg.mxu0
          %v4290 = vadd.f32 %v4058, %v4282
          %v4291 = vadd.f32 %v4059, %v4287
          %v4292 = vld [vmem:[%s138 + $0x270] sm:$0xff]
          %v4293 = vld [vmem:[%s138 + $0x278] sm:$0xff]
          %v4294 = vld [vmem:[%s138 + $0x280] sm:$0xff]
          %v4295 = vld [vmem:[%s138 + $0x288] sm:$0xff]
          %v4296 = vld [vmem:[%s138 + $0x290] sm:$0x1]
          %v4297 = vlaneseq
          %v4298 = vshrl.u32 %v4297, 7
          %v4299 = vsub.s32 0, %v4298
          %v4300 = vrot.slane %v4296, %v4299
          %v4302 = vsel %vm3297, %v4290, 0
          %v4305 = vsel %vm3297, %v4291, 0
          %4307 = vmatprep.subr.mxu0 0.0
          %4308 = vmatpush1.msra.mxu0 0.0
          %4309 = vmatprep.subr.mxu0 0.0
          %4310 = vmatpush1.msra.mxu0 0.0
          %4311 = vmatprep.subr.mxu0 0.0
          %4312 = vmatpush1.msra.mxu0 0.0
          %4313 = vmatprep.subr.mxu0 0.0
          %4314 = vmatpush1.msra.mxu0 0.0
          %4315 = vmatprep.subr.mxu0 0.0
          %4316 = vmatpush1.msra.mxu0 0.0
          %4317 = vmatprep.subr.mxu0 0.0
          %4318 = vmatpush1.msra.mxu0 0.0
          %4319 = vmatprep.subr.mxu0 0.0
          %4320 = vmatpush1.msra.mxu0 0.0
          %4321 = vmatprep.subr.mxu0 0.0
          %4322 = vmatpush1.msra.mxu0 0.0
          %4323 = vmatprep.subr.mxu0 0.0
          %4324 = vmatpush1.msra.mxu0 0.0
          %4325 = vmatprep.subr.mxu0 0.0
          %4326 = vmatpush1.msra.mxu0 0.0
          %4327 = vmatprep.subr.mxu0 0.0
          %4328 = vmatpush1.msra.mxu0 0.0
          %4329 = vmatprep.subr.mxu0 0.0
          %4330 = vmatpush1.msra.mxu0 0.0
          %4331 = vmatprep.subr.mxu0 0.0
          %4332 = vmatpush1.msra.mxu0 %v4295
          %4333 = vmatprep.subr.mxu0 0.0
          %4334 = vmatpush1.msra.mxu0 %v4294
          %4335 = vmatprep.subr.mxu0 0.0
          %4336 = vmatpush1.msra.mxu0 %v4293
          %4337 = vmatprep.subr.mxu0 0.0
          %4338 = vmatpush1.msra.mxu0 %v4292
          %4339 = vmatprep.subr.mxu0 0.0
          %4340 = vmatpush2.msra.mxu0 0.0
          %4341 = vmatprep.subr.mxu0 0.0
          %4342 = vmatpush2.msra.mxu0 0.0
          %4343 = vmatprep.subr.mxu0 0.0
          %4344 = vmatpush2.msra.mxu0 0.0
          %4345 = vmatprep.subr.mxu0 0.0
          %4346 = vmatpush2.msra.mxu0 0.0
          %4347 = vmatprep.subr.mxu0 0.0
          %4348 = vmatpush2.msra.mxu0 0.0
          %4349 = vmatprep.subr.mxu0 0.0
          %4350 = vmatpush2.msra.mxu0 0.0
          %4351 = vmatprep.subr.mxu0 0.0
          %4352 = vmatpush2.msra.mxu0 0.0
          %4353 = vmatprep.subr.mxu0 0.0
          %4354 = vmatpush2.msra.mxu0 0.0
          %4355 = vmatprep.subr.mxu0 0.0
          %4356 = vmatpush2.msra.mxu0 0.0
          %4357 = vmatprep.subr.mxu0 0.0
          %4358 = vmatpush2.msra.mxu0 0.0
          %4359 = vmatprep.subr.mxu0 0.0
          %4360 = vmatpush2.msra.mxu0 0.0
          %4361 = vmatprep.subr.mxu0 0.0
          %4362 = vmatpush2.msra.mxu0 0.0
          %4363 = vmatprep.subr.mxu0 0.0
          %4364 = vmatpush2.msra.mxu0 0.0
          %4365 = vmatprep.subr.mxu0 0.0
          %4366 = vmatpush2.msra.mxu0 0.0
          %4367 = vmatprep.subr.mxu0 0.0
          %4368 = vmatpush2.msra.mxu0 0.0
          %4369 = vmatprep.subr.mxu0 0.0
          %4370 = vmatpush2.msra.mxu0 0.0
          %4371 = vmatprep.mubr.f32.mxu0 0.0
          %4372 = vmatmul.mubr.f32.gmra.mxu0 %v4302
          %v4373 = vpop.f32.mrf.mxu0
          %v4374 = vadd.f32 %v4300, %v4373
          %v4375 = vpop.f32.mrf.mxu0
          %4376 = vmatprep.mubr.f32.mxu0 0.0
          %4377 = vmatmul.mubr.f32.gmra.mxu0 %v4305
          %v4378 = vpop.f32.mrf.mxu0
          %v4379 = vadd.f32 %v4300, %v4378
          %v4380 = vpop.f32.mrf.mxu0
          %4381 = vdwg.mxu0
          %v4382 = vmax.f32 %v4374, 0.0
          %v4383 = vmax.f32 %v4379, 0.0
          %v4384 = vld [vmem:[%s138 + $0x298] sm:$0xff]
          %v4385 = vld [vmem:[%s138 + $0x2a0] sm:$0xff]
          %v4386 = vld [vmem:[%s138 + $0x2a8] sm:$0xff]
          %v4387 = vld [vmem:[%s138 + $0x2b0] sm:$0xff]
          %v4388 = vld [vmem:[%s138 + $0x2b8] sm:$0x1]
          %v4389 = vlaneseq
          %v4390 = vshrl.u32 %v4389, 7
          %v4391 = vsub.s32 0, %v4390
          %v4392 = vrot.slane %v4388, %v4391
          %v4394 = vsel %vm3297, %v4382, 0
          %v4397 = vsel %vm3297, %v4383, 0
          %4399 = vmatprep.subr.mxu0 0.0
          %4400 = vmatpush1.msra.mxu0 0.0
          %4401 = vmatprep.subr.mxu0 0.0
          %4402 = vmatpush1.msra.mxu0 0.0
          %4403 = vmatprep.subr.mxu0 0.0
          %4404 = vmatpush1.msra.mxu0 0.0
          %4405 = vmatprep.subr.mxu0 0.0
          %4406 = vmatpush1.msra.mxu0 0.0
          %4407 = vmatprep.subr.mxu0 0.0
          %4408 = vmatpush1.msra.mxu0 0.0
          %4409 = vmatprep.subr.mxu0 0.0
          %4410 = vmatpush1.msra.mxu0 0.0
          %4411 = vmatprep.subr.mxu0 0.0
          %4412 = vmatpush1.msra.mxu0 0.0
          %4413 = vmatprep.subr.mxu0 0.0
          %4414 = vmatpush1.msra.mxu0 0.0
          %4415 = vmatprep.subr.mxu0 0.0
          %4416 = vmatpush1.msra.mxu0 0.0
          %4417 = vmatprep.subr.mxu0 0.0
          %4418 = vmatpush1.msra.mxu0 0.0
          %4419 = vmatprep.subr.mxu0 0.0
          %4420 = vmatpush1.msra.mxu0 0.0
          %4421 = vmatprep.subr.mxu0 0.0
          %4422 = vmatpush1.msra.mxu0 0.0
          %4423 = vmatprep.subr.mxu0 0.0
          %4424 = vmatpush1.msra.mxu0 %v4387
          %4425 = vmatprep.subr.mxu0 0.0
          %4426 = vmatpush1.msra.mxu0 %v4386
          %4427 = vmatprep.subr.mxu0 0.0
          %4428 = vmatpush1.msra.mxu0 %v4385
          %4429 = vmatprep.subr.mxu0 0.0
          %4430 = vmatpush1.msra.mxu0 %v4384
          %4431 = vmatprep.subr.mxu0 0.0
          %4432 = vmatpush2.msra.mxu0 0.0
          %4433 = vmatprep.subr.mxu0 0.0
          %4434 = vmatpush2.msra.mxu0 0.0
          %4435 = vmatprep.subr.mxu0 0.0
          %4436 = vmatpush2.msra.mxu0 0.0
          %4437 = vmatprep.subr.mxu0 0.0
          %4438 = vmatpush2.msra.mxu0 0.0
          %4439 = vmatprep.subr.mxu0 0.0
          %4440 = vmatpush2.msra.mxu0 0.0
          %4441 = vmatprep.subr.mxu0 0.0
          %4442 = vmatpush2.msra.mxu0 0.0
          %4443 = vmatprep.subr.mxu0 0.0
          %4444 = vmatpush2.msra.mxu0 0.0
          %4445 = vmatprep.subr.mxu0 0.0
          %4446 = vmatpush2.msra.mxu0 0.0
          %4447 = vmatprep.subr.mxu0 0.0
          %4448 = vmatpush2.msra.mxu0 0.0
          %4449 = vmatprep.subr.mxu0 0.0
          %4450 = vmatpush2.msra.mxu0 0.0
          %4451 = vmatprep.subr.mxu0 0.0
          %4452 = vmatpush2.msra.mxu0 0.0
          %4453 = vmatprep.subr.mxu0 0.0
          %4454 = vmatpush2.msra.mxu0 0.0
          %4455 = vmatprep.subr.mxu0 0.0
          %4456 = vmatpush2.msra.mxu0 0.0
          %4457 = vmatprep.subr.mxu0 0.0
          %4458 = vmatpush2.msra.mxu0 0.0
          %4459 = vmatprep.subr.mxu0 0.0
          %4460 = vmatpush2.msra.mxu0 0.0
          %4461 = vmatprep.subr.mxu0 0.0
          %4462 = vmatpush2.msra.mxu0 0.0
          %4463 = vmatprep.mubr.f32.mxu0 0.0
          %4464 = vmatmul.mubr.f32.gmra.mxu0 %v4394
          %v4465 = vpop.f32.mrf.mxu0
          %v4466 = vadd.f32 %v4392, %v4465
          %v4467 = vpop.f32.mrf.mxu0
          %4468 = vmatprep.mubr.f32.mxu0 0.0
          %4469 = vmatmul.mubr.f32.gmra.mxu0 %v4397
          %v4470 = vpop.f32.mrf.mxu0
          %v4471 = vadd.f32 %v4392, %v4470
          %v4472 = vpop.f32.mrf.mxu0
          %4473 = vdwg.mxu0
          %v4474 = vmax.f32 %v4466, 0.0
          %v4475 = vmax.f32 %v4471, 0.0
          %v4476 = vld [vmem:[%s138 + $0x2c0] sm:$0xff]
          %v4477 = vld [vmem:[%s138 + $0x2c8] sm:$0xff]
          %v4478 = vld [vmem:[%s138 + $0x2d0] sm:$0xff]
          %v4479 = vld [vmem:[%s138 + $0x2d8] sm:$0xff]
          %v4480 = vld [vmem:[%s138 + $0x2e0] sm:$0x1]
          %v4481 = vlaneseq
          %v4482 = vshrl.u32 %v4481, 7
          %v4483 = vsub.s32 0, %v4482
          %v4484 = vrot.slane %v4480, %v4483
          %v4486 = vsel %vm3297, %v4474, 0
          %v4489 = vsel %vm3297, %v4475, 0
          %4491 = vmatprep.subr.mxu0 0.0
          %4492 = vmatpush1.msra.mxu0 0.0
          %4493 = vmatprep.subr.mxu0 0.0
          %4494 = vmatpush1.msra.mxu0 0.0
          %4495 = vmatprep.subr.mxu0 0.0
          %4496 = vmatpush1.msra.mxu0 0.0
          %4497 = vmatprep.subr.mxu0 0.0
          %4498 = vmatpush1.msra.mxu0 0.0
          %4499 = vmatprep.subr.mxu0 0.0
          %4500 = vmatpush1.msra.mxu0 0.0
          %4501 = vmatprep.subr.mxu0 0.0
          %4502 = vmatpush1.msra.mxu0 0.0
          %4503 = vmatprep.subr.mxu0 0.0
          %4504 = vmatpush1.msra.mxu0 0.0
          %4505 = vmatprep.subr.mxu0 0.0
          %4506 = vmatpush1.msra.mxu0 0.0
          %4507 = vmatprep.subr.mxu0 0.0
          %4508 = vmatpush1.msra.mxu0 0.0
          %4509 = vmatprep.subr.mxu0 0.0
          %4510 = vmatpush1.msra.mxu0 0.0
          %4511 = vmatprep.subr.mxu0 0.0
          %4512 = vmatpush1.msra.mxu0 0.0
          %4513 = vmatprep.subr.mxu0 0.0
          %4514 = vmatpush1.msra.mxu0 0.0
          %4515 = vmatprep.subr.mxu0 0.0
          %4516 = vmatpush1.msra.mxu0 %v4479
          %4517 = vmatprep.subr.mxu0 0.0
          %4518 = vmatpush1.msra.mxu0 %v4478
          %4519 = vmatprep.subr.mxu0 0.0
          %4520 = vmatpush1.msra.mxu0 %v4477
          %4521 = vmatprep.subr.mxu0 0.0
          %4522 = vmatpush1.msra.mxu0 %v4476
          %4523 = vmatprep.subr.mxu0 0.0
          %4524 = vmatpush2.msra.mxu0 0.0
          %4525 = vmatprep.subr.mxu0 0.0
          %4526 = vmatpush2.msra.mxu0 0.0
          %4527 = vmatprep.subr.mxu0 0.0
          %4528 = vmatpush2.msra.mxu0 0.0
          %4529 = vmatprep.subr.mxu0 0.0
          %4530 = vmatpush2.msra.mxu0 0.0
          %4531 = vmatprep.subr.mxu0 0.0
          %4532 = vmatpush2.msra.mxu0 0.0
          %4533 = vmatprep.subr.mxu0 0.0
          %4534 = vmatpush2.msra.mxu0 0.0
          %4535 = vmatprep.subr.mxu0 0.0
          %4536 = vmatpush2.msra.mxu0 0.0
          %4537 = vmatprep.subr.mxu0 0.0
          %4538 = vmatpush2.msra.mxu0 0.0
          %4539 = vmatprep.subr.mxu0 0.0
          %4540 = vmatpush2.msra.mxu0 0.0
          %4541 = vmatprep.subr.mxu0 0.0
          %4542 = vmatpush2.msra.mxu0 0.0
          %4543 = vmatprep.subr.mxu0 0.0
          %4544 = vmatpush2.msra.mxu0 0.0
          %4545 = vmatprep.subr.mxu0 0.0
          %4546 = vmatpush2.msra.mxu0 0.0
          %4547 = vmatprep.subr.mxu0 0.0
          %4548 = vmatpush2.msra.mxu0 0.0
          %4549 = vmatprep.subr.mxu0 0.0
          %4550 = vmatpush2.msra.mxu0 0.0
          %4551 = vmatprep.subr.mxu0 0.0
          %4552 = vmatpush2.msra.mxu0 0.0
          %4553 = vmatprep.subr.mxu0 0.0
          %4554 = vmatpush2.msra.mxu0 0.0
          %4555 = vmatprep.mubr.f32.mxu0 0.0
          %4556 = vmatmul.mubr.f32.gmra.mxu0 %v4486
          %v4557 = vpop.f32.mrf.mxu0
          %v4558 = vadd.f32 %v4484, %v4557
          %v4559 = vpop.f32.mrf.mxu0
          %4560 = vmatprep.mubr.f32.mxu0 0.0
          %4561 = vmatmul.mubr.f32.gmra.mxu0 %v4489
          %v4562 = vpop.f32.mrf.mxu0
          %v4563 = vadd.f32 %v4484, %v4562
          %v4564 = vpop.f32.mrf.mxu0
          %4565 = vdwg.mxu0
          %v4566 = vmul.f32 %v4558, 0.001
          %v4567 = vmul.f32 %v4563, 0.001
          %v4568 = vadd.f32 %v4290, %v4566
          %v4569 = vadd.f32 %v4291, %v4567
          %v4570 = vld [vmem:[%s138 + $0x2e8] sm:$0x1]
          %v4571 = vld [vmem:[%s138 + $0x2f0] sm:$0x1]
          %v4572 = vsel %vm3297, %v4568, 0.0
          %4573 = vadd.xlane.f32.xlu0 %v4572
          %v4574 = vpop.xlane.xlu0 %4573
          %v4575 = vsel %vm3301, %v4569, 0.0
          %4576 = vadd.xlane.f32.xlu0 %v4575
          %v4577 = vpop.xlane.xlu0 %4576
          %v4578 = vmul.f32 %v4574, %v3305
          %v4579 = vmul.f32 %v4577, %v3305
          %v4580 = vsub.f32 %v4568, %v4578
          %v4581 = vsub.f32 %v4569, %v4579
          %v4582 = vmul.f32 %v4580, %v4580
          %v4583 = vmul.f32 %v4581, %v4581
          %v4584 = vsel %vm3297, %v4582, 0.0
          %4585 = vadd.xlane.f32.xlu0 %v4584
          %v4586 = vpop.xlane.xlu0 %4585
          %v4587 = vsel %vm3301, %v4583, 0.0
          %4588 = vadd.xlane.f32.xlu0 %v4587
          %v4589 = vpop.xlane.xlu0 %4588
          %v4590 = vmul.f32 %v4586, %v3305
          %v4591 = vmul.f32 %v4589, %v3305
          %v4592 = vadd.f32 %v4590, 1e-05
          %v4593 = vadd.f32 %v4591, 1e-05
          %v4594 = vrsqrt.pop %v4592
          %v4595 = vrsqrt.pop %v4593
          %v4596 = vmul.f32 %v4580, %v4594
          %v4597 = vmul.f32 %v4581, %v4595
          %v4598 = vlaneseq
          %v4599 = vshrl.u32 %v4598, 7
          %v4600 = vsub.s32 0, %v4599
          %v4601 = vrot.slane %v4570, %v4600
          %v4602 = vmul.f32 %v4596, %v4601
          %v4603 = vmul.f32 %v4597, %v4601
          %v4604 = vlaneseq
          %v4605 = vshrl.u32 %v4604, 7
          %v4606 = vsub.s32 0, %v4605
          %v4607 = vrot.slane %v4571, %v4606
          %v4608 = vadd.f32 %v4602, %v4607
          %v4609 = vadd.f32 %v4603, %v4607
          %v4610 = vld [vmem:[%s138 + $0x2f8] sm:$0xff]
          %v4611 = vld [vmem:[%s138 + $0x300] sm:$0xff]
          %v4612 = vld [vmem:[%s138 + $0x308] sm:$0xff]
          %v4613 = vld [vmem:[%s138 + $0x310] sm:$0xff]
          %v4614 = vld [vmem:[%s138 + $0x318] sm:$0x1]
          %v4615 = vlaneseq
          %v4616 = vshrl.u32 %v4615, 7
          %v4617 = vsub.s32 0, %v4616
          %v4618 = vrot.slane %v4614, %v4617
          %v4620 = vsel %vm3297, %v4608, 0
          %v4623 = vsel %vm3297, %v4609, 0
          %4625 = vmatprep.subr.mxu0 0.0
          %4626 = vmatpush1.msra.mxu0 0.0
          %4627 = vmatprep.subr.mxu0 0.0
          %4628 = vmatpush1.msra.mxu0 0.0
          %4629 = vmatprep.subr.mxu0 0.0
          %4630 = vmatpush1.msra.mxu0 0.0
          %4631 = vmatprep.subr.mxu0 0.0
          %4632 = vmatpush1.msra.mxu0 0.0
          %4633 = vmatprep.subr.mxu0 0.0
          %4634 = vmatpush1.msra.mxu0 0.0
          %4635 = vmatprep.subr.mxu0 0.0
          %4636 = vmatpush1.msra.mxu0 0.0
          %4637 = vmatprep.subr.mxu0 0.0
          %4638 = vmatpush1.msra.mxu0 0.0
          %4639 = vmatprep.subr.mxu0 0.0
          %4640 = vmatpush1.msra.mxu0 0.0
          %4641 = vmatprep.subr.mxu0 0.0
          %4642 = vmatpush1.msra.mxu0 0.0
          %4643 = vmatprep.subr.mxu0 0.0
          %4644 = vmatpush1.msra.mxu0 0.0
          %4645 = vmatprep.subr.mxu0 0.0
          %4646 = vmatpush1.msra.mxu0 0.0
          %4647 = vmatprep.subr.mxu0 0.0
          %4648 = vmatpush1.msra.mxu0 0.0
          %4649 = vmatprep.subr.mxu0 0.0
          %4650 = vmatpush1.msra.mxu0 %v4613
          %4651 = vmatprep.subr.mxu0 0.0
          %4652 = vmatpush1.msra.mxu0 %v4612
          %4653 = vmatprep.subr.mxu0 0.0
          %4654 = vmatpush1.msra.mxu0 %v4611
          %4655 = vmatprep.subr.mxu0 0.0
          %4656 = vmatpush1.msra.mxu0 %v4610
          %4657 = vmatprep.subr.mxu0 0.0
          %4658 = vmatpush2.msra.mxu0 0.0
          %4659 = vmatprep.subr.mxu0 0.0
          %4660 = vmatpush2.msra.mxu0 0.0
          %4661 = vmatprep.subr.mxu0 0.0
          %4662 = vmatpush2.msra.mxu0 0.0
          %4663 = vmatprep.subr.mxu0 0.0
          %4664 = vmatpush2.msra.mxu0 0.0
          %4665 = vmatprep.subr.mxu0 0.0
          %4666 = vmatpush2.msra.mxu0 0.0
          %4667 = vmatprep.subr.mxu0 0.0
          %4668 = vmatpush2.msra.mxu0 0.0
          %4669 = vmatprep.subr.mxu0 0.0
          %4670 = vmatpush2.msra.mxu0 0.0
          %4671 = vmatprep.subr.mxu0 0.0
          %4672 = vmatpush2.msra.mxu0 0.0
          %4673 = vmatprep.subr.mxu0 0.0
          %4674 = vmatpush2.msra.mxu0 0.0
          %4675 = vmatprep.subr.mxu0 0.0
          %4676 = vmatpush2.msra.mxu0 0.0
          %4677 = vmatprep.subr.mxu0 0.0
          %4678 = vmatpush2.msra.mxu0 0.0
          %4679 = vmatprep.subr.mxu0 0.0
          %4680 = vmatpush2.msra.mxu0 0.0
          %4681 = vmatprep.subr.mxu0 0.0
          %4682 = vmatpush2.msra.mxu0 0.0
          %4683 = vmatprep.subr.mxu0 0.0
          %4684 = vmatpush2.msra.mxu0 0.0
          %4685 = vmatprep.subr.mxu0 0.0
          %4686 = vmatpush2.msra.mxu0 0.0
          %4687 = vmatprep.subr.mxu0 0.0
          %4688 = vmatpush2.msra.mxu0 0.0
          %4689 = vmatprep.mubr.f32.mxu0 0.0
          %4690 = vmatmul.mubr.f32.gmra.mxu0 %v4620
          %v4691 = vpop.f32.mrf.mxu0
          %v4692 = vadd.f32 %v4618, %v4691
          %v4693 = vpop.f32.mrf.mxu0
          %4694 = vmatprep.mubr.f32.mxu0 0.0
          %4695 = vmatmul.mubr.f32.gmra.mxu0 %v4623
          %v4696 = vpop.f32.mrf.mxu0
          %v4697 = vadd.f32 %v4618, %v4696
          %v4698 = vpop.f32.mrf.mxu0
          %4699 = vdwg.mxu0
          %v4700 = vld [vmem:[%s138 + $0x320] sm:$0xff]
          %v4701 = vld [vmem:[%s138 + $0x328] sm:$0xff]
          %v4702 = vld [vmem:[%s138 + $0x330] sm:$0xff]
          %v4703 = vld [vmem:[%s138 + $0x338] sm:$0xff]
          %v4704 = vld [vmem:[%s138 + $0x340] sm:$0x1]
          %v4705 = vlaneseq
          %v4706 = vshrl.u32 %v4705, 7
          %v4707 = vsub.s32 0, %v4706
          %v4708 = vrot.slane %v4704, %v4707
          %4709 = vmatprep.subr.mxu0 0.0
          %4710 = vmatpush1.msra.mxu0 0.0
          %4711 = vmatprep.subr.mxu0 0.0
          %4712 = vmatpush1.msra.mxu0 0.0
          %4713 = vmatprep.subr.mxu0 0.0
          %4714 = vmatpush1.msra.mxu0 0.0
          %4715 = vmatprep.subr.mxu0 0.0
          %4716 = vmatpush1.msra.mxu0 0.0
          %4717 = vmatprep.subr.mxu0 0.0
          %4718 = vmatpush1.msra.mxu0 0.0
          %4719 = vmatprep.subr.mxu0 0.0
          %4720 = vmatpush1.msra.mxu0 0.0
          %4721 = vmatprep.subr.mxu0 0.0
          %4722 = vmatpush1.msra.mxu0 0.0
          %4723 = vmatprep.subr.mxu0 0.0
          %4724 = vmatpush1.msra.mxu0 0.0
          %4725 = vmatprep.subr.mxu0 0.0
          %4726 = vmatpush1.msra.mxu0 0.0
          %4727 = vmatprep.subr.mxu0 0.0
          %4728 = vmatpush1.msra.mxu0 0.0
          %4729 = vmatprep.subr.mxu0 0.0
          %4730 = vmatpush1.msra.mxu0 0.0
          %4731 = vmatprep.subr.mxu0 0.0
          %4732 = vmatpush1.msra.mxu0 0.0
          %4733 = vmatprep.subr.mxu0 0.0
          %4734 = vmatpush1.msra.mxu0 %v4703
          %4735 = vmatprep.subr.mxu0 0.0
          %4736 = vmatpush1.msra.mxu0 %v4702
          %4737 = vmatprep.subr.mxu0 0.0
          %4738 = vmatpush1.msra.mxu0 %v4701
          %4739 = vmatprep.subr.mxu0 0.0
          %4740 = vmatpush1.msra.mxu0 %v4700
          %4741 = vmatprep.subr.mxu0 0.0
          %4742 = vmatpush2.msra.mxu0 0.0
          %4743 = vmatprep.subr.mxu0 0.0
          %4744 = vmatpush2.msra.mxu0 0.0
          %4745 = vmatprep.subr.mxu0 0.0
          %4746 = vmatpush2.msra.mxu0 0.0
          %4747 = vmatprep.subr.mxu0 0.0
          %4748 = vmatpush2.msra.mxu0 0.0
          %4749 = vmatprep.subr.mxu0 0.0
          %4750 = vmatpush2.msra.mxu0 0.0
          %4751 = vmatprep.subr.mxu0 0.0
          %4752 = vmatpush2.msra.mxu0 0.0
          %4753 = vmatprep.subr.mxu0 0.0
          %4754 = vmatpush2.msra.mxu0 0.0
          %4755 = vmatprep.subr.mxu0 0.0
          %4756 = vmatpush2.msra.mxu0 0.0
          %4757 = vmatprep.subr.mxu0 0.0
          %4758 = vmatpush2.msra.mxu0 0.0
          %4759 = vmatprep.subr.mxu0 0.0
          %4760 = vmatpush2.msra.mxu0 0.0
          %4761 = vmatprep.subr.mxu0 0.0
          %4762 = vmatpush2.msra.mxu0 0.0
          %4763 = vmatprep.subr.mxu0 0.0
          %4764 = vmatpush2.msra.mxu0 0.0
          %4765 = vmatprep.subr.mxu0 0.0
          %4766 = vmatpush2.msra.mxu0 0.0
          %4767 = vmatprep.subr.mxu0 0.0
          %4768 = vmatpush2.msra.mxu0 0.0
          %4769 = vmatprep.subr.mxu0 0.0
          %4770 = vmatpush2.msra.mxu0 0.0
          %4771 = vmatprep.subr.mxu0 0.0
          %4772 = vmatpush2.msra.mxu0 0.0
          %4773 = vmatprep.mubr.f32.mxu0 0.0
          %4774 = vmatmul.mubr.f32.gmra.mxu0 %v4620
          %v4775 = vpop.f32.mrf.mxu0
          %v4776 = vadd.f32 %v4708, %v4775
          %v4777 = vpop.f32.mrf.mxu0
          %4778 = vmatprep.mubr.f32.mxu0 0.0
          %4779 = vmatmul.mubr.f32.gmra.mxu0 %v4623
          %v4780 = vpop.f32.mrf.mxu0
          %v4781 = vadd.f32 %v4708, %v4780
          %v4782 = vpop.f32.mrf.mxu0
          %4783 = vdwg.mxu0
          %v4784 = vld [vmem:[%s138 + $0x348] sm:$0xff]
          %v4785 = vld [vmem:[%s138 + $0x350] sm:$0xff]
          %v4786 = vld [vmem:[%s138 + $0x358] sm:$0xff]
          %v4787 = vld [vmem:[%s138 + $0x360] sm:$0xff]
          %v4788 = vld [vmem:[%s138 + $0x368] sm:$0x1]
          %v4789 = vlaneseq
          %v4790 = vshrl.u32 %v4789, 7
          %v4791 = vsub.s32 0, %v4790
          %v4792 = vrot.slane %v4788, %v4791
          %4793 = vmatprep.subr.mxu0 0.0
          %4794 = vmatpush1.msra.mxu0 0.0
          %4795 = vmatprep.subr.mxu0 0.0
          %4796 = vmatpush1.msra.mxu0 0.0
          %4797 = vmatprep.subr.mxu0 0.0
          %4798 = vmatpush1.msra.mxu0 0.0
          %4799 = vmatprep.subr.mxu0 0.0
          %4800 = vmatpush1.msra.mxu0 0.0
          %4801 = vmatprep.subr.mxu0 0.0
          %4802 = vmatpush1.msra.mxu0 0.0
          %4803 = vmatprep.subr.mxu0 0.0
          %4804 = vmatpush1.msra.mxu0 0.0
          %4805 = vmatprep.subr.mxu0 0.0
          %4806 = vmatpush1.msra.mxu0 0.0
          %4807 = vmatprep.subr.mxu0 0.0
          %4808 = vmatpush1.msra.mxu0 0.0
          %4809 = vmatprep.subr.mxu0 0.0
          %4810 = vmatpush1.msra.mxu0 0.0
          %4811 = vmatprep.subr.mxu0 0.0
          %4812 = vmatpush1.msra.mxu0 0.0
          %4813 = vmatprep.subr.mxu0 0.0
          %4814 = vmatpush1.msra.mxu0 0.0
          %4815 = vmatprep.subr.mxu0 0.0
          %4816 = vmatpush1.msra.mxu0 0.0
          %4817 = vmatprep.subr.mxu0 0.0
          %4818 = vmatpush1.msra.mxu0 %v4787
          %4819 = vmatprep.subr.mxu0 0.0
          %4820 = vmatpush1.msra.mxu0 %v4786
          %4821 = vmatprep.subr.mxu0 0.0
          %4822 = vmatpush1.msra.mxu0 %v4785
          %4823 = vmatprep.subr.mxu0 0.0
          %4824 = vmatpush1.msra.mxu0 %v4784
          %4825 = vmatprep.subr.mxu0 0.0
          %4826 = vmatpush2.msra.mxu0 0.0
          %4827 = vmatprep.subr.mxu0 0.0
          %4828 = vmatpush2.msra.mxu0 0.0
          %4829 = vmatprep.subr.mxu0 0.0
          %4830 = vmatpush2.msra.mxu0 0.0
          %4831 = vmatprep.subr.mxu0 0.0
          %4832 = vmatpush2.msra.mxu0 0.0
          %4833 = vmatprep.subr.mxu0 0.0
          %4834 = vmatpush2.msra.mxu0 0.0
          %4835 = vmatprep.subr.mxu0 0.0
          %4836 = vmatpush2.msra.mxu0 0.0
          %4837 = vmatprep.subr.mxu0 0.0
          %4838 = vmatpush2.msra.mxu0 0.0
          %4839 = vmatprep.subr.mxu0 0.0
          %4840 = vmatpush2.msra.mxu0 0.0
          %4841 = vmatprep.subr.mxu0 0.0
          %4842 = vmatpush2.msra.mxu0 0.0
          %4843 = vmatprep.subr.mxu0 0.0
          %4844 = vmatpush2.msra.mxu0 0.0
          %4845 = vmatprep.subr.mxu0 0.0
          %4846 = vmatpush2.msra.mxu0 0.0
          %4847 = vmatprep.subr.mxu0 0.0
          %4848 = vmatpush2.msra.mxu0 0.0
          %4849 = vmatprep.subr.mxu0 0.0
          %4850 = vmatpush2.msra.mxu0 0.0
          %4851 = vmatprep.subr.mxu0 0.0
          %4852 = vmatpush2.msra.mxu0 0.0
          %4853 = vmatprep.subr.mxu0 0.0
          %4854 = vmatpush2.msra.mxu0 0.0
          %4855 = vmatprep.subr.mxu0 0.0
          %4856 = vmatpush2.msra.mxu0 0.0
          %4857 = vmatprep.mubr.f32.mxu0 0.0
          %4858 = vmatmul.mubr.f32.gmra.mxu0 %v4620
          %v4859 = vpop.f32.mrf.mxu0
          %v4860 = vadd.f32 %v4792, %v4859
          %v4861 = vpop.f32.mrf.mxu0
          %4862 = vmatprep.mubr.f32.mxu0 0.0
          %4863 = vmatmul.mubr.f32.gmra.mxu0 %v4623
          %v4864 = vpop.f32.mrf.mxu0
          %v4865 = vadd.f32 %v4792, %v4864
          %v4866 = vpop.f32.mrf.mxu0
          %4867 = vdwg.mxu0
          %v4870 = vrot.slane %v4776, 6
          %v4871 = vrot.slane %v4781, 6
          %v4872 = vsel %vm3645, %v4870, %v4871
          %v4875 = vrot.slane %v4776, 4
          %v4876 = vrot.slane %v4781, 4
          %v4877 = vsel %vm3651, %v4875, %v4876
          %v4880 = vrot.slane %v4776, 2
          %v4881 = vrot.slane %v4781, 2
          %v4882 = vsel %vm3657, %v4880, %v4881
          %v4885 = vsel %vm3645, %v4781, %v4870
          %v4886 = vsel %vm3651, %v4872, %v4875
          %v4887 = vsel %vm3657, %v4877, %v4880
          %v4888 = vmul.f32 %v4776, %v3338
          %v4889 = vmul.f32 %v4885, %v3339
          %v4890 = vmul.f32 %v4886, %v3340
          %v4891 = vmul.f32 %v4887, %v3341
          %v4892 = vmul.f32 %v4882, %v3342
          %v4895 = vrot.slane %v4860, 6
          %v4896 = vrot.slane %v4865, 6
          %v4897 = vsel %vm3645, %v4895, %v4896
          %v4900 = vrot.slane %v4860, 4
          %v4901 = vrot.slane %v4865, 4
          %v4902 = vsel %vm3651, %v4900, %v4901
          %v4905 = vrot.slane %v4860, 2
          %v4906 = vrot.slane %v4865, 2
          %v4907 = vsel %vm3657, %v4905, %v4906
          %v4910 = vsel %vm3645, %v4865, %v4895
          %v4911 = vsel %vm3651, %v4897, %v4900
          %v4912 = vsel %vm3657, %v4902, %v4905
          %v4913 = vmul.f32 %v4860, %v3338
          %v4914 = vmul.f32 %v4910, %v3339
          %v4915 = vmul.f32 %v4911, %v3340
          %v4916 = vmul.f32 %v4912, %v3341
          %v4917 = vmul.f32 %v4907, %v3342
          %v4919 = vsel %vm3297, %v4692, 0
          %v4922 = vsel %vm3297, %v4697, 0
          %v4925 = vsel %vm3297, %v4888, 0
          %v4928 = vsel %vm3297, %v4889, 0
          %v4931 = vsel %vm3297, %v4890, 0
          %v4934 = vsel %vm3297, %v4891, 0
          %v4937 = vsel %vm3297, %v4892, 0
          %4939 = vmatprep.subr.mxu0 0.0
          %4940 = vmatpush1.xpose.msra.mxu0 0.0
          %4941 = vmatprep.subr.mxu0 0.0
          %4942 = vmatpush1.xpose.msra.mxu0 0.0
          %4943 = vmatprep.subr.mxu0 0.0
          %4944 = vmatpush1.xpose.msra.mxu0 0.0
          %4945 = vmatprep.subr.mxu0 0.0
          %4946 = vmatpush1.xpose.msra.mxu0 0.0
          %4947 = vmatprep.subr.mxu0 0.0
          %4948 = vmatpush1.xpose.msra.mxu0 0.0
          %4949 = vmatprep.subr.mxu0 0.0
          %4950 = vmatpush1.xpose.msra.mxu0 0.0
          %4951 = vmatprep.subr.mxu0 0.0
          %4952 = vmatpush1.xpose.msra.mxu0 0.0
          %4953 = vmatprep.subr.mxu0 0.0
          %4954 = vmatpush1.xpose.msra.mxu0 0.0
          %4955 = vmatprep.subr.mxu0 0.0
          %4956 = vmatpush1.xpose.msra.mxu0 0.0
          %4957 = vmatprep.subr.mxu0 0.0
          %4958 = vmatpush1.xpose.msra.mxu0 0.0
          %4959 = vmatprep.subr.mxu0 0.0
          %4960 = vmatpush1.xpose.msra.mxu0 0.0
          %4961 = vmatprep.subr.mxu0 0.0
          %4962 = vmatpush1.xpose.msra.mxu0 %v4937
          %4963 = vmatprep.subr.mxu0 0.0
          %4964 = vmatpush1.xpose.msra.mxu0 %v4934
          %4965 = vmatprep.subr.mxu0 0.0
          %4966 = vmatpush1.xpose.msra.mxu0 %v4931
          %4967 = vmatprep.subr.mxu0 0.0
          %4968 = vmatpush1.xpose.msra.mxu0 %v4928
          %4969 = vmatprep.subr.mxu0 0.0
          %4970 = vmatpush1.xpose.msra.mxu0 %v4925
          %4971 = vmatprep.subr.mxu0 0.0
          %4972 = vmatpush2.xpose.msra.mxu0 0.0
          %4973 = vmatprep.subr.mxu0 0.0
          %4974 = vmatpush2.xpose.msra.mxu0 0.0
          %4975 = vmatprep.subr.mxu0 0.0
          %4976 = vmatpush2.xpose.msra.mxu0 0.0
          %4977 = vmatprep.subr.mxu0 0.0
          %4978 = vmatpush2.xpose.msra.mxu0 0.0
          %4979 = vmatprep.subr.mxu0 0.0
          %4980 = vmatpush2.xpose.msra.mxu0 0.0
          %4981 = vmatprep.subr.mxu0 0.0
          %4982 = vmatpush2.xpose.msra.mxu0 0.0
          %4983 = vmatprep.subr.mxu0 0.0
          %4984 = vmatpush2.xpose.msra.mxu0 0.0
          %4985 = vmatprep.subr.mxu0 0.0
          %4986 = vmatpush2.xpose.msra.mxu0 0.0
          %4987 = vmatprep.subr.mxu0 0.0
          %4988 = vmatpush2.xpose.msra.mxu0 0.0
          %4989 = vmatprep.subr.mxu0 0.0
          %4990 = vmatpush2.xpose.msra.mxu0 0.0
          %4991 = vmatprep.subr.mxu0 0.0
          %4992 = vmatpush2.xpose.msra.mxu0 0.0
          %4993 = vmatprep.subr.mxu0 0.0
          %4994 = vmatpush2.xpose.msra.mxu0 0.0
          %4995 = vmatprep.subr.mxu0 0.0
          %4996 = vmatpush2.xpose.msra.mxu0 0.0
          %4997 = vmatprep.subr.mxu0 0.0
          %4998 = vmatpush2.xpose.msra.mxu0 0.0
          %4999 = vmatprep.subr.mxu0 0.0
          %5000 = vmatpush2.xpose.msra.mxu0 0.0
          %5001 = vmatprep.subr.mxu0 0.0
          %5002 = vmatpush2.xpose.msra.mxu0 0.0
          %5003 = vmatprep.mubr.f32.mxu0 0.0
          %5004 = vmatmul.mubr.f32.gmra.mxu0 %v4919
          %v5005 = vpop.f32.mrf.mxu0
          %v5006 = vadd.f32 %v3343, %v5005
          %v5007 = vpop.f32.mrf.mxu0
          %5008 = vmatprep.mubr.f32.mxu0 0.0
          %5009 = vmatmul.mubr.f32.gmra.mxu0 %v4922
          %v5010 = vpop.f32.mrf.mxu0
          %v5011 = vadd.f32 %v3344, %v5010
          %v5012 = vpop.f32.mrf.mxu0
          %5013 = vdwg.mxu0
          %v5014 = vsel %vm3792, %v5006, -inf
          %5015 = vmax.xlane.f32.xlu0 %v5014
          %v5016 = vpop.xlane.xlu0 %5015
          %v5017 = vsel %vm3796, %v5011, -inf
          %5018 = vmax.xlane.f32.xlu0 %v5017
          %v5019 = vpop.xlane.xlu0 %5018
          %v5020 = vsub.f32 %v5006, %v5016
          %v5021 = vsub.f32 %v5011, %v5019
          %v5022 = vmul.f32 %v5020, 1.442695
          %v5023 = vpow.pop %v5022
          %v5024 = vmul.f32 %v5021, 1.442695
          %v5025 = vpow.pop %v5024
          %v5027 = vsel %vm3792, %v5023, 0
          %v5030 = vsel %vm3792, %v5025, 0
          %5032 = vmatprep.subr.mxu0 0.0
          %5033 = vmatpush1.msra.mxu0 0.0
          %5034 = vmatprep.subr.mxu0 0.0
          %5035 = vmatpush1.msra.mxu0 0.0
          %5036 = vmatprep.subr.mxu0 0.0
          %5037 = vmatpush1.msra.mxu0 0.0
          %5038 = vmatprep.subr.mxu0 0.0
          %5039 = vmatpush1.msra.mxu0 0.0
          %5040 = vmatprep.subr.mxu0 0.0
          %5041 = vmatpush1.msra.mxu0 0.0
          %5042 = vmatprep.subr.mxu0 0.0
          %5043 = vmatpush1.msra.mxu0 0.0
          %5044 = vmatprep.subr.mxu0 0.0
          %5045 = vmatpush1.msra.mxu0 0.0
          %5046 = vmatprep.subr.mxu0 0.0
          %5047 = vmatpush1.msra.mxu0 0.0
          %5048 = vmatprep.subr.mxu0 0.0
          %5049 = vmatpush1.msra.mxu0 0.0
          %5050 = vmatprep.subr.mxu0 0.0
          %5051 = vmatpush1.msra.mxu0 0.0
          %5052 = vmatprep.subr.mxu0 0.0
          %5053 = vmatpush1.msra.mxu0 0.0
          %5054 = vmatprep.subr.mxu0 0.0
          %5055 = vmatpush1.msra.mxu0 %v3342
          %5056 = vmatprep.subr.mxu0 0.0
          %5057 = vmatpush1.msra.mxu0 %v3341
          %5058 = vmatprep.subr.mxu0 0.0
          %5059 = vmatpush1.msra.mxu0 %v3340
          %5060 = vmatprep.subr.mxu0 0.0
          %5061 = vmatpush1.msra.mxu0 %v3339
          %5062 = vmatprep.subr.mxu0 0.0
          %5063 = vmatpush1.msra.mxu0 %v3338
          %5064 = vmatprep.subr.mxu0 0.0
          %5065 = vmatpush2.msra.mxu0 0.0
          %5066 = vmatprep.subr.mxu0 0.0
          %5067 = vmatpush2.msra.mxu0 0.0
          %5068 = vmatprep.subr.mxu0 0.0
          %5069 = vmatpush2.msra.mxu0 0.0
          %5070 = vmatprep.subr.mxu0 0.0
          %5071 = vmatpush2.msra.mxu0 0.0
          %5072 = vmatprep.subr.mxu0 0.0
          %5073 = vmatpush2.msra.mxu0 0.0
          %5074 = vmatprep.subr.mxu0 0.0
          %5075 = vmatpush2.msra.mxu0 0.0
          %5076 = vmatprep.subr.mxu0 0.0
          %5077 = vmatpush2.msra.mxu0 0.0
          %5078 = vmatprep.subr.mxu0 0.0
          %5079 = vmatpush2.msra.mxu0 0.0
          %5080 = vmatprep.subr.mxu0 0.0
          %5081 = vmatpush2.msra.mxu0 0.0
          %5082 = vmatprep.subr.mxu0 0.0
          %5083 = vmatpush2.msra.mxu0 0.0
          %5084 = vmatprep.subr.mxu0 0.0
          %5085 = vmatpush2.msra.mxu0 0.0
          %5086 = vmatprep.subr.mxu0 0.0
          %5087 = vmatpush2.msra.mxu0 0.0
          %5088 = vmatprep.subr.mxu0 0.0
          %5089 = vmatpush2.msra.mxu0 0.0
          %5090 = vmatprep.subr.mxu0 0.0
          %5091 = vmatpush2.msra.mxu0 0.0
          %5092 = vmatprep.subr.mxu0 0.0
          %5093 = vmatpush2.msra.mxu0 0.0
          %5094 = vmatprep.subr.mxu0 0.0
          %5095 = vmatpush2.msra.mxu0 0.0
          %5096 = vmatprep.mubr.f32.mxu0 0.0
          %5097 = vmatmul.mubr.f32.gmra.mxu0 %v5027
          %v5098 = vpop.f32.mrf.mxu0
          %v5099 = vadd.f32 0.0, %v5098
          %v5100 = vpop.f32.mrf.mxu0
          %5101 = vmatprep.mubr.f32.mxu0 0.0
          %5102 = vmatmul.mubr.f32.gmra.mxu0 %v5030
          %v5103 = vpop.f32.mrf.mxu0
          %v5104 = vadd.f32 0.0, %v5103
          %v5105 = vpop.f32.mrf.mxu0
          %5106 = vdwg.mxu0
          %5107 = vmatprep.subr.mxu0 0.0
          %5108 = vmatpush1.msra.mxu0 0.0
          %5109 = vmatprep.subr.mxu0 0.0
          %5110 = vmatpush1.msra.mxu0 0.0
          %5111 = vmatprep.subr.mxu0 0.0
          %5112 = vmatpush1.msra.mxu0 0.0
          %5113 = vmatprep.subr.mxu0 0.0
          %5114 = vmatpush1.msra.mxu0 0.0
          %5115 = vmatprep.subr.mxu0 0.0
          %5116 = vmatpush1.msra.mxu0 0.0
          %5117 = vmatprep.subr.mxu0 0.0
          %5118 = vmatpush1.msra.mxu0 0.0
          %5119 = vmatprep.subr.mxu0 0.0
          %5120 = vmatpush1.msra.mxu0 0.0
          %5121 = vmatprep.subr.mxu0 0.0
          %5122 = vmatpush1.msra.mxu0 0.0
          %5123 = vmatprep.subr.mxu0 0.0
          %5124 = vmatpush1.msra.mxu0 0.0
          %5125 = vmatprep.subr.mxu0 0.0
          %5126 = vmatpush1.msra.mxu0 0.0
          %5127 = vmatprep.subr.mxu0 0.0
          %5128 = vmatpush1.msra.mxu0 0.0
          %5129 = vmatprep.subr.mxu0 0.0
          %5130 = vmatpush1.msra.mxu0 %v4917
          %5131 = vmatprep.subr.mxu0 0.0
          %5132 = vmatpush1.msra.mxu0 %v4916
          %5133 = vmatprep.subr.mxu0 0.0
          %5134 = vmatpush1.msra.mxu0 %v4915
          %5135 = vmatprep.subr.mxu0 0.0
          %5136 = vmatpush1.msra.mxu0 %v4914
          %5137 = vmatprep.subr.mxu0 0.0
          %5138 = vmatpush1.msra.mxu0 %v4913
          %5139 = vmatprep.subr.mxu0 0.0
          %5140 = vmatpush2.msra.mxu0 0.0
          %5141 = vmatprep.subr.mxu0 0.0
          %5142 = vmatpush2.msra.mxu0 0.0
          %5143 = vmatprep.subr.mxu0 0.0
          %5144 = vmatpush2.msra.mxu0 0.0
          %5145 = vmatprep.subr.mxu0 0.0
          %5146 = vmatpush2.msra.mxu0 0.0
          %5147 = vmatprep.subr.mxu0 0.0
          %5148 = vmatpush2.msra.mxu0 0.0
          %5149 = vmatprep.subr.mxu0 0.0
          %5150 = vmatpush2.msra.mxu0 0.0
          %5151 = vmatprep.subr.mxu0 0.0
          %5152 = vmatpush2.msra.mxu0 0.0
          %5153 = vmatprep.subr.mxu0 0.0
          %5154 = vmatpush2.msra.mxu0 0.0
          %5155 = vmatprep.subr.mxu0 0.0
          %5156 = vmatpush2.msra.mxu0 0.0
          %5157 = vmatprep.subr.mxu0 0.0
          %5158 = vmatpush2.msra.mxu0 0.0
          %5159 = vmatprep.subr.mxu0 0.0
          %5160 = vmatpush2.msra.mxu0 0.0
          %5161 = vmatprep.subr.mxu0 0.0
          %5162 = vmatpush2.msra.mxu0 0.0
          %5163 = vmatprep.subr.mxu0 0.0
          %5164 = vmatpush2.msra.mxu0 0.0
          %5165 = vmatprep.subr.mxu0 0.0
          %5166 = vmatpush2.msra.mxu0 0.0
          %5167 = vmatprep.subr.mxu0 0.0
          %5168 = vmatpush2.msra.mxu0 0.0
          %5169 = vmatprep.subr.mxu0 0.0
          %5170 = vmatpush2.msra.mxu0 0.0
          %5171 = vmatprep.mubr.f32.mxu0 0.0
          %5172 = vmatmul.mubr.f32.gmra.mxu0 %v5027
          %v5173 = vpop.f32.mrf.mxu0
          %v5174 = vadd.f32 0.0, %v5173
          %v5175 = vpop.f32.mrf.mxu0
          %5176 = vmatprep.mubr.f32.mxu0 0.0
          %5177 = vmatmul.mubr.f32.gmra.mxu0 %v5030
          %v5178 = vpop.f32.mrf.mxu0
          %v5179 = vadd.f32 0.0, %v5178
          %v5180 = vpop.f32.mrf.mxu0
          %5181 = vdwg.mxu0
          %v5182 = vrcp.pop %v5099
          %v5183 = vmul.f32 %v5174, %v5182
          %v5184 = vrcp.pop %v5104
          %v5185 = vmul.f32 %v5179, %v5184
          %v5186 = vld [vmem:[%s138 + $0x370] sm:$0xff]
          %v5187 = vld [vmem:[%s138 + $0x378] sm:$0xff]
          %v5188 = vld [vmem:[%s138 + $0x380] sm:$0xff]
          %v5189 = vld [vmem:[%s138 + $0x388] sm:$0xff]
          %v5191 = vsel %vm3297, %v5183, 0
          %v5194 = vsel %vm3297, %v5185, 0
          %5196 = vmatprep.subr.mxu0 0.0
          %5197 = vmatpush1.msra.mxu0 0.0
          %5198 = vmatprep.subr.mxu0 0.0
          %5199 = vmatpush1.msra.mxu0 0.0
          %5200 = vmatprep.subr.mxu0 0.0
          %5201 = vmatpush1.msra.mxu0 0.0
          %5202 = vmatprep.subr.mxu0 0.0
          %5203 = vmatpush1.msra.mxu0 0.0
          %5204 = vmatprep.subr.mxu0 0.0
          %5205 = vmatpush1.msra.mxu0 0.0
          %5206 = vmatprep.subr.mxu0 0.0
          %5207 = vmatpush1.msra.mxu0 0.0
          %5208 = vmatprep.subr.mxu0 0.0
          %5209 = vmatpush1.msra.mxu0 0.0
          %5210 = vmatprep.subr.mxu0 0.0
          %5211 = vmatpush1.msra.mxu0 0.0
          %5212 = vmatprep.subr.mxu0 0.0
          %5213 = vmatpush1.msra.mxu0 0.0
          %5214 = vmatprep.subr.mxu0 0.0
          %5215 = vmatpush1.msra.mxu0 0.0
          %5216 = vmatprep.subr.mxu0 0.0
          %5217 = vmatpush1.msra.mxu0 0.0
          %5218 = vmatprep.subr.mxu0 0.0
          %5219 = vmatpush1.msra.mxu0 0.0
          %5220 = vmatprep.subr.mxu0 0.0
          %5221 = vmatpush1.msra.mxu0 %v5189
          %5222 = vmatprep.subr.mxu0 0.0
          %5223 = vmatpush1.msra.mxu0 %v5188
          %5224 = vmatprep.subr.mxu0 0.0
          %5225 = vmatpush1.msra.mxu0 %v5187
          %5226 = vmatprep.subr.mxu0 0.0
          %5227 = vmatpush1.msra.mxu0 %v5186
          %5228 = vmatprep.subr.mxu0 0.0
          %5229 = vmatpush2.msra.mxu0 0.0
          %5230 = vmatprep.subr.mxu0 0.0
          %5231 = vmatpush2.msra.mxu0 0.0
          %5232 = vmatprep.subr.mxu0 0.0
          %5233 = vmatpush2.msra.mxu0 0.0
          %5234 = vmatprep.subr.mxu0 0.0
          %5235 = vmatpush2.msra.mxu0 0.0
          %5236 = vmatprep.subr.mxu0 0.0
          %5237 = vmatpush2.msra.mxu0 0.0
          %5238 = vmatprep.subr.mxu0 0.0
          %5239 = vmatpush2.msra.mxu0 0.0
          %5240 = vmatprep.subr.mxu0 0.0
          %5241 = vmatpush2.msra.mxu0 0.0
          %5242 = vmatprep.subr.mxu0 0.0
          %5243 = vmatpush2.msra.mxu0 0.0
          %5244 = vmatprep.subr.mxu0 0.0
          %5245 = vmatpush2.msra.mxu0 0.0
          %5246 = vmatprep.subr.mxu0 0.0
          %5247 = vmatpush2.msra.mxu0 0.0
          %5248 = vmatprep.subr.mxu0 0.0
          %5249 = vmatpush2.msra.mxu0 0.0
          %5250 = vmatprep.subr.mxu0 0.0
          %5251 = vmatpush2.msra.mxu0 0.0
          %5252 = vmatprep.subr.mxu0 0.0
          %5253 = vmatpush2.msra.mxu0 0.0
          %5254 = vmatprep.subr.mxu0 0.0
          %5255 = vmatpush2.msra.mxu0 0.0
          %5256 = vmatprep.subr.mxu0 0.0
          %5257 = vmatpush2.msra.mxu0 0.0
          %5258 = vmatprep.subr.mxu0 0.0
          %5259 = vmatpush2.msra.mxu0 0.0
          %5260 = vmatprep.mubr.f32.mxu0 0.0
          %5261 = vmatmul.mubr.f32.gmra.mxu0 %v5191
          %v5262 = vpop.f32.mrf.mxu0
          %v5263 = vadd.f32 0.0, %v5262
          %v5264 = vpop.f32.mrf.mxu0
          %5265 = vmatprep.mubr.f32.mxu0 0.0
          %5266 = vmatmul.mubr.f32.gmra.mxu0 %v5194
          %v5267 = vpop.f32.mrf.mxu0
          %v5268 = vadd.f32 0.0, %v5267
          %v5269 = vpop.f32.mrf.mxu0
          %5270 = vdwg.mxu0
          %v5271 = vadd.f32 %v4568, %v5263
          %v5272 = vadd.f32 %v4569, %v5268
          %v5273 = vld [vmem:[%s138 + $0x390] sm:$0x1]
          %v5274 = vlaneseq
          %v5275 = vshrl.u32 %v5274, 7
          %v5276 = vsub.s32 0, %v5275
          %v5277 = vrot.slane %v5273, %v5276
          %v5278 = vadd.f32 %v5271, %v5277
          %v5279 = vadd.f32 %v5272, %v5277
          %v5280 = vld [vmem:[%s138 + $0x398] sm:$0x1]
          %v5281 = vld [vmem:[%s138 + $0x3a0] sm:$0x1]
          %v5282 = vsel %vm3297, %v5278, 0.0
          %5283 = vadd.xlane.f32.xlu0 %v5282
          %v5284 = vpop.xlane.xlu0 %5283
          %v5285 = vsel %vm3301, %v5279, 0.0
          %5286 = vadd.xlane.f32.xlu0 %v5285
          %v5287 = vpop.xlane.xlu0 %5286
          %v5288 = vmul.f32 %v5284, %v3305
          %v5289 = vmul.f32 %v5287, %v3305
          %v5290 = vsub.f32 %v5278, %v5288
          %v5291 = vsub.f32 %v5279, %v5289
          %v5292 = vmul.f32 %v5290, %v5290
          %v5293 = vmul.f32 %v5291, %v5291
          %v5294 = vsel %vm3297, %v5292, 0.0
          %5295 = vadd.xlane.f32.xlu0 %v5294
          %v5296 = vpop.xlane.xlu0 %5295
          %v5297 = vsel %vm3301, %v5293, 0.0
          %5298 = vadd.xlane.f32.xlu0 %v5297
          %v5299 = vpop.xlane.xlu0 %5298
          %v5300 = vmul.f32 %v5296, %v3305
          %v5301 = vmul.f32 %v5299, %v3305
          %v5302 = vadd.f32 %v5300, 1e-05
          %v5303 = vadd.f32 %v5301, 1e-05
          %v5304 = vrsqrt.pop %v5302
          %v5305 = vrsqrt.pop %v5303
          %v5306 = vmul.f32 %v5290, %v5304
          %v5307 = vmul.f32 %v5291, %v5305
          %v5308 = vlaneseq
          %v5309 = vshrl.u32 %v5308, 7
          %v5310 = vsub.s32 0, %v5309
          %v5311 = vrot.slane %v5280, %v5310
          %v5312 = vmul.f32 %v5306, %v5311
          %v5313 = vmul.f32 %v5307, %v5311
          %v5314 = vlaneseq
          %v5315 = vshrl.u32 %v5314, 7
          %v5316 = vsub.s32 0, %v5315
          %v5317 = vrot.slane %v5281, %v5316
          %v5318 = vadd.f32 %v5312, %v5317
          %v5319 = vadd.f32 %v5313, %v5317
          %v5320 = vld [vmem:[%s138 + $0x3a8] sm:$0xff]
          %v5321 = vld [vmem:[%s138 + $0x3b0] sm:$0xff]
          %v5322 = vld [vmem:[%s138 + $0x3b8] sm:$0xff]
          %v5323 = vld [vmem:[%s138 + $0x3c0] sm:$0xff]
          %v5324 = vld [vmem:[%s138 + $0x3c8] sm:$0x1]
          %v5325 = vlaneseq
          %v5326 = vshrl.u32 %v5325, 7
          %v5327 = vsub.s32 0, %v5326
          %v5328 = vrot.slane %v5324, %v5327
          %v5330 = vsel %vm3297, %v5318, 0
          %v5333 = vsel %vm3297, %v5319, 0
          %5335 = vmatprep.subr.mxu0 0.0
          %5336 = vmatpush1.msra.mxu0 0.0
          %5337 = vmatprep.subr.mxu0 0.0
          %5338 = vmatpush1.msra.mxu0 0.0
          %5339 = vmatprep.subr.mxu0 0.0
          %5340 = vmatpush1.msra.mxu0 0.0
          %5341 = vmatprep.subr.mxu0 0.0
          %5342 = vmatpush1.msra.mxu0 0.0
          %5343 = vmatprep.subr.mxu0 0.0
          %5344 = vmatpush1.msra.mxu0 0.0
          %5345 = vmatprep.subr.mxu0 0.0
          %5346 = vmatpush1.msra.mxu0 0.0
          %5347 = vmatprep.subr.mxu0 0.0
          %5348 = vmatpush1.msra.mxu0 0.0
          %5349 = vmatprep.subr.mxu0 0.0
          %5350 = vmatpush1.msra.mxu0 0.0
          %5351 = vmatprep.subr.mxu0 0.0
          %5352 = vmatpush1.msra.mxu0 0.0
          %5353 = vmatprep.subr.mxu0 0.0
          %5354 = vmatpush1.msra.mxu0 0.0
          %5355 = vmatprep.subr.mxu0 0.0
          %5356 = vmatpush1.msra.mxu0 0.0
          %5357 = vmatprep.subr.mxu0 0.0
          %5358 = vmatpush1.msra.mxu0 0.0
          %5359 = vmatprep.subr.mxu0 0.0
          %5360 = vmatpush1.msra.mxu0 %v5323
          %5361 = vmatprep.subr.mxu0 0.0
          %5362 = vmatpush1.msra.mxu0 %v5322
          %5363 = vmatprep.subr.mxu0 0.0
          %5364 = vmatpush1.msra.mxu0 %v5321
          %5365 = vmatprep.subr.mxu0 0.0
          %5366 = vmatpush1.msra.mxu0 %v5320
          %5367 = vmatprep.subr.mxu0 0.0
          %5368 = vmatpush2.msra.mxu0 0.0
          %5369 = vmatprep.subr.mxu0 0.0
          %5370 = vmatpush2.msra.mxu0 0.0
          %5371 = vmatprep.subr.mxu0 0.0
          %5372 = vmatpush2.msra.mxu0 0.0
          %5373 = vmatprep.subr.mxu0 0.0
          %5374 = vmatpush2.msra.mxu0 0.0
          %5375 = vmatprep.subr.mxu0 0.0
          %5376 = vmatpush2.msra.mxu0 0.0
          %5377 = vmatprep.subr.mxu0 0.0
          %5378 = vmatpush2.msra.mxu0 0.0
          %5379 = vmatprep.subr.mxu0 0.0
          %5380 = vmatpush2.msra.mxu0 0.0
          %5381 = vmatprep.subr.mxu0 0.0
          %5382 = vmatpush2.msra.mxu0 0.0
          %5383 = vmatprep.subr.mxu0 0.0
          %5384 = vmatpush2.msra.mxu0 0.0
          %5385 = vmatprep.subr.mxu0 0.0
          %5386 = vmatpush2.msra.mxu0 0.0
          %5387 = vmatprep.subr.mxu0 0.0
          %5388 = vmatpush2.msra.mxu0 0.0
          %5389 = vmatprep.subr.mxu0 0.0
          %5390 = vmatpush2.msra.mxu0 0.0
          %5391 = vmatprep.subr.mxu0 0.0
          %5392 = vmatpush2.msra.mxu0 0.0
          %5393 = vmatprep.subr.mxu0 0.0
          %5394 = vmatpush2.msra.mxu0 0.0
          %5395 = vmatprep.subr.mxu0 0.0
          %5396 = vmatpush2.msra.mxu0 0.0
          %5397 = vmatprep.subr.mxu0 0.0
          %5398 = vmatpush2.msra.mxu0 0.0
          %5399 = vmatprep.mubr.f32.mxu0 0.0
          %5400 = vmatmul.mubr.f32.gmra.mxu0 %v5330
          %v5401 = vpop.f32.mrf.mxu0
          %v5402 = vadd.f32 %v5328, %v5401
          %v5403 = vpop.f32.mrf.mxu0
          %5404 = vmatprep.mubr.f32.mxu0 0.0
          %5405 = vmatmul.mubr.f32.gmra.mxu0 %v5333
          %v5406 = vpop.f32.mrf.mxu0
          %v5407 = vadd.f32 %v5328, %v5406
          %v5408 = vpop.f32.mrf.mxu0
          %5409 = vdwg.mxu0
          %v5410 = vmul.f32 %v5402, 1.702
          %v5411 = vmul.f32 %v5407, 1.702
          %v5412 = vxor.u32 %v5410, 2147483648
          %v5413 = vxor.u32 %v5411, 2147483648
          %v5414 = vmul.f32 %v5412, 1.442695
          %v5415 = vpow.pop %v5414
          %v5416 = vmul.f32 %v5413, 1.442695
          %v5417 = vpow.pop %v5416
          %v5418 = vadd.f32 %v5415, 1.0
          %v5419 = vadd.f32 %v5417, 1.0
          %v5420 = vrcp.pop %v5418
          %v5421 = vmul.f32 1.0, %v5420
          %v5422 = vrcp.pop %v5419
          %v5423 = vmul.f32 1.0, %v5422
          %v5424 = vmul.f32 %v5402, %v5421
          %v5425 = vmul.f32 %v5407, %v5423
          %v5426 = vld [vmem:[%s138 + $0x3d0] sm:$0xff]
          %v5427 = vld [vmem:[%s138 + $0x3d8] sm:$0xff]
          %v5428 = vld [vmem:[%s138 + $0x3e0] sm:$0xff]
          %v5429 = vld [vmem:[%s138 + $0x3e8] sm:$0xff]
          %v5430 = vld [vmem:[%s138 + $0x3f0] sm:$0x1]
          %v5431 = vlaneseq
          %v5432 = vshrl.u32 %v5431, 7
          %v5433 = vsub.s32 0, %v5432
          %v5434 = vrot.slane %v5430, %v5433
          %5435 = vmatprep.subr.mxu0 0.0
          %5436 = vmatpush1.xpose.msra.mxu0 0.0
          %5437 = vmatprep.subr.mxu0 0.0
          %5438 = vmatpush1.xpose.msra.mxu0 0.0
          %5439 = vmatprep.subr.mxu0 0.0
          %5440 = vmatpush1.xpose.msra.mxu0 0.0
          %5441 = vmatprep.subr.mxu0 0.0
          %5442 = vmatpush1.xpose.msra.mxu0 0.0
          %5443 = vmatprep.subr.mxu0 0.0
          %5444 = vmatpush1.xpose.msra.mxu0 0.0
          %5445 = vmatprep.subr.mxu0 0.0
          %5446 = vmatpush1.xpose.msra.mxu0 0.0
          %5447 = vmatprep.subr.mxu0 0.0
          %5448 = vmatpush1.xpose.msra.mxu0 0.0
          %5449 = vmatprep.subr.mxu0 0.0
          %5450 = vmatpush1.xpose.msra.mxu0 0.0
          %5451 = vmatprep.subr.mxu0 0.0
          %5452 = vmatpush1.xpose.msra.mxu0 0.0
          %5453 = vmatprep.subr.mxu0 0.0
          %5454 = vmatpush1.xpose.msra.mxu0 0.0
          %5455 = vmatprep.subr.mxu0 0.0
          %5456 = vmatpush1.xpose.msra.mxu0 0.0
          %5457 = vmatprep.subr.mxu0 0.0
          %5458 = vmatpush1.xpose.msra.mxu0 0.0
          %5459 = vmatprep.subr.mxu0 0.0
          %5460 = vmatpush1.xpose.msra.mxu0 %v5429
          %5461 = vmatprep.subr.mxu0 0.0
          %5462 = vmatpush1.xpose.msra.mxu0 %v5428
          %5463 = vmatprep.subr.mxu0 0.0
          %5464 = vmatpush1.xpose.msra.mxu0 %v5427
          %5465 = vmatprep.subr.mxu0 0.0
          %5466 = vmatpush1.xpose.msra.mxu0 %v5426
          %5467 = vmatprep.subr.mxu0 0.0
          %5468 = vmatpush2.xpose.msra.mxu0 0.0
          %5469 = vmatprep.subr.mxu0 0.0
          %5470 = vmatpush2.xpose.msra.mxu0 0.0
          %5471 = vmatprep.subr.mxu0 0.0
          %5472 = vmatpush2.xpose.msra.mxu0 0.0
          %5473 = vmatprep.subr.mxu0 0.0
          %5474 = vmatpush2.xpose.msra.mxu0 0.0
          %5475 = vmatprep.subr.mxu0 0.0
          %5476 = vmatpush2.xpose.msra.mxu0 0.0
          %5477 = vmatprep.subr.mxu0 0.0
          %5478 = vmatpush2.xpose.msra.mxu0 0.0
          %5479 = vmatprep.subr.mxu0 0.0
          %5480 = vmatpush2.xpose.msra.mxu0 0.0
          %5481 = vmatprep.subr.mxu0 0.0
          %5482 = vmatpush2.xpose.msra.mxu0 0.0
          %5483 = vmatprep.subr.mxu0 0.0
          %5484 = vmatpush2.xpose.msra.mxu0 0.0
          %5485 = vmatprep.subr.mxu0 0.0
          %5486 = vmatpush2.xpose.msra.mxu0 0.0
          %5487 = vmatprep.subr.mxu0 0.0
          %5488 = vmatpush2.xpose.msra.mxu0 0.0
          %5489 = vmatprep.subr.mxu0 0.0
          %5490 = vmatpush2.xpose.msra.mxu0 0.0
          %5491 = vmatprep.subr.mxu0 0.0
          %5492 = vmatpush2.xpose.msra.mxu0 0.0
          %5493 = vmatprep.subr.mxu0 0.0
          %5494 = vmatpush2.xpose.msra.mxu0 0.0
          %5495 = vmatprep.subr.mxu0 0.0
          %5496 = vmatpush2.xpose.msra.mxu0 0.0
          %5497 = vmatprep.subr.mxu0 0.0
          %5498 = vmatpush2.xpose.msra.mxu0 0.0
          %5499 = vmatprep.mubr.f32.mxu0 0.0
          %5500 = vmatmul.mubr.f32.gmra.mxu0 %v5424
          %v5501 = vpop.f32.mrf.mxu0
          %v5502 = vadd.f32 %v5434, %v5501
          %v5503 = vpop.f32.mrf.mxu0
          %5504 = vmatprep.mubr.f32.mxu0 0.0
          %5505 = vmatmul.mubr.f32.gmra.mxu0 %v5425
          %v5506 = vpop.f32.mrf.mxu0
          %v5507 = vadd.f32 %v5434, %v5506
          %v5508 = vpop.f32.mrf.mxu0
          %5509 = vdwg.mxu0
          %v5510 = vadd.f32 %v5278, %v5502
          %v5511 = vadd.f32 %v5279, %v5507
          %v5512 = vld [vmem:[%s138 + $0x3f8] sm:$0xff]
          %v5513 = vld [vmem:[%s138 + $0x400] sm:$0xff]
          %v5514 = vld [vmem:[%s138 + $0x408] sm:$0xff]
          %v5515 = vld [vmem:[%s138 + $0x410] sm:$0xff]
          %v5516 = vld [vmem:[%s138 + $0x418] sm:$0x1]
          %v5517 = vlaneseq
          %v5518 = vshrl.u32 %v5517, 7
          %v5519 = vsub.s32 0, %v5518
          %v5520 = vrot.slane %v5516, %v5519
          %v5522 = vsel %vm3297, %v5510, 0
          %v5525 = vsel %vm3297, %v5511, 0
          %5527 = vmatprep.subr.mxu0 0.0
          %5528 = vmatpush1.msra.mxu0 0.0
          %5529 = vmatprep.subr.mxu0 0.0
          %5530 = vmatpush1.msra.mxu0 0.0
          %5531 = vmatprep.subr.mxu0 0.0
          %5532 = vmatpush1.msra.mxu0 0.0
          %5533 = vmatprep.subr.mxu0 0.0
          %5534 = vmatpush1.msra.mxu0 0.0
          %5535 = vmatprep.subr.mxu0 0.0
          %5536 = vmatpush1.msra.mxu0 0.0
          %5537 = vmatprep.subr.mxu0 0.0
          %5538 = vmatpush1.msra.mxu0 0.0
          %5539 = vmatprep.subr.mxu0 0.0
          %5540 = vmatpush1.msra.mxu0 0.0
          %5541 = vmatprep.subr.mxu0 0.0
          %5542 = vmatpush1.msra.mxu0 0.0
          %5543 = vmatprep.subr.mxu0 0.0
          %5544 = vmatpush1.msra.mxu0 0.0
          %5545 = vmatprep.subr.mxu0 0.0
          %5546 = vmatpush1.msra.mxu0 0.0
          %5547 = vmatprep.subr.mxu0 0.0
          %5548 = vmatpush1.msra.mxu0 0.0
          %5549 = vmatprep.subr.mxu0 0.0
          %5550 = vmatpush1.msra.mxu0 0.0
          %5551 = vmatprep.subr.mxu0 0.0
          %5552 = vmatpush1.msra.mxu0 %v5515
          %5553 = vmatprep.subr.mxu0 0.0
          %5554 = vmatpush1.msra.mxu0 %v5514
          %5555 = vmatprep.subr.mxu0 0.0
          %5556 = vmatpush1.msra.mxu0 %v5513
          %5557 = vmatprep.subr.mxu0 0.0
          %5558 = vmatpush1.msra.mxu0 %v5512
          %5559 = vmatprep.subr.mxu0 0.0
          %5560 = vmatpush2.msra.mxu0 0.0
          %5561 = vmatprep.subr.mxu0 0.0
          %5562 = vmatpush2.msra.mxu0 0.0
          %5563 = vmatprep.subr.mxu0 0.0
          %5564 = vmatpush2.msra.mxu0 0.0
          %5565 = vmatprep.subr.mxu0 0.0
          %5566 = vmatpush2.msra.mxu0 0.0
          %5567 = vmatprep.subr.mxu0 0.0
          %5568 = vmatpush2.msra.mxu0 0.0
          %5569 = vmatprep.subr.mxu0 0.0
          %5570 = vmatpush2.msra.mxu0 0.0
          %5571 = vmatprep.subr.mxu0 0.0
          %5572 = vmatpush2.msra.mxu0 0.0
          %5573 = vmatprep.subr.mxu0 0.0
          %5574 = vmatpush2.msra.mxu0 0.0
          %5575 = vmatprep.subr.mxu0 0.0
          %5576 = vmatpush2.msra.mxu0 0.0
          %5577 = vmatprep.subr.mxu0 0.0
          %5578 = vmatpush2.msra.mxu0 0.0
          %5579 = vmatprep.subr.mxu0 0.0
          %5580 = vmatpush2.msra.mxu0 0.0
          %5581 = vmatprep.subr.mxu0 0.0
          %5582 = vmatpush2.msra.mxu0 0.0
          %5583 = vmatprep.subr.mxu0 0.0
          %5584 = vmatpush2.msra.mxu0 0.0
          %5585 = vmatprep.subr.mxu0 0.0
          %5586 = vmatpush2.msra.mxu0 0.0
          %5587 = vmatprep.subr.mxu0 0.0
          %5588 = vmatpush2.msra.mxu0 0.0
          %5589 = vmatprep.subr.mxu0 0.0
          %5590 = vmatpush2.msra.mxu0 0.0
          %5591 = vmatprep.mubr.f32.mxu0 0.0
          %5592 = vmatmul.mubr.f32.gmra.mxu0 %v5522
          %v5593 = vpop.f32.mrf.mxu0
          %v5594 = vadd.f32 %v5520, %v5593
          %v5595 = vpop.f32.mrf.mxu0
          %5596 = vmatprep.mubr.f32.mxu0 0.0
          %5597 = vmatmul.mubr.f32.gmra.mxu0 %v5525
          %v5598 = vpop.f32.mrf.mxu0
          %v5599 = vadd.f32 %v5520, %v5598
          %v5600 = vpop.f32.mrf.mxu0
          %5601 = vdwg.mxu0
          %v5602 = vmax.f32 %v5594, 0.0
          %v5603 = vmax.f32 %v5599, 0.0
          %v5604 = vld [vmem:[%s138 + $0x420] sm:$0xff]
          %v5605 = vld [vmem:[%s138 + $0x428] sm:$0xff]
          %v5606 = vld [vmem:[%s138 + $0x430] sm:$0xff]
          %v5607 = vld [vmem:[%s138 + $0x438] sm:$0xff]
          %v5608 = vld [vmem:[%s138 + $0x440] sm:$0x1]
          %v5609 = vlaneseq
          %v5610 = vshrl.u32 %v5609, 7
          %v5611 = vsub.s32 0, %v5610
          %v5612 = vrot.slane %v5608, %v5611
          %v5614 = vsel %vm3297, %v5602, 0
          %v5617 = vsel %vm3297, %v5603, 0
          %5619 = vmatprep.subr.mxu0 0.0
          %5620 = vmatpush1.msra.mxu0 0.0
          %5621 = vmatprep.subr.mxu0 0.0
          %5622 = vmatpush1.msra.mxu0 0.0
          %5623 = vmatprep.subr.mxu0 0.0
          %5624 = vmatpush1.msra.mxu0 0.0
          %5625 = vmatprep.subr.mxu0 0.0
          %5626 = vmatpush1.msra.mxu0 0.0
          %5627 = vmatprep.subr.mxu0 0.0
          %5628 = vmatpush1.msra.mxu0 0.0
          %5629 = vmatprep.subr.mxu0 0.0
          %5630 = vmatpush1.msra.mxu0 0.0
          %5631 = vmatprep.subr.mxu0 0.0
          %5632 = vmatpush1.msra.mxu0 0.0
          %5633 = vmatprep.subr.mxu0 0.0
          %5634 = vmatpush1.msra.mxu0 0.0
          %5635 = vmatprep.subr.mxu0 0.0
          %5636 = vmatpush1.msra.mxu0 0.0
          %5637 = vmatprep.subr.mxu0 0.0
          %5638 = vmatpush1.msra.mxu0 0.0
          %5639 = vmatprep.subr.mxu0 0.0
          %5640 = vmatpush1.msra.mxu0 0.0
          %5641 = vmatprep.subr.mxu0 0.0
          %5642 = vmatpush1.msra.mxu0 0.0
          %5643 = vmatprep.subr.mxu0 0.0
          %5644 = vmatpush1.msra.mxu0 %v5607
          %5645 = vmatprep.subr.mxu0 0.0
          %5646 = vmatpush1.msra.mxu0 %v5606
          %5647 = vmatprep.subr.mxu0 0.0
          %5648 = vmatpush1.msra.mxu0 %v5605
          %5649 = vmatprep.subr.mxu0 0.0
          %5650 = vmatpush1.msra.mxu0 %v5604
          %5651 = vmatprep.subr.mxu0 0.0
          %5652 = vmatpush2.msra.mxu0 0.0
          %5653 = vmatprep.subr.mxu0 0.0
          %5654 = vmatpush2.msra.mxu0 0.0
          %5655 = vmatprep.subr.mxu0 0.0
          %5656 = vmatpush2.msra.mxu0 0.0
          %5657 = vmatprep.subr.mxu0 0.0
          %5658 = vmatpush2.msra.mxu0 0.0
          %5659 = vmatprep.subr.mxu0 0.0
          %5660 = vmatpush2.msra.mxu0 0.0
          %5661 = vmatprep.subr.mxu0 0.0
          %5662 = vmatpush2.msra.mxu0 0.0
          %5663 = vmatprep.subr.mxu0 0.0
          %5664 = vmatpush2.msra.mxu0 0.0
          %5665 = vmatprep.subr.mxu0 0.0
          %5666 = vmatpush2.msra.mxu0 0.0
          %5667 = vmatprep.subr.mxu0 0.0
          %5668 = vmatpush2.msra.mxu0 0.0
          %5669 = vmatprep.subr.mxu0 0.0
          %5670 = vmatpush2.msra.mxu0 0.0
          %5671 = vmatprep.subr.mxu0 0.0
          %5672 = vmatpush2.msra.mxu0 0.0
          %5673 = vmatprep.subr.mxu0 0.0
          %5674 = vmatpush2.msra.mxu0 0.0
          %5675 = vmatprep.subr.mxu0 0.0
          %5676 = vmatpush2.msra.mxu0 0.0
          %5677 = vmatprep.subr.mxu0 0.0
          %5678 = vmatpush2.msra.mxu0 0.0
          %5679 = vmatprep.subr.mxu0 0.0
          %5680 = vmatpush2.msra.mxu0 0.0
          %5681 = vmatprep.subr.mxu0 0.0
          %5682 = vmatpush2.msra.mxu0 0.0
          %5683 = vmatprep.mubr.f32.mxu0 0.0
          %5684 = vmatmul.mubr.f32.gmra.mxu0 %v5614
          %v5685 = vpop.f32.mrf.mxu0
          %v5686 = vadd.f32 %v5612, %v5685
          %v5687 = vpop.f32.mrf.mxu0
          %5688 = vmatprep.mubr.f32.mxu0 0.0
          %5689 = vmatmul.mubr.f32.gmra.mxu0 %v5617
          %v5690 = vpop.f32.mrf.mxu0
          %v5691 = vadd.f32 %v5612, %v5690
          %v5692 = vpop.f32.mrf.mxu0
          %5693 = vdwg.mxu0
          %v5694 = vmax.f32 %v5686, 0.0
          %v5695 = vmax.f32 %v5691, 0.0
          %v5696 = vld [vmem:[%s138 + $0x448] sm:$0xff]
          %v5697 = vld [vmem:[%s138 + $0x450] sm:$0xff]
          %v5698 = vld [vmem:[%s138 + $0x458] sm:$0xff]
          %v5699 = vld [vmem:[%s138 + $0x460] sm:$0xff]
          %v5700 = vld [vmem:[%s138 + $0x468] sm:$0x1]
          %v5701 = vlaneseq
          %v5702 = vshrl.u32 %v5701, 7
          %v5703 = vsub.s32 0, %v5702
          %v5704 = vrot.slane %v5700, %v5703
          %v5706 = vsel %vm3297, %v5694, 0
          %v5709 = vsel %vm3297, %v5695, 0
          %5711 = vmatprep.subr.mxu0 0.0
          %5712 = vmatpush1.msra.mxu0 0.0
          %5713 = vmatprep.subr.mxu0 0.0
          %5714 = vmatpush1.msra.mxu0 0.0
          %5715 = vmatprep.subr.mxu0 0.0
          %5716 = vmatpush1.msra.mxu0 0.0
          %5717 = vmatprep.subr.mxu0 0.0
          %5718 = vmatpush1.msra.mxu0 0.0
          %5719 = vmatprep.subr.mxu0 0.0
          %5720 = vmatpush1.msra.mxu0 0.0
          %5721 = vmatprep.subr.mxu0 0.0
          %5722 = vmatpush1.msra.mxu0 0.0
          %5723 = vmatprep.subr.mxu0 0.0
          %5724 = vmatpush1.msra.mxu0 0.0
          %5725 = vmatprep.subr.mxu0 0.0
          %5726 = vmatpush1.msra.mxu0 0.0
          %5727 = vmatprep.subr.mxu0 0.0
          %5728 = vmatpush1.msra.mxu0 0.0
          %5729 = vmatprep.subr.mxu0 0.0
          %5730 = vmatpush1.msra.mxu0 0.0
          %5731 = vmatprep.subr.mxu0 0.0
          %5732 = vmatpush1.msra.mxu0 0.0
          %5733 = vmatprep.subr.mxu0 0.0
          %5734 = vmatpush1.msra.mxu0 0.0
          %5735 = vmatprep.subr.mxu0 0.0
          %5736 = vmatpush1.msra.mxu0 %v5699
          %5737 = vmatprep.subr.mxu0 0.0
          %5738 = vmatpush1.msra.mxu0 %v5698
          %5739 = vmatprep.subr.mxu0 0.0
          %5740 = vmatpush1.msra.mxu0 %v5697
          %5741 = vmatprep.subr.mxu0 0.0
          %5742 = vmatpush1.msra.mxu0 %v5696
          %5743 = vmatprep.subr.mxu0 0.0
          %5744 = vmatpush2.msra.mxu0 0.0
          %5745 = vmatprep.subr.mxu0 0.0
          %5746 = vmatpush2.msra.mxu0 0.0
          %5747 = vmatprep.subr.mxu0 0.0
          %5748 = vmatpush2.msra.mxu0 0.0
          %5749 = vmatprep.subr.mxu0 0.0
          %5750 = vmatpush2.msra.mxu0 0.0
          %5751 = vmatprep.subr.mxu0 0.0
          %5752 = vmatpush2.msra.mxu0 0.0
          %5753 = vmatprep.subr.mxu0 0.0
          %5754 = vmatpush2.msra.mxu0 0.0
          %5755 = vmatprep.subr.mxu0 0.0
          %5756 = vmatpush2.msra.mxu0 0.0
          %5757 = vmatprep.subr.mxu0 0.0
          %5758 = vmatpush2.msra.mxu0 0.0
          %5759 = vmatprep.subr.mxu0 0.0
          %5760 = vmatpush2.msra.mxu0 0.0
          %5761 = vmatprep.subr.mxu0 0.0
          %5762 = vmatpush2.msra.mxu0 0.0
          %5763 = vmatprep.subr.mxu0 0.0
          %5764 = vmatpush2.msra.mxu0 0.0
          %5765 = vmatprep.subr.mxu0 0.0
          %5766 = vmatpush2.msra.mxu0 0.0
          %5767 = vmatprep.subr.mxu0 0.0
          %5768 = vmatpush2.msra.mxu0 0.0
          %5769 = vmatprep.subr.mxu0 0.0
          %5770 = vmatpush2.msra.mxu0 0.0
          %5771 = vmatprep.subr.mxu0 0.0
          %5772 = vmatpush2.msra.mxu0 0.0
          %5773 = vmatprep.subr.mxu0 0.0
          %5774 = vmatpush2.msra.mxu0 0.0
          %5775 = vmatprep.mubr.f32.mxu0 0.0
          %5776 = vmatmul.mubr.f32.gmra.mxu0 %v5706
          %v5777 = vpop.f32.mrf.mxu0
          %v5778 = vadd.f32 %v5704, %v5777
          %v5779 = vpop.f32.mrf.mxu0
          %5780 = vmatprep.mubr.f32.mxu0 0.0
          %5781 = vmatmul.mubr.f32.gmra.mxu0 %v5709
          %v5782 = vpop.f32.mrf.mxu0
          %v5783 = vadd.f32 %v5704, %v5782
          %v5784 = vpop.f32.mrf.mxu0
          %5785 = vdwg.mxu0
          %v5786 = vmul.f32 %v5778, 0.001
          %v5787 = vmul.f32 %v5783, 0.001
          %v5788 = vadd.f32 %v5510, %v5786
          %v5789 = vadd.f32 %v5511, %v5787
          %v5790 = vld [vmem:[%s138 + $0xe0] sm:$0xff]
          %vm5791 = vcmask 80896
          %v5793 = vsel %vm5791, %v5790, 0
          %v5796 = vsel %vm3645, %v5789, 0
          %5798 = vmatprep.subr.mxu0 0.0
          %5799 = vmatpush1.msra.mxu0 0.0
          %5800 = vmatprep.subr.mxu0 0.0
          %5801 = vmatpush1.msra.mxu0 0.0
          %5802 = vmatprep.subr.mxu0 0.0
          %5803 = vmatpush1.msra.mxu0 0.0
          %5804 = vmatprep.subr.mxu0 0.0
          %5805 = vmatpush1.msra.mxu0 0.0
          %5806 = vmatprep.subr.mxu0 0.0
          %5807 = vmatpush1.msra.mxu0 0.0
          %5808 = vmatprep.subr.mxu0 0.0
          %5809 = vmatpush1.msra.mxu0 0.0
          %5810 = vmatprep.subr.mxu0 0.0
          %5811 = vmatpush1.msra.mxu0 0.0
          %5812 = vmatprep.subr.mxu0 0.0
          %5813 = vmatpush1.msra.mxu0 0.0
          %5814 = vmatprep.subr.mxu0 0.0
          %5815 = vmatpush1.msra.mxu0 0.0
          %5816 = vmatprep.subr.mxu0 0.0
          %5817 = vmatpush1.msra.mxu0 0.0
          %5818 = vmatprep.subr.mxu0 0.0
          %5819 = vmatpush1.msra.mxu0 0.0
          %5820 = vmatprep.subr.mxu0 0.0
          %5821 = vmatpush1.msra.mxu0 0.0
          %5822 = vmatprep.subr.mxu0 0.0
          %5823 = vmatpush1.msra.mxu0 0.0
          %5824 = vmatprep.subr.mxu0 0.0
          %5825 = vmatpush1.msra.mxu0 0.0
          %5826 = vmatprep.subr.mxu0 0.0
          %5827 = vmatpush1.msra.mxu0 %v5796
          %5828 = vmatprep.subr.mxu0 0.0
          %5829 = vmatpush1.msra.mxu0 %v5788
          %5830 = vmatprep.subr.mxu0 0.0
          %5831 = vmatpush2.msra.mxu0 0.0
          %5832 = vmatprep.subr.mxu0 0.0
          %5833 = vmatpush2.msra.mxu0 0.0
          %5834 = vmatprep.subr.mxu0 0.0
          %5835 = vmatpush2.msra.mxu0 0.0
          %5836 = vmatprep.subr.mxu0 0.0
          %5837 = vmatpush2.msra.mxu0 0.0
          %5838 = vmatprep.subr.mxu0 0.0
          %5839 = vmatpush2.msra.mxu0 0.0
          %5840 = vmatprep.subr.mxu0 0.0
          %5841 = vmatpush2.msra.mxu0 0.0
          %5842 = vmatprep.subr.mxu0 0.0
          %5843 = vmatpush2.msra.mxu0 0.0
          %5844 = vmatprep.subr.mxu0 0.0
          %5845 = vmatpush2.msra.mxu0 0.0
          %5846 = vmatprep.subr.mxu0 0.0
          %5847 = vmatpush2.msra.mxu0 0.0
          %5848 = vmatprep.subr.mxu0 0.0
          %5849 = vmatpush2.msra.mxu0 0.0
          %5850 = vmatprep.subr.mxu0 0.0
          %5851 = vmatpush2.msra.mxu0 0.0
          %5852 = vmatprep.subr.mxu0 0.0
          %5853 = vmatpush2.msra.mxu0 0.0
          %5854 = vmatprep.subr.mxu0 0.0
          %5855 = vmatpush2.msra.mxu0 0.0
          %5856 = vmatprep.subr.mxu0 0.0
          %5857 = vmatpush2.msra.mxu0 0.0
          %5858 = vmatprep.subr.mxu0 0.0
          %5859 = vmatpush2.msra.mxu0 0.0
          %5860 = vmatprep.subr.mxu0 0.0
          %5861 = vmatpush2.msra.mxu0 0.0
          %5862 = vmatprep.mubr.f32.mxu0 0.0
          %5863 = vmatmul.mubr.f32.gmra.mxu0 %v5793
          %v5864 = vpop.f32.mrf.mxu0
          %v5865 = vadd.f32 0.0, %v5864
          %v5866 = vpop.f32.mrf.mxu0
          %5867 = vdwg.mxu0
          %v5868 = vld [vmem:[%s138 + $0x130] sm:$0x1]
          %v5869 = vld [vmem:[%s138 + $0x138] sm:$0x1]
          %v5870 = vsel %vm3297, %v5865, 0.0
          %5871 = vadd.xlane.f32.xlu0 %v5870
          %v5872 = vpop.xlane.xlu0 %5871
          %v5873 = vmul.f32 %v5872, %v3305
          %v5874 = vsub.f32 %v5865, %v5873
          %v5875 = vmul.f32 %v5874, %v5874
          %v5876 = vsel %vm3297, %v5875, 0.0
          %5877 = vadd.xlane.f32.xlu0 %v5876
          %v5878 = vpop.xlane.xlu0 %5877
          %v5879 = vmul.f32 %v5878, %v3305
          %v5880 = vadd.f32 %v5879, 1e-05
          %v5881 = vrsqrt.pop %v5880
          %v5882 = vmul.f32 %v5874, %v5881
          %v5883 = vlaneseq
          %v5884 = vshrl.u32 %v5883, 7
          %v5885 = vsub.s32 0, %v5884
          %v5886 = vrot.slane %v5868, %v5885
          %v5887 = vmul.f32 %v5882, %v5886
          %v5888 = vlaneseq
          %v5889 = vshrl.u32 %v5888, 7
          %v5890 = vsub.s32 0, %v5889
          %v5891 = vrot.slane %v5869, %v5890
          %v5892 = vadd.f32 %v5887, %v5891
          %v5893 = vld [vmem:[%s138 + $0x140] sm:$0xff]
          %v5894 = vld [vmem:[%s138 + $0x148] sm:$0xff]
          %v5895 = vld [vmem:[%s138 + $0x150] sm:$0xff]
          %v5896 = vld [vmem:[%s138 + $0x158] sm:$0xff]
          %v5898 = vsel %vm3297, %v5892, 0
          %5900 = vmatprep.subr.mxu0 0.0
          %5901 = vmatpush1.msra.mxu0 0.0
          %5902 = vmatprep.subr.mxu0 0.0
          %5903 = vmatpush1.msra.mxu0 0.0
          %5904 = vmatprep.subr.mxu0 0.0
          %5905 = vmatpush1.msra.mxu0 0.0
          %5906 = vmatprep.subr.mxu0 0.0
          %5907 = vmatpush1.msra.mxu0 0.0
          %5908 = vmatprep.subr.mxu0 0.0
          %5909 = vmatpush1.msra.mxu0 0.0
          %5910 = vmatprep.subr.mxu0 0.0
          %5911 = vmatpush1.msra.mxu0 0.0
          %5912 = vmatprep.subr.mxu0 0.0
          %5913 = vmatpush1.msra.mxu0 0.0
          %5914 = vmatprep.subr.mxu0 0.0
          %5915 = vmatpush1.msra.mxu0 0.0
          %5916 = vmatprep.subr.mxu0 0.0
          %5917 = vmatpush1.msra.mxu0 0.0
          %5918 = vmatprep.subr.mxu0 0.0
          %5919 = vmatpush1.msra.mxu0 0.0
          %5920 = vmatprep.subr.mxu0 0.0
          %5921 = vmatpush1.msra.mxu0 0.0
          %5922 = vmatprep.subr.mxu0 0.0
          %5923 = vmatpush1.msra.mxu0 0.0
          %5924 = vmatprep.subr.mxu0 0.0
          %5925 = vmatpush1.msra.mxu0 %v5896
          %5926 = vmatprep.subr.mxu0 0.0
          %5927 = vmatpush1.msra.mxu0 %v5895
          %5928 = vmatprep.subr.mxu0 0.0
          %5929 = vmatpush1.msra.mxu0 %v5894
          %5930 = vmatprep.subr.mxu0 0.0
          %5931 = vmatpush1.msra.mxu0 %v5893
          %5932 = vmatprep.subr.mxu0 0.0
          %5933 = vmatpush2.msra.mxu0 0.0
          %5934 = vmatprep.subr.mxu0 0.0
          %5935 = vmatpush2.msra.mxu0 0.0
          %5936 = vmatprep.subr.mxu0 0.0
          %5937 = vmatpush2.msra.mxu0 0.0
          %5938 = vmatprep.subr.mxu0 0.0
          %5939 = vmatpush2.msra.mxu0 0.0
          %5940 = vmatprep.subr.mxu0 0.0
          %5941 = vmatpush2.msra.mxu0 0.0
          %5942 = vmatprep.subr.mxu0 0.0
          %5943 = vmatpush2.msra.mxu0 0.0
          %5944 = vmatprep.subr.mxu0 0.0
          %5945 = vmatpush2.msra.mxu0 0.0
          %5946 = vmatprep.subr.mxu0 0.0
          %5947 = vmatpush2.msra.mxu0 0.0
          %5948 = vmatprep.subr.mxu0 0.0
          %5949 = vmatpush2.msra.mxu0 0.0
          %5950 = vmatprep.subr.mxu0 0.0
          %5951 = vmatpush2.msra.mxu0 0.0
          %5952 = vmatprep.subr.mxu0 0.0
          %5953 = vmatpush2.msra.mxu0 0.0
          %5954 = vmatprep.subr.mxu0 0.0
          %5955 = vmatpush2.msra.mxu0 0.0
          %5956 = vmatprep.subr.mxu0 0.0
          %5957 = vmatpush2.msra.mxu0 0.0
          %5958 = vmatprep.subr.mxu0 0.0
          %5959 = vmatpush2.msra.mxu0 0.0
          %5960 = vmatprep.subr.mxu0 0.0
          %5961 = vmatpush2.msra.mxu0 0.0
          %5962 = vmatprep.subr.mxu0 0.0
          %5963 = vmatpush2.msra.mxu0 0.0
          %5964 = vmatprep.mubr.f32.mxu0 0.0
          %5965 = vmatmul.mubr.f32.gmra.mxu0 %v5898
          %v5966 = vpop.f32.mrf.mxu0
          %v5967 = vadd.f32 0.0, %v5966
          %v5968 = vpop.f32.mrf.mxu0
          %5969 = vdwg.mxu0
          %v5970 = vmul.f32 %v5967, %v5967
          %5971 = vadd.xlane.f32.xlu0 %v5970
          %v5972 = vpop.xlane.xlu0 %5971
          %v5973 = vadd.f32 %v5972, 1e-12
          %v5974 = vrsqrt.pop %v5973
          %v5975 = vmul.f32 %v5967, %v5974
          %5976 = vst [vmem:[%s161] sm:$0xff] %v5975
        $region40: #{maple_forward.1} parent=27 // pred_fallthru
          _
        %p5977 = scmp.lt.s32.totalorder %s16, 1
        %s5978 = scalar_select %p5977, %s16, 1
        %s5979 = smul.addr %s5978, 8
        %s5980 = scalar_lea.vmem %s2, %s5979
        // Predicated region
        $region41: #{maple_forward.1} parent=27 // pred_check
          %p5981 = pneg %p81
        $region42: #{maple_forward.1} parent=27 // pred_check_branch
          %5983 = sbr.rel (%p5981) target = $region44
        $region43: #{maple_forward.1} parent=27 // pred_region
          _
        $region44: #{maple_forward.1} parent=27 // pred_fallthru
          _
      $region28: #{maple_forward.1} parent=5 // pred_fallthru
        _
      %p5984 = scmp.le.s32.totalorder 2, %s11
      // Predicated region
      $region45: #{maple_forward.1} parent=5 // pred_check
        %p5985 = pneg %p5984
      $region46: #{maple_forward.1} parent=5 // pred_check_branch
        %5987 = sbr.rel (%p5985) target = $region48
      $region47: #{maple_forward.1} parent=5 // pred_region
        %s5988 = ssub.s32 %s11, 2
        // Predicated region
        $region49: #{maple_forward.1} parent=47 // pred_check
          %p5989 = pneg %p87
        $region50: #{maple_forward.1} parent=47 // pred_check_branch
          %5991 = sbr.rel (%p5989) target = $region52
        $region51: #{maple_forward.1} parent=47 // pred_region
          %p5992 = scmp.lt.s32.totalorder %s17, 1
          %s5993 = scalar_select %p5992, %s17, 1
          %s5994 = smul.addr %s5993, 8
          %s5995 = scalar_lea.vmem %s2, %s5994
        $region52: #{maple_forward.1} parent=47 // pred_fallthru
          _
      $region48: #{maple_forward.1} parent=5 // pred_fallthru
        _
    $region6: #{maple_forward.1} parent=1 // loop_footer
      %s15 = sadd.s32 1, %s11
    $region7: #{maple_forward.1} parent=1 // loop_footer_branch
      %10 = sbr.rel target = $region3
    $region8: #{maple_forward.1} parent=1 // loop_exit
      _
    %5996 = vsyncpa [#allocation3], 1
    %s5997 = scalar_lea.sflag [#allocation3], 1
    %5998 = vsyncpa %s5997, 1

</llo_original>
